<compile_context>
chip_gen: v6e
topology: v6e:2x2x1
jax: 0.10.0
libtpu: 0.0.40
codegen_flags: <defaults>
</compile_context>

<pallas_src>
import functools

import jax
import jax.numpy as jnp
from jax import lax
from jax.experimental import pallas as pl
from jax.experimental.pallas import tpu as pltpu


def _leaky(x, slope=0.1):
    return jnp.where(x > 0, x, slope * x)


# ---------------------------------------------------------------------------
# Fused DAB kernel: one grid step == one batch sample, everything in VMEM.
# ---------------------------------------------------------------------------
def _dab_kernel(x_ref, dyn_ref, att_ref, w1x1_ref, b1x1_ref, wc_ref, bc_ref,
                o_ref, xpad_ref, *, H, W, ksize, slope):
    HW, C = x_ref.shape
    KK = ksize * ksize
    p = ksize // 2
    Hp, Wp = H + 2 * p, W + 2 * p

    def leaky(v):
        return jnp.where(v > 0, v, slope * v)

    # Zero ONLY the halo ring, once per sample: it stays zero for all four stages,
    # the interior is fully overwritten at the start of every stage.
    if p > 0:
        row_zero = jnp.zeros((p, Wp, C), jnp.float32)
        col_zero = jnp.zeros((Hp, p, C), jnp.float32)
        xpad_ref[0:p, :, :] = row_zero
        xpad_ref[Hp - p:Hp, :, :] = row_zero
        xpad_ref[:, 0:p, :] = col_zero
        xpad_ref[:, Wp - p:Wp, :] = col_zero

    def write_interior(x_flat):
        xpad_ref[p:p + H, p:p + W, :] = x_flat.reshape(H, W, C)

    def window(t):
        # Read one shifted (H*W, C) window on demand (keeps vreg liveness low).
        dy, dx = divmod(t, ksize)
        return xpad_ref[dy:dy + H, dx:dx + W, :].reshape(HW, C)

    def da_stage(j):
        """leaky( conv1x1(leaky(depthwise(x, dyn_j))) + x * att_j ) — DA_conv + DAB relu."""
        base = j * KK
        acc = window(0) * dyn_ref[base:base + 1, :]
        for t in range(1, KK):
            acc = acc + window(t) * dyn_ref[base + t:base + t + 1, :]
        y = leaky(acc)                                                    # inner LeakyReLU
        y = jnp.dot(y, w1x1_ref[j], preferred_element_type=jnp.float32) + b1x1_ref[j]
        x_in = window(p * ksize + p)          # re-read stage input from scratch (no held live value)
        return leaky(y + x_in * att_ref[j:j + 1, :])                      # DAB outer LeakyReLU

    def conv_stage(j):
        """Standard KxK conv (default_conv) as K*K shifted depth-C MXU matmuls."""
        base = j * KK
        acc = jnp.dot(window(0), wc_ref[base], preferred_element_type=jnp.float32)
        for t in range(1, KK):
            acc = acc + jnp.dot(window(t), wc_ref[base + t],
                                preferred_element_type=jnp.float32)
        return acc + bc_ref[j]

    write_interior(x_ref[...].astype(jnp.float32))
    a = da_stage(0)                       # relu(da_conv1(x))
    write_interior(a)
    a = leaky(conv_stage(0))              # relu(conv1(.))
    write_interior(a)
    a = da_stage(1)                       # relu(da_conv2([., x1]))
    write_interior(a)
    a = conv_stage(1) + x_ref[...].astype(jnp.float32)   # conv2(.) + x0 (re-read, not held)
    o_ref[...] = a.astype(o_ref.dtype)


# ---------------------------------------------------------------------------
# Degradation heads (hoisted out of the kernel, batched over B, HIGHEST precision
# so they bit-match the reference head math).
# ---------------------------------------------------------------------------
def _deg_head(pp, d, C, K, r):
    P = lax.Precision.HIGHEST
    KK = K * K
    feat = jnp.dot(d, pp["adaptive_size_w"].T, precision=P)                       # (B, C)
    h = _leaky(jnp.dot(feat, pp["k1_w"].T, precision=P))                          # (B, C//r)
    kflat = jnp.dot(h, pp["k2_w"].T, precision=P)                                 # (B, C*KK)
    # PyTorch view(-1,1,K,K): flat layout is channel-major then tap -> tap-major (B, KK, C).
    dyn = kflat.reshape(-1, C, KK).transpose(0, 2, 1)
    f2 = jnp.dot(d, pp["ca_ac_w"].reshape(C, -1).T, precision=P)                  # (B, C)
    g = _leaky(jnp.dot(f2, pp["ca_w1"].reshape(C // r, C).T, precision=P))
    att = jax.nn.sigmoid(jnp.dot(g, pp["ca_w2"].reshape(C, C // r).T, precision=P))
    return dyn, att                                                               # (B,KK,C), (B,C)


# ---------------------------------------------------------------------------
# Wrapper: NCHW -> flat NHWC, weight re-layout, one pallas_call for the whole DAB.
# ---------------------------------------------------------------------------
def dab_forward(params, x0_nchw, x1_nchw, *, K, r):
    B, C, H, W = x0_nchw.shape
    assert K % 2 == 1, "odd kernel size assumed (DASR uses K=3)"
    KK = K * K
    HW = H * W
    p = K // 2

    x0 = jnp.transpose(x0_nchw, (0, 2, 3, 1)).reshape(B, HW, C)   # NCHW -> (B, H*W, C)
    d = jnp.mean(x1_nchw, axis=(2, 3))                            # AdaptiveAvgPool2d((1,1)) + flatten

    # Per-sample dynamic depthwise kernels and channel attention for both DA stages.
    dyn1, att1 = _deg_head(params["da1"], d, C, K, r)
    dyn2, att2 = _deg_head(params["da2"], d, C, K, r)
    dyn = jnp.concatenate([dyn1, dyn2], axis=1)                   # (B, 2*KK, C)
    att = jnp.stack([att1, att2], axis=1)                         # (B, 2, C)

    def prep_1x1(pp):
        return pp["conv_w"].reshape(C, C).T, pp["conv_b"].reshape(1, C)

    w1a, b1a = prep_1x1(params["da1"])
    w1b, b1b = prep_1x1(params["da2"])
    w1x1 = jnp.stack([w1a, w1b])                                  # (2, Cin, Cout)
    b1x1 = jnp.stack([b1a, b1b])                                  # (2, 1, C)

    def prep_conv(w, b):
        # (O, I, kh, kw) -> (kh*kw, Cin, Cout), tap-major as the kernel expects.
        return jnp.transpose(w, (2, 3, 1, 0)).reshape(KK, C, C), b.reshape(1, C)

    wc1, bc1 = prep_conv(params["conv1_w"], params["conv1_b"])
    wc2, bc2 = prep_conv(params["conv2_w"], params["conv2_b"])
    wc = jnp.concatenate([wc1, wc2], axis=0)                      # (2*KK, Cin, Cout)
    bc = jnp.stack([bc1, bc2])                                    # (2, 1, C)

    const3 = lambda b: (0, 0, 0)

    out = pl.pallas_call(
        functools.partial(_dab_kernel, H=H, W=W, ksize=K, slope=0.1),
        out_shape=jax.ShapeDtypeStruct((B, HW, C), x0.dtype),
        grid=(B,),
        in_specs=[
            pl.BlockSpec((None, HW, C), lambda b: (b, 0, 0)),        # x0, flat spatial (256, 32)
            pl.BlockSpec((None, 2 * KK, C), lambda b: (b, 0, 0)),    # dynamic depthwise kernels
            pl.BlockSpec((None, 2, C), lambda b: (b, 0, 0)),         # channel attention vectors
            pl.BlockSpec((2, C, C), const3),                         # DA 1x1 conv weights
            pl.BlockSpec((2, 1, C), const3),                         # DA 1x1 conv biases
            pl.BlockSpec((2 * KK, C, C), const3),                    # conv1/conv2 per-tap weights
            pl.BlockSpec((2, 1, C), const3),                         # conv1/conv2 biases
        ],
        out_specs=pl.BlockSpec((None, HW, C), lambda b: (b, 0, 0)),
        scratch_shapes=[pltpu.VMEM((H + 2 * p, W + 2 * p, C), jnp.float32)],
        compiler_params=pltpu.CompilerParams(
            dimension_semantics=("parallel",)),                      # B shards across v7x TCs
    )(x0, dyn, att, w1x1, b1x1, wc, bc)

    return jnp.transpose(out.reshape(B, H, W, C), (0, 3, 1, 2))      # flat NHWC -> NCHW


# ---------------------------------------------------------------------------
# Parameters (deterministic synthetic init, PyTorch weight layouts).
# ---------------------------------------------------------------------------
def init_params(key, C, K, r, deg):
    keys = iter(jax.random.split(key, 24))

    def w(shape, scale=0.05):
        return jax.random.normal(next(keys), shape, jnp.float32) * scale

    def da():
        return dict(
            adaptive_size_w=w((C, deg)),            # Linear(deg, C)
            k1_w=w((C // r, C)),                    # Linear(C, C//r)
            k2_w=w((C * K * K, C // r), scale=0.2), # Linear(C//r, C*K*K)
            conv_w=w((C, C, 1, 1)),                 # 1x1 conv
            conv_b=w((C,)),
            ca_ac_w=w((C, deg, 1, 1)),              # CA adaptive_channels
            ca_w1=w((C // r, C, 1, 1)),             # CA conv_du[0]
            ca_w2=w((C, C // r, 1, 1)),             # CA conv_du[2]
        )

    return dict(
        da1=da(), da2=da(),
        conv1_w=w((C, C, K, K)), conv1_b=w((C,)),
        conv2_w=w((C, C, K, K)), conv2_b=w((C,)),
    )


# ---------------------------------------------------------------------------
# Pure-JAX reference mirroring the PyTorch module exactly (NCHW).
# ---------------------------------------------------------------------------
def _torch_conv2d(x, w, b=None, padding=0, groups=1):
    out = lax.conv_general_dilated(
        x, w, window_strides=(1, 1),
        padding=[(padding, padding), (padding, padding)],
        dimension_numbers=("NCHW", "OIHW", "NCHW"),
        feature_group_count=groups,
        precision=lax.Precision.HIGHEST)
    if b is not None:
        out = out + b[None, :, None, None]
    return out


def _ref_da_conv(p, x0, x1, K, r):
    B, C, H, W = x0.shape
    P = lax.Precision.HIGHEST
    d = jnp.mean(x1, axis=(2, 3))
    feat = jnp.dot(d, p["adaptive_size_w"].T, precision=P)
    h = _leaky(jnp.dot(feat, p["k1_w"].T, precision=P))
    kflat = jnp.dot(h, p["k2_w"].T, precision=P)
    kernel = kflat.reshape(B * C, 1, K, K)
    out = _torch_conv2d(x0.reshape(1, B * C, H, W), kernel,
                        padding=(K - 1) // 2, groups=B * C)
    out = _leaky(out).reshape(B, C, H, W)
    out = _torch_conv2d(out, p["conv_w"], p["conv_b"], padding=0)
    f2 = jnp.dot(d, p["ca_ac_w"].reshape(C, -1).T, precision=P)
    g = _leaky(jnp.dot(f2, p["ca_w1"].reshape(C // r, C).T, precision=P))
    att = jax.nn.sigmoid(jnp.dot(g, p["ca_w2"].reshape(C, C // r).T, precision=P))
    return out + x0 * att[:, :, None, None]


def ref_dab(params, x0, x1, *, K, r):
    out = _leaky(_ref_da_conv(params["da1"], x0, x1, K, r))
    out = _leaky(_torch_conv2d(out, params["conv1_w"], params["conv1_b"], padding=K // 2))
    out = _leaky(_ref_da_conv(params["da2"], out, x1, K, r))
    out = _torch_conv2d(out, params["conv2_w"], params["conv2_b"], padding=K // 2) + x0
    return out


if __name__ == "__main__":
    B, C, H, W = 2, 32, 16, 16      # n_feat = 32
    K, R, DEG = 3, 8, 512           # kernel_size = 3, reduction = 8, deg_fsize = 512
    Hd, Wd = 4, 4                   # spatial size of the degradation feature map x[1]

    root = jax.random.PRNGKey(0)
    kx0, kx1, kp = jax.random.split(root, 3)
    x0 = jax.random.normal(kx0, (B, C, H, W), jnp.float32)
    x1 = jax.random.normal(kx1, (B, DEG, Hd, Wd), jnp.float32)
    params = init_params(kp, C, K, R, DEG)

    fwd = jax.jit(functools.partial(dab_forward, K=K, r=R))
    out = jax.block_until_ready(fwd(params, x0, x1))
    assert out.shape == (B, C, H, W)

    ref = ref_dab(params, x0, x1, K=K, r=R)
    if not jnp.allclose(out, ref, rtol=5e-3, atol=5e-3):
        err = float(jnp.max(jnp.abs(out - ref)))
        raise SystemExit(f"mismatch vs reference, max abs err = {err}")
    print("KERNEL_OK")
</pallas_src>

<mosaic_0001>
module attributes {stable_mosaic.version = 11 : i64} {
  func.func @_dab_kernel(%arg0: i32, %arg1: memref<1x256x32xf32, #tpu.memory_space<vmem>>, %arg2: memref<1x18x32xf32, #tpu.memory_space<vmem>>, %arg3: memref<1x2x32xf32, #tpu.memory_space<vmem>>, %arg4: memref<2x32x32xf32, #tpu.memory_space<vmem>>, %arg5: memref<2x1x32xf32, #tpu.memory_space<vmem>>, %arg6: memref<18x32x32xf32, #tpu.memory_space<vmem>>, %arg7: memref<2x1x32xf32, #tpu.memory_space<vmem>>, %arg8: memref<1x256x32xf32, #tpu.memory_space<vmem>>, %arg9: memref<18x18x32xf32, #tpu.memory_space<vmem>>) attributes {dimension_semantics = [#tpu.dimension_semantics<parallel>], iteration_bounds = array<i64: 2>, scalar_prefetch = 0 : i64, scratch_operands = 1 : i64, tpu.core_type = #tpu.core_type<tc>, window_params = [{transform_indices = @transform_0, window_bounds = array<i64: 1, 256, 32>}, {transform_indices = @transform_1, window_bounds = array<i64: 1, 18, 32>}, {transform_indices = @transform_2, window_bounds = array<i64: 1, 2, 32>}, {pipeline_mode = #tpu.pipeline_mode<synchronous>, transform_indices = @transform_3, window_bounds = array<i64: 2, 32, 32>}, {pipeline_mode = #tpu.pipeline_mode<synchronous>, transform_indices = @transform_4, window_bounds = array<i64: 2, 1, 32>}, {pipeline_mode = #tpu.pipeline_mode<synchronous>, transform_indices = @transform_5, window_bounds = array<i64: 18, 32, 32>}, {pipeline_mode = #tpu.pipeline_mode<synchronous>, transform_indices = @transform_6, window_bounds = array<i64: 2, 1, 32>}, {transform_indices = @transform_7, window_bounds = array<i64: 1, 256, 32>}]} {
    %cst = arith.constant 0.000000e+00 : f32
    %0 = vector.broadcast %cst : f32 to vector<1x18x32xf32>
    %cst_0 = arith.constant 0.000000e+00 : f32
    %1 = vector.broadcast %cst_0 : f32 to vector<18x1x32xf32>
    %c0 = arith.constant 0 : index
    %c0_1 = arith.constant 0 : index
    %c0_2 = arith.constant 0 : index
    %2 = vector.load %arg9[%c0, %c0_1, %c0_2] : memref<18x18x32xf32, #tpu.memory_space<vmem>>, vector<1x18x32xf32>
    tpu.vector_store %arg9[%c0, %c0_1, %c0_2], %0 {strides = array<i32>} : memref<18x18x32xf32, #tpu.memory_space<vmem>>, vector<1x18x32xf32>,
    %c17 = arith.constant 17 : index
    %c0_3 = arith.constant 0 : index
    %c0_4 = arith.constant 0 : index
    %3 = vector.load %arg9[%c17, %c0_3, %c0_4] : memref<18x18x32xf32, #tpu.memory_space<vmem>>, vector<1x18x32xf32>
    tpu.vector_store %arg9[%c17, %c0_3, %c0_4], %0 {strides = array<i32>} : memref<18x18x32xf32, #tpu.memory_space<vmem>>, vector<1x18x32xf32>,
    %c0_5 = arith.constant 0 : index
    %c0_6 = arith.constant 0 : index
    %c0_7 = arith.constant 0 : index
    %4 = vector.load %arg9[%c0_5, %c0_6, %c0_7] : memref<18x18x32xf32, #tpu.memory_space<vmem>>, vector<18x1x32xf32>
    tpu.vector_store %arg9[%c0_5, %c0_6, %c0_7], %1 {strides = array<i32>} : memref<18x18x32xf32, #tpu.memory_space<vmem>>, vector<18x1x32xf32>,
    %c0_8 = arith.constant 0 : index
    %c17_9 = arith.constant 17 : index
    %c0_10 = arith.constant 0 : index
    %5 = vector.load %arg9[%c0_8, %c17_9, %c0_10] : memref<18x18x32xf32, #tpu.memory_space<vmem>>, vector<18x1x32xf32>
    tpu.vector_store %arg9[%c0_8, %c17_9, %c0_10], %1 {strides = array<i32>} : memref<18x18x32xf32, #tpu.memory_space<vmem>>, vector<18x1x32xf32>,
    %c0_11 = arith.constant 0 : index
    %c0_12 = arith.constant 0 : index
    %c0_13 = arith.constant 0 : index
    %6 = vector.load %arg1[%c0_11, %c0_12, %c0_13] : memref<1x256x32xf32, #tpu.memory_space<vmem>>, vector<1x256x32xf32>
    %7 = vector.shape_cast %6 : vector<1x256x32xf32> to vector<256x32xf32>
    %8 = vector.shape_cast %7 : vector<256x32xf32> to vector<16x16x32xf32>
    %c1 = arith.constant 1 : index
    %c1_14 = arith.constant 1 : index
    %c0_15 = arith.constant 0 : index
    %9 = vector.load %arg9[%c1, %c1_14, %c0_15] : memref<18x18x32xf32, #tpu.memory_space<vmem>>, vector<16x16x32xf32>
    tpu.vector_store %arg9[%c1, %c1_14, %c0_15], %8 {strides = array<i32>} : memref<18x18x32xf32, #tpu.memory_space<vmem>>, vector<16x16x32xf32>,
    %c0_16 = arith.constant 0 : index
    %c0_17 = arith.constant 0 : index
    %c0_18 = arith.constant 0 : index
    %10 = vector.load %arg9[%c0_16, %c0_17, %c0_18] : memref<18x18x32xf32, #tpu.memory_space<vmem>>, vector<16x16x32xf32>
    %11 = vector.shape_cast %10 : vector<16x16x32xf32> to vector<256x32xf32>
    %c0_19 = arith.constant 0 : index
    %c0_20 = arith.constant 0 : index
    %c0_21 = arith.constant 0 : index
    %12 = vector.load %arg2[%c0_19, %c0_20, %c0_21] : memref<1x18x32xf32, #tpu.memory_space<vmem>>, vector<1x1x32xf32>
    %13 = vector.shape_cast %12 : vector<1x1x32xf32> to vector<1x32xf32>
    %14 = vector.broadcast %13 : vector<1x32xf32> to vector<256x32xf32>
    %15 = arith.mulf %11, %14 : vector<256x32xf32>
    %c0_22 = arith.constant 0 : index
    %c1_23 = arith.constant 1 : index
    %c0_24 = arith.constant 0 : index
    %16 = vector.load %arg9[%c0_22, %c1_23, %c0_24] : memref<18x18x32xf32, #tpu.memory_space<vmem>>, vector<16x16x32xf32>
    %17 = vector.shape_cast %16 : vector<16x16x32xf32> to vector<256x32xf32>
    %c0_25 = arith.constant 0 : index
    %c1_26 = arith.constant 1 : index
    %c0_27 = arith.constant 0 : index
    %18 = vector.load %arg2[%c0_25, %c1_26, %c0_27] : memref<1x18x32xf32, #tpu.memory_space<vmem>>, vector<1x1x32xf32>
    %19 = vector.shape_cast %18 : vector<1x1x32xf32> to vector<1x32xf32>
    %20 = vector.broadcast %19 : vector<1x32xf32> to vector<256x32xf32>
    %21 = arith.mulf %17, %20 : vector<256x32xf32>
    %22 = arith.addf %15, %21 : vector<256x32xf32>
    %c0_28 = arith.constant 0 : index
    %c2 = arith.constant 2 : index
    %c0_29 = arith.constant 0 : index
    %23 = vector.load %arg9[%c0_28, %c2, %c0_29] : memref<18x18x32xf32, #tpu.memory_space<vmem>>, vector<16x16x32xf32>
    %24 = vector.shape_cast %23 : vector<16x16x32xf32> to vector<256x32xf32>
    %c0_30 = arith.constant 0 : index
    %c2_31 = arith.constant 2 : index
    %c0_32 = arith.constant 0 : index
    %25 = vector.load %arg2[%c0_30, %c2_31, %c0_32] : memref<1x18x32xf32, #tpu.memory_space<vmem>>, vector<1x1x32xf32>
    %26 = vector.shape_cast %25 : vector<1x1x32xf32> to vector<1x32xf32>
    %27 = vector.broadcast %26 : vector<1x32xf32> to vector<256x32xf32>
    %28 = arith.mulf %24, %27 : vector<256x32xf32>
    %29 = arith.addf %22, %28 : vector<256x32xf32>
    %c1_33 = arith.constant 1 : index
    %c0_34 = arith.constant 0 : index
    %c0_35 = arith.constant 0 : index
    %30 = vector.load %arg9[%c1_33, %c0_34, %c0_35] : memref<18x18x32xf32, #tpu.memory_space<vmem>>, vector<16x16x32xf32>
    %31 = vector.shape_cast %30 : vector<16x16x32xf32> to vector<256x32xf32>
    %c0_36 = arith.constant 0 : index
    %c3 = arith.constant 3 : index
    %c0_37 = arith.constant 0 : index
    %32 = vector.load %arg2[%c0_36, %c3, %c0_37] : memref<1x18x32xf32, #tpu.memory_space<vmem>>, vector<1x1x32xf32>
    %33 = vector.shape_cast %32 : vector<1x1x32xf32> to vector<1x32xf32>
    %34 = vector.broadcast %33 : vector<1x32xf32> to vector<256x32xf32>
    %35 = arith.mulf %31, %34 : vector<256x32xf32>
    %36 = arith.addf %29, %35 : vector<256x32xf32>
    %c1_38 = arith.constant 1 : index
    %c1_39 = arith.constant 1 : index
    %c0_40 = arith.constant 0 : index
    %37 = vector.load %arg9[%c1_38, %c1_39, %c0_40] : memref<18x18x32xf32, #tpu.memory_space<vmem>>, vector<16x16x32xf32>
    %38 = vector.shape_cast %37 : vector<16x16x32xf32> to vector<256x32xf32>
    %c0_41 = arith.constant 0 : index
    %c4 = arith.constant 4 : index
    %c0_42 = arith.constant 0 : index
    %39 = vector.load %arg2[%c0_41, %c4, %c0_42] : memref<1x18x32xf32, #tpu.memory_space<vmem>>, vector<1x1x32xf32>
    %40 = vector.shape_cast %39 : vector<1x1x32xf32> to vector<1x32xf32>
    %41 = vector.broadcast %40 : vector<1x32xf32> to vector<256x32xf32>
    %42 = arith.mulf %38, %41 : vector<256x32xf32>
    %43 = arith.addf %36, %42 : vector<256x32xf32>
    %c1_43 = arith.constant 1 : index
    %c2_44 = arith.constant 2 : index
    %c0_45 = arith.constant 0 : index
    %44 = vector.load %arg9[%c1_43, %c2_44, %c0_45] : memref<18x18x32xf32, #tpu.memory_space<vmem>>, vector<16x16x32xf32>
    %45 = vector.shape_cast %44 : vector<16x16x32xf32> to vector<256x32xf32>
    %c0_46 = arith.constant 0 : index
    %c5 = arith.constant 5 : index
    %c0_47 = arith.constant 0 : index
    %46 = vector.load %arg2[%c0_46, %c5, %c0_47] : memref<1x18x32xf32, #tpu.memory_space<vmem>>, vector<1x1x32xf32>
    %47 = vector.shape_cast %46 : vector<1x1x32xf32> to vector<1x32xf32>
    %48 = vector.broadcast %47 : vector<1x32xf32> to vector<256x32xf32>
    %49 = arith.mulf %45, %48 : vector<256x32xf32>
    %50 = arith.addf %43, %49 : vector<256x32xf32>
    %c2_48 = arith.constant 2 : index
    %c0_49 = arith.constant 0 : index
    %c0_50 = arith.constant 0 : index
    %51 = vector.load %arg9[%c2_48, %c0_49, %c0_50] : memref<18x18x32xf32, #tpu.memory_space<vmem>>, vector<16x16x32xf32>
    %52 = vector.shape_cast %51 : vector<16x16x32xf32> to vector<256x32xf32>
    %c0_51 = arith.constant 0 : index
    %c6 = arith.constant 6 : index
    %c0_52 = arith.constant 0 : index
    %53 = vector.load %arg2[%c0_51, %c6, %c0_52] : memref<1x18x32xf32, #tpu.memory_space<vmem>>, vector<1x1x32xf32>
    %54 = vector.shape_cast %53 : vector<1x1x32xf32> to vector<1x32xf32>
    %55 = vector.broadcast %54 : vector<1x32xf32> to vector<256x32xf32>
    %56 = arith.mulf %52, %55 : vector<256x32xf32>
    %57 = arith.addf %50, %56 : vector<256x32xf32>
    %c2_53 = arith.constant 2 : index
    %c1_54 = arith.constant 1 : index
    %c0_55 = arith.constant 0 : index
    %58 = vector.load %arg9[%c2_53, %c1_54, %c0_55] : memref<18x18x32xf32, #tpu.memory_space<vmem>>, vector<16x16x32xf32>
    %59 = vector.shape_cast %58 : vector<16x16x32xf32> to vector<256x32xf32>
    %c0_56 = arith.constant 0 : index
    %c7 = arith.constant 7 : index
    %c0_57 = arith.constant 0 : index
    %60 = vector.load %arg2[%c0_56, %c7, %c0_57] : memref<1x18x32xf32, #tpu.memory_space<vmem>>, vector<1x1x32xf32>
    %61 = vector.shape_cast %60 : vector<1x1x32xf32> to vector<1x32xf32>
    %62 = vector.broadcast %61 : vector<1x32xf32> to vector<256x32xf32>
    %63 = arith.mulf %59, %62 : vector<256x32xf32>
    %64 = arith.addf %57, %63 : vector<256x32xf32>
    %c2_58 = arith.constant 2 : index
    %c2_59 = arith.constant 2 : index
    %c0_60 = arith.constant 0 : index
    %65 = vector.load %arg9[%c2_58, %c2_59, %c0_60] : memref<18x18x32xf32, #tpu.memory_space<vmem>>, vector<16x16x32xf32>
    %66 = vector.shape_cast %65 : vector<16x16x32xf32> to vector<256x32xf32>
    %c0_61 = arith.constant 0 : index
    %c8 = arith.constant 8 : index
    %c0_62 = arith.constant 0 : index
    %67 = vector.load %arg2[%c0_61, %c8, %c0_62] : memref<1x18x32xf32, #tpu.memory_space<vmem>>, vector<1x1x32xf32>
    %68 = vector.shape_cast %67 : vector<1x1x32xf32> to vector<1x32xf32>
    %69 = vector.broadcast %68 : vector<1x32xf32> to vector<256x32xf32>
    %70 = arith.mulf %66, %69 : vector<256x32xf32>
    %71 = arith.addf %64, %70 : vector<256x32xf32>
    %cst_63 = arith.constant 0.000000e+00 : f32
    %72 = vector.broadcast %cst_63 : f32 to vector<256x32xf32>
    %73 = arith.cmpf ogt, %71, %72 : vector<256x32xf32>
    %cst_64 = arith.constant 1.000000e-01 : f32
    %74 = vector.broadcast %cst_64 : f32 to vector<256x32xf32>
    %75 = arith.mulf %74, %71 : vector<256x32xf32>
    %76 = arith.select %73, %71, %75 : vector<256x32xi1>, vector<256x32xf32>
    %c0_65 = arith.constant 0 : index
    %c0_66 = arith.constant 0 : index
    %c0_67 = arith.constant 0 : index
    %77 = vector.load %arg4[%c0_65, %c0_66, %c0_67] : memref<2x32x32xf32, #tpu.memory_space<vmem>>, vector<1x32x32xf32>
    %78 = vector.shape_cast %77 : vector<1x32x32xf32> to vector<32x32xf32>
    %cst_68 = arith.constant dense<0.000000e+00> : vector<256x32xf32>
    %79 = tpu.matmul %76, %78, %cst_68 {dimension_numbers = #tpu.dot_dimension_numbers<[1], [0], [0], [1], [0, 0, 1, 1], [], []>} : vector<256x32xf32>, vector<32x32xf32>, vector<256x32xf32> -> vector<256x32xf32>
    %c0_69 = arith.constant 0 : index
    %c0_70 = arith.constant 0 : index
    %c0_71 = arith.constant 0 : index
    %80 = vector.load %arg5[%c0_69, %c0_70, %c0_71] : memref<2x1x32xf32, #tpu.memory_space<vmem>>, vector<1x1x32xf32>
    %81 = vector.shape_cast %80 : vector<1x1x32xf32> to vector<1x32xf32>
    %82 = vector.broadcast %81 : vector<1x32xf32> to vector<256x32xf32>
    %83 = arith.addf %79, %82 : vector<256x32xf32>
    %c1_72 = arith.constant 1 : index
    %c1_73 = arith.constant 1 : index
    %c0_74 = arith.constant 0 : index
    %84 = vector.load %arg9[%c1_72, %c1_73, %c0_74] : memref<18x18x32xf32, #tpu.memory_space<vmem>>, vector<16x16x32xf32>
    %85 = vector.shape_cast %84 : vector<16x16x32xf32> to vector<256x32xf32>
    %c0_75 = arith.constant 0 : index
    %c0_76 = arith.constant 0 : index
    %c0_77 = arith.constant 0 : index
    %86 = vector.load %arg3[%c0_75, %c0_76, %c0_77] : memref<1x2x32xf32, #tpu.memory_space<vmem>>, vector<1x1x32xf32>
    %87 = vector.shape_cast %86 : vector<1x1x32xf32> to vector<1x32xf32>
    %88 = vector.broadcast %87 : vector<1x32xf32> to vector<256x32xf32>
    %89 = arith.mulf %85, %88 : vector<256x32xf32>
    %90 = arith.addf %83, %89 : vector<256x32xf32>
    %cst_78 = arith.constant 0.000000e+00 : f32
    %91 = vector.broadcast %cst_78 : f32 to vector<256x32xf32>
    %92 = arith.cmpf ogt, %90, %91 : vector<256x32xf32>
    %cst_79 = arith.constant 1.000000e-01 : f32
    %93 = vector.broadcast %cst_79 : f32 to vector<256x32xf32>
    %94 = arith.mulf %93, %90 : vector<256x32xf32>
    %95 = arith.select %92, %90, %94 : vector<256x32xi1>, vector<256x32xf32>
    %96 = vector.shape_cast %95 : vector<256x32xf32> to vector<16x16x32xf32>
    %c1_80 = arith.constant 1 : index
    %c1_81 = arith.constant 1 : index
    %c0_82 = arith.constant 0 : index
    %97 = vector.load %arg9[%c1_80, %c1_81, %c0_82] : memref<18x18x32xf32, #tpu.memory_space<vmem>>, vector<16x16x32xf32>
    tpu.vector_store %arg9[%c1_80, %c1_81, %c0_82], %96 {strides = array<i32>} : memref<18x18x32xf32, #tpu.memory_space<vmem>>, vector<16x16x32xf32>,
    %c0_83 = arith.constant 0 : index
    %c0_84 = arith.constant 0 : index
    %c0_85 = arith.constant 0 : index
    %98 = vector.load %arg9[%c0_83, %c0_84, %c0_85] : memref<18x18x32xf32, #tpu.memory_space<vmem>>, vector<16x16x32xf32>
    %99 = vector.shape_cast %98 : vector<16x16x32xf32> to vector<256x32xf32>
    %c0_86 = arith.constant 0 : index
    %c0_87 = arith.constant 0 : index
    %c0_88 = arith.constant 0 : index
    %100 = vector.load %arg6[%c0_86, %c0_87, %c0_88] : memref<18x32x32xf32, #tpu.memory_space<vmem>>, vector<1x32x32xf32>
    %101 = vector.shape_cast %100 : vector<1x32x32xf32> to vector<32x32xf32>
    %cst_89 = arith.constant dense<0.000000e+00> : vector<256x32xf32>
    %102 = tpu.matmul %99, %101, %cst_89 {dimension_numbers = #tpu.dot_dimension_numbers<[1], [0], [0], [1], [0, 0, 1, 1], [], []>} : vector<256x32xf32>, vector<32x32xf32>, vector<256x32xf32> -> vector<256x32xf32>
    %c0_90 = arith.constant 0 : index
    %c1_91 = arith.constant 1 : index
    %c0_92 = arith.constant 0 : index
    %103 = vector.load %arg9[%c0_90, %c1_91, %c0_92] : memref<18x18x32xf32, #tpu.memory_space<vmem>>, vector<16x16x32xf32>
    %104 = vector.shape_cast %103 : vector<16x16x32xf32> to vector<256x32xf32>
    %c1_93 = arith.constant 1 : index
    %c0_94 = arith.constant 0 : index
    %c0_95 = arith.constant 0 : index
    %105 = vector.load %arg6[%c1_93, %c0_94, %c0_95] : memref<18x32x32xf32, #tpu.memory_space<vmem>>, vector<1x32x32xf32>
    %106 = vector.shape_cast %105 : vector<1x32x32xf32> to vector<32x32xf32>
    %cst_96 = arith.constant dense<0.000000e+00> : vector<256x32xf32>
    %107 = tpu.matmul %104, %106, %cst_96 {dimension_numbers = #tpu.dot_dimension_numbers<[1], [0], [0], [1], [0, 0, 1, 1], [], []>} : vector<256x32xf32>, vector<32x32xf32>, vector<256x32xf32> -> vector<256x32xf32>
    %108 = arith.addf %102, %107 : vector<256x32xf32>
    %c0_97 = arith.constant 0 : index
    %c2_98 = arith.constant 2 : index
    %c0_99 = arith.constant 0 : index
    %109 = vector.load %arg9[%c0_97, %c2_98, %c0_99] : memref<18x18x32xf32, #tpu.memory_space<vmem>>, vector<16x16x32xf32>
    %110 = vector.shape_cast %109 : vector<16x16x32xf32> to vector<256x32xf32>
    %c2_100 = arith.constant 2 : index
    %c0_101 = arith.constant 0 : index
    %c0_102 = arith.constant 0 : index
    %111 = vector.load %arg6[%c2_100, %c0_101, %c0_102] : memref<18x32x32xf32, #tpu.memory_space<vmem>>, vector<1x32x32xf32>
    %112 = vector.shape_cast %111 : vector<1x32x32xf32> to vector<32x32xf32>
    %cst_103 = arith.constant dense<0.000000e+00> : vector<256x32xf32>
    %113 = tpu.matmul %110, %112, %cst_103 {dimension_numbers = #tpu.dot_dimension_numbers<[1], [0], [0], [1], [0, 0, 1, 1], [], []>} : vector<256x32xf32>, vector<32x32xf32>, vector<256x32xf32> -> vector<256x32xf32>
    %114 = arith.addf %108, %113 : vector<256x32xf32>
    %c1_104 = arith.constant 1 : index
    %c0_105 = arith.constant 0 : index
    %c0_106 = arith.constant 0 : index
    %115 = vector.load %arg9[%c1_104, %c0_105, %c0_106] : memref<18x18x32xf32, #tpu.memory_space<vmem>>, vector<16x16x32xf32>
    %116 = vector.shape_cast %115 : vector<16x16x32xf32> to vector<256x32xf32>
    %c3_107 = arith.constant 3 : index
    %c0_108 = arith.constant 0 : index
    %c0_109 = arith.constant 0 : index
    %117 = vector.load %arg6[%c3_107, %c0_108, %c0_109] : memref<18x32x32xf32, #tpu.memory_space<vmem>>, vector<1x32x32xf32>
    %118 = vector.shape_cast %117 : vector<1x32x32xf32> to vector<32x32xf32>
    %cst_110 = arith.constant dense<0.000000e+00> : vector<256x32xf32>
    %119 = tpu.matmul %116, %118, %cst_110 {dimension_numbers = #tpu.dot_dimension_numbers<[1], [0], [0], [1], [0, 0, 1, 1], [], []>} : vector<256x32xf32>, vector<32x32xf32>, vector<256x32xf32> -> vector<256x32xf32>
    %120 = arith.addf %114, %119 : vector<256x32xf32>
    %c1_111 = arith.constant 1 : index
    %c1_112 = arith.constant 1 : index
    %c0_113 = arith.constant 0 : index
    %121 = vector.load %arg9[%c1_111, %c1_112, %c0_113] : memref<18x18x32xf32, #tpu.memory_space<vmem>>, vector<16x16x32xf32>
    %122 = vector.shape_cast %121 : vector<16x16x32xf32> to vector<256x32xf32>
    %c4_114 = arith.constant 4 : index
    %c0_115 = arith.constant 0 : index
    %c0_116 = arith.constant 0 : index
    %123 = vector.load %arg6[%c4_114, %c0_115, %c0_116] : memref<18x32x32xf32, #tpu.memory_space<vmem>>, vector<1x32x32xf32>
    %124 = vector.shape_cast %123 : vector<1x32x32xf32> to vector<32x32xf32>
    %cst_117 = arith.constant dense<0.000000e+00> : vector<256x32xf32>
    %125 = tpu.matmul %122, %124, %cst_117 {dimension_numbers = #tpu.dot_dimension_numbers<[1], [0], [0], [1], [0, 0, 1, 1], [], []>} : vector<256x32xf32>, vector<32x32xf32>, vector<256x32xf32> -> vector<256x32xf32>
    %126 = arith.addf %120, %125 : vector<256x32xf32>
    %c1_118 = arith.constant 1 : index
    %c2_119 = arith.constant 2 : index
    %c0_120 = arith.constant 0 : index
    %127 = vector.load %arg9[%c1_118, %c2_119, %c0_120] : memref<18x18x32xf32, #tpu.memory_space<vmem>>, vector<16x16x32xf32>
    %128 = vector.shape_cast %127 : vector<16x16x32xf32> to vector<256x32xf32>
    %c5_121 = arith.constant 5 : index
    %c0_122 = arith.constant 0 : index
    %c0_123 = arith.constant 0 : index
    %129 = vector.load %arg6[%c5_121, %c0_122, %c0_123] : memref<18x32x32xf32, #tpu.memory_space<vmem>>, vector<1x32x32xf32>
    %130 = vector.shape_cast %129 : vector<1x32x32xf32> to vector<32x32xf32>
    %cst_124 = arith.constant dense<0.000000e+00> : vector<256x32xf32>
    %131 = tpu.matmul %128, %130, %cst_124 {dimension_numbers = #tpu.dot_dimension_numbers<[1], [0], [0], [1], [0, 0, 1, 1], [], []>} : vector<256x32xf32>, vector<32x32xf32>, vector<256x32xf32> -> vector<256x32xf32>
    %132 = arith.addf %126, %131 : vector<256x32xf32>
    %c2_125 = arith.constant 2 : index
    %c0_126 = arith.constant 0 : index
    %c0_127 = arith.constant 0 : index
    %133 = vector.load %arg9[%c2_125, %c0_126, %c0_127] : memref<18x18x32xf32, #tpu.memory_space<vmem>>, vector<16x16x32xf32>
    %134 = vector.shape_cast %133 : vector<16x16x32xf32> to vector<256x32xf32>
    %c6_128 = arith.constant 6 : index
    %c0_129 = arith.constant 0 : index
    %c0_130 = arith.constant 0 : index
    %135 = vector.load %arg6[%c6_128, %c0_129, %c0_130] : memref<18x32x32xf32, #tpu.memory_space<vmem>>, vector<1x32x32xf32>
    %136 = vector.shape_cast %135 : vector<1x32x32xf32> to vector<32x32xf32>
    %cst_131 = arith.constant dense<0.000000e+00> : vector<256x32xf32>
    %137 = tpu.matmul %134, %136, %cst_131 {dimension_numbers = #tpu.dot_dimension_numbers<[1], [0], [0], [1], [0, 0, 1, 1], [], []>} : vector<256x32xf32>, vector<32x32xf32>, vector<256x32xf32> -> vector<256x32xf32>
    %138 = arith.addf %132, %137 : vector<256x32xf32>
    %c2_132 = arith.constant 2 : index
    %c1_133 = arith.constant 1 : index
    %c0_134 = arith.constant 0 : index
    %139 = vector.load %arg9[%c2_132, %c1_133, %c0_134] : memref<18x18x32xf32, #tpu.memory_space<vmem>>, vector<16x16x32xf32>
    %140 = vector.shape_cast %139 : vector<16x16x32xf32> to vector<256x32xf32>
    %c7_135 = arith.constant 7 : index
    %c0_136 = arith.constant 0 : index
    %c0_137 = arith.constant 0 : index
    %141 = vector.load %arg6[%c7_135, %c0_136, %c0_137] : memref<18x32x32xf32, #tpu.memory_space<vmem>>, vector<1x32x32xf32>
    %142 = vector.shape_cast %141 : vector<1x32x32xf32> to vector<32x32xf32>
    %cst_138 = arith.constant dense<0.000000e+00> : vector<256x32xf32>
    %143 = tpu.matmul %140, %142, %cst_138 {dimension_numbers = #tpu.dot_dimension_numbers<[1], [0], [0], [1], [0, 0, 1, 1], [], []>} : vector<256x32xf32>, vector<32x32xf32>, vector<256x32xf32> -> vector<256x32xf32>
    %144 = arith.addf %138, %143 : vector<256x32xf32>
    %c2_139 = arith.constant 2 : index
    %c2_140 = arith.constant 2 : index
    %c0_141 = arith.constant 0 : index
    %145 = vector.load %arg9[%c2_139, %c2_140, %c0_141] : memref<18x18x32xf32, #tpu.memory_space<vmem>>, vector<16x16x32xf32>
    %146 = vector.shape_cast %145 : vector<16x16x32xf32> to vector<256x32xf32>
    %c8_142 = arith.constant 8 : index
    %c0_143 = arith.constant 0 : index
    %c0_144 = arith.constant 0 : index
    %147 = vector.load %arg6[%c8_142, %c0_143, %c0_144] : memref<18x32x32xf32, #tpu.memory_space<vmem>>, vector<1x32x32xf32>
    %148 = vector.shape_cast %147 : vector<1x32x32xf32> to vector<32x32xf32>
    %cst_145 = arith.constant dense<0.000000e+00> : vector<256x32xf32>
    %149 = tpu.matmul %146, %148, %cst_145 {dimension_numbers = #tpu.dot_dimension_numbers<[1], [0], [0], [1], [0, 0, 1, 1], [], []>} : vector<256x32xf32>, vector<32x32xf32>, vector<256x32xf32> -> vector<256x32xf32>
    %150 = arith.addf %144, %149 : vector<256x32xf32>
    %c0_146 = arith.constant 0 : index
    %c0_147 = arith.constant 0 : index
    %c0_148 = arith.constant 0 : index
    %151 = vector.load %arg7[%c0_146, %c0_147, %c0_148] : memref<2x1x32xf32, #tpu.memory_space<vmem>>, vector<1x1x32xf32>
    %152 = vector.shape_cast %151 : vector<1x1x32xf32> to vector<1x32xf32>
    %153 = vector.broadcast %152 : vector<1x32xf32> to vector<256x32xf32>
    %154 = arith.addf %150, %153 : vector<256x32xf32>
    %cst_149 = arith.constant 0.000000e+00 : f32
    %155 = vector.broadcast %cst_149 : f32 to vector<256x32xf32>
    %156 = arith.cmpf ogt, %154, %155 : vector<256x32xf32>
    %cst_150 = arith.constant 1.000000e-01 : f32
    %157 = vector.broadcast %cst_150 : f32 to vector<256x32xf32>
    %158 = arith.mulf %157, %154 : vector<256x32xf32>
    %159 = arith.select %156, %154, %158 : vector<256x32xi1>, vector<256x32xf32>
    %160 = vector.shape_cast %159 : vector<256x32xf32> to vector<16x16x32xf32>
    %c1_151 = arith.constant 1 : index
    %c1_152 = arith.constant 1 : index
    %c0_153 = arith.constant 0 : index
    %161 = vector.load %arg9[%c1_151, %c1_152, %c0_153] : memref<18x18x32xf32, #tpu.memory_space<vmem>>, vector<16x16x32xf32>
    tpu.vector_store %arg9[%c1_151, %c1_152, %c0_153], %160 {strides = array<i32>} : memref<18x18x32xf32, #tpu.memory_space<vmem>>, vector<16x16x32xf32>,
    %c0_154 = arith.constant 0 : index
    %c0_155 = arith.constant 0 : index
    %c0_156 = arith.constant 0 : index
    %162 = vector.load %arg9[%c0_154, %c0_155, %c0_156] : memref<18x18x32xf32, #tpu.memory_space<vmem>>, vector<16x16x32xf32>
    %163 = vector.shape_cast %162 : vector<16x16x32xf32> to vector<256x32xf32>
    %c0_157 = arith.constant 0 : index
    %c9 = arith.constant 9 : index
    %c0_158 = arith.constant 0 : index
    %164 = vector.load %arg2[%c0_157, %c9, %c0_158] : memref<1x18x32xf32, #tpu.memory_space<vmem>>, vector<1x1x32xf32>
    %165 = vector.shape_cast %164 : vector<1x1x32xf32> to vector<1x32xf32>
    %166 = vector.broadcast %165 : vector<1x32xf32> to vector<256x32xf32>
    %167 = arith.mulf %163, %166 : vector<256x32xf32>
    %c0_159 = arith.constant 0 : index
    %c1_160 = arith.constant 1 : index
    %c0_161 = arith.constant 0 : index
    %168 = vector.load %arg9[%c0_159, %c1_160, %c0_161] : memref<18x18x32xf32, #tpu.memory_space<vmem>>, vector<16x16x32xf32>
    %169 = vector.shape_cast %168 : vector<16x16x32xf32> to vector<256x32xf32>
    %c0_162 = arith.constant 0 : index
    %c10 = arith.constant 10 : index
    %c0_163 = arith.constant 0 : index
    %170 = vector.load %arg2[%c0_162, %c10, %c0_163] : memref<1x18x32xf32, #tpu.memory_space<vmem>>, vector<1x1x32xf32>
    %171 = vector.shape_cast %170 : vector<1x1x32xf32> to vector<1x32xf32>
    %172 = vector.broadcast %171 : vector<1x32xf32> to vector<256x32xf32>
    %173 = arith.mulf %169, %172 : vector<256x32xf32>
    %174 = arith.addf %167, %173 : vector<256x32xf32>
    %c0_164 = arith.constant 0 : index
    %c2_165 = arith.constant 2 : index
    %c0_166 = arith.constant 0 : index
    %175 = vector.load %arg9[%c0_164, %c2_165, %c0_166] : memref<18x18x32xf32, #tpu.memory_space<vmem>>, vector<16x16x32xf32>
    %176 = vector.shape_cast %175 : vector<16x16x32xf32> to vector<256x32xf32>
    %c0_167 = arith.constant 0 : index
    %c11 = arith.constant 11 : index
    %c0_168 = arith.constant 0 : index
    %177 = vector.load %arg2[%c0_167, %c11, %c0_168] : memref<1x18x32xf32, #tpu.memory_space<vmem>>, vector<1x1x32xf32>
    %178 = vector.shape_cast %177 : vector<1x1x32xf32> to vector<1x32xf32>
    %179 = vector.broadcast %178 : vector<1x32xf32> to vector<256x32xf32>
    %180 = arith.mulf %176, %179 : vector<256x32xf32>
    %181 = arith.addf %174, %180 : vector<256x32xf32>
    %c1_169 = arith.constant 1 : index
    %c0_170 = arith.constant 0 : index
    %c0_171 = arith.constant 0 : index
    %182 = vector.load %arg9[%c1_169, %c0_170, %c0_171] : memref<18x18x32xf32, #tpu.memory_space<vmem>>, vector<16x16x32xf32>
    %183 = vector.shape_cast %182 : vector<16x16x32xf32> to vector<256x32xf32>
    %c0_172 = arith.constant 0 : index
    %c12 = arith.constant 12 : index
    %c0_173 = arith.constant 0 : index
    %184 = vector.load %arg2[%c0_172, %c12, %c0_173] : memref<1x18x32xf32, #tpu.memory_space<vmem>>, vector<1x1x32xf32>
    %185 = vector.shape_cast %184 : vector<1x1x32xf32> to vector<1x32xf32>
    %186 = vector.broadcast %185 : vector<1x32xf32> to vector<256x32xf32>
    %187 = arith.mulf %183, %186 : vector<256x32xf32>
    %188 = arith.addf %181, %187 : vector<256x32xf32>
    %c1_174 = arith.constant 1 : index
    %c1_175 = arith.constant 1 : index
    %c0_176 = arith.constant 0 : index
    %189 = vector.load %arg9[%c1_174, %c1_175, %c0_176] : memref<18x18x32xf32, #tpu.memory_space<vmem>>, vector<16x16x32xf32>
    %190 = vector.shape_cast %189 : vector<16x16x32xf32> to vector<256x32xf32>
    %c0_177 = arith.constant 0 : index
    %c13 = arith.constant 13 : index
    %c0_178 = arith.constant 0 : index
    %191 = vector.load %arg2[%c0_177, %c13, %c0_178] : memref<1x18x32xf32, #tpu.memory_space<vmem>>, vector<1x1x32xf32>
    %192 = vector.shape_cast %191 : vector<1x1x32xf32> to vector<1x32xf32>
    %193 = vector.broadcast %192 : vector<1x32xf32> to vector<256x32xf32>
    %194 = arith.mulf %190, %193 : vector<256x32xf32>
    %195 = arith.addf %188, %194 : vector<256x32xf32>
    %c1_179 = arith.constant 1 : index
    %c2_180 = arith.constant 2 : index
    %c0_181 = arith.constant 0 : index
    %196 = vector.load %arg9[%c1_179, %c2_180, %c0_181] : memref<18x18x32xf32, #tpu.memory_space<vmem>>, vector<16x16x32xf32>
    %197 = vector.shape_cast %196 : vector<16x16x32xf32> to vector<256x32xf32>
    %c0_182 = arith.constant 0 : index
    %c14 = arith.constant 14 : index
    %c0_183 = arith.constant 0 : index
    %198 = vector.load %arg2[%c0_182, %c14, %c0_183] : memref<1x18x32xf32, #tpu.memory_space<vmem>>, vector<1x1x32xf32>
    %199 = vector.shape_cast %198 : vector<1x1x32xf32> to vector<1x32xf32>
    %200 = vector.broadcast %199 : vector<1x32xf32> to vector<256x32xf32>
    %201 = arith.mulf %197, %200 : vector<256x32xf32>
    %202 = arith.addf %195, %201 : vector<256x32xf32>
    %c2_184 = arith.constant 2 : index
    %c0_185 = arith.constant 0 : index
    %c0_186 = arith.constant 0 : index
    %203 = vector.load %arg9[%c2_184, %c0_185, %c0_186] : memref<18x18x32xf32, #tpu.memory_space<vmem>>, vector<16x16x32xf32>
    %204 = vector.shape_cast %203 : vector<16x16x32xf32> to vector<256x32xf32>
    %c0_187 = arith.constant 0 : index
    %c15 = arith.constant 15 : index
    %c0_188 = arith.constant 0 : index
    %205 = vector.load %arg2[%c0_187, %c15, %c0_188] : memref<1x18x32xf32, #tpu.memory_space<vmem>>, vector<1x1x32xf32>
    %206 = vector.shape_cast %205 : vector<1x1x32xf32> to vector<1x32xf32>
    %207 = vector.broadcast %206 : vector<1x32xf32> to vector<256x32xf32>
    %208 = arith.mulf %204, %207 : vector<256x32xf32>
    %209 = arith.addf %202, %208 : vector<256x32xf32>
    %c2_189 = arith.constant 2 : index
    %c1_190 = arith.constant 1 : index
    %c0_191 = arith.constant 0 : index
    %210 = vector.load %arg9[%c2_189, %c1_190, %c0_191] : memref<18x18x32xf32, #tpu.memory_space<vmem>>, vector<16x16x32xf32>
    %211 = vector.shape_cast %210 : vector<16x16x32xf32> to vector<256x32xf32>
    %c0_192 = arith.constant 0 : index
    %c16 = arith.constant 16 : index
    %c0_193 = arith.constant 0 : index
    %212 = vector.load %arg2[%c0_192, %c16, %c0_193] : memref<1x18x32xf32, #tpu.memory_space<vmem>>, vector<1x1x32xf32>
    %213 = vector.shape_cast %212 : vector<1x1x32xf32> to vector<1x32xf32>
    %214 = vector.broadcast %213 : vector<1x32xf32> to vector<256x32xf32>
    %215 = arith.mulf %211, %214 : vector<256x32xf32>
    %216 = arith.addf %209, %215 : vector<256x32xf32>
    %c2_194 = arith.constant 2 : index
    %c2_195 = arith.constant 2 : index
    %c0_196 = arith.constant 0 : index
    %217 = vector.load %arg9[%c2_194, %c2_195, %c0_196] : memref<18x18x32xf32, #tpu.memory_space<vmem>>, vector<16x16x32xf32>
    %218 = vector.shape_cast %217 : vector<16x16x32xf32> to vector<256x32xf32>
    %c0_197 = arith.constant 0 : index
    %c17_198 = arith.constant 17 : index
    %c0_199 = arith.constant 0 : index
    %219 = vector.load %arg2[%c0_197, %c17_198, %c0_199] : memref<1x18x32xf32, #tpu.memory_space<vmem>>, vector<1x1x32xf32>
    %220 = vector.shape_cast %219 : vector<1x1x32xf32> to vector<1x32xf32>
    %221 = vector.broadcast %220 : vector<1x32xf32> to vector<256x32xf32>
    %222 = arith.mulf %218, %221 : vector<256x32xf32>
    %223 = arith.addf %216, %222 : vector<256x32xf32>
    %cst_200 = arith.constant 0.000000e+00 : f32
    %224 = vector.broadcast %cst_200 : f32 to vector<256x32xf32>
    %225 = arith.cmpf ogt, %223, %224 : vector<256x32xf32>
    %cst_201 = arith.constant 1.000000e-01 : f32
    %226 = vector.broadcast %cst_201 : f32 to vector<256x32xf32>
    %227 = arith.mulf %226, %223 : vector<256x32xf32>
    %228 = arith.select %225, %223, %227 : vector<256x32xi1>, vector<256x32xf32>
    %c1_202 = arith.constant 1 : index
    %c0_203 = arith.constant 0 : index
    %c0_204 = arith.constant 0 : index
    %229 = vector.load %arg4[%c1_202, %c0_203, %c0_204] : memref<2x32x32xf32, #tpu.memory_space<vmem>>, vector<1x32x32xf32>
    %230 = vector.shape_cast %229 : vector<1x32x32xf32> to vector<32x32xf32>
    %cst_205 = arith.constant dense<0.000000e+00> : vector<256x32xf32>
    %231 = tpu.matmul %228, %230, %cst_205 {dimension_numbers = #tpu.dot_dimension_numbers<[1], [0], [0], [1], [0, 0, 1, 1], [], []>} : vector<256x32xf32>, vector<32x32xf32>, vector<256x32xf32> -> vector<256x32xf32>
    %c1_206 = arith.constant 1 : index
    %c0_207 = arith.constant 0 : index
    %c0_208 = arith.constant 0 : index
    %232 = vector.load %arg5[%c1_206, %c0_207, %c0_208] : memref<2x1x32xf32, #tpu.memory_space<vmem>>, vector<1x1x32xf32>
    %233 = vector.shape_cast %232 : vector<1x1x32xf32> to vector<1x32xf32>
    %234 = vector.broadcast %233 : vector<1x32xf32> to vector<256x32xf32>
    %235 = arith.addf %231, %234 : vector<256x32xf32>
    %c1_209 = arith.constant 1 : index
    %c1_210 = arith.constant 1 : index
    %c0_211 = arith.constant 0 : index
    %236 = vector.load %arg9[%c1_209, %c1_210, %c0_211] : memref<18x18x32xf32, #tpu.memory_space<vmem>>, vector<16x16x32xf32>
    %237 = vector.shape_cast %236 : vector<16x16x32xf32> to vector<256x32xf32>
    %c0_212 = arith.constant 0 : index
    %c1_213 = arith.constant 1 : index
    %c0_214 = arith.constant 0 : index
    %238 = vector.load %arg3[%c0_212, %c1_213, %c0_214] : memref<1x2x32xf32, #tpu.memory_space<vmem>>, vector<1x1x32xf32>
    %239 = vector.shape_cast %238 : vector<1x1x32xf32> to vector<1x32xf32>
    %240 = vector.broadcast %239 : vector<1x32xf32> to vector<256x32xf32>
    %241 = arith.mulf %237, %240 : vector<256x32xf32>
    %242 = arith.addf %235, %241 : vector<256x32xf32>
    %cst_215 = arith.constant 0.000000e+00 : f32
    %243 = vector.broadcast %cst_215 : f32 to vector<256x32xf32>
    %244 = arith.cmpf ogt, %242, %243 : vector<256x32xf32>
    %cst_216 = arith.constant 1.000000e-01 : f32
    %245 = vector.broadcast %cst_216 : f32 to vector<256x32xf32>
    %246 = arith.mulf %245, %242 : vector<256x32xf32>
    %247 = arith.select %244, %242, %246 : vector<256x32xi1>, vector<256x32xf32>
    %248 = vector.shape_cast %247 : vector<256x32xf32> to vector<16x16x32xf32>
    %c1_217 = arith.constant 1 : index
    %c1_218 = arith.constant 1 : index
    %c0_219 = arith.constant 0 : index
    %249 = vector.load %arg9[%c1_217, %c1_218, %c0_219] : memref<18x18x32xf32, #tpu.memory_space<vmem>>, vector<16x16x32xf32>
    tpu.vector_store %arg9[%c1_217, %c1_218, %c0_219], %248 {strides = array<i32>} : memref<18x18x32xf32, #tpu.memory_space<vmem>>, vector<16x16x32xf32>,
    %c0_220 = arith.constant 0 : index
    %c0_221 = arith.constant 0 : index
    %c0_222 = arith.constant 0 : index
    %250 = vector.load %arg9[%c0_220, %c0_221, %c0_222] : memref<18x18x32xf32, #tpu.memory_space<vmem>>, vector<16x16x32xf32>
    %251 = vector.shape_cast %250 : vector<16x16x32xf32> to vector<256x32xf32>
    %c9_223 = arith.constant 9 : index
    %c0_224 = arith.constant 0 : index
    %c0_225 = arith.constant 0 : index
    %252 = vector.load %arg6[%c9_223, %c0_224, %c0_225] : memref<18x32x32xf32, #tpu.memory_space<vmem>>, vector<1x32x32xf32>
    %253 = vector.shape_cast %252 : vector<1x32x32xf32> to vector<32x32xf32>
    %cst_226 = arith.constant dense<0.000000e+00> : vector<256x32xf32>
    %254 = tpu.matmul %251, %253, %cst_226 {dimension_numbers = #tpu.dot_dimension_numbers<[1], [0], [0], [1], [0, 0, 1, 1], [], []>} : vector<256x32xf32>, vector<32x32xf32>, vector<256x32xf32> -> vector<256x32xf32>
    %c0_227 = arith.constant 0 : index
    %c1_228 = arith.constant 1 : index
    %c0_229 = arith.constant 0 : index
    %255 = vector.load %arg9[%c0_227, %c1_228, %c0_229] : memref<18x18x32xf32, #tpu.memory_space<vmem>>, vector<16x16x32xf32>
    %256 = vector.shape_cast %255 : vector<16x16x32xf32> to vector<256x32xf32>
    %c10_230 = arith.constant 10 : index
    %c0_231 = arith.constant 0 : index
    %c0_232 = arith.constant 0 : index
    %257 = vector.load %arg6[%c10_230, %c0_231, %c0_232] : memref<18x32x32xf32, #tpu.memory_space<vmem>>, vector<1x32x32xf32>
    %258 = vector.shape_cast %257 : vector<1x32x32xf32> to vector<32x32xf32>
    %cst_233 = arith.constant dense<0.000000e+00> : vector<256x32xf32>
    %259 = tpu.matmul %256, %258, %cst_233 {dimension_numbers = #tpu.dot_dimension_numbers<[1], [0], [0], [1], [0, 0, 1, 1], [], []>} : vector<256x32xf32>, vector<32x32xf32>, vector<256x32xf32> -> vector<256x32xf32>
    %260 = arith.addf %254, %259 : vector<256x32xf32>
    %c0_234 = arith.constant 0 : index
    %c2_235 = arith.constant 2 : index
    %c0_236 = arith.constant 0 : index
    %261 = vector.load %arg9[%c0_234, %c2_235, %c0_236] : memref<18x18x32xf32, #tpu.memory_space<vmem>>, vector<16x16x32xf32>
    %262 = vector.shape_cast %261 : vector<16x16x32xf32> to vector<256x32xf32>
    %c11_237 = arith.constant 11 : index
    %c0_238 = arith.constant 0 : index
    %c0_239 = arith.constant 0 : index
    %263 = vector.load %arg6[%c11_237, %c0_238, %c0_239] : memref<18x32x32xf32, #tpu.memory_space<vmem>>, vector<1x32x32xf32>
    %264 = vector.shape_cast %263 : vector<1x32x32xf32> to vector<32x32xf32>
    %cst_240 = arith.constant dense<0.000000e+00> : vector<256x32xf32>
    %265 = tpu.matmul %262, %264, %cst_240 {dimension_numbers = #tpu.dot_dimension_numbers<[1], [0], [0], [1], [0, 0, 1, 1], [], []>} : vector<256x32xf32>, vector<32x32xf32>, vector<256x32xf32> -> vector<256x32xf32>
    %266 = arith.addf %260, %265 : vector<256x32xf32>
    %c1_241 = arith.constant 1 : index
    %c0_242 = arith.constant 0 : index
    %c0_243 = arith.constant 0 : index
    %267 = vector.load %arg9[%c1_241, %c0_242, %c0_243] : memref<18x18x32xf32, #tpu.memory_space<vmem>>, vector<16x16x32xf32>
    %268 = vector.shape_cast %267 : vector<16x16x32xf32> to vector<256x32xf32>
    %c12_244 = arith.constant 12 : index
    %c0_245 = arith.constant 0 : index
    %c0_246 = arith.constant 0 : index
    %269 = vector.load %arg6[%c12_244, %c0_245, %c0_246] : memref<18x32x32xf32, #tpu.memory_space<vmem>>, vector<1x32x32xf32>
    %270 = vector.shape_cast %269 : vector<1x32x32xf32> to vector<32x32xf32>
    %cst_247 = arith.constant dense<0.000000e+00> : vector<256x32xf32>
    %271 = tpu.matmul %268, %270, %cst_247 {dimension_numbers = #tpu.dot_dimension_numbers<[1], [0], [0], [1], [0, 0, 1, 1], [], []>} : vector<256x32xf32>, vector<32x32xf32>, vector<256x32xf32> -> vector<256x32xf32>
    %272 = arith.addf %266, %271 : vector<256x32xf32>
    %c1_248 = arith.constant 1 : index
    %c1_249 = arith.constant 1 : index
    %c0_250 = arith.constant 0 : index
    %273 = vector.load %arg9[%c1_248, %c1_249, %c0_250] : memref<18x18x32xf32, #tpu.memory_space<vmem>>, vector<16x16x32xf32>
    %274 = vector.shape_cast %273 : vector<16x16x32xf32> to vector<256x32xf32>
    %c13_251 = arith.constant 13 : index
    %c0_252 = arith.constant 0 : index
    %c0_253 = arith.constant 0 : index
    %275 = vector.load %arg6[%c13_251, %c0_252, %c0_253] : memref<18x32x32xf32, #tpu.memory_space<vmem>>, vector<1x32x32xf32>
    %276 = vector.shape_cast %275 : vector<1x32x32xf32> to vector<32x32xf32>
    %cst_254 = arith.constant dense<0.000000e+00> : vector<256x32xf32>
    %277 = tpu.matmul %274, %276, %cst_254 {dimension_numbers = #tpu.dot_dimension_numbers<[1], [0], [0], [1], [0, 0, 1, 1], [], []>} : vector<256x32xf32>, vector<32x32xf32>, vector<256x32xf32> -> vector<256x32xf32>
    %278 = arith.addf %272, %277 : vector<256x32xf32>
    %c1_255 = arith.constant 1 : index
    %c2_256 = arith.constant 2 : index
    %c0_257 = arith.constant 0 : index
    %279 = vector.load %arg9[%c1_255, %c2_256, %c0_257] : memref<18x18x32xf32, #tpu.memory_space<vmem>>, vector<16x16x32xf32>
    %280 = vector.shape_cast %279 : vector<16x16x32xf32> to vector<256x32xf32>
    %c14_258 = arith.constant 14 : index
    %c0_259 = arith.constant 0 : index
    %c0_260 = arith.constant 0 : index
    %281 = vector.load %arg6[%c14_258, %c0_259, %c0_260] : memref<18x32x32xf32, #tpu.memory_space<vmem>>, vector<1x32x32xf32>
    %282 = vector.shape_cast %281 : vector<1x32x32xf32> to vector<32x32xf32>
    %cst_261 = arith.constant dense<0.000000e+00> : vector<256x32xf32>
    %283 = tpu.matmul %280, %282, %cst_261 {dimension_numbers = #tpu.dot_dimension_numbers<[1], [0], [0], [1], [0, 0, 1, 1], [], []>} : vector<256x32xf32>, vector<32x32xf32>, vector<256x32xf32> -> vector<256x32xf32>
    %284 = arith.addf %278, %283 : vector<256x32xf32>
    %c2_262 = arith.constant 2 : index
    %c0_263 = arith.constant 0 : index
    %c0_264 = arith.constant 0 : index
    %285 = vector.load %arg9[%c2_262, %c0_263, %c0_264] : memref<18x18x32xf32, #tpu.memory_space<vmem>>, vector<16x16x32xf32>
    %286 = vector.shape_cast %285 : vector<16x16x32xf32> to vector<256x32xf32>
    %c15_265 = arith.constant 15 : index
    %c0_266 = arith.constant 0 : index
    %c0_267 = arith.constant 0 : index
    %287 = vector.load %arg6[%c15_265, %c0_266, %c0_267] : memref<18x32x32xf32, #tpu.memory_space<vmem>>, vector<1x32x32xf32>
    %288 = vector.shape_cast %287 : vector<1x32x32xf32> to vector<32x32xf32>
    %cst_268 = arith.constant dense<0.000000e+00> : vector<256x32xf32>
    %289 = tpu.matmul %286, %288, %cst_268 {dimension_numbers = #tpu.dot_dimension_numbers<[1], [0], [0], [1], [0, 0, 1, 1], [], []>} : vector<256x32xf32>, vector<32x32xf32>, vector<256x32xf32> -> vector<256x32xf32>
    %290 = arith.addf %284, %289 : vector<256x32xf32>
    %c2_269 = arith.constant 2 : index
    %c1_270 = arith.constant 1 : index
    %c0_271 = arith.constant 0 : index
    %291 = vector.load %arg9[%c2_269, %c1_270, %c0_271] : memref<18x18x32xf32, #tpu.memory_space<vmem>>, vector<16x16x32xf32>
    %292 = vector.shape_cast %291 : vector<16x16x32xf32> to vector<256x32xf32>
    %c16_272 = arith.constant 16 : index
    %c0_273 = arith.constant 0 : index
    %c0_274 = arith.constant 0 : index
    %293 = vector.load %arg6[%c16_272, %c0_273, %c0_274] : memref<18x32x32xf32, #tpu.memory_space<vmem>>, vector<1x32x32xf32>
    %294 = vector.shape_cast %293 : vector<1x32x32xf32> to vector<32x32xf32>
    %cst_275 = arith.constant dense<0.000000e+00> : vector<256x32xf32>
    %295 = tpu.matmul %292, %294, %cst_275 {dimension_numbers = #tpu.dot_dimension_numbers<[1], [0], [0], [1], [0, 0, 1, 1], [], []>} : vector<256x32xf32>, vector<32x32xf32>, vector<256x32xf32> -> vector<256x32xf32>
    %296 = arith.addf %290, %295 : vector<256x32xf32>
    %c2_276 = arith.constant 2 : index
    %c2_277 = arith.constant 2 : index
    %c0_278 = arith.constant 0 : index
    %297 = vector.load %arg9[%c2_276, %c2_277, %c0_278] : memref<18x18x32xf32, #tpu.memory_space<vmem>>, vector<16x16x32xf32>
    %298 = vector.shape_cast %297 : vector<16x16x32xf32> to vector<256x32xf32>
    %c17_279 = arith.constant 17 : index
    %c0_280 = arith.constant 0 : index
    %c0_281 = arith.constant 0 : index
    %299 = vector.load %arg6[%c17_279, %c0_280, %c0_281] : memref<18x32x32xf32, #tpu.memory_space<vmem>>, vector<1x32x32xf32>
    %300 = vector.shape_cast %299 : vector<1x32x32xf32> to vector<32x32xf32>
    %cst_282 = arith.constant dense<0.000000e+00> : vector<256x32xf32>
    %301 = tpu.matmul %298, %300, %cst_282 {dimension_numbers = #tpu.dot_dimension_numbers<[1], [0], [0], [1], [0, 0, 1, 1], [], []>} : vector<256x32xf32>, vector<32x32xf32>, vector<256x32xf32> -> vector<256x32xf32>
    %302 = arith.addf %296, %301 : vector<256x32xf32>
    %c1_283 = arith.constant 1 : index
    %c0_284 = arith.constant 0 : index
    %c0_285 = arith.constant 0 : index
    %303 = vector.load %arg7[%c1_283, %c0_284, %c0_285] : memref<2x1x32xf32, #tpu.memory_space<vmem>>, vector<1x1x32xf32>
    %304 = vector.shape_cast %303 : vector<1x1x32xf32> to vector<1x32xf32>
    %305 = vector.broadcast %304 : vector<1x32xf32> to vector<256x32xf32>
    %306 = arith.addf %302, %305 : vector<256x32xf32>
    %c0_286 = arith.constant 0 : index
    %c0_287 = arith.constant 0 : index
    %c0_288 = arith.constant 0 : index
    %307 = vector.load %arg1[%c0_286, %c0_287, %c0_288] : memref<1x256x32xf32, #tpu.memory_space<vmem>>, vector<1x256x32xf32>
    %308 = vector.shape_cast %307 : vector<1x256x32xf32> to vector<256x32xf32>
    %309 = arith.addf %306, %308 : vector<256x32xf32>
    %c0_289 = arith.constant 0 : index
    %c0_290 = arith.constant 0 : index
    %c0_291 = arith.constant 0 : index
    %310 = vector.load %arg8[%c0_289, %c0_290, %c0_291] : memref<1x256x32xf32, #tpu.memory_space<vmem>>, vector<1x256x32xf32>
    %311 = vector.shape_cast %310 : vector<1x256x32xf32> to vector<256x32xf32>
    %312 = vector.shape_cast %309 : vector<256x32xf32> to vector<1x256x32xf32>
    tpu.vector_store %arg8[%c0_289, %c0_290, %c0_291], %312 {strides = array<i32>} : memref<1x256x32xf32, #tpu.memory_space<vmem>>, vector<1x256x32xf32>,
    return
  }
  func.func @transform_0(%arg0: i32) -> (i32, i32, i32) {
    %c0_i32 = arith.constant 0 : i32
    %c0_i32_0 = arith.constant 0 : i32
    %c0_i32_1 = arith.constant 0 : i32
    return %arg0, %c0_i32, %c0_i32_0 : i32, i32, i32
  }
  func.func @transform_1(%arg0: i32) -> (i32, i32, i32) {
    %c0_i32 = arith.constant 0 : i32
    %c0_i32_0 = arith.constant 0 : i32
    %c0_i32_1 = arith.constant 0 : i32
    return %arg0, %c0_i32, %c0_i32_0 : i32, i32, i32
  }
  func.func @transform_2(%arg0: i32) -> (i32, i32, i32) {
    %c0_i32 = arith.constant 0 : i32
    %c0_i32_0 = arith.constant 0 : i32
    %c0_i32_1 = arith.constant 0 : i32
    return %arg0, %c0_i32, %c0_i32_0 : i32, i32, i32
  }
  func.func @transform_3(%arg0: i32) -> (i32, i32, i32) {
    %c0_i32 = arith.constant 0 : i32
    %c0_i32_0 = arith.constant 0 : i32
    %c0_i32_1 = arith.constant 0 : i32
    %c0_i32_2 = arith.constant 0 : i32
    return %c0_i32, %c0_i32_0, %c0_i32_1 : i32, i32, i32
  }
  func.func @transform_4(%arg0: i32) -> (i32, i32, i32) {
    %c0_i32 = arith.constant 0 : i32
    %c0_i32_0 = arith.constant 0 : i32
    %c0_i32_1 = arith.constant 0 : i32
    %c0_i32_2 = arith.constant 0 : i32
    return %c0_i32, %c0_i32_0, %c0_i32_1 : i32, i32, i32
  }
  func.func @transform_5(%arg0: i32) -> (i32, i32, i32) {
    %c0_i32 = arith.constant 0 : i32
    %c0_i32_0 = arith.constant 0 : i32
    %c0_i32_1 = arith.constant 0 : i32
    %c0_i32_2 = arith.constant 0 : i32
    return %c0_i32, %c0_i32_0, %c0_i32_1 : i32, i32, i32
  }
  func.func @transform_6(%arg0: i32) -> (i32, i32, i32) {
    %c0_i32 = arith.constant 0 : i32
    %c0_i32_0 = arith.constant 0 : i32
    %c0_i32_1 = arith.constant 0 : i32
    %c0_i32_2 = arith.constant 0 : i32
    return %c0_i32, %c0_i32_0, %c0_i32_1 : i32, i32, i32
  }
  func.func @transform_7(%arg0: i32) -> (i32, i32, i32) {
    %c0_i32 = arith.constant 0 : i32
    %c0_i32_0 = arith.constant 0 : i32
    %c0_i32_1 = arith.constant 0 : i32
    return %arg0, %c0_i32, %c0_i32_0 : i32, i32, i32
  }
}

</mosaic_0001>

<llo_original>
// kernel: dab_forward.1
$region0: #{dab_forward.1}
  #allocation0 [shape = 'u32[]', space=smem, size = 0x4, offset = 0x4, fixed_abs, tag = 'smem constant byte address 0x4 - core index']
  #allocation1 [shape = 'u32[144,128]{1,0:T(1,128)}', space=vmem, size = 0x12000, scoped, tag = 'internal scratch']
  #allocation2 [shape = 'f32[18,18,32]{2,1,0:T(8,128)}', space=vmem, size = 0x36000, scoped, tag = 'scratch operand']
  %s0 = inlined_call_operand.vmem [shape: f32[2,256,32], index: 0, kind: input, shape index: {}]
  %s1 = inlined_call_operand.vmem [shape: f32[2,18,32], index: 1, kind: input, shape index: {}]
  %s2 = inlined_call_operand.vmem [shape: f32[2,2,32], index: 2, kind: input, shape index: {}]
  %s3 = inlined_call_operand.vmem [shape: f32[2,32,32], index: 3, kind: input, shape index: {}]
  %s4 = inlined_call_operand.vmem [shape: f32[2,1,32], index: 4, kind: input, shape index: {}]
  %s5 = inlined_call_operand.vmem [shape: f32[18,32,32], index: 5, kind: input, shape index: {}]
  %s6 = inlined_call_operand.vmem [shape: f32[2,1,32], index: 6, kind: input, shape index: {}]
  %s7 = inlined_call_operand.hbm [shape: f32[2,256,32], index: 7, kind: output, shape index: {}]
  %s8 = sld [smem:[#allocation0]]
  $region61: #{dab_forward.1} parent=0
    _
  %s10 = ssub.s32 1, %s8
  %s11 = scalar_select 0, %s10, %s8
  $region1: #{dab_forward.1} parent=0
    #allocation3 [shape = 'u8[262144]{0}', space=vmem, size = 0x40000, scoped, tag = 'output window, operand 0']
    #allocation4 [shape = 's32[2]{0}', space=sflag, size = 0x8, scoped, tag = 'scoped memory for dab_forward.1']
    %12 = vsyncpa [#allocation4], 0
    %s13 = scalar_lea.sflag [#allocation4], 1
    %14 = vsyncpa %s13, 0
    loop: start=0, step=1, limit=4
    $region2: #{dab_forward.1} parent=1 // loop_pre_header
      _
    $region3: #{dab_forward.1} parent=1 // loop_header
      %s16 = sphi 0, %s20
      %p17 = scmp.ge.s32.totalorder %s16, 4
      %s26 = sphi 0, %s28
      %s29 = sphi 0, %s26
      %s30 = sphi 0, %s29
      %s46 = sphi 0, %s30
      %s52 = sphi 0, %s54
      %s55 = sphi 0, %s52
      %s56 = sphi 0, %s55
      %s72 = sphi 0, %s56
      %s78 = sphi 0, %s80
      %s81 = sphi 0, %s78
      %s82 = sphi 0, %s81
      %s98 = sphi 0, %s82
      %s102 = sphi 0, %s102
      %s104 = sphi 0, %s102
      %s105 = sphi 0, %s104
      %s119 = sphi 0, %s105
      %s123 = sphi 0, %s123
      %s125 = sphi 0, %s123
      %s126 = sphi 0, %s125
      %s140 = sphi 0, %s126
      %s144 = sphi 0, %s144
      %s146 = sphi 0, %s144
      %s147 = sphi 0, %s146
      %s161 = sphi 0, %s147
      %s165 = sphi 0, %s165
      %s167 = sphi 0, %s165
      %s168 = sphi 0, %s167
      %s182 = sphi 0, %s168
      %s188 = sphi 0, %s190
      %s191 = sphi 0, %s188
      %s192 = sphi 0, %s191
      %s208 = sphi 0, %s192
    $region4: #{dab_forward.1} parent=1 // loop_header_branch
      %19 = sbr.rel (%p17) target = $region8
    $region5: #{dab_forward.1} parent=1 // loop_body
      %s21 = ssub.s32 %s16, 1
      %s22 = ssub.s32 %s16, 2
      %s23 = sadd.s32 %s16, 1
      %s24 = ssub.s32 %s16, %s23
      %p25 = scmp.eq.s32.totalorder %s24, 0
      %s27 = sadd.s32 %s26, 1
      %s28 = scalar_select %p25, %s26, %s27
      %p31 = pneg %p25
      %p32 = scmp.eq.s32.totalorder %s16, 1
      %p33 = por %p31, %p32
      %p34 = scmp.ne.s32.totalorder %s26, %s29
      %p35 = scmp.eq.s32.totalorder %s16, 0
      %p36 = por %p34, %p35
      %p37 = scmp.ne.s32.totalorder %s26, %s29
      %p38 = scmp.eq.s32.totalorder %s21, 1
      %p39 = por %p37, %p38
      %p40 = scmp.ne.s32.totalorder %s29, %s30
      %p41 = scmp.eq.s32.totalorder %s21, 0
      %p42 = por %p40, %p41
      %p43 = scmp.ne.s32.totalorder %s29, %s30
      %p44 = scmp.eq.s32.totalorder %s22, 1
      %p45 = por %p43, %p44
      %p47 = scmp.ne.s32.totalorder %s30, %s46
      %p48 = scmp.eq.s32.totalorder %s22, 0
      %p49 = por %p47, %p48
      %s50 = ssub.s32 %s16, %s23
      %p51 = scmp.eq.s32.totalorder %s50, 0
      %s53 = sadd.s32 %s52, 1
      %s54 = scalar_select %p51, %s52, %s53
      %p57 = pneg %p51
      %p58 = scmp.eq.s32.totalorder %s16, 1
      %p59 = por %p57, %p58
      %p60 = scmp.ne.s32.totalorder %s52, %s55
      %p61 = scmp.eq.s32.totalorder %s16, 0
      %p62 = por %p60, %p61
      %p63 = scmp.ne.s32.totalorder %s52, %s55
      %p64 = scmp.eq.s32.totalorder %s21, 1
      %p65 = por %p63, %p64
      %p66 = scmp.ne.s32.totalorder %s55, %s56
      %p67 = scmp.eq.s32.totalorder %s21, 0
      %p68 = por %p66, %p67
      %p69 = scmp.ne.s32.totalorder %s55, %s56
      %p70 = scmp.eq.s32.totalorder %s22, 1
      %p71 = por %p69, %p70
      %p73 = scmp.ne.s32.totalorder %s56, %s72
      %p74 = scmp.eq.s32.totalorder %s22, 0
      %p75 = por %p73, %p74
      %s76 = ssub.s32 %s16, %s23
      %p77 = scmp.eq.s32.totalorder %s76, 0
      %s79 = sadd.s32 %s78, 1
      %s80 = scalar_select %p77, %s78, %s79
      %p83 = pneg %p77
      %p84 = scmp.eq.s32.totalorder %s16, 1
      %p85 = por %p83, %p84
      %p86 = scmp.ne.s32.totalorder %s78, %s81
      %p87 = scmp.eq.s32.totalorder %s16, 0
      %p88 = por %p86, %p87
      %p89 = scmp.ne.s32.totalorder %s78, %s81
      %p90 = scmp.eq.s32.totalorder %s21, 1
      %p91 = por %p89, %p90
      %p92 = scmp.ne.s32.totalorder %s81, %s82
      %p93 = scmp.eq.s32.totalorder %s21, 0
      %p94 = por %p92, %p93
      %p95 = scmp.ne.s32.totalorder %s81, %s82
      %p96 = scmp.eq.s32.totalorder %s22, 1
      %p97 = por %p95, %p96
      %p99 = scmp.ne.s32.totalorder %s82, %s98
      %p100 = scmp.eq.s32.totalorder %s22, 0
      %p101 = por %p99, %p100
      %s103 = sadd.s32 %s102, 1
      %p106 = scmp.eq.s32.totalorder %s16, 1
      %p107 = scmp.ne.s32.totalorder %s102, %s104
      %p108 = scmp.eq.s32.totalorder %s16, 0
      %p109 = por %p107, %p108
      %p110 = scmp.ne.s32.totalorder %s102, %s104
      %p111 = scmp.eq.s32.totalorder %s21, 1
      %p112 = por %p110, %p111
      %p113 = scmp.ne.s32.totalorder %s104, %s105
      %p114 = scmp.eq.s32.totalorder %s21, 0
      %p115 = por %p113, %p114
      %p116 = scmp.ne.s32.totalorder %s104, %s105
      %p117 = scmp.eq.s32.totalorder %s22, 1
      %p118 = por %p116, %p117
      %p120 = scmp.ne.s32.totalorder %s105, %s119
      %p121 = scmp.eq.s32.totalorder %s22, 0
      %p122 = por %p120, %p121
      %s124 = sadd.s32 %s123, 1
      %p127 = scmp.eq.s32.totalorder %s16, 1
      %p128 = scmp.ne.s32.totalorder %s123, %s125
      %p129 = scmp.eq.s32.totalorder %s16, 0
      %p130 = por %p128, %p129
      %p131 = scmp.ne.s32.totalorder %s123, %s125
      %p132 = scmp.eq.s32.totalorder %s21, 1
      %p133 = por %p131, %p132
      %p134 = scmp.ne.s32.totalorder %s125, %s126
      %p135 = scmp.eq.s32.totalorder %s21, 0
      %p136 = por %p134, %p135
      %p137 = scmp.ne.s32.totalorder %s125, %s126
      %p138 = scmp.eq.s32.totalorder %s22, 1
      %p139 = por %p137, %p138
      %p141 = scmp.ne.s32.totalorder %s126, %s140
      %p142 = scmp.eq.s32.totalorder %s22, 0
      %p143 = por %p141, %p142
      %s145 = sadd.s32 %s144, 1
      %p148 = scmp.eq.s32.totalorder %s16, 1
      %p149 = scmp.ne.s32.totalorder %s144, %s146
      %p150 = scmp.eq.s32.totalorder %s16, 0
      %p151 = por %p149, %p150
      %p152 = scmp.ne.s32.totalorder %s144, %s146
      %p153 = scmp.eq.s32.totalorder %s21, 1
      %p154 = por %p152, %p153
      %p155 = scmp.ne.s32.totalorder %s146, %s147
      %p156 = scmp.eq.s32.totalorder %s21, 0
      %p157 = por %p155, %p156
      %p158 = scmp.ne.s32.totalorder %s146, %s147
      %p159 = scmp.eq.s32.totalorder %s22, 1
      %p160 = por %p158, %p159
      %p162 = scmp.ne.s32.totalorder %s147, %s161
      %p163 = scmp.eq.s32.totalorder %s22, 0
      %p164 = por %p162, %p163
      %s166 = sadd.s32 %s165, 1
      %p169 = scmp.eq.s32.totalorder %s16, 1
      %p170 = scmp.ne.s32.totalorder %s165, %s167
      %p171 = scmp.eq.s32.totalorder %s16, 0
      %p172 = por %p170, %p171
      %p173 = scmp.ne.s32.totalorder %s165, %s167
      %p174 = scmp.eq.s32.totalorder %s21, 1
      %p175 = por %p173, %p174
      %p176 = scmp.ne.s32.totalorder %s167, %s168
      %p177 = scmp.eq.s32.totalorder %s21, 0
      %p178 = por %p176, %p177
      %p179 = scmp.ne.s32.totalorder %s167, %s168
      %p180 = scmp.eq.s32.totalorder %s22, 1
      %p181 = por %p179, %p180
      %p183 = scmp.ne.s32.totalorder %s168, %s182
      %p184 = scmp.eq.s32.totalorder %s22, 0
      %p185 = por %p183, %p184
      %s186 = ssub.s32 %s16, %s23
      %p187 = scmp.eq.s32.totalorder %s186, 0
      %s189 = sadd.s32 %s188, 1
      %s190 = scalar_select %p187, %s188, %s189
      %p193 = pneg %p187
      %p194 = scmp.eq.s32.totalorder %s16, 1
      %p195 = por %p193, %p194
      %p196 = scmp.ne.s32.totalorder %s188, %s191
      %p197 = scmp.eq.s32.totalorder %s16, 0
      %p198 = por %p196, %p197
      %p199 = scmp.ne.s32.totalorder %s188, %s191
      %p200 = scmp.eq.s32.totalorder %s21, 1
      %p201 = por %p199, %p200
      %p202 = scmp.ne.s32.totalorder %s191, %s192
      %p203 = scmp.eq.s32.totalorder %s21, 0
      %p204 = por %p202, %p203
      %p205 = scmp.ne.s32.totalorder %s191, %s192
      %p206 = scmp.eq.s32.totalorder %s22, 1
      %p207 = por %p205, %p206
      %p209 = scmp.ne.s32.totalorder %s192, %s208
      %p210 = scmp.eq.s32.totalorder %s22, 0
      %p211 = por %p209, %p210
      %p212 = scmp.le.s32.totalorder 1, %s16
      %p213 = scmp.lt.s32.totalorder %s16, 3
      %p214 = pnand %p212, %p213
      %p215 = pneg %p214
      // Predicated region
      $region9: #{dab_forward.1} parent=5 // pred_check
        _
      $region10: #{dab_forward.1} parent=5 // pred_check_branch
        %217 = sbr.rel (%p214) target = $region12
      $region11: #{dab_forward.1} parent=5 // pred_region
        %s218 = ssub.s32 %s16, 1
        // Predicated region
        $region13: #{dab_forward.1} parent=11 // pred_check
          %p219 = pneg %p115
        $region14: #{dab_forward.1} parent=11 // pred_check_branch
          %221 = sbr.rel (%p219) target = $region16
        $region15: #{dab_forward.1} parent=11 // pred_region
          _
        $region16: #{dab_forward.1} parent=11 // pred_fallthru
          _
        // Predicated region
        $region17: #{dab_forward.1} parent=11 // pred_check
          %p222 = pneg %p136
        $region18: #{dab_forward.1} parent=11 // pred_check_branch
          %224 = sbr.rel (%p222) target = $region20
        $region19: #{dab_forward.1} parent=11 // pred_region
          _
        $region20: #{dab_forward.1} parent=11 // pred_fallthru
          _
        // Predicated region
        $region21: #{dab_forward.1} parent=11 // pred_check
          %p225 = pneg %p157
        $region22: #{dab_forward.1} parent=11 // pred_check_branch
          %227 = sbr.rel (%p225) target = $region24
        $region23: #{dab_forward.1} parent=11 // pred_region
          _
        $region24: #{dab_forward.1} parent=11 // pred_fallthru
          _
        // Predicated region
        $region25: #{dab_forward.1} parent=11 // pred_check
          %p228 = pneg %p178
        $region26: #{dab_forward.1} parent=11 // pred_check_branch
          %230 = sbr.rel (%p228) target = $region28
        $region27: #{dab_forward.1} parent=11 // pred_region
          _
        $region28: #{dab_forward.1} parent=11 // pred_fallthru
          _
      $region12: #{dab_forward.1} parent=5 // pred_fallthru
        _
      %p231 = scmp.lt.s32.totalorder %s16, 2
      // Predicated region
      $region29: #{dab_forward.1} parent=5 // pred_check
        %p232 = pneg %p231
      $region30: #{dab_forward.1} parent=5 // pred_check_branch
        %234 = sbr.rel (%p232) target = $region32
      $region31: #{dab_forward.1} parent=5 // pred_region
        // Predicated region
        $region33: #{dab_forward.1} parent=31 // pred_check
          %p235 = pneg %p36
        $region34: #{dab_forward.1} parent=31 // pred_check_branch
          %237 = sbr.rel (%p235) target = $region36
        $region35: #{dab_forward.1} parent=31 // pred_region
          %p238 = scmp.lt.s32.totalorder %s16, 1
          %s239 = scalar_select %p238, %s16, 1
          %s240 = smul.addr %s239, 32
          %s241 = smul.addr %s240, 8
          %s242 = scalar_lea.vmem %s0, %s241
        $region36: #{dab_forward.1} parent=31 // pred_fallthru
          _
        // Predicated region
        $region37: #{dab_forward.1} parent=31 // pred_check
          %p243 = pneg %p62
        $region38: #{dab_forward.1} parent=31 // pred_check_branch
          %245 = sbr.rel (%p243) target = $region40
        $region39: #{dab_forward.1} parent=31 // pred_region
          %p246 = scmp.lt.s32.totalorder %s16, 1
          %s247 = scalar_select %p246, %s16, 1
          %s248 = smul.addr %s247, 3
          %s249 = smul.addr %s248, 8
          %s250 = scalar_lea.vmem %s1, %s249
        $region40: #{dab_forward.1} parent=31 // pred_fallthru
          _
        // Predicated region
        $region41: #{dab_forward.1} parent=31 // pred_check
          %p251 = pneg %p88
        $region42: #{dab_forward.1} parent=31 // pred_check_branch
          %253 = sbr.rel (%p251) target = $region44
        $region43: #{dab_forward.1} parent=31 // pred_region
          %p254 = scmp.lt.s32.totalorder %s16, 1
          %s255 = scalar_select %p254, %s16, 1
          %s256 = smul.addr %s255, 2
          %s257 = scalar_lea.vmem %s2, %s256
        $region44: #{dab_forward.1} parent=31 // pred_fallthru
          _
      $region32: #{dab_forward.1} parent=5 // pred_fallthru
        _
      %p258 = scmp.le.s32.totalorder 1, %s16
      %p259 = scmp.lt.s32.totalorder %s16, 3
      %p260 = pnand %p258, %p259
      %p261 = pneg %p260
      // Predicated region
      $region45: #{dab_forward.1} parent=5 // pred_check
        _
      $region46: #{dab_forward.1} parent=5 // pred_check_branch
        %263 = sbr.rel (%p260) target = $region48
      $region47: #{dab_forward.1} parent=5 // pred_region
        %s264 = ssub.s32 %s16, 1
        %p265 = scmp.lt.s32.totalorder %s21, 1
        %s266 = scalar_select %p265, %s21, 1
        %s267 = smul.addr %s266, 32
        %s268 = smul.addr %s267, 8
        %s269 = scalar_lea.vmem %s0, %s268
        %p270 = pneg %p42
        %p271 = pneg %p39
        %p272 = scmp.lt.s32.totalorder %s21, 1
        %s273 = scalar_select %p272, %s21, 1
        %s274 = smul.addr %s273, 3
        %s275 = smul.addr %s274, 8
        %s276 = scalar_lea.vmem %s1, %s275
        %p277 = pneg %p68
        %p278 = pneg %p65
        %p279 = scmp.lt.s32.totalorder %s21, 1
        %s280 = scalar_select %p279, %s21, 1
        %s281 = smul.addr %s280, 2
        %s282 = scalar_lea.vmem %s2, %s281
        %p283 = pneg %p94
        %p284 = pneg %p91
        %p285 = pneg %p115
        %p286 = pneg %p112
        %p287 = pneg %p136
        %p288 = pneg %p133
        %p289 = pneg %p157
        %p290 = pneg %p154
        %p291 = pneg %p178
        %p292 = pneg %p175
        %p293 = pneg %p204
        %p294 = pneg %p201
        %s295 = sand.u32 %s191, 1
        %s296 = scalar_lea.sflag [#allocation4], %s295
        %s297 = sand.u32 %s191, 1
        %s298 = smul.addr %s297, 256
        %s299 = scalar_lea.vmem [#allocation3], %s298
        %p300 = scmp.lt.s32.totalorder %s21, 1
        %s301 = scalar_select %p300, %s21, 1
        %s302 = smul.addr %s301, 32
        %s303 = smul.addr %s302, 8
        %s304 = scalar_lea.vmem %s0, %s303
        %p305 = scmp.lt.s32.totalorder %s21, 1
        %s306 = scalar_select %p305, %s21, 1
        %s307 = smul.addr %s306, 3
        %s308 = smul.addr %s307, 8
        %s309 = scalar_lea.vmem %s1, %s308
        %p310 = scmp.lt.s32.totalorder %s21, 1
        %s311 = scalar_select %p310, %s21, 1
        %s312 = smul.addr %s311, 2
        %s313 = scalar_lea.vmem %s2, %s312
        %vm314 = vcmask 261120
        %315 = vst.msk [vmem:[#allocation2] sm:$0xff] %vm314, 0.0
        %316 = vst.msk [vmem:[#allocation2 + $0x8] sm:$0xff] %vm314, 0.0
        %vm317 = vcmask 254976
        %318 = vst.msk [vmem:[#allocation2 + $0x10] sm:$0x3] %vm317, 0.0
        %s319 = scalar_lea.vmem [#allocation2], 408
        %320 = vst.msk [vmem:[%s319] sm:$0xff] %vm314, 0.0
        %321 = vst.msk [vmem:[%s319 + $0x8] sm:$0xff] %vm314, 0.0
        %322 = vst.msk [vmem:[%s319 + $0x10] sm:$0x3] %vm317, 0.0
        %vm323 = vcmask 253952
        %324 = vst.msk [vmem:[#allocation2] sm:$0x1] %vm323, 0.0
        %325 = vst.msk [vmem:[#allocation2 + $0x18] sm:$0x1] %vm323, 0.0
        %326 = vst.msk [vmem:[#allocation2 + $0x30] sm:$0x1] %vm323, 0.0
        %327 = vst.msk [vmem:[#allocation2 + $0x48] sm:$0x1] %vm323, 0.0
        %328 = vst.msk [vmem:[#allocation2 + $0x60] sm:$0x1] %vm323, 0.0
        %329 = vst.msk [vmem:[#allocation2 + $0x78] sm:$0x1] %vm323, 0.0
        %330 = vst.msk [vmem:[#allocation2 + $0x90] sm:$0x1] %vm323, 0.0
        %331 = vst.msk [vmem:[#allocation2 + $0xa8] sm:$0x1] %vm323, 0.0
        %332 = vst.msk [vmem:[#allocation2 + $0xc0] sm:$0x1] %vm323, 0.0
        %333 = vst.msk [vmem:[#allocation2 + $0xd8] sm:$0x1] %vm323, 0.0
        %334 = vst.msk [vmem:[#allocation2 + $0xf0] sm:$0x1] %vm323, 0.0
        %335 = vst.msk [vmem:[#allocation2 + $0x108] sm:$0x1] %vm323, 0.0
        %336 = vst.msk [vmem:[#allocation2 + $0x120] sm:$0x1] %vm323, 0.0
        %337 = vst.msk [vmem:[#allocation2 + $0x138] sm:$0x1] %vm323, 0.0
        %338 = vst.msk [vmem:[#allocation2 + $0x150] sm:$0x1] %vm323, 0.0
        %339 = vst.msk [vmem:[#allocation2 + $0x168] sm:$0x1] %vm323, 0.0
        %340 = vst.msk [vmem:[#allocation2 + $0x180] sm:$0x1] %vm323, 0.0
        %341 = vst.msk [vmem:[#allocation2 + $0x198] sm:$0x1] %vm323, 0.0
        %342 = vst.msk [vmem:[#allocation2 + $0x11] sm:$0x1] %vm323, 0.0
        %343 = vst.msk [vmem:[#allocation2 + $0x29] sm:$0x1] %vm323, 0.0
        %344 = vst.msk [vmem:[#allocation2 + $0x41] sm:$0x1] %vm323, 0.0
        %345 = vst.msk [vmem:[#allocation2 + $0x59] sm:$0x1] %vm323, 0.0
        %346 = vst.msk [vmem:[#allocation2 + $0x71] sm:$0x1] %vm323, 0.0
        %347 = vst.msk [vmem:[#allocation2 + $0x89] sm:$0x1] %vm323, 0.0
        %348 = vst.msk [vmem:[#allocation2 + $0xa1] sm:$0x1] %vm323, 0.0
        %349 = vst.msk [vmem:[#allocation2 + $0xb9] sm:$0x1] %vm323, 0.0
        %350 = vst.msk [vmem:[#allocation2 + $0xd1] sm:$0x1] %vm323, 0.0
        %351 = vst.msk [vmem:[#allocation2 + $0xe9] sm:$0x1] %vm323, 0.0
        %352 = vst.msk [vmem:[#allocation2 + $0x101] sm:$0x1] %vm323, 0.0
        %353 = vst.msk [vmem:[#allocation2 + $0x119] sm:$0x1] %vm323, 0.0
        %354 = vst.msk [vmem:[#allocation2 + $0x131] sm:$0x1] %vm323, 0.0
        %355 = vst.msk [vmem:[#allocation2 + $0x149] sm:$0x1] %vm323, 0.0
        %356 = vst.msk [vmem:[#allocation2 + $0x161] sm:$0x1] %vm323, 0.0
        %357 = vst.msk [vmem:[#allocation2 + $0x179] sm:$0x1] %vm323, 0.0
        %358 = vst.msk [vmem:[#allocation2 + $0x191] sm:$0x1] %vm323, 0.0
        %359 = vst.msk [vmem:[#allocation2 + $0x1a9] sm:$0x1] %vm323, 0.0
        %v360 = vld [vmem:[%s304] sm:$0xff]
        %v361 = vld [vmem:[%s304 + $0x8] sm:$0xff]
        %v362 = vld [vmem:[%s304 + $0x10] sm:$0xff]
        %v363 = vld [vmem:[%s304 + $0x18] sm:$0xff]
        %v364 = vld [vmem:[%s304 + $0x20] sm:$0xff]
        %v365 = vld [vmem:[%s304 + $0x28] sm:$0xff]
        %v366 = vld [vmem:[%s304 + $0x30] sm:$0xff]
        %v367 = vld [vmem:[%s304 + $0x38] sm:$0xff]
        %v368 = vld [vmem:[%s304 + $0x40] sm:$0xff]
        %v369 = vld [vmem:[%s304 + $0x48] sm:$0xff]
        %v370 = vld [vmem:[%s304 + $0x50] sm:$0xff]
        %v371 = vld [vmem:[%s304 + $0x58] sm:$0xff]
        %v372 = vld [vmem:[%s304 + $0x60] sm:$0xff]
        %v373 = vld [vmem:[%s304 + $0x68] sm:$0xff]
        %v374 = vld [vmem:[%s304 + $0x70] sm:$0xff]
        %v375 = vld [vmem:[%s304 + $0x78] sm:$0xff]
        %v376 = vld [vmem:[%s304 + $0x80] sm:$0xff]
        %v377 = vld [vmem:[%s304 + $0x88] sm:$0xff]
        %v378 = vld [vmem:[%s304 + $0x90] sm:$0xff]
        %v379 = vld [vmem:[%s304 + $0x98] sm:$0xff]
        %v380 = vld [vmem:[%s304 + $0xa0] sm:$0xff]
        %v381 = vld [vmem:[%s304 + $0xa8] sm:$0xff]
        %v382 = vld [vmem:[%s304 + $0xb0] sm:$0xff]
        %v383 = vld [vmem:[%s304 + $0xb8] sm:$0xff]
        %v384 = vld [vmem:[%s304 + $0xc0] sm:$0xff]
        %v385 = vld [vmem:[%s304 + $0xc8] sm:$0xff]
        %v386 = vld [vmem:[%s304 + $0xd0] sm:$0xff]
        %v387 = vld [vmem:[%s304 + $0xd8] sm:$0xff]
        %v388 = vld [vmem:[%s304 + $0xe0] sm:$0xff]
        %v389 = vld [vmem:[%s304 + $0xe8] sm:$0xff]
        %v390 = vld [vmem:[%s304 + $0xf0] sm:$0xff]
        %v391 = vld [vmem:[%s304 + $0xf8] sm:$0xff]
        %s392 = scalar_lea.vmem [#allocation2], 24
        %393 = vst.msk [vmem:[%s392 + $0x1] sm:$0xff] %vm314, %v360
        %394 = vst.msk [vmem:[%s392 + $0x9] sm:$0xff] %vm314, %v361
        %395 = vst.msk [vmem:[%s392 + $0x19] sm:$0xff] %vm314, %v362
        %396 = vst.msk [vmem:[%s392 + $0x21] sm:$0xff] %vm314, %v363
        %397 = vst.msk [vmem:[%s392 + $0x31] sm:$0xff] %vm314, %v364
        %398 = vst.msk [vmem:[%s392 + $0x39] sm:$0xff] %vm314, %v365
        %399 = vst.msk [vmem:[%s392 + $0x49] sm:$0xff] %vm314, %v366
        %400 = vst.msk [vmem:[%s392 + $0x51] sm:$0xff] %vm314, %v367
        %401 = vst.msk [vmem:[%s392 + $0x61] sm:$0xff] %vm314, %v368
        %402 = vst.msk [vmem:[%s392 + $0x69] sm:$0xff] %vm314, %v369
        %403 = vst.msk [vmem:[%s392 + $0x79] sm:$0xff] %vm314, %v370
        %404 = vst.msk [vmem:[%s392 + $0x81] sm:$0xff] %vm314, %v371
        %405 = vst.msk [vmem:[%s392 + $0x91] sm:$0xff] %vm314, %v372
        %406 = vst.msk [vmem:[%s392 + $0x99] sm:$0xff] %vm314, %v373
        %407 = vst.msk [vmem:[%s392 + $0xa9] sm:$0xff] %vm314, %v374
        %408 = vst.msk [vmem:[%s392 + $0xb1] sm:$0xff] %vm314, %v375
        %409 = vst.msk [vmem:[%s392 + $0xc1] sm:$0xff] %vm314, %v376
        %410 = vst.msk [vmem:[%s392 + $0xc9] sm:$0xff] %vm314, %v377
        %411 = vst.msk [vmem:[%s392 + $0xd9] sm:$0xff] %vm314, %v378
        %412 = vst.msk [vmem:[%s392 + $0xe1] sm:$0xff] %vm314, %v379
        %413 = vst.msk [vmem:[%s392 + $0xf1] sm:$0xff] %vm314, %v380
        %414 = vst.msk [vmem:[%s392 + $0xf9] sm:$0xff] %vm314, %v381
        %415 = vst.msk [vmem:[%s392 + $0x109] sm:$0xff] %vm314, %v382
        %416 = vst.msk [vmem:[%s392 + $0x111] sm:$0xff] %vm314, %v383
        %417 = vst.msk [vmem:[%s392 + $0x121] sm:$0xff] %vm314, %v384
        %418 = vst.msk [vmem:[%s392 + $0x129] sm:$0xff] %vm314, %v385
        %419 = vst.msk [vmem:[%s392 + $0x139] sm:$0xff] %vm314, %v386
        %420 = vst.msk [vmem:[%s392 + $0x141] sm:$0xff] %vm314, %v387
        %421 = vst.msk [vmem:[%s392 + $0x151] sm:$0xff] %vm314, %v388
        %422 = vst.msk [vmem:[%s392 + $0x159] sm:$0xff] %vm314, %v389
        %423 = vst.msk [vmem:[%s392 + $0x169] sm:$0xff] %vm314, %v390
        %424 = vst.msk [vmem:[%s392 + $0x171] sm:$0xff] %vm314, %v391
        %v425 = vld [vmem:[#allocation2] sm:$0xff]
        %v426 = vld [vmem:[#allocation2 + $0x8] sm:$0xff]
        %v427 = vld [vmem:[#allocation2 + $0x18] sm:$0xff]
        %v428 = vld [vmem:[#allocation2 + $0x20] sm:$0xff]
        %v429 = vld [vmem:[#allocation2 + $0x30] sm:$0xff]
        %v430 = vld [vmem:[#allocation2 + $0x38] sm:$0xff]
        %v431 = vld [vmem:[#allocation2 + $0x48] sm:$0xff]
        %v432 = vld [vmem:[#allocation2 + $0x50] sm:$0xff]
        %v433 = vld [vmem:[#allocation2 + $0x60] sm:$0xff]
        %v434 = vld [vmem:[#allocation2 + $0x68] sm:$0xff]
        %v435 = vld [vmem:[#allocation2 + $0x78] sm:$0xff]
        %v436 = vld [vmem:[#allocation2 + $0x80] sm:$0xff]
        %v437 = vld [vmem:[#allocation2 + $0x90] sm:$0xff]
        %v438 = vld [vmem:[#allocation2 + $0x98] sm:$0xff]
        %v439 = vld [vmem:[#allocation2 + $0xa8] sm:$0xff]
        %v440 = vld [vmem:[#allocation2 + $0xb0] sm:$0xff]
        %v441 = vld [vmem:[#allocation2 + $0xc0] sm:$0xff]
        %v442 = vld [vmem:[#allocation2 + $0xc8] sm:$0xff]
        %v443 = vld [vmem:[#allocation2 + $0xd8] sm:$0xff]
        %v444 = vld [vmem:[#allocation2 + $0xe0] sm:$0xff]
        %v445 = vld [vmem:[#allocation2 + $0xf0] sm:$0xff]
        %v446 = vld [vmem:[#allocation2 + $0xf8] sm:$0xff]
        %v447 = vld [vmem:[#allocation2 + $0x108] sm:$0xff]
        %v448 = vld [vmem:[#allocation2 + $0x110] sm:$0xff]
        %v449 = vld [vmem:[#allocation2 + $0x120] sm:$0xff]
        %v450 = vld [vmem:[#allocation2 + $0x128] sm:$0xff]
        %v451 = vld [vmem:[#allocation2 + $0x138] sm:$0xff]
        %v452 = vld [vmem:[#allocation2 + $0x140] sm:$0xff]
        %v453 = vld [vmem:[#allocation2 + $0x150] sm:$0xff]
        %v454 = vld [vmem:[#allocation2 + $0x158] sm:$0xff]
        %v455 = vld [vmem:[#allocation2 + $0x168] sm:$0xff]
        %v456 = vld [vmem:[#allocation2 + $0x170] sm:$0xff]
        %v457 = vld [vmem:[%s309] sm:$0x1]
        %v458 = vlaneseq
        %v459 = vshrl.u32 %v458, 7
        %v460 = vsub.s32 0, %v459
        %v461 = vrot.slane %v457, %v460
        %v462 = vmul.f32 %v425, %v461
        %v463 = vmul.f32 %v426, %v461
        %v464 = vmul.f32 %v427, %v461
        %v465 = vmul.f32 %v428, %v461
        %v466 = vmul.f32 %v429, %v461
        %v467 = vmul.f32 %v430, %v461
        %v468 = vmul.f32 %v431, %v461
        %v469 = vmul.f32 %v432, %v461
        %v470 = vmul.f32 %v433, %v461
        %v471 = vmul.f32 %v434, %v461
        %v472 = vmul.f32 %v435, %v461
        %v473 = vmul.f32 %v436, %v461
        %v474 = vmul.f32 %v437, %v461
        %v475 = vmul.f32 %v438, %v461
        %v476 = vmul.f32 %v439, %v461
        %v477 = vmul.f32 %v440, %v461
        %v478 = vmul.f32 %v441, %v461
        %v479 = vmul.f32 %v442, %v461
        %v480 = vmul.f32 %v443, %v461
        %v481 = vmul.f32 %v444, %v461
        %v482 = vmul.f32 %v445, %v461
        %v483 = vmul.f32 %v446, %v461
        %v484 = vmul.f32 %v447, %v461
        %v485 = vmul.f32 %v448, %v461
        %v486 = vmul.f32 %v449, %v461
        %v487 = vmul.f32 %v450, %v461
        %v488 = vmul.f32 %v451, %v461
        %v489 = vmul.f32 %v452, %v461
        %v490 = vmul.f32 %v453, %v461
        %v491 = vmul.f32 %v454, %v461
        %v492 = vmul.f32 %v455, %v461
        %v493 = vmul.f32 %v456, %v461
        %v494 = vld [vmem:[#allocation2 + $0x1] sm:$0xff]
        %v495 = vld [vmem:[#allocation2 + $0x9] sm:$0xff]
        %v496 = vld [vmem:[#allocation2 + $0x19] sm:$0xff]
        %v497 = vld [vmem:[#allocation2 + $0x21] sm:$0xff]
        %v498 = vld [vmem:[#allocation2 + $0x31] sm:$0xff]
        %v499 = vld [vmem:[#allocation2 + $0x39] sm:$0xff]
        %v500 = vld [vmem:[#allocation2 + $0x49] sm:$0xff]
        %v501 = vld [vmem:[#allocation2 + $0x51] sm:$0xff]
        %v502 = vld [vmem:[#allocation2 + $0x61] sm:$0xff]
        %v503 = vld [vmem:[#allocation2 + $0x69] sm:$0xff]
        %v504 = vld [vmem:[#allocation2 + $0x79] sm:$0xff]
        %v505 = vld [vmem:[#allocation2 + $0x81] sm:$0xff]
        %v506 = vld [vmem:[#allocation2 + $0x91] sm:$0xff]
        %v507 = vld [vmem:[#allocation2 + $0x99] sm:$0xff]
        %v508 = vld [vmem:[#allocation2 + $0xa9] sm:$0xff]
        %v509 = vld [vmem:[#allocation2 + $0xb1] sm:$0xff]
        %v510 = vld [vmem:[#allocation2 + $0xc1] sm:$0xff]
        %v511 = vld [vmem:[#allocation2 + $0xc9] sm:$0xff]
        %v512 = vld [vmem:[#allocation2 + $0xd9] sm:$0xff]
        %v513 = vld [vmem:[#allocation2 + $0xe1] sm:$0xff]
        %v514 = vld [vmem:[#allocation2 + $0xf1] sm:$0xff]
        %v515 = vld [vmem:[#allocation2 + $0xf9] sm:$0xff]
        %v516 = vld [vmem:[#allocation2 + $0x109] sm:$0xff]
        %v517 = vld [vmem:[#allocation2 + $0x111] sm:$0xff]
        %v518 = vld [vmem:[#allocation2 + $0x121] sm:$0xff]
        %v519 = vld [vmem:[#allocation2 + $0x129] sm:$0xff]
        %v520 = vld [vmem:[#allocation2 + $0x139] sm:$0xff]
        %v521 = vld [vmem:[#allocation2 + $0x141] sm:$0xff]
        %v522 = vld [vmem:[#allocation2 + $0x151] sm:$0xff]
        %v523 = vld [vmem:[#allocation2 + $0x159] sm:$0xff]
        %v524 = vld [vmem:[#allocation2 + $0x169] sm:$0xff]
        %v525 = vld [vmem:[#allocation2 + $0x171] sm:$0xff]
        %v526 = vld [vmem:[%s309 + $0x1] sm:$0x1]
        %v527 = vlaneseq
        %v528 = vshrl.u32 %v527, 7
        %v529 = vsub.s32 0, %v528
        %v530 = vrot.slane %v526, %v529
        %v531 = vmul.f32 %v494, %v530
        %v532 = vmul.f32 %v495, %v530
        %v533 = vmul.f32 %v496, %v530
        %v534 = vmul.f32 %v497, %v530
        %v535 = vmul.f32 %v498, %v530
        %v536 = vmul.f32 %v499, %v530
        %v537 = vmul.f32 %v500, %v530
        %v538 = vmul.f32 %v501, %v530
        %v539 = vmul.f32 %v502, %v530
        %v540 = vmul.f32 %v503, %v530
        %v541 = vmul.f32 %v504, %v530
        %v542 = vmul.f32 %v505, %v530
        %v543 = vmul.f32 %v506, %v530
        %v544 = vmul.f32 %v507, %v530
        %v545 = vmul.f32 %v508, %v530
        %v546 = vmul.f32 %v509, %v530
        %v547 = vmul.f32 %v510, %v530
        %v548 = vmul.f32 %v511, %v530
        %v549 = vmul.f32 %v512, %v530
        %v550 = vmul.f32 %v513, %v530
        %v551 = vmul.f32 %v514, %v530
        %v552 = vmul.f32 %v515, %v530
        %v553 = vmul.f32 %v516, %v530
        %v554 = vmul.f32 %v517, %v530
        %v555 = vmul.f32 %v518, %v530
        %v556 = vmul.f32 %v519, %v530
        %v557 = vmul.f32 %v520, %v530
        %v558 = vmul.f32 %v521, %v530
        %v559 = vmul.f32 %v522, %v530
        %v560 = vmul.f32 %v523, %v530
        %v561 = vmul.f32 %v524, %v530
        %v562 = vmul.f32 %v525, %v530
        %v563 = vadd.f32 %v462, %v531
        %v564 = vadd.f32 %v463, %v532
        %v565 = vadd.f32 %v464, %v533
        %v566 = vadd.f32 %v465, %v534
        %v567 = vadd.f32 %v466, %v535
        %v568 = vadd.f32 %v467, %v536
        %v569 = vadd.f32 %v468, %v537
        %v570 = vadd.f32 %v469, %v538
        %v571 = vadd.f32 %v470, %v539
        %v572 = vadd.f32 %v471, %v540
        %v573 = vadd.f32 %v472, %v541
        %v574 = vadd.f32 %v473, %v542
        %v575 = vadd.f32 %v474, %v543
        %v576 = vadd.f32 %v475, %v544
        %v577 = vadd.f32 %v476, %v545
        %v578 = vadd.f32 %v477, %v546
        %v579 = vadd.f32 %v478, %v547
        %v580 = vadd.f32 %v479, %v548
        %v581 = vadd.f32 %v480, %v549
        %v582 = vadd.f32 %v481, %v550
        %v583 = vadd.f32 %v482, %v551
        %v584 = vadd.f32 %v483, %v552
        %v585 = vadd.f32 %v484, %v553
        %v586 = vadd.f32 %v485, %v554
        %v587 = vadd.f32 %v486, %v555
        %v588 = vadd.f32 %v487, %v556
        %v589 = vadd.f32 %v488, %v557
        %v590 = vadd.f32 %v489, %v558
        %v591 = vadd.f32 %v490, %v559
        %v592 = vadd.f32 %v491, %v560
        %v593 = vadd.f32 %v492, %v561
        %v594 = vadd.f32 %v493, %v562
        %v595 = vld [vmem:[#allocation2 + $0x2] sm:$0xff]
        %v596 = vld [vmem:[#allocation2 + $0xa] sm:$0xff]
        %v597 = vld [vmem:[#allocation2 + $0x1a] sm:$0xff]
        %v598 = vld [vmem:[#allocation2 + $0x22] sm:$0xff]
        %v599 = vld [vmem:[#allocation2 + $0x32] sm:$0xff]
        %v600 = vld [vmem:[#allocation2 + $0x3a] sm:$0xff]
        %v601 = vld [vmem:[#allocation2 + $0x4a] sm:$0xff]
        %v602 = vld [vmem:[#allocation2 + $0x52] sm:$0xff]
        %v603 = vld [vmem:[#allocation2 + $0x62] sm:$0xff]
        %v604 = vld [vmem:[#allocation2 + $0x6a] sm:$0xff]
        %v605 = vld [vmem:[#allocation2 + $0x7a] sm:$0xff]
        %v606 = vld [vmem:[#allocation2 + $0x82] sm:$0xff]
        %v607 = vld [vmem:[#allocation2 + $0x92] sm:$0xff]
        %v608 = vld [vmem:[#allocation2 + $0x9a] sm:$0xff]
        %v609 = vld [vmem:[#allocation2 + $0xaa] sm:$0xff]
        %v610 = vld [vmem:[#allocation2 + $0xb2] sm:$0xff]
        %v611 = vld [vmem:[#allocation2 + $0xc2] sm:$0xff]
        %v612 = vld [vmem:[#allocation2 + $0xca] sm:$0xff]
        %v613 = vld [vmem:[#allocation2 + $0xda] sm:$0xff]
        %v614 = vld [vmem:[#allocation2 + $0xe2] sm:$0xff]
        %v615 = vld [vmem:[#allocation2 + $0xf2] sm:$0xff]
        %v616 = vld [vmem:[#allocation2 + $0xfa] sm:$0xff]
        %v617 = vld [vmem:[#allocation2 + $0x10a] sm:$0xff]
        %v618 = vld [vmem:[#allocation2 + $0x112] sm:$0xff]
        %v619 = vld [vmem:[#allocation2 + $0x122] sm:$0xff]
        %v620 = vld [vmem:[#allocation2 + $0x12a] sm:$0xff]
        %v621 = vld [vmem:[#allocation2 + $0x13a] sm:$0xff]
        %v622 = vld [vmem:[#allocation2 + $0x142] sm:$0xff]
        %v623 = vld [vmem:[#allocation2 + $0x152] sm:$0xff]
        %v624 = vld [vmem:[#allocation2 + $0x15a] sm:$0xff]
        %v625 = vld [vmem:[#allocation2 + $0x16a] sm:$0xff]
        %v626 = vld [vmem:[#allocation2 + $0x172] sm:$0xff]
        %v627 = vld [vmem:[%s309 + $0x2] sm:$0x1]
        %v628 = vlaneseq
        %v629 = vshrl.u32 %v628, 7
        %v630 = vsub.s32 0, %v629
        %v631 = vrot.slane %v627, %v630
        %v632 = vmul.f32 %v595, %v631
        %v633 = vmul.f32 %v596, %v631
        %v634 = vmul.f32 %v597, %v631
        %v635 = vmul.f32 %v598, %v631
        %v636 = vmul.f32 %v599, %v631
        %v637 = vmul.f32 %v600, %v631
        %v638 = vmul.f32 %v601, %v631
        %v639 = vmul.f32 %v602, %v631
        %v640 = vmul.f32 %v603, %v631
        %v641 = vmul.f32 %v604, %v631
        %v642 = vmul.f32 %v605, %v631
        %v643 = vmul.f32 %v606, %v631
        %v644 = vmul.f32 %v607, %v631
        %v645 = vmul.f32 %v608, %v631
        %v646 = vmul.f32 %v609, %v631
        %v647 = vmul.f32 %v610, %v631
        %v648 = vmul.f32 %v611, %v631
        %v649 = vmul.f32 %v612, %v631
        %v650 = vmul.f32 %v613, %v631
        %v651 = vmul.f32 %v614, %v631
        %v652 = vmul.f32 %v615, %v631
        %v653 = vmul.f32 %v616, %v631
        %v654 = vmul.f32 %v617, %v631
        %v655 = vmul.f32 %v618, %v631
        %v656 = vmul.f32 %v619, %v631
        %v657 = vmul.f32 %v620, %v631
        %v658 = vmul.f32 %v621, %v631
        %v659 = vmul.f32 %v622, %v631
        %v660 = vmul.f32 %v623, %v631
        %v661 = vmul.f32 %v624, %v631
        %v662 = vmul.f32 %v625, %v631
        %v663 = vmul.f32 %v626, %v631
        %v664 = vadd.f32 %v563, %v632
        %v665 = vadd.f32 %v564, %v633
        %v666 = vadd.f32 %v565, %v634
        %v667 = vadd.f32 %v566, %v635
        %v668 = vadd.f32 %v567, %v636
        %v669 = vadd.f32 %v568, %v637
        %v670 = vadd.f32 %v569, %v638
        %v671 = vadd.f32 %v570, %v639
        %v672 = vadd.f32 %v571, %v640
        %v673 = vadd.f32 %v572, %v641
        %v674 = vadd.f32 %v573, %v642
        %v675 = vadd.f32 %v574, %v643
        %v676 = vadd.f32 %v575, %v644
        %v677 = vadd.f32 %v576, %v645
        %v678 = vadd.f32 %v577, %v646
        %v679 = vadd.f32 %v578, %v647
        %v680 = vadd.f32 %v579, %v648
        %v681 = vadd.f32 %v580, %v649
        %v682 = vadd.f32 %v581, %v650
        %v683 = vadd.f32 %v582, %v651
        %v684 = vadd.f32 %v583, %v652
        %v685 = vadd.f32 %v584, %v653
        %v686 = vadd.f32 %v585, %v654
        %v687 = vadd.f32 %v586, %v655
        %v688 = vadd.f32 %v587, %v656
        %v689 = vadd.f32 %v588, %v657
        %v690 = vadd.f32 %v589, %v658
        %v691 = vadd.f32 %v590, %v659
        %v692 = vadd.f32 %v591, %v660
        %v693 = vadd.f32 %v592, %v661
        %v694 = vadd.f32 %v593, %v662
        %v695 = vadd.f32 %v594, %v663
        %v696 = vld [vmem:[%s392] sm:$0xff]
        %v697 = vld [vmem:[%s392 + $0x8] sm:$0xff]
        %v698 = vld [vmem:[%s392 + $0x18] sm:$0xff]
        %v699 = vld [vmem:[%s392 + $0x20] sm:$0xff]
        %v700 = vld [vmem:[%s392 + $0x30] sm:$0xff]
        %v701 = vld [vmem:[%s392 + $0x38] sm:$0xff]
        %v702 = vld [vmem:[%s392 + $0x48] sm:$0xff]
        %v703 = vld [vmem:[%s392 + $0x50] sm:$0xff]
        %v704 = vld [vmem:[%s392 + $0x60] sm:$0xff]
        %v705 = vld [vmem:[%s392 + $0x68] sm:$0xff]
        %v706 = vld [vmem:[%s392 + $0x78] sm:$0xff]
        %v707 = vld [vmem:[%s392 + $0x80] sm:$0xff]
        %v708 = vld [vmem:[%s392 + $0x90] sm:$0xff]
        %v709 = vld [vmem:[%s392 + $0x98] sm:$0xff]
        %v710 = vld [vmem:[%s392 + $0xa8] sm:$0xff]
        %v711 = vld [vmem:[%s392 + $0xb0] sm:$0xff]
        %v712 = vld [vmem:[%s392 + $0xc0] sm:$0xff]
        %v713 = vld [vmem:[%s392 + $0xc8] sm:$0xff]
        %v714 = vld [vmem:[%s392 + $0xd8] sm:$0xff]
        %v715 = vld [vmem:[%s392 + $0xe0] sm:$0xff]
        %v716 = vld [vmem:[%s392 + $0xf0] sm:$0xff]
        %v717 = vld [vmem:[%s392 + $0xf8] sm:$0xff]
        %v718 = vld [vmem:[%s392 + $0x108] sm:$0xff]
        %v719 = vld [vmem:[%s392 + $0x110] sm:$0xff]
        %v720 = vld [vmem:[%s392 + $0x120] sm:$0xff]
        %v721 = vld [vmem:[%s392 + $0x128] sm:$0xff]
        %v722 = vld [vmem:[%s392 + $0x138] sm:$0xff]
        %v723 = vld [vmem:[%s392 + $0x140] sm:$0xff]
        %v724 = vld [vmem:[%s392 + $0x150] sm:$0xff]
        %v725 = vld [vmem:[%s392 + $0x158] sm:$0xff]
        %v726 = vld [vmem:[%s392 + $0x168] sm:$0xff]
        %v727 = vld [vmem:[%s392 + $0x170] sm:$0xff]
        %v728 = vld [vmem:[%s309 + $0x3] sm:$0x1]
        %v729 = vlaneseq
        %v730 = vshrl.u32 %v729, 7
        %v731 = vsub.s32 0, %v730
        %v732 = vrot.slane %v728, %v731
        %v733 = vmul.f32 %v696, %v732
        %v734 = vmul.f32 %v697, %v732
        %v735 = vmul.f32 %v698, %v732
        %v736 = vmul.f32 %v699, %v732
        %v737 = vmul.f32 %v700, %v732
        %v738 = vmul.f32 %v701, %v732
        %v739 = vmul.f32 %v702, %v732
        %v740 = vmul.f32 %v703, %v732
        %v741 = vmul.f32 %v704, %v732
        %v742 = vmul.f32 %v705, %v732
        %v743 = vmul.f32 %v706, %v732
        %v744 = vmul.f32 %v707, %v732
        %v745 = vmul.f32 %v708, %v732
        %v746 = vmul.f32 %v709, %v732
        %v747 = vmul.f32 %v710, %v732
        %v748 = vmul.f32 %v711, %v732
        %v749 = vmul.f32 %v712, %v732
        %v750 = vmul.f32 %v713, %v732
        %v751 = vmul.f32 %v714, %v732
        %v752 = vmul.f32 %v715, %v732
        %v753 = vmul.f32 %v716, %v732
        %v754 = vmul.f32 %v717, %v732
        %v755 = vmul.f32 %v718, %v732
        %v756 = vmul.f32 %v719, %v732
        %v757 = vmul.f32 %v720, %v732
        %v758 = vmul.f32 %v721, %v732
        %v759 = vmul.f32 %v722, %v732
        %v760 = vmul.f32 %v723, %v732
        %v761 = vmul.f32 %v724, %v732
        %v762 = vmul.f32 %v725, %v732
        %v763 = vmul.f32 %v726, %v732
        %v764 = vmul.f32 %v727, %v732
        %v765 = vadd.f32 %v664, %v733
        %v766 = vadd.f32 %v665, %v734
        %v767 = vadd.f32 %v666, %v735
        %v768 = vadd.f32 %v667, %v736
        %v769 = vadd.f32 %v668, %v737
        %v770 = vadd.f32 %v669, %v738
        %v771 = vadd.f32 %v670, %v739
        %v772 = vadd.f32 %v671, %v740
        %v773 = vadd.f32 %v672, %v741
        %v774 = vadd.f32 %v673, %v742
        %v775 = vadd.f32 %v674, %v743
        %v776 = vadd.f32 %v675, %v744
        %v777 = vadd.f32 %v676, %v745
        %v778 = vadd.f32 %v677, %v746
        %v779 = vadd.f32 %v678, %v747
        %v780 = vadd.f32 %v679, %v748
        %v781 = vadd.f32 %v680, %v749
        %v782 = vadd.f32 %v681, %v750
        %v783 = vadd.f32 %v682, %v751
        %v784 = vadd.f32 %v683, %v752
        %v785 = vadd.f32 %v684, %v753
        %v786 = vadd.f32 %v685, %v754
        %v787 = vadd.f32 %v686, %v755
        %v788 = vadd.f32 %v687, %v756
        %v789 = vadd.f32 %v688, %v757
        %v790 = vadd.f32 %v689, %v758
        %v791 = vadd.f32 %v690, %v759
        %v792 = vadd.f32 %v691, %v760
        %v793 = vadd.f32 %v692, %v761
        %v794 = vadd.f32 %v693, %v762
        %v795 = vadd.f32 %v694, %v763
        %v796 = vadd.f32 %v695, %v764
        %v797 = vld [vmem:[%s392 + $0x1] sm:$0xff]
        %v798 = vld [vmem:[%s392 + $0x9] sm:$0xff]
        %v799 = vld [vmem:[%s392 + $0x19] sm:$0xff]
        %v800 = vld [vmem:[%s392 + $0x21] sm:$0xff]
        %v801 = vld [vmem:[%s392 + $0x31] sm:$0xff]
        %v802 = vld [vmem:[%s392 + $0x39] sm:$0xff]
        %v803 = vld [vmem:[%s392 + $0x49] sm:$0xff]
        %v804 = vld [vmem:[%s392 + $0x51] sm:$0xff]
        %v805 = vld [vmem:[%s392 + $0x61] sm:$0xff]
        %v806 = vld [vmem:[%s392 + $0x69] sm:$0xff]
        %v807 = vld [vmem:[%s392 + $0x79] sm:$0xff]
        %v808 = vld [vmem:[%s392 + $0x81] sm:$0xff]
        %v809 = vld [vmem:[%s392 + $0x91] sm:$0xff]
        %v810 = vld [vmem:[%s392 + $0x99] sm:$0xff]
        %v811 = vld [vmem:[%s392 + $0xa9] sm:$0xff]
        %v812 = vld [vmem:[%s392 + $0xb1] sm:$0xff]
        %v813 = vld [vmem:[%s392 + $0xc1] sm:$0xff]
        %v814 = vld [vmem:[%s392 + $0xc9] sm:$0xff]
        %v815 = vld [vmem:[%s392 + $0xd9] sm:$0xff]
        %v816 = vld [vmem:[%s392 + $0xe1] sm:$0xff]
        %v817 = vld [vmem:[%s392 + $0xf1] sm:$0xff]
        %v818 = vld [vmem:[%s392 + $0xf9] sm:$0xff]
        %v819 = vld [vmem:[%s392 + $0x109] sm:$0xff]
        %v820 = vld [vmem:[%s392 + $0x111] sm:$0xff]
        %v821 = vld [vmem:[%s392 + $0x121] sm:$0xff]
        %v822 = vld [vmem:[%s392 + $0x129] sm:$0xff]
        %v823 = vld [vmem:[%s392 + $0x139] sm:$0xff]
        %v824 = vld [vmem:[%s392 + $0x141] sm:$0xff]
        %v825 = vld [vmem:[%s392 + $0x151] sm:$0xff]
        %v826 = vld [vmem:[%s392 + $0x159] sm:$0xff]
        %v827 = vld [vmem:[%s392 + $0x169] sm:$0xff]
        %v828 = vld [vmem:[%s392 + $0x171] sm:$0xff]
        %v829 = vld [vmem:[%s309 + $0x4] sm:$0x1]
        %v830 = vlaneseq
        %v831 = vshrl.u32 %v830, 7
        %v832 = vsub.s32 0, %v831
        %v833 = vrot.slane %v829, %v832
        %v834 = vmul.f32 %v797, %v833
        %v835 = vmul.f32 %v798, %v833
        %v836 = vmul.f32 %v799, %v833
        %v837 = vmul.f32 %v800, %v833
        %v838 = vmul.f32 %v801, %v833
        %v839 = vmul.f32 %v802, %v833
        %v840 = vmul.f32 %v803, %v833
        %v841 = vmul.f32 %v804, %v833
        %v842 = vmul.f32 %v805, %v833
        %v843 = vmul.f32 %v806, %v833
        %v844 = vmul.f32 %v807, %v833
        %v845 = vmul.f32 %v808, %v833
        %v846 = vmul.f32 %v809, %v833
        %v847 = vmul.f32 %v810, %v833
        %v848 = vmul.f32 %v811, %v833
        %v849 = vmul.f32 %v812, %v833
        %v850 = vmul.f32 %v813, %v833
        %v851 = vmul.f32 %v814, %v833
        %v852 = vmul.f32 %v815, %v833
        %v853 = vmul.f32 %v816, %v833
        %v854 = vmul.f32 %v817, %v833
        %v855 = vmul.f32 %v818, %v833
        %v856 = vmul.f32 %v819, %v833
        %v857 = vmul.f32 %v820, %v833
        %v858 = vmul.f32 %v821, %v833
        %v859 = vmul.f32 %v822, %v833
        %v860 = vmul.f32 %v823, %v833
        %v861 = vmul.f32 %v824, %v833
        %v862 = vmul.f32 %v825, %v833
        %v863 = vmul.f32 %v826, %v833
        %v864 = vmul.f32 %v827, %v833
        %v865 = vmul.f32 %v828, %v833
        %v866 = vadd.f32 %v765, %v834
        %v867 = vadd.f32 %v766, %v835
        %v868 = vadd.f32 %v767, %v836
        %v869 = vadd.f32 %v768, %v837
        %v870 = vadd.f32 %v769, %v838
        %v871 = vadd.f32 %v770, %v839
        %v872 = vadd.f32 %v771, %v840
        %v873 = vadd.f32 %v772, %v841
        %v874 = vadd.f32 %v773, %v842
        %v875 = vadd.f32 %v774, %v843
        %v876 = vadd.f32 %v775, %v844
        %v877 = vadd.f32 %v776, %v845
        %v878 = vadd.f32 %v777, %v846
        %v879 = vadd.f32 %v778, %v847
        %v880 = vadd.f32 %v779, %v848
        %v881 = vadd.f32 %v780, %v849
        %v882 = vadd.f32 %v781, %v850
        %v883 = vadd.f32 %v782, %v851
        %v884 = vadd.f32 %v783, %v852
        %v885 = vadd.f32 %v784, %v853
        %v886 = vadd.f32 %v785, %v854
        %v887 = vadd.f32 %v786, %v855
        %v888 = vadd.f32 %v787, %v856
        %v889 = vadd.f32 %v788, %v857
        %v890 = vadd.f32 %v789, %v858
        %v891 = vadd.f32 %v790, %v859
        %v892 = vadd.f32 %v791, %v860
        %v893 = vadd.f32 %v792, %v861
        %v894 = vadd.f32 %v793, %v862
        %v895 = vadd.f32 %v794, %v863
        %v896 = vadd.f32 %v795, %v864
        %v897 = vadd.f32 %v796, %v865
        %v898 = vld [vmem:[%s392 + $0x2] sm:$0xff]
        %v899 = vld [vmem:[%s392 + $0xa] sm:$0xff]
        %v900 = vld [vmem:[%s392 + $0x1a] sm:$0xff]
        %v901 = vld [vmem:[%s392 + $0x22] sm:$0xff]
        %v902 = vld [vmem:[%s392 + $0x32] sm:$0xff]
        %v903 = vld [vmem:[%s392 + $0x3a] sm:$0xff]
        %v904 = vld [vmem:[%s392 + $0x4a] sm:$0xff]
        %v905 = vld [vmem:[%s392 + $0x52] sm:$0xff]
        %v906 = vld [vmem:[%s392 + $0x62] sm:$0xff]
        %v907 = vld [vmem:[%s392 + $0x6a] sm:$0xff]
        %v908 = vld [vmem:[%s392 + $0x7a] sm:$0xff]
        %v909 = vld [vmem:[%s392 + $0x82] sm:$0xff]
        %v910 = vld [vmem:[%s392 + $0x92] sm:$0xff]
        %v911 = vld [vmem:[%s392 + $0x9a] sm:$0xff]
        %v912 = vld [vmem:[%s392 + $0xaa] sm:$0xff]
        %v913 = vld [vmem:[%s392 + $0xb2] sm:$0xff]
        %v914 = vld [vmem:[%s392 + $0xc2] sm:$0xff]
        %v915 = vld [vmem:[%s392 + $0xca] sm:$0xff]
        %v916 = vld [vmem:[%s392 + $0xda] sm:$0xff]
        %v917 = vld [vmem:[%s392 + $0xe2] sm:$0xff]
        %v918 = vld [vmem:[%s392 + $0xf2] sm:$0xff]
        %v919 = vld [vmem:[%s392 + $0xfa] sm:$0xff]
        %v920 = vld [vmem:[%s392 + $0x10a] sm:$0xff]
        %v921 = vld [vmem:[%s392 + $0x112] sm:$0xff]
        %v922 = vld [vmem:[%s392 + $0x122] sm:$0xff]
        %v923 = vld [vmem:[%s392 + $0x12a] sm:$0xff]
        %v924 = vld [vmem:[%s392 + $0x13a] sm:$0xff]
        %v925 = vld [vmem:[%s392 + $0x142] sm:$0xff]
        %v926 = vld [vmem:[%s392 + $0x152] sm:$0xff]
        %v927 = vld [vmem:[%s392 + $0x15a] sm:$0xff]
        %v928 = vld [vmem:[%s392 + $0x16a] sm:$0xff]
        %v929 = vld [vmem:[%s392 + $0x172] sm:$0xff]
        %v930 = vld [vmem:[%s309 + $0x5] sm:$0x1]
        %v931 = vlaneseq
        %v932 = vshrl.u32 %v931, 7
        %v933 = vsub.s32 0, %v932
        %v934 = vrot.slane %v930, %v933
        %v935 = vmul.f32 %v898, %v934
        %v936 = vmul.f32 %v899, %v934
        %v937 = vmul.f32 %v900, %v934
        %v938 = vmul.f32 %v901, %v934
        %v939 = vmul.f32 %v902, %v934
        %v940 = vmul.f32 %v903, %v934
        %v941 = vmul.f32 %v904, %v934
        %v942 = vmul.f32 %v905, %v934
        %v943 = vmul.f32 %v906, %v934
        %v944 = vmul.f32 %v907, %v934
        %v945 = vmul.f32 %v908, %v934
        %v946 = vmul.f32 %v909, %v934
        %v947 = vmul.f32 %v910, %v934
        %v948 = vmul.f32 %v911, %v934
        %v949 = vmul.f32 %v912, %v934
        %v950 = vmul.f32 %v913, %v934
        %v951 = vmul.f32 %v914, %v934
        %v952 = vmul.f32 %v915, %v934
        %v953 = vmul.f32 %v916, %v934
        %v954 = vmul.f32 %v917, %v934
        %v955 = vmul.f32 %v918, %v934
        %v956 = vmul.f32 %v919, %v934
        %v957 = vmul.f32 %v920, %v934
        %v958 = vmul.f32 %v921, %v934
        %v959 = vmul.f32 %v922, %v934
        %v960 = vmul.f32 %v923, %v934
        %v961 = vmul.f32 %v924, %v934
        %v962 = vmul.f32 %v925, %v934
        %v963 = vmul.f32 %v926, %v934
        %v964 = vmul.f32 %v927, %v934
        %v965 = vmul.f32 %v928, %v934
        %v966 = vmul.f32 %v929, %v934
        %v967 = vadd.f32 %v866, %v935
        %v968 = vadd.f32 %v867, %v936
        %v969 = vadd.f32 %v868, %v937
        %v970 = vadd.f32 %v869, %v938
        %v971 = vadd.f32 %v870, %v939
        %v972 = vadd.f32 %v871, %v940
        %v973 = vadd.f32 %v872, %v941
        %v974 = vadd.f32 %v873, %v942
        %v975 = vadd.f32 %v874, %v943
        %v976 = vadd.f32 %v875, %v944
        %v977 = vadd.f32 %v876, %v945
        %v978 = vadd.f32 %v877, %v946
        %v979 = vadd.f32 %v878, %v947
        %v980 = vadd.f32 %v879, %v948
        %v981 = vadd.f32 %v880, %v949
        %v982 = vadd.f32 %v881, %v950
        %v983 = vadd.f32 %v882, %v951
        %v984 = vadd.f32 %v883, %v952
        %v985 = vadd.f32 %v884, %v953
        %v986 = vadd.f32 %v885, %v954
        %v987 = vadd.f32 %v886, %v955
        %v988 = vadd.f32 %v887, %v956
        %v989 = vadd.f32 %v888, %v957
        %v990 = vadd.f32 %v889, %v958
        %v991 = vadd.f32 %v890, %v959
        %v992 = vadd.f32 %v891, %v960
        %v993 = vadd.f32 %v892, %v961
        %v994 = vadd.f32 %v893, %v962
        %v995 = vadd.f32 %v894, %v963
        %v996 = vadd.f32 %v895, %v964
        %v997 = vadd.f32 %v896, %v965
        %v998 = vadd.f32 %v897, %v966
        %s999 = scalar_lea.vmem [#allocation2], 48
        %v1000 = vld [vmem:[%s999] sm:$0xff]
        %v1001 = vld [vmem:[%s999 + $0x8] sm:$0xff]
        %v1002 = vld [vmem:[%s999 + $0x18] sm:$0xff]
        %v1003 = vld [vmem:[%s999 + $0x20] sm:$0xff]
        %v1004 = vld [vmem:[%s999 + $0x30] sm:$0xff]
        %v1005 = vld [vmem:[%s999 + $0x38] sm:$0xff]
        %v1006 = vld [vmem:[%s999 + $0x48] sm:$0xff]
        %v1007 = vld [vmem:[%s999 + $0x50] sm:$0xff]
        %v1008 = vld [vmem:[%s999 + $0x60] sm:$0xff]
        %v1009 = vld [vmem:[%s999 + $0x68] sm:$0xff]
        %v1010 = vld [vmem:[%s999 + $0x78] sm:$0xff]
        %v1011 = vld [vmem:[%s999 + $0x80] sm:$0xff]
        %v1012 = vld [vmem:[%s999 + $0x90] sm:$0xff]
        %v1013 = vld [vmem:[%s999 + $0x98] sm:$0xff]
        %v1014 = vld [vmem:[%s999 + $0xa8] sm:$0xff]
        %v1015 = vld [vmem:[%s999 + $0xb0] sm:$0xff]
        %v1016 = vld [vmem:[%s999 + $0xc0] sm:$0xff]
        %v1017 = vld [vmem:[%s999 + $0xc8] sm:$0xff]
        %v1018 = vld [vmem:[%s999 + $0xd8] sm:$0xff]
        %v1019 = vld [vmem:[%s999 + $0xe0] sm:$0xff]
        %v1020 = vld [vmem:[%s999 + $0xf0] sm:$0xff]
        %v1021 = vld [vmem:[%s999 + $0xf8] sm:$0xff]
        %v1022 = vld [vmem:[%s999 + $0x108] sm:$0xff]
        %v1023 = vld [vmem:[%s999 + $0x110] sm:$0xff]
        %v1024 = vld [vmem:[%s999 + $0x120] sm:$0xff]
        %v1025 = vld [vmem:[%s999 + $0x128] sm:$0xff]
        %v1026 = vld [vmem:[%s999 + $0x138] sm:$0xff]
        %v1027 = vld [vmem:[%s999 + $0x140] sm:$0xff]
        %v1028 = vld [vmem:[%s999 + $0x150] sm:$0xff]
        %v1029 = vld [vmem:[%s999 + $0x158] sm:$0xff]
        %v1030 = vld [vmem:[%s999 + $0x168] sm:$0xff]
        %v1031 = vld [vmem:[%s999 + $0x170] sm:$0xff]
        %v1032 = vld [vmem:[%s309 + $0x6] sm:$0x1]
        %v1033 = vlaneseq
        %v1034 = vshrl.u32 %v1033, 7
        %v1035 = vsub.s32 0, %v1034
        %v1036 = vrot.slane %v1032, %v1035
        %v1037 = vmul.f32 %v1000, %v1036
        %v1038 = vmul.f32 %v1001, %v1036
        %v1039 = vmul.f32 %v1002, %v1036
        %v1040 = vmul.f32 %v1003, %v1036
        %v1041 = vmul.f32 %v1004, %v1036
        %v1042 = vmul.f32 %v1005, %v1036
        %v1043 = vmul.f32 %v1006, %v1036
        %v1044 = vmul.f32 %v1007, %v1036
        %v1045 = vmul.f32 %v1008, %v1036
        %v1046 = vmul.f32 %v1009, %v1036
        %v1047 = vmul.f32 %v1010, %v1036
        %v1048 = vmul.f32 %v1011, %v1036
        %v1049 = vmul.f32 %v1012, %v1036
        %v1050 = vmul.f32 %v1013, %v1036
        %v1051 = vmul.f32 %v1014, %v1036
        %v1052 = vmul.f32 %v1015, %v1036
        %v1053 = vmul.f32 %v1016, %v1036
        %v1054 = vmul.f32 %v1017, %v1036
        %v1055 = vmul.f32 %v1018, %v1036
        %v1056 = vmul.f32 %v1019, %v1036
        %v1057 = vmul.f32 %v1020, %v1036
        %v1058 = vmul.f32 %v1021, %v1036
        %v1059 = vmul.f32 %v1022, %v1036
        %v1060 = vmul.f32 %v1023, %v1036
        %v1061 = vmul.f32 %v1024, %v1036
        %v1062 = vmul.f32 %v1025, %v1036
        %v1063 = vmul.f32 %v1026, %v1036
        %v1064 = vmul.f32 %v1027, %v1036
        %v1065 = vmul.f32 %v1028, %v1036
        %v1066 = vmul.f32 %v1029, %v1036
        %v1067 = vmul.f32 %v1030, %v1036
        %v1068 = vmul.f32 %v1031, %v1036
        %v1069 = vadd.f32 %v967, %v1037
        %v1070 = vadd.f32 %v968, %v1038
        %v1071 = vadd.f32 %v969, %v1039
        %v1072 = vadd.f32 %v970, %v1040
        %v1073 = vadd.f32 %v971, %v1041
        %v1074 = vadd.f32 %v972, %v1042
        %v1075 = vadd.f32 %v973, %v1043
        %v1076 = vadd.f32 %v974, %v1044
        %v1077 = vadd.f32 %v975, %v1045
        %v1078 = vadd.f32 %v976, %v1046
        %v1079 = vadd.f32 %v977, %v1047
        %v1080 = vadd.f32 %v978, %v1048
        %v1081 = vadd.f32 %v979, %v1049
        %v1082 = vadd.f32 %v980, %v1050
        %v1083 = vadd.f32 %v981, %v1051
        %v1084 = vadd.f32 %v982, %v1052
        %v1085 = vadd.f32 %v983, %v1053
        %v1086 = vadd.f32 %v984, %v1054
        %v1087 = vadd.f32 %v985, %v1055
        %v1088 = vadd.f32 %v986, %v1056
        %v1089 = vadd.f32 %v987, %v1057
        %v1090 = vadd.f32 %v988, %v1058
        %v1091 = vadd.f32 %v989, %v1059
        %v1092 = vadd.f32 %v990, %v1060
        %v1093 = vadd.f32 %v991, %v1061
        %v1094 = vadd.f32 %v992, %v1062
        %v1095 = vadd.f32 %v993, %v1063
        %v1096 = vadd.f32 %v994, %v1064
        %v1097 = vadd.f32 %v995, %v1065
        %v1098 = vadd.f32 %v996, %v1066
        %v1099 = vadd.f32 %v997, %v1067
        %v1100 = vadd.f32 %v998, %v1068
        %v1101 = vld [vmem:[%s999 + $0x1] sm:$0xff]
        %v1102 = vld [vmem:[%s999 + $0x9] sm:$0xff]
        %v1103 = vld [vmem:[%s999 + $0x19] sm:$0xff]
        %v1104 = vld [vmem:[%s999 + $0x21] sm:$0xff]
        %v1105 = vld [vmem:[%s999 + $0x31] sm:$0xff]
        %v1106 = vld [vmem:[%s999 + $0x39] sm:$0xff]
        %v1107 = vld [vmem:[%s999 + $0x49] sm:$0xff]
        %v1108 = vld [vmem:[%s999 + $0x51] sm:$0xff]
        %v1109 = vld [vmem:[%s999 + $0x61] sm:$0xff]
        %v1110 = vld [vmem:[%s999 + $0x69] sm:$0xff]
        %v1111 = vld [vmem:[%s999 + $0x79] sm:$0xff]
        %v1112 = vld [vmem:[%s999 + $0x81] sm:$0xff]
        %v1113 = vld [vmem:[%s999 + $0x91] sm:$0xff]
        %v1114 = vld [vmem:[%s999 + $0x99] sm:$0xff]
        %v1115 = vld [vmem:[%s999 + $0xa9] sm:$0xff]
        %v1116 = vld [vmem:[%s999 + $0xb1] sm:$0xff]
        %v1117 = vld [vmem:[%s999 + $0xc1] sm:$0xff]
        %v1118 = vld [vmem:[%s999 + $0xc9] sm:$0xff]
        %v1119 = vld [vmem:[%s999 + $0xd9] sm:$0xff]
        %v1120 = vld [vmem:[%s999 + $0xe1] sm:$0xff]
        %v1121 = vld [vmem:[%s999 + $0xf1] sm:$0xff]
        %v1122 = vld [vmem:[%s999 + $0xf9] sm:$0xff]
        %v1123 = vld [vmem:[%s999 + $0x109] sm:$0xff]
        %v1124 = vld [vmem:[%s999 + $0x111] sm:$0xff]
        %v1125 = vld [vmem:[%s999 + $0x121] sm:$0xff]
        %v1126 = vld [vmem:[%s999 + $0x129] sm:$0xff]
        %v1127 = vld [vmem:[%s999 + $0x139] sm:$0xff]
        %v1128 = vld [vmem:[%s999 + $0x141] sm:$0xff]
        %v1129 = vld [vmem:[%s999 + $0x151] sm:$0xff]
        %v1130 = vld [vmem:[%s999 + $0x159] sm:$0xff]
        %v1131 = vld [vmem:[%s999 + $0x169] sm:$0xff]
        %v1132 = vld [vmem:[%s999 + $0x171] sm:$0xff]
        %v1133 = vld [vmem:[%s309 + $0x7] sm:$0x1]
        %v1134 = vlaneseq
        %v1135 = vshrl.u32 %v1134, 7
        %v1136 = vsub.s32 0, %v1135
        %v1137 = vrot.slane %v1133, %v1136
        %v1138 = vmul.f32 %v1101, %v1137
        %v1139 = vmul.f32 %v1102, %v1137
        %v1140 = vmul.f32 %v1103, %v1137
        %v1141 = vmul.f32 %v1104, %v1137
        %v1142 = vmul.f32 %v1105, %v1137
        %v1143 = vmul.f32 %v1106, %v1137
        %v1144 = vmul.f32 %v1107, %v1137
        %v1145 = vmul.f32 %v1108, %v1137
        %v1146 = vmul.f32 %v1109, %v1137
        %v1147 = vmul.f32 %v1110, %v1137
        %v1148 = vmul.f32 %v1111, %v1137
        %v1149 = vmul.f32 %v1112, %v1137
        %v1150 = vmul.f32 %v1113, %v1137
        %v1151 = vmul.f32 %v1114, %v1137
        %v1152 = vmul.f32 %v1115, %v1137
        %v1153 = vmul.f32 %v1116, %v1137
        %v1154 = vmul.f32 %v1117, %v1137
        %v1155 = vmul.f32 %v1118, %v1137
        %v1156 = vmul.f32 %v1119, %v1137
        %v1157 = vmul.f32 %v1120, %v1137
        %v1158 = vmul.f32 %v1121, %v1137
        %v1159 = vmul.f32 %v1122, %v1137
        %v1160 = vmul.f32 %v1123, %v1137
        %v1161 = vmul.f32 %v1124, %v1137
        %v1162 = vmul.f32 %v1125, %v1137
        %v1163 = vmul.f32 %v1126, %v1137
        %v1164 = vmul.f32 %v1127, %v1137
        %v1165 = vmul.f32 %v1128, %v1137
        %v1166 = vmul.f32 %v1129, %v1137
        %v1167 = vmul.f32 %v1130, %v1137
        %v1168 = vmul.f32 %v1131, %v1137
        %v1169 = vmul.f32 %v1132, %v1137
        %v1170 = vadd.f32 %v1069, %v1138
        %v1171 = vadd.f32 %v1070, %v1139
        %v1172 = vadd.f32 %v1071, %v1140
        %v1173 = vadd.f32 %v1072, %v1141
        %v1174 = vadd.f32 %v1073, %v1142
        %v1175 = vadd.f32 %v1074, %v1143
        %v1176 = vadd.f32 %v1075, %v1144
        %v1177 = vadd.f32 %v1076, %v1145
        %v1178 = vadd.f32 %v1077, %v1146
        %v1179 = vadd.f32 %v1078, %v1147
        %v1180 = vadd.f32 %v1079, %v1148
        %v1181 = vadd.f32 %v1080, %v1149
        %v1182 = vadd.f32 %v1081, %v1150
        %v1183 = vadd.f32 %v1082, %v1151
        %v1184 = vadd.f32 %v1083, %v1152
        %v1185 = vadd.f32 %v1084, %v1153
        %v1186 = vadd.f32 %v1085, %v1154
        %v1187 = vadd.f32 %v1086, %v1155
        %v1188 = vadd.f32 %v1087, %v1156
        %v1189 = vadd.f32 %v1088, %v1157
        %v1190 = vadd.f32 %v1089, %v1158
        %v1191 = vadd.f32 %v1090, %v1159
        %v1192 = vadd.f32 %v1091, %v1160
        %v1193 = vadd.f32 %v1092, %v1161
        %v1194 = vadd.f32 %v1093, %v1162
        %v1195 = vadd.f32 %v1094, %v1163
        %v1196 = vadd.f32 %v1095, %v1164
        %v1197 = vadd.f32 %v1096, %v1165
        %v1198 = vadd.f32 %v1097, %v1166
        %v1199 = vadd.f32 %v1098, %v1167
        %v1200 = vadd.f32 %v1099, %v1168
        %v1201 = vadd.f32 %v1100, %v1169
        %v1202 = vld [vmem:[%s999 + $0x2] sm:$0xff]
        %v1203 = vld [vmem:[%s999 + $0xa] sm:$0xff]
        %v1204 = vld [vmem:[%s999 + $0x1a] sm:$0xff]
        %v1205 = vld [vmem:[%s999 + $0x22] sm:$0xff]
        %v1206 = vld [vmem:[%s999 + $0x32] sm:$0xff]
        %v1207 = vld [vmem:[%s999 + $0x3a] sm:$0xff]
        %v1208 = vld [vmem:[%s999 + $0x4a] sm:$0xff]
        %v1209 = vld [vmem:[%s999 + $0x52] sm:$0xff]
        %v1210 = vld [vmem:[%s999 + $0x62] sm:$0xff]
        %v1211 = vld [vmem:[%s999 + $0x6a] sm:$0xff]
        %v1212 = vld [vmem:[%s999 + $0x7a] sm:$0xff]
        %v1213 = vld [vmem:[%s999 + $0x82] sm:$0xff]
        %v1214 = vld [vmem:[%s999 + $0x92] sm:$0xff]
        %v1215 = vld [vmem:[%s999 + $0x9a] sm:$0xff]
        %v1216 = vld [vmem:[%s999 + $0xaa] sm:$0xff]
        %v1217 = vld [vmem:[%s999 + $0xb2] sm:$0xff]
        %v1218 = vld [vmem:[%s999 + $0xc2] sm:$0xff]
        %v1219 = vld [vmem:[%s999 + $0xca] sm:$0xff]
        %v1220 = vld [vmem:[%s999 + $0xda] sm:$0xff]
        %v1221 = vld [vmem:[%s999 + $0xe2] sm:$0xff]
        %v1222 = vld [vmem:[%s999 + $0xf2] sm:$0xff]
        %v1223 = vld [vmem:[%s999 + $0xfa] sm:$0xff]
        %v1224 = vld [vmem:[%s999 + $0x10a] sm:$0xff]
        %v1225 = vld [vmem:[%s999 + $0x112] sm:$0xff]
        %v1226 = vld [vmem:[%s999 + $0x122] sm:$0xff]
        %v1227 = vld [vmem:[%s999 + $0x12a] sm:$0xff]
        %v1228 = vld [vmem:[%s999 + $0x13a] sm:$0xff]
        %v1229 = vld [vmem:[%s999 + $0x142] sm:$0xff]
        %v1230 = vld [vmem:[%s999 + $0x152] sm:$0xff]
        %v1231 = vld [vmem:[%s999 + $0x15a] sm:$0xff]
        %v1232 = vld [vmem:[%s999 + $0x16a] sm:$0xff]
        %v1233 = vld [vmem:[%s999 + $0x172] sm:$0xff]
        %v1234 = vld [vmem:[%s309 + $0x8] sm:$0x1]
        %v1235 = vlaneseq
        %v1236 = vshrl.u32 %v1235, 7
        %v1237 = vsub.s32 0, %v1236
        %v1238 = vrot.slane %v1234, %v1237
        %v1239 = vmul.f32 %v1202, %v1238
        %v1240 = vmul.f32 %v1203, %v1238
        %v1241 = vmul.f32 %v1204, %v1238
        %v1242 = vmul.f32 %v1205, %v1238
        %v1243 = vmul.f32 %v1206, %v1238
        %v1244 = vmul.f32 %v1207, %v1238
        %v1245 = vmul.f32 %v1208, %v1238
        %v1246 = vmul.f32 %v1209, %v1238
        %v1247 = vmul.f32 %v1210, %v1238
        %v1248 = vmul.f32 %v1211, %v1238
        %v1249 = vmul.f32 %v1212, %v1238
        %v1250 = vmul.f32 %v1213, %v1238
        %v1251 = vmul.f32 %v1214, %v1238
        %v1252 = vmul.f32 %v1215, %v1238
        %v1253 = vmul.f32 %v1216, %v1238
        %v1254 = vmul.f32 %v1217, %v1238
        %v1255 = vmul.f32 %v1218, %v1238
        %v1256 = vmul.f32 %v1219, %v1238
        %v1257 = vmul.f32 %v1220, %v1238
        %v1258 = vmul.f32 %v1221, %v1238
        %v1259 = vmul.f32 %v1222, %v1238
        %v1260 = vmul.f32 %v1223, %v1238
        %v1261 = vmul.f32 %v1224, %v1238
        %v1262 = vmul.f32 %v1225, %v1238
        %v1263 = vmul.f32 %v1226, %v1238
        %v1264 = vmul.f32 %v1227, %v1238
        %v1265 = vmul.f32 %v1228, %v1238
        %v1266 = vmul.f32 %v1229, %v1238
        %v1267 = vmul.f32 %v1230, %v1238
        %v1268 = vmul.f32 %v1231, %v1238
        %v1269 = vmul.f32 %v1232, %v1238
        %v1270 = vmul.f32 %v1233, %v1238
        %v1271 = vadd.f32 %v1170, %v1239
        %v1272 = vadd.f32 %v1171, %v1240
        %v1273 = vadd.f32 %v1172, %v1241
        %v1274 = vadd.f32 %v1173, %v1242
        %v1275 = vadd.f32 %v1174, %v1243
        %v1276 = vadd.f32 %v1175, %v1244
        %v1277 = vadd.f32 %v1176, %v1245
        %v1278 = vadd.f32 %v1177, %v1246
        %v1279 = vadd.f32 %v1178, %v1247
        %v1280 = vadd.f32 %v1179, %v1248
        %v1281 = vadd.f32 %v1180, %v1249
        %v1282 = vadd.f32 %v1181, %v1250
        %v1283 = vadd.f32 %v1182, %v1251
        %v1284 = vadd.f32 %v1183, %v1252
        %v1285 = vadd.f32 %v1184, %v1253
        %v1286 = vadd.f32 %v1185, %v1254
        %v1287 = vadd.f32 %v1186, %v1255
        %v1288 = vadd.f32 %v1187, %v1256
        %v1289 = vadd.f32 %v1188, %v1257
        %v1290 = vadd.f32 %v1189, %v1258
        %v1291 = vadd.f32 %v1190, %v1259
        %v1292 = vadd.f32 %v1191, %v1260
        %v1293 = vadd.f32 %v1192, %v1261
        %v1294 = vadd.f32 %v1193, %v1262
        %v1295 = vadd.f32 %v1194, %v1263
        %v1296 = vadd.f32 %v1195, %v1264
        %v1297 = vadd.f32 %v1196, %v1265
        %v1298 = vadd.f32 %v1197, %v1266
        %v1299 = vadd.f32 %v1198, %v1267
        %v1300 = vadd.f32 %v1199, %v1268
        %v1301 = vadd.f32 %v1200, %v1269
        %v1302 = vadd.f32 %v1201, %v1270
        %vm1303 = vcmp.gt.f32.partialorder %v1271, 0.0
        %vm1304 = vcmp.gt.f32.partialorder %v1272, 0.0
        %vm1305 = vcmp.gt.f32.partialorder %v1273, 0.0
        %vm1306 = vcmp.gt.f32.partialorder %v1274, 0.0
        %vm1307 = vcmp.gt.f32.partialorder %v1275, 0.0
        %vm1308 = vcmp.gt.f32.partialorder %v1276, 0.0
        %vm1309 = vcmp.gt.f32.partialorder %v1277, 0.0
        %vm1310 = vcmp.gt.f32.partialorder %v1278, 0.0
        %vm1311 = vcmp.gt.f32.partialorder %v1279, 0.0
        %vm1312 = vcmp.gt.f32.partialorder %v1280, 0.0
        %vm1313 = vcmp.gt.f32.partialorder %v1281, 0.0
        %vm1314 = vcmp.gt.f32.partialorder %v1282, 0.0
        %vm1315 = vcmp.gt.f32.partialorder %v1283, 0.0
        %vm1316 = vcmp.gt.f32.partialorder %v1284, 0.0
        %vm1317 = vcmp.gt.f32.partialorder %v1285, 0.0
        %vm1318 = vcmp.gt.f32.partialorder %v1286, 0.0
        %vm1319 = vcmp.gt.f32.partialorder %v1287, 0.0
        %vm1320 = vcmp.gt.f32.partialorder %v1288, 0.0
        %vm1321 = vcmp.gt.f32.partialorder %v1289, 0.0
        %vm1322 = vcmp.gt.f32.partialorder %v1290, 0.0
        %vm1323 = vcmp.gt.f32.partialorder %v1291, 0.0
        %vm1324 = vcmp.gt.f32.partialorder %v1292, 0.0
        %vm1325 = vcmp.gt.f32.partialorder %v1293, 0.0
        %vm1326 = vcmp.gt.f32.partialorder %v1294, 0.0
        %vm1327 = vcmp.gt.f32.partialorder %v1295, 0.0
        %vm1328 = vcmp.gt.f32.partialorder %v1296, 0.0
        %vm1329 = vcmp.gt.f32.partialorder %v1297, 0.0
        %vm1330 = vcmp.gt.f32.partialorder %v1298, 0.0
        %vm1331 = vcmp.gt.f32.partialorder %v1299, 0.0
        %vm1332 = vcmp.gt.f32.partialorder %v1300, 0.0
        %vm1333 = vcmp.gt.f32.partialorder %v1301, 0.0
        %vm1334 = vcmp.gt.f32.partialorder %v1302, 0.0
        %v1335 = vmul.f32 %v1271, 0.1
        %v1336 = vmul.f32 %v1272, 0.1
        %v1337 = vmul.f32 %v1273, 0.1
        %v1338 = vmul.f32 %v1274, 0.1
        %v1339 = vmul.f32 %v1275, 0.1
        %v1340 = vmul.f32 %v1276, 0.1
        %v1341 = vmul.f32 %v1277, 0.1
        %v1342 = vmul.f32 %v1278, 0.1
        %v1343 = vmul.f32 %v1279, 0.1
        %v1344 = vmul.f32 %v1280, 0.1
        %v1345 = vmul.f32 %v1281, 0.1
        %v1346 = vmul.f32 %v1282, 0.1
        %v1347 = vmul.f32 %v1283, 0.1
        %v1348 = vmul.f32 %v1284, 0.1
        %v1349 = vmul.f32 %v1285, 0.1
        %v1350 = vmul.f32 %v1286, 0.1
        %v1351 = vmul.f32 %v1287, 0.1
        %v1352 = vmul.f32 %v1288, 0.1
        %v1353 = vmul.f32 %v1289, 0.1
        %v1354 = vmul.f32 %v1290, 0.1
        %v1355 = vmul.f32 %v1291, 0.1
        %v1356 = vmul.f32 %v1292, 0.1
        %v1357 = vmul.f32 %v1293, 0.1
        %v1358 = vmul.f32 %v1294, 0.1
        %v1359 = vmul.f32 %v1295, 0.1
        %v1360 = vmul.f32 %v1296, 0.1
        %v1361 = vmul.f32 %v1297, 0.1
        %v1362 = vmul.f32 %v1298, 0.1
        %v1363 = vmul.f32 %v1299, 0.1
        %v1364 = vmul.f32 %v1300, 0.1
        %v1365 = vmul.f32 %v1301, 0.1
        %v1366 = vmul.f32 %v1302, 0.1
        %v1367 = vsel %vm1303, %v1271, %v1335
        %v1368 = vsel %vm1304, %v1272, %v1336
        %v1369 = vsel %vm1305, %v1273, %v1337
        %v1370 = vsel %vm1306, %v1274, %v1338
        %v1371 = vsel %vm1307, %v1275, %v1339
        %v1372 = vsel %vm1308, %v1276, %v1340
        %v1373 = vsel %vm1309, %v1277, %v1341
        %v1374 = vsel %vm1310, %v1278, %v1342
        %v1375 = vsel %vm1311, %v1279, %v1343
        %v1376 = vsel %vm1312, %v1280, %v1344
        %v1377 = vsel %vm1313, %v1281, %v1345
        %v1378 = vsel %vm1314, %v1282, %v1346
        %v1379 = vsel %vm1315, %v1283, %v1347
        %v1380 = vsel %vm1316, %v1284, %v1348
        %v1381 = vsel %vm1317, %v1285, %v1349
        %v1382 = vsel %vm1318, %v1286, %v1350
        %v1383 = vsel %vm1319, %v1287, %v1351
        %v1384 = vsel %vm1320, %v1288, %v1352
        %v1385 = vsel %vm1321, %v1289, %v1353
        %v1386 = vsel %vm1322, %v1290, %v1354
        %v1387 = vsel %vm1323, %v1291, %v1355
        %v1388 = vsel %vm1324, %v1292, %v1356
        %v1389 = vsel %vm1325, %v1293, %v1357
        %v1390 = vsel %vm1326, %v1294, %v1358
        %v1391 = vsel %vm1327, %v1295, %v1359
        %v1392 = vsel %vm1328, %v1296, %v1360
        %v1393 = vsel %vm1329, %v1297, %v1361
        %v1394 = vsel %vm1330, %v1298, %v1362
        %v1395 = vsel %vm1331, %v1299, %v1363
        %v1396 = vsel %vm1332, %v1300, %v1364
        %v1397 = vsel %vm1333, %v1301, %v1365
        %v1398 = vsel %vm1334, %v1302, %v1366
        %v1399 = vld [vmem:[%s3] sm:$0xff]
        %v1400 = vld [vmem:[%s3 + $0x8] sm:$0xff]
        %v1401 = vld [vmem:[%s3 + $0x10] sm:$0xff]
        %v1402 = vld [vmem:[%s3 + $0x18] sm:$0xff]
        %v1403 = vld [vmem:[%s4] sm:$0x1]
        %v1405 = vlaneseq
        %v1406 = vshrl.u32 %v1405, 7
        %v1407 = vsub.s32 0, %v1406
        %v1408 = vrot.slane %v1403, %v1407
        %v1411 = vsel %vm314, %v1367, 0
        %v1414 = vsel %vm314, %v1368, 0
        %v1417 = vsel %vm314, %v1369, 0
        %v1420 = vsel %vm314, %v1370, 0
        %v1423 = vsel %vm314, %v1371, 0
        %v1426 = vsel %vm314, %v1372, 0
        %v1429 = vsel %vm314, %v1373, 0
        %v1432 = vsel %vm314, %v1374, 0
        %v1435 = vsel %vm314, %v1375, 0
        %v1438 = vsel %vm314, %v1376, 0
        %v1441 = vsel %vm314, %v1377, 0
        %v1444 = vsel %vm314, %v1378, 0
        %v1447 = vsel %vm314, %v1379, 0
        %v1450 = vsel %vm314, %v1380, 0
        %v1453 = vsel %vm314, %v1381, 0
        %v1456 = vsel %vm314, %v1382, 0
        %v1459 = vsel %vm314, %v1383, 0
        %v1462 = vsel %vm314, %v1384, 0
        %v1465 = vsel %vm314, %v1385, 0
        %v1468 = vsel %vm314, %v1386, 0
        %v1471 = vsel %vm314, %v1387, 0
        %v1474 = vsel %vm314, %v1388, 0
        %v1477 = vsel %vm314, %v1389, 0
        %v1480 = vsel %vm314, %v1390, 0
        %v1483 = vsel %vm314, %v1391, 0
        %v1486 = vsel %vm314, %v1392, 0
        %v1489 = vsel %vm314, %v1393, 0
        %v1492 = vsel %vm314, %v1394, 0
        %v1495 = vsel %vm314, %v1395, 0
        %v1498 = vsel %vm314, %v1396, 0
        %v1501 = vsel %vm314, %v1397, 0
        %v1504 = vsel %vm314, %v1398, 0
        %1506 = vmatprep.subr.mxu0 0.0
        %1507 = vmatpush1.msra.mxu0 0.0
        %1508 = vmatprep.subr.mxu0 0.0
        %1509 = vmatpush1.msra.mxu0 0.0
        %1510 = vmatprep.subr.mxu0 0.0
        %1511 = vmatpush1.msra.mxu0 0.0
        %1512 = vmatprep.subr.mxu0 0.0
        %1513 = vmatpush1.msra.mxu0 0.0
        %1514 = vmatprep.subr.mxu0 0.0
        %1515 = vmatpush1.msra.mxu0 0.0
        %1516 = vmatprep.subr.mxu0 0.0
        %1517 = vmatpush1.msra.mxu0 0.0
        %1518 = vmatprep.subr.mxu0 0.0
        %1519 = vmatpush1.msra.mxu0 0.0
        %1520 = vmatprep.subr.mxu0 0.0
        %1521 = vmatpush1.msra.mxu0 0.0
        %1522 = vmatprep.subr.mxu0 0.0
        %1523 = vmatpush1.msra.mxu0 0.0
        %1524 = vmatprep.subr.mxu0 0.0
        %1525 = vmatpush1.msra.mxu0 0.0
        %1526 = vmatprep.subr.mxu0 0.0
        %1527 = vmatpush1.msra.mxu0 0.0
        %1528 = vmatprep.subr.mxu0 0.0
        %1529 = vmatpush1.msra.mxu0 0.0
        %1530 = vmatprep.subr.mxu0 0.0
        %1531 = vmatpush1.msra.mxu0 %v1402
        %1532 = vmatprep.subr.mxu0 0.0
        %1533 = vmatpush1.msra.mxu0 %v1401
        %1534 = vmatprep.subr.mxu0 0.0
        %1535 = vmatpush1.msra.mxu0 %v1400
        %1536 = vmatprep.subr.mxu0 0.0
        %1537 = vmatpush1.msra.mxu0 %v1399
        %1538 = vmatprep.subr.mxu0 0.0
        %1539 = vmatpush2.msra.mxu0 0.0
        %1540 = vmatprep.subr.mxu0 0.0
        %1541 = vmatpush2.msra.mxu0 0.0
        %1542 = vmatprep.subr.mxu0 0.0
        %1543 = vmatpush2.msra.mxu0 0.0
        %1544 = vmatprep.subr.mxu0 0.0
        %1545 = vmatpush2.msra.mxu0 0.0
        %1546 = vmatprep.subr.mxu0 0.0
        %1547 = vmatpush2.msra.mxu0 0.0
        %1548 = vmatprep.subr.mxu0 0.0
        %1549 = vmatpush2.msra.mxu0 0.0
        %1550 = vmatprep.subr.mxu0 0.0
        %1551 = vmatpush2.msra.mxu0 0.0
        %1552 = vmatprep.subr.mxu0 0.0
        %1553 = vmatpush2.msra.mxu0 0.0
        %1554 = vmatprep.subr.mxu0 0.0
        %1555 = vmatpush2.msra.mxu0 0.0
        %1556 = vmatprep.subr.mxu0 0.0
        %1557 = vmatpush2.msra.mxu0 0.0
        %1558 = vmatprep.subr.mxu0 0.0
        %1559 = vmatpush2.msra.mxu0 0.0
        %1560 = vmatprep.subr.mxu0 0.0
        %1561 = vmatpush2.msra.mxu0 0.0
        %1562 = vmatprep.subr.mxu0 0.0
        %1563 = vmatpush2.msra.mxu0 0.0
        %1564 = vmatprep.subr.mxu0 0.0
        %1565 = vmatpush2.msra.mxu0 0.0
        %1566 = vmatprep.subr.mxu0 0.0
        %1567 = vmatpush2.msra.mxu0 0.0
        %1568 = vmatprep.subr.mxu0 0.0
        %1569 = vmatpush2.msra.mxu0 0.0
        %1570 = vmatprep.mubr.f32.mxu0 0.0
        %1571 = vmatmul.mubr.f32.gmra.mxu0 %v1411
        %v1572 = vpop.f32.mrf.mxu0
        %v1573 = vadd.f32 %v1408, %v1572
        %v1574 = vpop.f32.mrf.mxu0
        %1575 = vmatprep.mubr.f32.mxu0 0.0
        %1576 = vmatmul.mubr.f32.gmra.mxu0 %v1414
        %v1577 = vpop.f32.mrf.mxu0
        %v1578 = vadd.f32 %v1408, %v1577
        %v1579 = vpop.f32.mrf.mxu0
        %1580 = vmatprep.mubr.f32.mxu0 0.0
        %1581 = vmatmul.mubr.f32.gmra.mxu0 %v1417
        %v1582 = vpop.f32.mrf.mxu0
        %v1583 = vadd.f32 %v1408, %v1582
        %v1584 = vpop.f32.mrf.mxu0
        %1585 = vmatprep.mubr.f32.mxu0 0.0
        %1586 = vmatmul.mubr.f32.gmra.mxu0 %v1420
        %v1587 = vpop.f32.mrf.mxu0
        %v1588 = vadd.f32 %v1408, %v1587
        %v1589 = vpop.f32.mrf.mxu0
        %1590 = vmatprep.mubr.f32.mxu0 0.0
        %1591 = vmatmul.mubr.f32.gmra.mxu0 %v1423
        %v1592 = vpop.f32.mrf.mxu0
        %v1593 = vadd.f32 %v1408, %v1592
        %v1594 = vpop.f32.mrf.mxu0
        %1595 = vmatprep.mubr.f32.mxu0 0.0
        %1596 = vmatmul.mubr.f32.gmra.mxu0 %v1426
        %v1597 = vpop.f32.mrf.mxu0
        %v1598 = vadd.f32 %v1408, %v1597
        %v1599 = vpop.f32.mrf.mxu0
        %1600 = vmatprep.mubr.f32.mxu0 0.0
        %1601 = vmatmul.mubr.f32.gmra.mxu0 %v1429
        %v1602 = vpop.f32.mrf.mxu0
        %v1603 = vadd.f32 %v1408, %v1602
        %v1604 = vpop.f32.mrf.mxu0
        %1605 = vmatprep.mubr.f32.mxu0 0.0
        %1606 = vmatmul.mubr.f32.gmra.mxu0 %v1432
        %v1607 = vpop.f32.mrf.mxu0
        %v1608 = vadd.f32 %v1408, %v1607
        %v1609 = vpop.f32.mrf.mxu0
        %1610 = vmatprep.mubr.f32.mxu0 0.0
        %1611 = vmatmul.mubr.f32.gmra.mxu0 %v1435
        %v1612 = vpop.f32.mrf.mxu0
        %v1613 = vadd.f32 %v1408, %v1612
        %v1614 = vpop.f32.mrf.mxu0
        %1615 = vmatprep.mubr.f32.mxu0 0.0
        %1616 = vmatmul.mubr.f32.gmra.mxu0 %v1438
        %v1617 = vpop.f32.mrf.mxu0
        %v1618 = vadd.f32 %v1408, %v1617
        %v1619 = vpop.f32.mrf.mxu0
        %1620 = vmatprep.mubr.f32.mxu0 0.0
        %1621 = vmatmul.mubr.f32.gmra.mxu0 %v1441
        %v1622 = vpop.f32.mrf.mxu0
        %v1623 = vadd.f32 %v1408, %v1622
        %v1624 = vpop.f32.mrf.mxu0
        %1625 = vmatprep.mubr.f32.mxu0 0.0
        %1626 = vmatmul.mubr.f32.gmra.mxu0 %v1444
        %v1627 = vpop.f32.mrf.mxu0
        %v1628 = vadd.f32 %v1408, %v1627
        %v1629 = vpop.f32.mrf.mxu0
        %1630 = vmatprep.mubr.f32.mxu0 0.0
        %1631 = vmatmul.mubr.f32.gmra.mxu0 %v1447
        %v1632 = vpop.f32.mrf.mxu0
        %v1633 = vadd.f32 %v1408, %v1632
        %v1634 = vpop.f32.mrf.mxu0
        %1635 = vmatprep.mubr.f32.mxu0 0.0
        %1636 = vmatmul.mubr.f32.gmra.mxu0 %v1450
        %v1637 = vpop.f32.mrf.mxu0
        %v1638 = vadd.f32 %v1408, %v1637
        %v1639 = vpop.f32.mrf.mxu0
        %1640 = vmatprep.mubr.f32.mxu0 0.0
        %1641 = vmatmul.mubr.f32.gmra.mxu0 %v1453
        %v1642 = vpop.f32.mrf.mxu0
        %v1643 = vadd.f32 %v1408, %v1642
        %v1644 = vpop.f32.mrf.mxu0
        %1645 = vmatprep.mubr.f32.mxu0 0.0
        %1646 = vmatmul.mubr.f32.gmra.mxu0 %v1456
        %v1647 = vpop.f32.mrf.mxu0
        %v1648 = vadd.f32 %v1408, %v1647
        %v1649 = vpop.f32.mrf.mxu0
        %1650 = vmatprep.mubr.f32.mxu0 0.0
        %1651 = vmatmul.mubr.f32.gmra.mxu0 %v1459
        %v1652 = vpop.f32.mrf.mxu0
        %v1653 = vadd.f32 %v1408, %v1652
        %v1654 = vpop.f32.mrf.mxu0
        %1655 = vmatprep.mubr.f32.mxu0 0.0
        %1656 = vmatmul.mubr.f32.gmra.mxu0 %v1462
        %v1657 = vpop.f32.mrf.mxu0
        %v1658 = vadd.f32 %v1408, %v1657
        %v1659 = vpop.f32.mrf.mxu0
        %1660 = vmatprep.mubr.f32.mxu0 0.0
        %1661 = vmatmul.mubr.f32.gmra.mxu0 %v1465
        %v1662 = vpop.f32.mrf.mxu0
        %v1663 = vadd.f32 %v1408, %v1662
        %v1664 = vpop.f32.mrf.mxu0
        %1665 = vmatprep.mubr.f32.mxu0 0.0
        %1666 = vmatmul.mubr.f32.gmra.mxu0 %v1468
        %v1667 = vpop.f32.mrf.mxu0
        %v1668 = vadd.f32 %v1408, %v1667
        %v1669 = vpop.f32.mrf.mxu0
        %1670 = vmatprep.mubr.f32.mxu0 0.0
        %1671 = vmatmul.mubr.f32.gmra.mxu0 %v1471
        %v1672 = vpop.f32.mrf.mxu0
        %v1673 = vadd.f32 %v1408, %v1672
        %v1674 = vpop.f32.mrf.mxu0
        %1675 = vmatprep.mubr.f32.mxu0 0.0
        %1676 = vmatmul.mubr.f32.gmra.mxu0 %v1474
        %v1677 = vpop.f32.mrf.mxu0
        %v1678 = vadd.f32 %v1408, %v1677
        %v1679 = vpop.f32.mrf.mxu0
        %1680 = vmatprep.mubr.f32.mxu0 0.0
        %1681 = vmatmul.mubr.f32.gmra.mxu0 %v1477
        %v1682 = vpop.f32.mrf.mxu0
        %v1683 = vadd.f32 %v1408, %v1682
        %v1684 = vpop.f32.mrf.mxu0
        %1685 = vmatprep.mubr.f32.mxu0 0.0
        %1686 = vmatmul.mubr.f32.gmra.mxu0 %v1480
        %v1687 = vpop.f32.mrf.mxu0
        %v1688 = vadd.f32 %v1408, %v1687
        %v1689 = vpop.f32.mrf.mxu0
        %1690 = vmatprep.mubr.f32.mxu0 0.0
        %1691 = vmatmul.mubr.f32.gmra.mxu0 %v1483
        %v1692 = vpop.f32.mrf.mxu0
        %v1693 = vadd.f32 %v1408, %v1692
        %v1694 = vpop.f32.mrf.mxu0
        %1695 = vmatprep.mubr.f32.mxu0 0.0
        %1696 = vmatmul.mubr.f32.gmra.mxu0 %v1486
        %v1697 = vpop.f32.mrf.mxu0
        %v1698 = vadd.f32 %v1408, %v1697
        %v1699 = vpop.f32.mrf.mxu0
        %1700 = vmatprep.mubr.f32.mxu0 0.0
        %1701 = vmatmul.mubr.f32.gmra.mxu0 %v1489
        %v1702 = vpop.f32.mrf.mxu0
        %v1703 = vadd.f32 %v1408, %v1702
        %v1704 = vpop.f32.mrf.mxu0
        %1705 = vmatprep.mubr.f32.mxu0 0.0
        %1706 = vmatmul.mubr.f32.gmra.mxu0 %v1492
        %v1707 = vpop.f32.mrf.mxu0
        %v1708 = vadd.f32 %v1408, %v1707
        %v1709 = vpop.f32.mrf.mxu0
        %1710 = vmatprep.mubr.f32.mxu0 0.0
        %1711 = vmatmul.mubr.f32.gmra.mxu0 %v1495
        %v1712 = vpop.f32.mrf.mxu0
        %v1713 = vadd.f32 %v1408, %v1712
        %v1714 = vpop.f32.mrf.mxu0
        %1715 = vmatprep.mubr.f32.mxu0 0.0
        %1716 = vmatmul.mubr.f32.gmra.mxu0 %v1498
        %v1717 = vpop.f32.mrf.mxu0
        %v1718 = vadd.f32 %v1408, %v1717
        %v1719 = vpop.f32.mrf.mxu0
        %1720 = vmatprep.mubr.f32.mxu0 0.0
        %1721 = vmatmul.mubr.f32.gmra.mxu0 %v1501
        %v1722 = vpop.f32.mrf.mxu0
        %v1723 = vadd.f32 %v1408, %v1722
        %v1724 = vpop.f32.mrf.mxu0
        %1725 = vmatprep.mubr.f32.mxu0 0.0
        %1726 = vmatmul.mubr.f32.gmra.mxu0 %v1504
        %v1727 = vpop.f32.mrf.mxu0
        %v1728 = vadd.f32 %v1408, %v1727
        %v1729 = vpop.f32.mrf.mxu0
        %1730 = vdwg.mxu0
        %v1731 = vld [vmem:[%s313] sm:$0x1]
        %v1732 = vlaneseq
        %v1733 = vshrl.u32 %v1732, 7
        %v1734 = vsub.s32 0, %v1733
        %v1735 = vrot.slane %v1731, %v1734
        %v1736 = vmul.f32 %v797, %v1735
        %v1737 = vmul.f32 %v798, %v1735
        %v1738 = vmul.f32 %v799, %v1735
        %v1739 = vmul.f32 %v800, %v1735
        %v1740 = vmul.f32 %v801, %v1735
        %v1741 = vmul.f32 %v802, %v1735
        %v1742 = vmul.f32 %v803, %v1735
        %v1743 = vmul.f32 %v804, %v1735
        %v1744 = vmul.f32 %v805, %v1735
        %v1745 = vmul.f32 %v806, %v1735
        %v1746 = vmul.f32 %v807, %v1735
        %v1747 = vmul.f32 %v808, %v1735
        %v1748 = vmul.f32 %v809, %v1735
        %v1749 = vmul.f32 %v810, %v1735
        %v1750 = vmul.f32 %v811, %v1735
        %v1751 = vmul.f32 %v812, %v1735
        %v1752 = vmul.f32 %v813, %v1735
        %v1753 = vmul.f32 %v814, %v1735
        %v1754 = vmul.f32 %v815, %v1735
        %v1755 = vmul.f32 %v816, %v1735
        %v1756 = vmul.f32 %v817, %v1735
        %v1757 = vmul.f32 %v818, %v1735
        %v1758 = vmul.f32 %v819, %v1735
        %v1759 = vmul.f32 %v820, %v1735
        %v1760 = vmul.f32 %v821, %v1735
        %v1761 = vmul.f32 %v822, %v1735
        %v1762 = vmul.f32 %v823, %v1735
        %v1763 = vmul.f32 %v824, %v1735
        %v1764 = vmul.f32 %v825, %v1735
        %v1765 = vmul.f32 %v826, %v1735
        %v1766 = vmul.f32 %v827, %v1735
        %v1767 = vmul.f32 %v828, %v1735
        %v1768 = vadd.f32 %v1573, %v1736
        %v1769 = vadd.f32 %v1578, %v1737
        %v1770 = vadd.f32 %v1583, %v1738
        %v1771 = vadd.f32 %v1588, %v1739
        %v1772 = vadd.f32 %v1593, %v1740
        %v1773 = vadd.f32 %v1598, %v1741
        %v1774 = vadd.f32 %v1603, %v1742
        %v1775 = vadd.f32 %v1608, %v1743
        %v1776 = vadd.f32 %v1613, %v1744
        %v1777 = vadd.f32 %v1618, %v1745
        %v1778 = vadd.f32 %v1623, %v1746
        %v1779 = vadd.f32 %v1628, %v1747
        %v1780 = vadd.f32 %v1633, %v1748
        %v1781 = vadd.f32 %v1638, %v1749
        %v1782 = vadd.f32 %v1643, %v1750
        %v1783 = vadd.f32 %v1648, %v1751
        %v1784 = vadd.f32 %v1653, %v1752
        %v1785 = vadd.f32 %v1658, %v1753
        %v1786 = vadd.f32 %v1663, %v1754
        %v1787 = vadd.f32 %v1668, %v1755
        %v1788 = vadd.f32 %v1673, %v1756
        %v1789 = vadd.f32 %v1678, %v1757
        %v1790 = vadd.f32 %v1683, %v1758
        %v1791 = vadd.f32 %v1688, %v1759
        %v1792 = vadd.f32 %v1693, %v1760
        %v1793 = vadd.f32 %v1698, %v1761
        %v1794 = vadd.f32 %v1703, %v1762
        %v1795 = vadd.f32 %v1708, %v1763
        %v1796 = vadd.f32 %v1713, %v1764
        %v1797 = vadd.f32 %v1718, %v1765
        %v1798 = vadd.f32 %v1723, %v1766
        %v1799 = vadd.f32 %v1728, %v1767
        %vm1800 = vcmp.gt.f32.partialorder %v1768, 0.0
        %vm1801 = vcmp.gt.f32.partialorder %v1769, 0.0
        %vm1802 = vcmp.gt.f32.partialorder %v1770, 0.0
        %vm1803 = vcmp.gt.f32.partialorder %v1771, 0.0
        %vm1804 = vcmp.gt.f32.partialorder %v1772, 0.0
        %vm1805 = vcmp.gt.f32.partialorder %v1773, 0.0
        %vm1806 = vcmp.gt.f32.partialorder %v1774, 0.0
        %vm1807 = vcmp.gt.f32.partialorder %v1775, 0.0
        %vm1808 = vcmp.gt.f32.partialorder %v1776, 0.0
        %vm1809 = vcmp.gt.f32.partialorder %v1777, 0.0
        %vm1810 = vcmp.gt.f32.partialorder %v1778, 0.0
        %vm1811 = vcmp.gt.f32.partialorder %v1779, 0.0
        %vm1812 = vcmp.gt.f32.partialorder %v1780, 0.0
        %vm1813 = vcmp.gt.f32.partialorder %v1781, 0.0
        %vm1814 = vcmp.gt.f32.partialorder %v1782, 0.0
        %vm1815 = vcmp.gt.f32.partialorder %v1783, 0.0
        %vm1816 = vcmp.gt.f32.partialorder %v1784, 0.0
        %vm1817 = vcmp.gt.f32.partialorder %v1785, 0.0
        %vm1818 = vcmp.gt.f32.partialorder %v1786, 0.0
        %vm1819 = vcmp.gt.f32.partialorder %v1787, 0.0
        %vm1820 = vcmp.gt.f32.partialorder %v1788, 0.0
        %vm1821 = vcmp.gt.f32.partialorder %v1789, 0.0
        %vm1822 = vcmp.gt.f32.partialorder %v1790, 0.0
        %vm1823 = vcmp.gt.f32.partialorder %v1791, 0.0
        %vm1824 = vcmp.gt.f32.partialorder %v1792, 0.0
        %vm1825 = vcmp.gt.f32.partialorder %v1793, 0.0
        %vm1826 = vcmp.gt.f32.partialorder %v1794, 0.0
        %vm1827 = vcmp.gt.f32.partialorder %v1795, 0.0
        %vm1828 = vcmp.gt.f32.partialorder %v1796, 0.0
        %vm1829 = vcmp.gt.f32.partialorder %v1797, 0.0
        %vm1830 = vcmp.gt.f32.partialorder %v1798, 0.0
        %vm1831 = vcmp.gt.f32.partialorder %v1799, 0.0
        %v1832 = vmul.f32 %v1768, 0.1
        %v1833 = vmul.f32 %v1769, 0.1
        %v1834 = vmul.f32 %v1770, 0.1
        %v1835 = vmul.f32 %v1771, 0.1
        %v1836 = vmul.f32 %v1772, 0.1
        %v1837 = vmul.f32 %v1773, 0.1
        %v1838 = vmul.f32 %v1774, 0.1
        %v1839 = vmul.f32 %v1775, 0.1
        %v1840 = vmul.f32 %v1776, 0.1
        %v1841 = vmul.f32 %v1777, 0.1
        %v1842 = vmul.f32 %v1778, 0.1
        %v1843 = vmul.f32 %v1779, 0.1
        %v1844 = vmul.f32 %v1780, 0.1
        %v1845 = vmul.f32 %v1781, 0.1
        %v1846 = vmul.f32 %v1782, 0.1
        %v1847 = vmul.f32 %v1783, 0.1
        %v1848 = vmul.f32 %v1784, 0.1
        %v1849 = vmul.f32 %v1785, 0.1
        %v1850 = vmul.f32 %v1786, 0.1
        %v1851 = vmul.f32 %v1787, 0.1
        %v1852 = vmul.f32 %v1788, 0.1
        %v1853 = vmul.f32 %v1789, 0.1
        %v1854 = vmul.f32 %v1790, 0.1
        %v1855 = vmul.f32 %v1791, 0.1
        %v1856 = vmul.f32 %v1792, 0.1
        %v1857 = vmul.f32 %v1793, 0.1
        %v1858 = vmul.f32 %v1794, 0.1
        %v1859 = vmul.f32 %v1795, 0.1
        %v1860 = vmul.f32 %v1796, 0.1
        %v1861 = vmul.f32 %v1797, 0.1
        %v1862 = vmul.f32 %v1798, 0.1
        %v1863 = vmul.f32 %v1799, 0.1
        %v1864 = vsel %vm1800, %v1768, %v1832
        %v1865 = vsel %vm1801, %v1769, %v1833
        %v1866 = vsel %vm1802, %v1770, %v1834
        %v1867 = vsel %vm1803, %v1771, %v1835
        %v1868 = vsel %vm1804, %v1772, %v1836
        %v1869 = vsel %vm1805, %v1773, %v1837
        %v1870 = vsel %vm1806, %v1774, %v1838
        %v1871 = vsel %vm1807, %v1775, %v1839
        %v1872 = vsel %vm1808, %v1776, %v1840
        %v1873 = vsel %vm1809, %v1777, %v1841
        %v1874 = vsel %vm1810, %v1778, %v1842
        %v1875 = vsel %vm1811, %v1779, %v1843
        %v1876 = vsel %vm1812, %v1780, %v1844
        %v1877 = vsel %vm1813, %v1781, %v1845
        %v1878 = vsel %vm1814, %v1782, %v1846
        %v1879 = vsel %vm1815, %v1783, %v1847
        %v1880 = vsel %vm1816, %v1784, %v1848
        %v1881 = vsel %vm1817, %v1785, %v1849
        %v1882 = vsel %vm1818, %v1786, %v1850
        %v1883 = vsel %vm1819, %v1787, %v1851
        %v1884 = vsel %vm1820, %v1788, %v1852
        %v1885 = vsel %vm1821, %v1789, %v1853
        %v1886 = vsel %vm1822, %v1790, %v1854
        %v1887 = vsel %vm1823, %v1791, %v1855
        %v1888 = vsel %vm1824, %v1792, %v1856
        %v1889 = vsel %vm1825, %v1793, %v1857
        %v1890 = vsel %vm1826, %v1794, %v1858
        %v1891 = vsel %vm1827, %v1795, %v1859
        %v1892 = vsel %vm1828, %v1796, %v1860
        %v1893 = vsel %vm1829, %v1797, %v1861
        %v1894 = vsel %vm1830, %v1798, %v1862
        %v1895 = vsel %vm1831, %v1799, %v1863
        %1896 = vst.msk [vmem:[%s392 + $0x1] sm:$0xff] %vm314, %v1864
        %1897 = vst.msk [vmem:[%s392 + $0x9] sm:$0xff] %vm314, %v1865
        %1898 = vst.msk [vmem:[%s392 + $0x19] sm:$0xff] %vm314, %v1866
        %1899 = vst.msk [vmem:[%s392 + $0x21] sm:$0xff] %vm314, %v1867
        %1900 = vst.msk [vmem:[%s392 + $0x31] sm:$0xff] %vm314, %v1868
        %1901 = vst.msk [vmem:[%s392 + $0x39] sm:$0xff] %vm314, %v1869
        %1902 = vst.msk [vmem:[%s392 + $0x49] sm:$0xff] %vm314, %v1870
        %1903 = vst.msk [vmem:[%s392 + $0x51] sm:$0xff] %vm314, %v1871
        %1904 = vst.msk [vmem:[%s392 + $0x61] sm:$0xff] %vm314, %v1872
        %1905 = vst.msk [vmem:[%s392 + $0x69] sm:$0xff] %vm314, %v1873
        %1906 = vst.msk [vmem:[%s392 + $0x79] sm:$0xff] %vm314, %v1874
        %1907 = vst.msk [vmem:[%s392 + $0x81] sm:$0xff] %vm314, %v1875
        %1908 = vst.msk [vmem:[%s392 + $0x91] sm:$0xff] %vm314, %v1876
        %1909 = vst.msk [vmem:[%s392 + $0x99] sm:$0xff] %vm314, %v1877
        %1910 = vst.msk [vmem:[%s392 + $0xa9] sm:$0xff] %vm314, %v1878
        %1911 = vst.msk [vmem:[%s392 + $0xb1] sm:$0xff] %vm314, %v1879
        %1912 = vst.msk [vmem:[%s392 + $0xc1] sm:$0xff] %vm314, %v1880
        %1913 = vst.msk [vmem:[%s392 + $0xc9] sm:$0xff] %vm314, %v1881
        %1914 = vst.msk [vmem:[%s392 + $0xd9] sm:$0xff] %vm314, %v1882
        %1915 = vst.msk [vmem:[%s392 + $0xe1] sm:$0xff] %vm314, %v1883
        %1916 = vst.msk [vmem:[%s392 + $0xf1] sm:$0xff] %vm314, %v1884
        %1917 = vst.msk [vmem:[%s392 + $0xf9] sm:$0xff] %vm314, %v1885
        %1918 = vst.msk [vmem:[%s392 + $0x109] sm:$0xff] %vm314, %v1886
        %1919 = vst.msk [vmem:[%s392 + $0x111] sm:$0xff] %vm314, %v1887
        %1920 = vst.msk [vmem:[%s392 + $0x121] sm:$0xff] %vm314, %v1888
        %1921 = vst.msk [vmem:[%s392 + $0x129] sm:$0xff] %vm314, %v1889
        %1922 = vst.msk [vmem:[%s392 + $0x139] sm:$0xff] %vm314, %v1890
        %1923 = vst.msk [vmem:[%s392 + $0x141] sm:$0xff] %vm314, %v1891
        %1924 = vst.msk [vmem:[%s392 + $0x151] sm:$0xff] %vm314, %v1892
        %1925 = vst.msk [vmem:[%s392 + $0x159] sm:$0xff] %vm314, %v1893
        %1926 = vst.msk [vmem:[%s392 + $0x169] sm:$0xff] %vm314, %v1894
        %1927 = vst.msk [vmem:[%s392 + $0x171] sm:$0xff] %vm314, %v1895
        %v1928 = vld [vmem:[#allocation2] sm:$0xff]
        %v1929 = vld [vmem:[#allocation2 + $0x8] sm:$0xff]
        %v1930 = vld [vmem:[#allocation2 + $0x18] sm:$0xff]
        %v1931 = vld [vmem:[#allocation2 + $0x20] sm:$0xff]
        %v1932 = vld [vmem:[#allocation2 + $0x30] sm:$0xff]
        %v1933 = vld [vmem:[#allocation2 + $0x38] sm:$0xff]
        %v1934 = vld [vmem:[#allocation2 + $0x48] sm:$0xff]
        %v1935 = vld [vmem:[#allocation2 + $0x50] sm:$0xff]
        %v1936 = vld [vmem:[#allocation2 + $0x60] sm:$0xff]
        %v1937 = vld [vmem:[#allocation2 + $0x68] sm:$0xff]
        %v1938 = vld [vmem:[#allocation2 + $0x78] sm:$0xff]
        %v1939 = vld [vmem:[#allocation2 + $0x80] sm:$0xff]
        %v1940 = vld [vmem:[#allocation2 + $0x90] sm:$0xff]
        %v1941 = vld [vmem:[#allocation2 + $0x98] sm:$0xff]
        %v1942 = vld [vmem:[#allocation2 + $0xa8] sm:$0xff]
        %v1943 = vld [vmem:[#allocation2 + $0xb0] sm:$0xff]
        %v1944 = vld [vmem:[#allocation2 + $0xc0] sm:$0xff]
        %v1945 = vld [vmem:[#allocation2 + $0xc8] sm:$0xff]
        %v1946 = vld [vmem:[#allocation2 + $0xd8] sm:$0xff]
        %v1947 = vld [vmem:[#allocation2 + $0xe0] sm:$0xff]
        %v1948 = vld [vmem:[#allocation2 + $0xf0] sm:$0xff]
        %v1949 = vld [vmem:[#allocation2 + $0xf8] sm:$0xff]
        %v1950 = vld [vmem:[#allocation2 + $0x108] sm:$0xff]
        %v1951 = vld [vmem:[#allocation2 + $0x110] sm:$0xff]
        %v1952 = vld [vmem:[#allocation2 + $0x120] sm:$0xff]
        %v1953 = vld [vmem:[#allocation2 + $0x128] sm:$0xff]
        %v1954 = vld [vmem:[#allocation2 + $0x138] sm:$0xff]
        %v1955 = vld [vmem:[#allocation2 + $0x140] sm:$0xff]
        %v1956 = vld [vmem:[#allocation2 + $0x150] sm:$0xff]
        %v1957 = vld [vmem:[#allocation2 + $0x158] sm:$0xff]
        %v1958 = vld [vmem:[#allocation2 + $0x168] sm:$0xff]
        %v1959 = vld [vmem:[#allocation2 + $0x170] sm:$0xff]
        %v1960 = vld [vmem:[%s5] sm:$0xff]
        %v1961 = vld [vmem:[%s5 + $0x8] sm:$0xff]
        %v1962 = vld [vmem:[%s5 + $0x10] sm:$0xff]
        %v1963 = vld [vmem:[%s5 + $0x18] sm:$0xff]
        %v1964 = vld [vmem:[#allocation2 + $0x1] sm:$0xff]
        %v1965 = vld [vmem:[#allocation2 + $0x9] sm:$0xff]
        %v1966 = vld [vmem:[#allocation2 + $0x19] sm:$0xff]
        %v1967 = vld [vmem:[#allocation2 + $0x21] sm:$0xff]
        %v1968 = vld [vmem:[#allocation2 + $0x31] sm:$0xff]
        %v1969 = vld [vmem:[#allocation2 + $0x39] sm:$0xff]
        %v1970 = vld [vmem:[#allocation2 + $0x49] sm:$0xff]
        %v1971 = vld [vmem:[#allocation2 + $0x51] sm:$0xff]
        %v1972 = vld [vmem:[#allocation2 + $0x61] sm:$0xff]
        %v1973 = vld [vmem:[#allocation2 + $0x69] sm:$0xff]
        %v1974 = vld [vmem:[#allocation2 + $0x79] sm:$0xff]
        %v1975 = vld [vmem:[#allocation2 + $0x81] sm:$0xff]
        %v1976 = vld [vmem:[#allocation2 + $0x91] sm:$0xff]
        %v1977 = vld [vmem:[#allocation2 + $0x99] sm:$0xff]
        %v1978 = vld [vmem:[#allocation2 + $0xa9] sm:$0xff]
        %v1979 = vld [vmem:[#allocation2 + $0xb1] sm:$0xff]
        %v1980 = vld [vmem:[#allocation2 + $0xc1] sm:$0xff]
        %v1981 = vld [vmem:[#allocation2 + $0xc9] sm:$0xff]
        %v1982 = vld [vmem:[#allocation2 + $0xd9] sm:$0xff]
        %v1983 = vld [vmem:[#allocation2 + $0xe1] sm:$0xff]
        %v1984 = vld [vmem:[#allocation2 + $0xf1] sm:$0xff]
        %v1985 = vld [vmem:[#allocation2 + $0xf9] sm:$0xff]
        %v1986 = vld [vmem:[#allocation2 + $0x109] sm:$0xff]
        %v1987 = vld [vmem:[#allocation2 + $0x111] sm:$0xff]
        %v1988 = vld [vmem:[#allocation2 + $0x121] sm:$0xff]
        %v1989 = vld [vmem:[#allocation2 + $0x129] sm:$0xff]
        %v1990 = vld [vmem:[#allocation2 + $0x139] sm:$0xff]
        %v1991 = vld [vmem:[#allocation2 + $0x141] sm:$0xff]
        %v1992 = vld [vmem:[#allocation2 + $0x151] sm:$0xff]
        %v1993 = vld [vmem:[#allocation2 + $0x159] sm:$0xff]
        %v1994 = vld [vmem:[#allocation2 + $0x169] sm:$0xff]
        %v1995 = vld [vmem:[#allocation2 + $0x171] sm:$0xff]
        %s1996 = scalar_lea.vmem %s5, 32
        %v1997 = vld [vmem:[%s1996] sm:$0xff]
        %v1998 = vld [vmem:[%s1996 + $0x8] sm:$0xff]
        %v1999 = vld [vmem:[%s1996 + $0x10] sm:$0xff]
        %v2000 = vld [vmem:[%s1996 + $0x18] sm:$0xff]
        %v2002 = vsel %vm314, %v1964, 0
        %v2005 = vsel %vm314, %v1965, 0
        %v2008 = vsel %vm314, %v1966, 0
        %v2011 = vsel %vm314, %v1967, 0
        %v2014 = vsel %vm314, %v1968, 0
        %v2017 = vsel %vm314, %v1969, 0
        %v2020 = vsel %vm314, %v1970, 0
        %v2023 = vsel %vm314, %v1971, 0
        %v2026 = vsel %vm314, %v1972, 0
        %v2029 = vsel %vm314, %v1973, 0
        %v2032 = vsel %vm314, %v1974, 0
        %v2035 = vsel %vm314, %v1975, 0
        %v2038 = vsel %vm314, %v1976, 0
        %v2041 = vsel %vm314, %v1977, 0
        %v2044 = vsel %vm314, %v1978, 0
        %v2047 = vsel %vm314, %v1979, 0
        %v2050 = vsel %vm314, %v1980, 0
        %v2053 = vsel %vm314, %v1981, 0
        %v2056 = vsel %vm314, %v1982, 0
        %v2059 = vsel %vm314, %v1983, 0
        %v2062 = vsel %vm314, %v1984, 0
        %v2065 = vsel %vm314, %v1985, 0
        %v2068 = vsel %vm314, %v1986, 0
        %v2071 = vsel %vm314, %v1987, 0
        %v2074 = vsel %vm314, %v1988, 0
        %v2077 = vsel %vm314, %v1989, 0
        %v2080 = vsel %vm314, %v1990, 0
        %v2083 = vsel %vm314, %v1991, 0
        %v2086 = vsel %vm314, %v1992, 0
        %v2089 = vsel %vm314, %v1993, 0
        %v2092 = vsel %vm314, %v1994, 0
        %v2095 = vsel %vm314, %v1995, 0
        %2097 = vmatprep.subr.mxu0 0.0
        %2098 = vmatpush1.msra.mxu0 0.0
        %2099 = vmatprep.subr.mxu0 0.0
        %2100 = vmatpush1.msra.mxu0 0.0
        %2101 = vmatprep.subr.mxu0 0.0
        %2102 = vmatpush1.msra.mxu0 0.0
        %2103 = vmatprep.subr.mxu0 0.0
        %2104 = vmatpush1.msra.mxu0 0.0
        %2105 = vmatprep.subr.mxu0 0.0
        %2106 = vmatpush1.msra.mxu0 0.0
        %2107 = vmatprep.subr.mxu0 0.0
        %2108 = vmatpush1.msra.mxu0 0.0
        %2109 = vmatprep.subr.mxu0 0.0
        %2110 = vmatpush1.msra.mxu0 0.0
        %2111 = vmatprep.subr.mxu0 0.0
        %2112 = vmatpush1.msra.mxu0 0.0
        %2113 = vmatprep.subr.mxu0 0.0
        %2114 = vmatpush1.msra.mxu0 0.0
        %2115 = vmatprep.subr.mxu0 0.0
        %2116 = vmatpush1.msra.mxu0 0.0
        %2117 = vmatprep.subr.mxu0 0.0
        %2118 = vmatpush1.msra.mxu0 0.0
        %2119 = vmatprep.subr.mxu0 0.0
        %2120 = vmatpush1.msra.mxu0 0.0
        %2121 = vmatprep.subr.mxu0 0.0
        %2122 = vmatpush1.msra.mxu0 %v2000
        %2123 = vmatprep.subr.mxu0 0.0
        %2124 = vmatpush1.msra.mxu0 %v1999
        %2125 = vmatprep.subr.mxu0 0.0
        %2126 = vmatpush1.msra.mxu0 %v1998
        %2127 = vmatprep.subr.mxu0 0.0
        %2128 = vmatpush1.msra.mxu0 %v1997
        %2129 = vmatprep.subr.mxu0 0.0
        %2130 = vmatpush2.msra.mxu0 0.0
        %2131 = vmatprep.subr.mxu0 0.0
        %2132 = vmatpush2.msra.mxu0 0.0
        %2133 = vmatprep.subr.mxu0 0.0
        %2134 = vmatpush2.msra.mxu0 0.0
        %2135 = vmatprep.subr.mxu0 0.0
        %2136 = vmatpush2.msra.mxu0 0.0
        %2137 = vmatprep.subr.mxu0 0.0
        %2138 = vmatpush2.msra.mxu0 0.0
        %2139 = vmatprep.subr.mxu0 0.0
        %2140 = vmatpush2.msra.mxu0 0.0
        %2141 = vmatprep.subr.mxu0 0.0
        %2142 = vmatpush2.msra.mxu0 0.0
        %2143 = vmatprep.subr.mxu0 0.0
        %2144 = vmatpush2.msra.mxu0 0.0
        %2145 = vmatprep.subr.mxu0 0.0
        %2146 = vmatpush2.msra.mxu0 0.0
        %2147 = vmatprep.subr.mxu0 0.0
        %2148 = vmatpush2.msra.mxu0 0.0
        %2149 = vmatprep.subr.mxu0 0.0
        %2150 = vmatpush2.msra.mxu0 0.0
        %2151 = vmatprep.subr.mxu0 0.0
        %2152 = vmatpush2.msra.mxu0 0.0
        %2153 = vmatprep.subr.mxu0 0.0
        %2154 = vmatpush2.msra.mxu0 0.0
        %2155 = vmatprep.subr.mxu0 0.0
        %2156 = vmatpush2.msra.mxu0 0.0
        %2157 = vmatprep.subr.mxu0 0.0
        %2158 = vmatpush2.msra.mxu0 0.0
        %2159 = vmatprep.subr.mxu0 0.0
        %2160 = vmatpush2.msra.mxu0 0.0
        %2161 = vmatprep.mubr.f32.mxu0 0.0
        %2162 = vmatmul.mubr.f32.gmra.mxu0 %v2002
        %v2163 = vpop.f32.mrf.mxu0
        %v2164 = vadd.f32 0.0, %v2163
        %v2165 = vpop.f32.mrf.mxu0
        %2166 = vmatprep.mubr.f32.mxu0 0.0
        %2167 = vmatmul.mubr.f32.gmra.mxu0 %v2005
        %v2168 = vpop.f32.mrf.mxu0
        %v2169 = vadd.f32 0.0, %v2168
        %v2170 = vpop.f32.mrf.mxu0
        %2171 = vmatprep.mubr.f32.mxu0 0.0
        %2172 = vmatmul.mubr.f32.gmra.mxu0 %v2008
        %v2173 = vpop.f32.mrf.mxu0
        %v2174 = vadd.f32 0.0, %v2173
        %v2175 = vpop.f32.mrf.mxu0
        %2176 = vmatprep.mubr.f32.mxu0 0.0
        %2177 = vmatmul.mubr.f32.gmra.mxu0 %v2011
        %v2178 = vpop.f32.mrf.mxu0
        %v2179 = vadd.f32 0.0, %v2178
        %v2180 = vpop.f32.mrf.mxu0
        %2181 = vmatprep.mubr.f32.mxu0 0.0
        %2182 = vmatmul.mubr.f32.gmra.mxu0 %v2014
        %v2183 = vpop.f32.mrf.mxu0
        %v2184 = vadd.f32 0.0, %v2183
        %v2185 = vpop.f32.mrf.mxu0
        %2186 = vmatprep.mubr.f32.mxu0 0.0
        %2187 = vmatmul.mubr.f32.gmra.mxu0 %v2017
        %v2188 = vpop.f32.mrf.mxu0
        %v2189 = vadd.f32 0.0, %v2188
        %v2190 = vpop.f32.mrf.mxu0
        %2191 = vmatprep.mubr.f32.mxu0 0.0
        %2192 = vmatmul.mubr.f32.gmra.mxu0 %v2020
        %v2193 = vpop.f32.mrf.mxu0
        %v2194 = vadd.f32 0.0, %v2193
        %v2195 = vpop.f32.mrf.mxu0
        %2196 = vmatprep.mubr.f32.mxu0 0.0
        %2197 = vmatmul.mubr.f32.gmra.mxu0 %v2023
        %v2198 = vpop.f32.mrf.mxu0
        %v2199 = vadd.f32 0.0, %v2198
        %v2200 = vpop.f32.mrf.mxu0
        %2201 = vmatprep.mubr.f32.mxu0 0.0
        %2202 = vmatmul.mubr.f32.gmra.mxu0 %v2026
        %v2203 = vpop.f32.mrf.mxu0
        %v2204 = vadd.f32 0.0, %v2203
        %v2205 = vpop.f32.mrf.mxu0
        %2206 = vmatprep.mubr.f32.mxu0 0.0
        %2207 = vmatmul.mubr.f32.gmra.mxu0 %v2029
        %v2208 = vpop.f32.mrf.mxu0
        %v2209 = vadd.f32 0.0, %v2208
        %v2210 = vpop.f32.mrf.mxu0
        %2211 = vmatprep.mubr.f32.mxu0 0.0
        %2212 = vmatmul.mubr.f32.gmra.mxu0 %v2032
        %v2213 = vpop.f32.mrf.mxu0
        %v2214 = vadd.f32 0.0, %v2213
        %v2215 = vpop.f32.mrf.mxu0
        %2216 = vmatprep.mubr.f32.mxu0 0.0
        %2217 = vmatmul.mubr.f32.gmra.mxu0 %v2035
        %v2218 = vpop.f32.mrf.mxu0
        %v2219 = vadd.f32 0.0, %v2218
        %v2220 = vpop.f32.mrf.mxu0
        %2221 = vmatprep.mubr.f32.mxu0 0.0
        %2222 = vmatmul.mubr.f32.gmra.mxu0 %v2038
        %v2223 = vpop.f32.mrf.mxu0
        %v2224 = vadd.f32 0.0, %v2223
        %v2225 = vpop.f32.mrf.mxu0
        %2226 = vmatprep.mubr.f32.mxu0 0.0
        %2227 = vmatmul.mubr.f32.gmra.mxu0 %v2041
        %v2228 = vpop.f32.mrf.mxu0
        %v2229 = vadd.f32 0.0, %v2228
        %v2230 = vpop.f32.mrf.mxu0
        %2231 = vmatprep.mubr.f32.mxu0 0.0
        %2232 = vmatmul.mubr.f32.gmra.mxu0 %v2044
        %v2233 = vpop.f32.mrf.mxu0
        %v2234 = vadd.f32 0.0, %v2233
        %v2235 = vpop.f32.mrf.mxu0
        %2236 = vmatprep.mubr.f32.mxu0 0.0
        %2237 = vmatmul.mubr.f32.gmra.mxu0 %v2047
        %v2238 = vpop.f32.mrf.mxu0
        %v2239 = vadd.f32 0.0, %v2238
        %v2240 = vpop.f32.mrf.mxu0
        %2241 = vmatprep.mubr.f32.mxu0 0.0
        %2242 = vmatmul.mubr.f32.gmra.mxu0 %v2050
        %v2243 = vpop.f32.mrf.mxu0
        %v2244 = vadd.f32 0.0, %v2243
        %v2245 = vpop.f32.mrf.mxu0
        %2246 = vmatprep.mubr.f32.mxu0 0.0
        %2247 = vmatmul.mubr.f32.gmra.mxu0 %v2053
        %v2248 = vpop.f32.mrf.mxu0
        %v2249 = vadd.f32 0.0, %v2248
        %v2250 = vpop.f32.mrf.mxu0
        %2251 = vmatprep.mubr.f32.mxu0 0.0
        %2252 = vmatmul.mubr.f32.gmra.mxu0 %v2056
        %v2253 = vpop.f32.mrf.mxu0
        %v2254 = vadd.f32 0.0, %v2253
        %v2255 = vpop.f32.mrf.mxu0
        %2256 = vmatprep.mubr.f32.mxu0 0.0
        %2257 = vmatmul.mubr.f32.gmra.mxu0 %v2059
        %v2258 = vpop.f32.mrf.mxu0
        %v2259 = vadd.f32 0.0, %v2258
        %v2260 = vpop.f32.mrf.mxu0
        %2261 = vmatprep.mubr.f32.mxu0 0.0
        %2262 = vmatmul.mubr.f32.gmra.mxu0 %v2062
        %v2263 = vpop.f32.mrf.mxu0
        %v2264 = vadd.f32 0.0, %v2263
        %v2265 = vpop.f32.mrf.mxu0
        %2266 = vmatprep.mubr.f32.mxu0 0.0
        %2267 = vmatmul.mubr.f32.gmra.mxu0 %v2065
        %v2268 = vpop.f32.mrf.mxu0
        %v2269 = vadd.f32 0.0, %v2268
        %v2270 = vpop.f32.mrf.mxu0
        %2271 = vmatprep.mubr.f32.mxu0 0.0
        %2272 = vmatmul.mubr.f32.gmra.mxu0 %v2068
        %v2273 = vpop.f32.mrf.mxu0
        %v2274 = vadd.f32 0.0, %v2273
        %v2275 = vpop.f32.mrf.mxu0
        %2276 = vmatprep.mubr.f32.mxu0 0.0
        %2277 = vmatmul.mubr.f32.gmra.mxu0 %v2071
        %v2278 = vpop.f32.mrf.mxu0
        %v2279 = vadd.f32 0.0, %v2278
        %v2280 = vpop.f32.mrf.mxu0
        %2281 = vmatprep.mubr.f32.mxu0 0.0
        %2282 = vmatmul.mubr.f32.gmra.mxu0 %v2074
        %v2283 = vpop.f32.mrf.mxu0
        %v2284 = vadd.f32 0.0, %v2283
        %v2285 = vpop.f32.mrf.mxu0
        %2286 = vmatprep.mubr.f32.mxu0 0.0
        %2287 = vmatmul.mubr.f32.gmra.mxu0 %v2077
        %v2288 = vpop.f32.mrf.mxu0
        %v2289 = vadd.f32 0.0, %v2288
        %v2290 = vpop.f32.mrf.mxu0
        %2291 = vmatprep.mubr.f32.mxu0 0.0
        %2292 = vmatmul.mubr.f32.gmra.mxu0 %v2080
        %v2293 = vpop.f32.mrf.mxu0
        %v2294 = vadd.f32 0.0, %v2293
        %v2295 = vpop.f32.mrf.mxu0
        %2296 = vmatprep.mubr.f32.mxu0 0.0
        %2297 = vmatmul.mubr.f32.gmra.mxu0 %v2083
        %v2298 = vpop.f32.mrf.mxu0
        %v2299 = vadd.f32 0.0, %v2298
        %v2300 = vpop.f32.mrf.mxu0
        %2301 = vmatprep.mubr.f32.mxu0 0.0
        %2302 = vmatmul.mubr.f32.gmra.mxu0 %v2086
        %v2303 = vpop.f32.mrf.mxu0
        %v2304 = vadd.f32 0.0, %v2303
        %v2305 = vpop.f32.mrf.mxu0
        %2306 = vmatprep.mubr.f32.mxu0 0.0
        %2307 = vmatmul.mubr.f32.gmra.mxu0 %v2089
        %v2308 = vpop.f32.mrf.mxu0
        %v2309 = vadd.f32 0.0, %v2308
        %v2310 = vpop.f32.mrf.mxu0
        %2311 = vmatprep.mubr.f32.mxu0 0.0
        %2312 = vmatmul.mubr.f32.gmra.mxu0 %v2092
        %v2313 = vpop.f32.mrf.mxu0
        %v2314 = vadd.f32 0.0, %v2313
        %v2315 = vpop.f32.mrf.mxu0
        %2316 = vmatprep.mubr.f32.mxu0 0.0
        %2317 = vmatmul.mubr.f32.gmra.mxu0 %v2095
        %v2318 = vpop.f32.mrf.mxu0
        %v2319 = vadd.f32 0.0, %v2318
        %v2320 = vpop.f32.mrf.mxu0
        %2321 = vdwg.mxu0
        %v2323 = vsel %vm314, %v1928, 0
        %v2326 = vsel %vm314, %v1929, 0
        %v2329 = vsel %vm314, %v1930, 0
        %v2332 = vsel %vm314, %v1931, 0
        %v2335 = vsel %vm314, %v1932, 0
        %v2338 = vsel %vm314, %v1933, 0
        %v2341 = vsel %vm314, %v1934, 0
        %v2344 = vsel %vm314, %v1935, 0
        %v2347 = vsel %vm314, %v1936, 0
        %v2350 = vsel %vm314, %v1937, 0
        %v2353 = vsel %vm314, %v1938, 0
        %v2356 = vsel %vm314, %v1939, 0
        %v2359 = vsel %vm314, %v1940, 0
        %v2362 = vsel %vm314, %v1941, 0
        %v2365 = vsel %vm314, %v1942, 0
        %v2368 = vsel %vm314, %v1943, 0
        %v2371 = vsel %vm314, %v1944, 0
        %v2374 = vsel %vm314, %v1945, 0
        %v2377 = vsel %vm314, %v1946, 0
        %v2380 = vsel %vm314, %v1947, 0
        %v2383 = vsel %vm314, %v1948, 0
        %v2386 = vsel %vm314, %v1949, 0
        %v2389 = vsel %vm314, %v1950, 0
        %v2392 = vsel %vm314, %v1951, 0
        %v2395 = vsel %vm314, %v1952, 0
        %v2398 = vsel %vm314, %v1953, 0
        %v2401 = vsel %vm314, %v1954, 0
        %v2404 = vsel %vm314, %v1955, 0
        %v2407 = vsel %vm314, %v1956, 0
        %v2410 = vsel %vm314, %v1957, 0
        %v2413 = vsel %vm314, %v1958, 0
        %v2416 = vsel %vm314, %v1959, 0
        %2418 = vmatprep.subr.mxu0 0.0
        %2419 = vmatpush1.msra.mxu0 0.0
        %2420 = vmatprep.subr.mxu0 0.0
        %2421 = vmatpush1.msra.mxu0 0.0
        %2422 = vmatprep.subr.mxu0 0.0
        %2423 = vmatpush1.msra.mxu0 0.0
        %2424 = vmatprep.subr.mxu0 0.0
        %2425 = vmatpush1.msra.mxu0 0.0
        %2426 = vmatprep.subr.mxu0 0.0
        %2427 = vmatpush1.msra.mxu0 0.0
        %2428 = vmatprep.subr.mxu0 0.0
        %2429 = vmatpush1.msra.mxu0 0.0
        %2430 = vmatprep.subr.mxu0 0.0
        %2431 = vmatpush1.msra.mxu0 0.0
        %2432 = vmatprep.subr.mxu0 0.0
        %2433 = vmatpush1.msra.mxu0 0.0
        %2434 = vmatprep.subr.mxu0 0.0
        %2435 = vmatpush1.msra.mxu0 0.0
        %2436 = vmatprep.subr.mxu0 0.0
        %2437 = vmatpush1.msra.mxu0 0.0
        %2438 = vmatprep.subr.mxu0 0.0
        %2439 = vmatpush1.msra.mxu0 0.0
        %2440 = vmatprep.subr.mxu0 0.0
        %2441 = vmatpush1.msra.mxu0 0.0
        %2442 = vmatprep.subr.mxu0 0.0
        %2443 = vmatpush1.msra.mxu0 %v1963
        %2444 = vmatprep.subr.mxu0 0.0
        %2445 = vmatpush1.msra.mxu0 %v1962
        %2446 = vmatprep.subr.mxu0 0.0
        %2447 = vmatpush1.msra.mxu0 %v1961
        %2448 = vmatprep.subr.mxu0 0.0
        %2449 = vmatpush1.msra.mxu0 %v1960
        %2450 = vmatprep.subr.mxu0 0.0
        %2451 = vmatpush2.msra.mxu0 0.0
        %2452 = vmatprep.subr.mxu0 0.0
        %2453 = vmatpush2.msra.mxu0 0.0
        %2454 = vmatprep.subr.mxu0 0.0
        %2455 = vmatpush2.msra.mxu0 0.0
        %2456 = vmatprep.subr.mxu0 0.0
        %2457 = vmatpush2.msra.mxu0 0.0
        %2458 = vmatprep.subr.mxu0 0.0
        %2459 = vmatpush2.msra.mxu0 0.0
        %2460 = vmatprep.subr.mxu0 0.0
        %2461 = vmatpush2.msra.mxu0 0.0
        %2462 = vmatprep.subr.mxu0 0.0
        %2463 = vmatpush2.msra.mxu0 0.0
        %2464 = vmatprep.subr.mxu0 0.0
        %2465 = vmatpush2.msra.mxu0 0.0
        %2466 = vmatprep.subr.mxu0 0.0
        %2467 = vmatpush2.msra.mxu0 0.0
        %2468 = vmatprep.subr.mxu0 0.0
        %2469 = vmatpush2.msra.mxu0 0.0
        %2470 = vmatprep.subr.mxu0 0.0
        %2471 = vmatpush2.msra.mxu0 0.0
        %2472 = vmatprep.subr.mxu0 0.0
        %2473 = vmatpush2.msra.mxu0 0.0
        %2474 = vmatprep.subr.mxu0 0.0
        %2475 = vmatpush2.msra.mxu0 0.0
        %2476 = vmatprep.subr.mxu0 0.0
        %2477 = vmatpush2.msra.mxu0 0.0
        %2478 = vmatprep.subr.mxu0 0.0
        %2479 = vmatpush2.msra.mxu0 0.0
        %2480 = vmatprep.subr.mxu0 0.0
        %2481 = vmatpush2.msra.mxu0 0.0
        %2482 = vmatprep.mubr.f32.mxu0 0.0
        %2483 = vmatmul.mubr.f32.gmra.mxu0 %v2323
        %v2484 = vpop.f32.mrf.mxu0
        %v2485 = vadd.f32 %v2164, %v2484
        %v2486 = vpop.f32.mrf.mxu0
        %2487 = vmatprep.mubr.f32.mxu0 0.0
        %2488 = vmatmul.mubr.f32.gmra.mxu0 %v2326
        %v2489 = vpop.f32.mrf.mxu0
        %v2490 = vadd.f32 %v2169, %v2489
        %v2491 = vpop.f32.mrf.mxu0
        %2492 = vmatprep.mubr.f32.mxu0 0.0
        %2493 = vmatmul.mubr.f32.gmra.mxu0 %v2329
        %v2494 = vpop.f32.mrf.mxu0
        %v2495 = vadd.f32 %v2174, %v2494
        %v2496 = vpop.f32.mrf.mxu0
        %2497 = vmatprep.mubr.f32.mxu0 0.0
        %2498 = vmatmul.mubr.f32.gmra.mxu0 %v2332
        %v2499 = vpop.f32.mrf.mxu0
        %v2500 = vadd.f32 %v2179, %v2499
        %v2501 = vpop.f32.mrf.mxu0
        %2502 = vmatprep.mubr.f32.mxu0 0.0
        %2503 = vmatmul.mubr.f32.gmra.mxu0 %v2335
        %v2504 = vpop.f32.mrf.mxu0
        %v2505 = vadd.f32 %v2184, %v2504
        %v2506 = vpop.f32.mrf.mxu0
        %2507 = vmatprep.mubr.f32.mxu0 0.0
        %2508 = vmatmul.mubr.f32.gmra.mxu0 %v2338
        %v2509 = vpop.f32.mrf.mxu0
        %v2510 = vadd.f32 %v2189, %v2509
        %v2511 = vpop.f32.mrf.mxu0
        %2512 = vmatprep.mubr.f32.mxu0 0.0
        %2513 = vmatmul.mubr.f32.gmra.mxu0 %v2341
        %v2514 = vpop.f32.mrf.mxu0
        %v2515 = vadd.f32 %v2194, %v2514
        %v2516 = vpop.f32.mrf.mxu0
        %2517 = vmatprep.mubr.f32.mxu0 0.0
        %2518 = vmatmul.mubr.f32.gmra.mxu0 %v2344
        %v2519 = vpop.f32.mrf.mxu0
        %v2520 = vadd.f32 %v2199, %v2519
        %v2521 = vpop.f32.mrf.mxu0
        %2522 = vmatprep.mubr.f32.mxu0 0.0
        %2523 = vmatmul.mubr.f32.gmra.mxu0 %v2347
        %v2524 = vpop.f32.mrf.mxu0
        %v2525 = vadd.f32 %v2204, %v2524
        %v2526 = vpop.f32.mrf.mxu0
        %2527 = vmatprep.mubr.f32.mxu0 0.0
        %2528 = vmatmul.mubr.f32.gmra.mxu0 %v2350
        %v2529 = vpop.f32.mrf.mxu0
        %v2530 = vadd.f32 %v2209, %v2529
        %v2531 = vpop.f32.mrf.mxu0
        %2532 = vmatprep.mubr.f32.mxu0 0.0
        %2533 = vmatmul.mubr.f32.gmra.mxu0 %v2353
        %v2534 = vpop.f32.mrf.mxu0
        %v2535 = vadd.f32 %v2214, %v2534
        %v2536 = vpop.f32.mrf.mxu0
        %2537 = vmatprep.mubr.f32.mxu0 0.0
        %2538 = vmatmul.mubr.f32.gmra.mxu0 %v2356
        %v2539 = vpop.f32.mrf.mxu0
        %v2540 = vadd.f32 %v2219, %v2539
        %v2541 = vpop.f32.mrf.mxu0
        %2542 = vmatprep.mubr.f32.mxu0 0.0
        %2543 = vmatmul.mubr.f32.gmra.mxu0 %v2359
        %v2544 = vpop.f32.mrf.mxu0
        %v2545 = vadd.f32 %v2224, %v2544
        %v2546 = vpop.f32.mrf.mxu0
        %2547 = vmatprep.mubr.f32.mxu0 0.0
        %2548 = vmatmul.mubr.f32.gmra.mxu0 %v2362
        %v2549 = vpop.f32.mrf.mxu0
        %v2550 = vadd.f32 %v2229, %v2549
        %v2551 = vpop.f32.mrf.mxu0
        %2552 = vmatprep.mubr.f32.mxu0 0.0
        %2553 = vmatmul.mubr.f32.gmra.mxu0 %v2365
        %v2554 = vpop.f32.mrf.mxu0
        %v2555 = vadd.f32 %v2234, %v2554
        %v2556 = vpop.f32.mrf.mxu0
        %2557 = vmatprep.mubr.f32.mxu0 0.0
        %2558 = vmatmul.mubr.f32.gmra.mxu0 %v2368
        %v2559 = vpop.f32.mrf.mxu0
        %v2560 = vadd.f32 %v2239, %v2559
        %v2561 = vpop.f32.mrf.mxu0
        %2562 = vmatprep.mubr.f32.mxu0 0.0
        %2563 = vmatmul.mubr.f32.gmra.mxu0 %v2371
        %v2564 = vpop.f32.mrf.mxu0
        %v2565 = vadd.f32 %v2244, %v2564
        %v2566 = vpop.f32.mrf.mxu0
        %2567 = vmatprep.mubr.f32.mxu0 0.0
        %2568 = vmatmul.mubr.f32.gmra.mxu0 %v2374
        %v2569 = vpop.f32.mrf.mxu0
        %v2570 = vadd.f32 %v2249, %v2569
        %v2571 = vpop.f32.mrf.mxu0
        %2572 = vmatprep.mubr.f32.mxu0 0.0
        %2573 = vmatmul.mubr.f32.gmra.mxu0 %v2377
        %v2574 = vpop.f32.mrf.mxu0
        %v2575 = vadd.f32 %v2254, %v2574
        %v2576 = vpop.f32.mrf.mxu0
        %2577 = vmatprep.mubr.f32.mxu0 0.0
        %2578 = vmatmul.mubr.f32.gmra.mxu0 %v2380
        %v2579 = vpop.f32.mrf.mxu0
        %v2580 = vadd.f32 %v2259, %v2579
        %v2581 = vpop.f32.mrf.mxu0
        %2582 = vmatprep.mubr.f32.mxu0 0.0
        %2583 = vmatmul.mubr.f32.gmra.mxu0 %v2383
        %v2584 = vpop.f32.mrf.mxu0
        %v2585 = vadd.f32 %v2264, %v2584
        %v2586 = vpop.f32.mrf.mxu0
        %2587 = vmatprep.mubr.f32.mxu0 0.0
        %2588 = vmatmul.mubr.f32.gmra.mxu0 %v2386
        %v2589 = vpop.f32.mrf.mxu0
        %v2590 = vadd.f32 %v2269, %v2589
        %v2591 = vpop.f32.mrf.mxu0
        %2592 = vmatprep.mubr.f32.mxu0 0.0
        %2593 = vmatmul.mubr.f32.gmra.mxu0 %v2389
        %v2594 = vpop.f32.mrf.mxu0
        %v2595 = vadd.f32 %v2274, %v2594
        %v2596 = vpop.f32.mrf.mxu0
        %2597 = vmatprep.mubr.f32.mxu0 0.0
        %2598 = vmatmul.mubr.f32.gmra.mxu0 %v2392
        %v2599 = vpop.f32.mrf.mxu0
        %v2600 = vadd.f32 %v2279, %v2599
        %v2601 = vpop.f32.mrf.mxu0
        %2602 = vmatprep.mubr.f32.mxu0 0.0
        %2603 = vmatmul.mubr.f32.gmra.mxu0 %v2395
        %v2604 = vpop.f32.mrf.mxu0
        %v2605 = vadd.f32 %v2284, %v2604
        %v2606 = vpop.f32.mrf.mxu0
        %2607 = vmatprep.mubr.f32.mxu0 0.0
        %2608 = vmatmul.mubr.f32.gmra.mxu0 %v2398
        %v2609 = vpop.f32.mrf.mxu0
        %v2610 = vadd.f32 %v2289, %v2609
        %v2611 = vpop.f32.mrf.mxu0
        %2612 = vmatprep.mubr.f32.mxu0 0.0
        %2613 = vmatmul.mubr.f32.gmra.mxu0 %v2401
        %v2614 = vpop.f32.mrf.mxu0
        %v2615 = vadd.f32 %v2294, %v2614
        %v2616 = vpop.f32.mrf.mxu0
        %2617 = vmatprep.mubr.f32.mxu0 0.0
        %2618 = vmatmul.mubr.f32.gmra.mxu0 %v2404
        %v2619 = vpop.f32.mrf.mxu0
        %v2620 = vadd.f32 %v2299, %v2619
        %v2621 = vpop.f32.mrf.mxu0
        %2622 = vmatprep.mubr.f32.mxu0 0.0
        %2623 = vmatmul.mubr.f32.gmra.mxu0 %v2407
        %v2624 = vpop.f32.mrf.mxu0
        %v2625 = vadd.f32 %v2304, %v2624
        %v2626 = vpop.f32.mrf.mxu0
        %2627 = vmatprep.mubr.f32.mxu0 0.0
        %2628 = vmatmul.mubr.f32.gmra.mxu0 %v2410
        %v2629 = vpop.f32.mrf.mxu0
        %v2630 = vadd.f32 %v2309, %v2629
        %v2631 = vpop.f32.mrf.mxu0
        %2632 = vmatprep.mubr.f32.mxu0 0.0
        %2633 = vmatmul.mubr.f32.gmra.mxu0 %v2413
        %v2634 = vpop.f32.mrf.mxu0
        %v2635 = vadd.f32 %v2314, %v2634
        %v2636 = vpop.f32.mrf.mxu0
        %2637 = vmatprep.mubr.f32.mxu0 0.0
        %2638 = vmatmul.mubr.f32.gmra.mxu0 %v2416
        %v2639 = vpop.f32.mrf.mxu0
        %v2640 = vadd.f32 %v2319, %v2639
        %v2641 = vpop.f32.mrf.mxu0
        %2642 = vdwg.mxu0
        %v2643 = vld [vmem:[#allocation2 + $0x2] sm:$0xff]
        %v2644 = vld [vmem:[#allocation2 + $0xa] sm:$0xff]
        %v2645 = vld [vmem:[#allocation2 + $0x1a] sm:$0xff]
        %v2646 = vld [vmem:[#allocation2 + $0x22] sm:$0xff]
        %v2647 = vld [vmem:[#allocation2 + $0x32] sm:$0xff]
        %v2648 = vld [vmem:[#allocation2 + $0x3a] sm:$0xff]
        %v2649 = vld [vmem:[#allocation2 + $0x4a] sm:$0xff]
        %v2650 = vld [vmem:[#allocation2 + $0x52] sm:$0xff]
        %v2651 = vld [vmem:[#allocation2 + $0x62] sm:$0xff]
        %v2652 = vld [vmem:[#allocation2 + $0x6a] sm:$0xff]
        %v2653 = vld [vmem:[#allocation2 + $0x7a] sm:$0xff]
        %v2654 = vld [vmem:[#allocation2 + $0x82] sm:$0xff]
        %v2655 = vld [vmem:[#allocation2 + $0x92] sm:$0xff]
        %v2656 = vld [vmem:[#allocation2 + $0x9a] sm:$0xff]
        %v2657 = vld [vmem:[#allocation2 + $0xaa] sm:$0xff]
        %v2658 = vld [vmem:[#allocation2 + $0xb2] sm:$0xff]
        %v2659 = vld [vmem:[#allocation2 + $0xc2] sm:$0xff]
        %v2660 = vld [vmem:[#allocation2 + $0xca] sm:$0xff]
        %v2661 = vld [vmem:[#allocation2 + $0xda] sm:$0xff]
        %v2662 = vld [vmem:[#allocation2 + $0xe2] sm:$0xff]
        %v2663 = vld [vmem:[#allocation2 + $0xf2] sm:$0xff]
        %v2664 = vld [vmem:[#allocation2 + $0xfa] sm:$0xff]
        %v2665 = vld [vmem:[#allocation2 + $0x10a] sm:$0xff]
        %v2666 = vld [vmem:[#allocation2 + $0x112] sm:$0xff]
        %v2667 = vld [vmem:[#allocation2 + $0x122] sm:$0xff]
        %v2668 = vld [vmem:[#allocation2 + $0x12a] sm:$0xff]
        %v2669 = vld [vmem:[#allocation2 + $0x13a] sm:$0xff]
        %v2670 = vld [vmem:[#allocation2 + $0x142] sm:$0xff]
        %v2671 = vld [vmem:[#allocation2 + $0x152] sm:$0xff]
        %v2672 = vld [vmem:[#allocation2 + $0x15a] sm:$0xff]
        %v2673 = vld [vmem:[#allocation2 + $0x16a] sm:$0xff]
        %v2674 = vld [vmem:[#allocation2 + $0x172] sm:$0xff]
        %s2675 = scalar_lea.vmem %s5, 64
        %v2676 = vld [vmem:[%s2675] sm:$0xff]
        %v2677 = vld [vmem:[%s2675 + $0x8] sm:$0xff]
        %v2678 = vld [vmem:[%s2675 + $0x10] sm:$0xff]
        %v2679 = vld [vmem:[%s2675 + $0x18] sm:$0xff]
        %v2681 = vsel %vm314, %v2643, 0
        %v2684 = vsel %vm314, %v2644, 0
        %v2687 = vsel %vm314, %v2645, 0
        %v2690 = vsel %vm314, %v2646, 0
        %v2693 = vsel %vm314, %v2647, 0
        %v2696 = vsel %vm314, %v2648, 0
        %v2699 = vsel %vm314, %v2649, 0
        %v2702 = vsel %vm314, %v2650, 0
        %v2705 = vsel %vm314, %v2651, 0
        %v2708 = vsel %vm314, %v2652, 0
        %v2711 = vsel %vm314, %v2653, 0
        %v2714 = vsel %vm314, %v2654, 0
        %v2717 = vsel %vm314, %v2655, 0
        %v2720 = vsel %vm314, %v2656, 0
        %v2723 = vsel %vm314, %v2657, 0
        %v2726 = vsel %vm314, %v2658, 0
        %v2729 = vsel %vm314, %v2659, 0
        %v2732 = vsel %vm314, %v2660, 0
        %v2735 = vsel %vm314, %v2661, 0
        %v2738 = vsel %vm314, %v2662, 0
        %v2741 = vsel %vm314, %v2663, 0
        %v2744 = vsel %vm314, %v2664, 0
        %v2747 = vsel %vm314, %v2665, 0
        %v2750 = vsel %vm314, %v2666, 0
        %v2753 = vsel %vm314, %v2667, 0
        %v2756 = vsel %vm314, %v2668, 0
        %v2759 = vsel %vm314, %v2669, 0
        %v2762 = vsel %vm314, %v2670, 0
        %v2765 = vsel %vm314, %v2671, 0
        %v2768 = vsel %vm314, %v2672, 0
        %v2771 = vsel %vm314, %v2673, 0
        %v2774 = vsel %vm314, %v2674, 0
        %2776 = vmatprep.subr.mxu0 0.0
        %2777 = vmatpush1.msra.mxu0 0.0
        %2778 = vmatprep.subr.mxu0 0.0
        %2779 = vmatpush1.msra.mxu0 0.0
        %2780 = vmatprep.subr.mxu0 0.0
        %2781 = vmatpush1.msra.mxu0 0.0
        %2782 = vmatprep.subr.mxu0 0.0
        %2783 = vmatpush1.msra.mxu0 0.0
        %2784 = vmatprep.subr.mxu0 0.0
        %2785 = vmatpush1.msra.mxu0 0.0
        %2786 = vmatprep.subr.mxu0 0.0
        %2787 = vmatpush1.msra.mxu0 0.0
        %2788 = vmatprep.subr.mxu0 0.0
        %2789 = vmatpush1.msra.mxu0 0.0
        %2790 = vmatprep.subr.mxu0 0.0
        %2791 = vmatpush1.msra.mxu0 0.0
        %2792 = vmatprep.subr.mxu0 0.0
        %2793 = vmatpush1.msra.mxu0 0.0
        %2794 = vmatprep.subr.mxu0 0.0
        %2795 = vmatpush1.msra.mxu0 0.0
        %2796 = vmatprep.subr.mxu0 0.0
        %2797 = vmatpush1.msra.mxu0 0.0
        %2798 = vmatprep.subr.mxu0 0.0
        %2799 = vmatpush1.msra.mxu0 0.0
        %2800 = vmatprep.subr.mxu0 0.0
        %2801 = vmatpush1.msra.mxu0 %v2679
        %2802 = vmatprep.subr.mxu0 0.0
        %2803 = vmatpush1.msra.mxu0 %v2678
        %2804 = vmatprep.subr.mxu0 0.0
        %2805 = vmatpush1.msra.mxu0 %v2677
        %2806 = vmatprep.subr.mxu0 0.0
        %2807 = vmatpush1.msra.mxu0 %v2676
        %2808 = vmatprep.subr.mxu0 0.0
        %2809 = vmatpush2.msra.mxu0 0.0
        %2810 = vmatprep.subr.mxu0 0.0
        %2811 = vmatpush2.msra.mxu0 0.0
        %2812 = vmatprep.subr.mxu0 0.0
        %2813 = vmatpush2.msra.mxu0 0.0
        %2814 = vmatprep.subr.mxu0 0.0
        %2815 = vmatpush2.msra.mxu0 0.0
        %2816 = vmatprep.subr.mxu0 0.0
        %2817 = vmatpush2.msra.mxu0 0.0
        %2818 = vmatprep.subr.mxu0 0.0
        %2819 = vmatpush2.msra.mxu0 0.0
        %2820 = vmatprep.subr.mxu0 0.0
        %2821 = vmatpush2.msra.mxu0 0.0
        %2822 = vmatprep.subr.mxu0 0.0
        %2823 = vmatpush2.msra.mxu0 0.0
        %2824 = vmatprep.subr.mxu0 0.0
        %2825 = vmatpush2.msra.mxu0 0.0
        %2826 = vmatprep.subr.mxu0 0.0
        %2827 = vmatpush2.msra.mxu0 0.0
        %2828 = vmatprep.subr.mxu0 0.0
        %2829 = vmatpush2.msra.mxu0 0.0
        %2830 = vmatprep.subr.mxu0 0.0
        %2831 = vmatpush2.msra.mxu0 0.0
        %2832 = vmatprep.subr.mxu0 0.0
        %2833 = vmatpush2.msra.mxu0 0.0
        %2834 = vmatprep.subr.mxu0 0.0
        %2835 = vmatpush2.msra.mxu0 0.0
        %2836 = vmatprep.subr.mxu0 0.0
        %2837 = vmatpush2.msra.mxu0 0.0
        %2838 = vmatprep.subr.mxu0 0.0
        %2839 = vmatpush2.msra.mxu0 0.0
        %2840 = vmatprep.mubr.f32.mxu0 0.0
        %2841 = vmatmul.mubr.f32.gmra.mxu0 %v2681
        %v2842 = vpop.f32.mrf.mxu0
        %v2843 = vadd.f32 0.0, %v2842
        %v2844 = vpop.f32.mrf.mxu0
        %2845 = vmatprep.mubr.f32.mxu0 0.0
        %2846 = vmatmul.mubr.f32.gmra.mxu0 %v2684
        %v2847 = vpop.f32.mrf.mxu0
        %v2848 = vadd.f32 0.0, %v2847
        %v2849 = vpop.f32.mrf.mxu0
        %2850 = vmatprep.mubr.f32.mxu0 0.0
        %2851 = vmatmul.mubr.f32.gmra.mxu0 %v2687
        %v2852 = vpop.f32.mrf.mxu0
        %v2853 = vadd.f32 0.0, %v2852
        %v2854 = vpop.f32.mrf.mxu0
        %2855 = vmatprep.mubr.f32.mxu0 0.0
        %2856 = vmatmul.mubr.f32.gmra.mxu0 %v2690
        %v2857 = vpop.f32.mrf.mxu0
        %v2858 = vadd.f32 0.0, %v2857
        %v2859 = vpop.f32.mrf.mxu0
        %2860 = vmatprep.mubr.f32.mxu0 0.0
        %2861 = vmatmul.mubr.f32.gmra.mxu0 %v2693
        %v2862 = vpop.f32.mrf.mxu0
        %v2863 = vadd.f32 0.0, %v2862
        %v2864 = vpop.f32.mrf.mxu0
        %2865 = vmatprep.mubr.f32.mxu0 0.0
        %2866 = vmatmul.mubr.f32.gmra.mxu0 %v2696
        %v2867 = vpop.f32.mrf.mxu0
        %v2868 = vadd.f32 0.0, %v2867
        %v2869 = vpop.f32.mrf.mxu0
        %2870 = vmatprep.mubr.f32.mxu0 0.0
        %2871 = vmatmul.mubr.f32.gmra.mxu0 %v2699
        %v2872 = vpop.f32.mrf.mxu0
        %v2873 = vadd.f32 0.0, %v2872
        %v2874 = vpop.f32.mrf.mxu0
        %2875 = vmatprep.mubr.f32.mxu0 0.0
        %2876 = vmatmul.mubr.f32.gmra.mxu0 %v2702
        %v2877 = vpop.f32.mrf.mxu0
        %v2878 = vadd.f32 0.0, %v2877
        %v2879 = vpop.f32.mrf.mxu0
        %2880 = vmatprep.mubr.f32.mxu0 0.0
        %2881 = vmatmul.mubr.f32.gmra.mxu0 %v2705
        %v2882 = vpop.f32.mrf.mxu0
        %v2883 = vadd.f32 0.0, %v2882
        %v2884 = vpop.f32.mrf.mxu0
        %2885 = vmatprep.mubr.f32.mxu0 0.0
        %2886 = vmatmul.mubr.f32.gmra.mxu0 %v2708
        %v2887 = vpop.f32.mrf.mxu0
        %v2888 = vadd.f32 0.0, %v2887
        %v2889 = vpop.f32.mrf.mxu0
        %2890 = vmatprep.mubr.f32.mxu0 0.0
        %2891 = vmatmul.mubr.f32.gmra.mxu0 %v2711
        %v2892 = vpop.f32.mrf.mxu0
        %v2893 = vadd.f32 0.0, %v2892
        %v2894 = vpop.f32.mrf.mxu0
        %2895 = vmatprep.mubr.f32.mxu0 0.0
        %2896 = vmatmul.mubr.f32.gmra.mxu0 %v2714
        %v2897 = vpop.f32.mrf.mxu0
        %v2898 = vadd.f32 0.0, %v2897
        %v2899 = vpop.f32.mrf.mxu0
        %2900 = vmatprep.mubr.f32.mxu0 0.0
        %2901 = vmatmul.mubr.f32.gmra.mxu0 %v2717
        %v2902 = vpop.f32.mrf.mxu0
        %v2903 = vadd.f32 0.0, %v2902
        %v2904 = vpop.f32.mrf.mxu0
        %2905 = vmatprep.mubr.f32.mxu0 0.0
        %2906 = vmatmul.mubr.f32.gmra.mxu0 %v2720
        %v2907 = vpop.f32.mrf.mxu0
        %v2908 = vadd.f32 0.0, %v2907
        %v2909 = vpop.f32.mrf.mxu0
        %2910 = vmatprep.mubr.f32.mxu0 0.0
        %2911 = vmatmul.mubr.f32.gmra.mxu0 %v2723
        %v2912 = vpop.f32.mrf.mxu0
        %v2913 = vadd.f32 0.0, %v2912
        %v2914 = vpop.f32.mrf.mxu0
        %2915 = vmatprep.mubr.f32.mxu0 0.0
        %2916 = vmatmul.mubr.f32.gmra.mxu0 %v2726
        %v2917 = vpop.f32.mrf.mxu0
        %v2918 = vadd.f32 0.0, %v2917
        %v2919 = vpop.f32.mrf.mxu0
        %2920 = vmatprep.mubr.f32.mxu0 0.0
        %2921 = vmatmul.mubr.f32.gmra.mxu0 %v2729
        %v2922 = vpop.f32.mrf.mxu0
        %v2923 = vadd.f32 0.0, %v2922
        %v2924 = vpop.f32.mrf.mxu0
        %2925 = vmatprep.mubr.f32.mxu0 0.0
        %2926 = vmatmul.mubr.f32.gmra.mxu0 %v2732
        %v2927 = vpop.f32.mrf.mxu0
        %v2928 = vadd.f32 0.0, %v2927
        %v2929 = vpop.f32.mrf.mxu0
        %2930 = vmatprep.mubr.f32.mxu0 0.0
        %2931 = vmatmul.mubr.f32.gmra.mxu0 %v2735
        %v2932 = vpop.f32.mrf.mxu0
        %v2933 = vadd.f32 0.0, %v2932
        %v2934 = vpop.f32.mrf.mxu0
        %2935 = vmatprep.mubr.f32.mxu0 0.0
        %2936 = vmatmul.mubr.f32.gmra.mxu0 %v2738
        %v2937 = vpop.f32.mrf.mxu0
        %v2938 = vadd.f32 0.0, %v2937
        %v2939 = vpop.f32.mrf.mxu0
        %2940 = vmatprep.mubr.f32.mxu0 0.0
        %2941 = vmatmul.mubr.f32.gmra.mxu0 %v2741
        %v2942 = vpop.f32.mrf.mxu0
        %v2943 = vadd.f32 0.0, %v2942
        %v2944 = vpop.f32.mrf.mxu0
        %2945 = vmatprep.mubr.f32.mxu0 0.0
        %2946 = vmatmul.mubr.f32.gmra.mxu0 %v2744
        %v2947 = vpop.f32.mrf.mxu0
        %v2948 = vadd.f32 0.0, %v2947
        %v2949 = vpop.f32.mrf.mxu0
        %2950 = vmatprep.mubr.f32.mxu0 0.0
        %2951 = vmatmul.mubr.f32.gmra.mxu0 %v2747
        %v2952 = vpop.f32.mrf.mxu0
        %v2953 = vadd.f32 0.0, %v2952
        %v2954 = vpop.f32.mrf.mxu0
        %2955 = vmatprep.mubr.f32.mxu0 0.0
        %2956 = vmatmul.mubr.f32.gmra.mxu0 %v2750
        %v2957 = vpop.f32.mrf.mxu0
        %v2958 = vadd.f32 0.0, %v2957
        %v2959 = vpop.f32.mrf.mxu0
        %2960 = vmatprep.mubr.f32.mxu0 0.0
        %2961 = vmatmul.mubr.f32.gmra.mxu0 %v2753
        %v2962 = vpop.f32.mrf.mxu0
        %v2963 = vadd.f32 0.0, %v2962
        %v2964 = vpop.f32.mrf.mxu0
        %2965 = vmatprep.mubr.f32.mxu0 0.0
        %2966 = vmatmul.mubr.f32.gmra.mxu0 %v2756
        %v2967 = vpop.f32.mrf.mxu0
        %v2968 = vadd.f32 0.0, %v2967
        %v2969 = vpop.f32.mrf.mxu0
        %2970 = vmatprep.mubr.f32.mxu0 0.0
        %2971 = vmatmul.mubr.f32.gmra.mxu0 %v2759
        %v2972 = vpop.f32.mrf.mxu0
        %v2973 = vadd.f32 0.0, %v2972
        %v2974 = vpop.f32.mrf.mxu0
        %2975 = vmatprep.mubr.f32.mxu0 0.0
        %2976 = vmatmul.mubr.f32.gmra.mxu0 %v2762
        %v2977 = vpop.f32.mrf.mxu0
        %v2978 = vadd.f32 0.0, %v2977
        %v2979 = vpop.f32.mrf.mxu0
        %2980 = vmatprep.mubr.f32.mxu0 0.0
        %2981 = vmatmul.mubr.f32.gmra.mxu0 %v2765
        %v2982 = vpop.f32.mrf.mxu0
        %v2983 = vadd.f32 0.0, %v2982
        %v2984 = vpop.f32.mrf.mxu0
        %2985 = vmatprep.mubr.f32.mxu0 0.0
        %2986 = vmatmul.mubr.f32.gmra.mxu0 %v2768
        %v2987 = vpop.f32.mrf.mxu0
        %v2988 = vadd.f32 0.0, %v2987
        %v2989 = vpop.f32.mrf.mxu0
        %2990 = vmatprep.mubr.f32.mxu0 0.0
        %2991 = vmatmul.mubr.f32.gmra.mxu0 %v2771
        %v2992 = vpop.f32.mrf.mxu0
        %v2993 = vadd.f32 0.0, %v2992
        %v2994 = vpop.f32.mrf.mxu0
        %2995 = vmatprep.mubr.f32.mxu0 0.0
        %2996 = vmatmul.mubr.f32.gmra.mxu0 %v2774
        %v2997 = vpop.f32.mrf.mxu0
        %v2998 = vadd.f32 0.0, %v2997
        %v2999 = vpop.f32.mrf.mxu0
        %3000 = vdwg.mxu0
        %v3001 = vadd.f32 %v2485, %v2843
        %v3002 = vadd.f32 %v2490, %v2848
        %v3003 = vadd.f32 %v2495, %v2853
        %v3004 = vadd.f32 %v2500, %v2858
        %v3005 = vadd.f32 %v2505, %v2863
        %v3006 = vadd.f32 %v2510, %v2868
        %v3007 = vadd.f32 %v2515, %v2873
        %v3008 = vadd.f32 %v2520, %v2878
        %v3009 = vadd.f32 %v2525, %v2883
        %v3010 = vadd.f32 %v2530, %v2888
        %v3011 = vadd.f32 %v2535, %v2893
        %v3012 = vadd.f32 %v2540, %v2898
        %v3013 = vadd.f32 %v2545, %v2903
        %v3014 = vadd.f32 %v2550, %v2908
        %v3015 = vadd.f32 %v2555, %v2913
        %v3016 = vadd.f32 %v2560, %v2918
        %v3017 = vadd.f32 %v2565, %v2923
        %v3018 = vadd.f32 %v2570, %v2928
        %v3019 = vadd.f32 %v2575, %v2933
        %v3020 = vadd.f32 %v2580, %v2938
        %v3021 = vadd.f32 %v2585, %v2943
        %v3022 = vadd.f32 %v2590, %v2948
        %v3023 = vadd.f32 %v2595, %v2953
        %v3024 = vadd.f32 %v2600, %v2958
        %v3025 = vadd.f32 %v2605, %v2963
        %v3026 = vadd.f32 %v2610, %v2968
        %v3027 = vadd.f32 %v2615, %v2973
        %v3028 = vadd.f32 %v2620, %v2978
        %v3029 = vadd.f32 %v2625, %v2983
        %v3030 = vadd.f32 %v2630, %v2988
        %v3031 = vadd.f32 %v2635, %v2993
        %v3032 = vadd.f32 %v2640, %v2998
        %v3033 = vld [vmem:[%s392] sm:$0xff]
        %v3034 = vld [vmem:[%s392 + $0x8] sm:$0xff]
        %v3035 = vld [vmem:[%s392 + $0x18] sm:$0xff]
        %v3036 = vld [vmem:[%s392 + $0x20] sm:$0xff]
        %v3037 = vld [vmem:[%s392 + $0x30] sm:$0xff]
        %v3038 = vld [vmem:[%s392 + $0x38] sm:$0xff]
        %v3039 = vld [vmem:[%s392 + $0x48] sm:$0xff]
        %v3040 = vld [vmem:[%s392 + $0x50] sm:$0xff]
        %v3041 = vld [vmem:[%s392 + $0x60] sm:$0xff]
        %v3042 = vld [vmem:[%s392 + $0x68] sm:$0xff]
        %v3043 = vld [vmem:[%s392 + $0x78] sm:$0xff]
        %v3044 = vld [vmem:[%s392 + $0x80] sm:$0xff]
        %v3045 = vld [vmem:[%s392 + $0x90] sm:$0xff]
        %v3046 = vld [vmem:[%s392 + $0x98] sm:$0xff]
        %v3047 = vld [vmem:[%s392 + $0xa8] sm:$0xff]
        %v3048 = vld [vmem:[%s392 + $0xb0] sm:$0xff]
        %v3049 = vld [vmem:[%s392 + $0xc0] sm:$0xff]
        %v3050 = vld [vmem:[%s392 + $0xc8] sm:$0xff]
        %v3051 = vld [vmem:[%s392 + $0xd8] sm:$0xff]
        %v3052 = vld [vmem:[%s392 + $0xe0] sm:$0xff]
        %v3053 = vld [vmem:[%s392 + $0xf0] sm:$0xff]
        %v3054 = vld [vmem:[%s392 + $0xf8] sm:$0xff]
        %v3055 = vld [vmem:[%s392 + $0x108] sm:$0xff]
        %v3056 = vld [vmem:[%s392 + $0x110] sm:$0xff]
        %v3057 = vld [vmem:[%s392 + $0x120] sm:$0xff]
        %v3058 = vld [vmem:[%s392 + $0x128] sm:$0xff]
        %v3059 = vld [vmem:[%s392 + $0x138] sm:$0xff]
        %v3060 = vld [vmem:[%s392 + $0x140] sm:$0xff]
        %v3061 = vld [vmem:[%s392 + $0x150] sm:$0xff]
        %v3062 = vld [vmem:[%s392 + $0x158] sm:$0xff]
        %v3063 = vld [vmem:[%s392 + $0x168] sm:$0xff]
        %v3064 = vld [vmem:[%s392 + $0x170] sm:$0xff]
        %s3065 = scalar_lea.vmem %s5, 96
        %v3066 = vld [vmem:[%s3065] sm:$0xff]
        %v3067 = vld [vmem:[%s3065 + $0x8] sm:$0xff]
        %v3068 = vld [vmem:[%s3065 + $0x10] sm:$0xff]
        %v3069 = vld [vmem:[%s3065 + $0x18] sm:$0xff]
        %v3071 = vsel %vm314, %v3033, 0
        %v3074 = vsel %vm314, %v3034, 0
        %v3077 = vsel %vm314, %v3035, 0
        %v3080 = vsel %vm314, %v3036, 0
        %v3083 = vsel %vm314, %v3037, 0
        %v3086 = vsel %vm314, %v3038, 0
        %v3089 = vsel %vm314, %v3039, 0
        %v3092 = vsel %vm314, %v3040, 0
        %v3095 = vsel %vm314, %v3041, 0
        %v3098 = vsel %vm314, %v3042, 0
        %v3101 = vsel %vm314, %v3043, 0
        %v3104 = vsel %vm314, %v3044, 0
        %v3107 = vsel %vm314, %v3045, 0
        %v3110 = vsel %vm314, %v3046, 0
        %v3113 = vsel %vm314, %v3047, 0
        %v3116 = vsel %vm314, %v3048, 0
        %v3119 = vsel %vm314, %v3049, 0
        %v3122 = vsel %vm314, %v3050, 0
        %v3125 = vsel %vm314, %v3051, 0
        %v3128 = vsel %vm314, %v3052, 0
        %v3131 = vsel %vm314, %v3053, 0
        %v3134 = vsel %vm314, %v3054, 0
        %v3137 = vsel %vm314, %v3055, 0
        %v3140 = vsel %vm314, %v3056, 0
        %v3143 = vsel %vm314, %v3057, 0
        %v3146 = vsel %vm314, %v3058, 0
        %v3149 = vsel %vm314, %v3059, 0
        %v3152 = vsel %vm314, %v3060, 0
        %v3155 = vsel %vm314, %v3061, 0
        %v3158 = vsel %vm314, %v3062, 0
        %v3161 = vsel %vm314, %v3063, 0
        %v3164 = vsel %vm314, %v3064, 0
        %3166 = vmatprep.subr.mxu0 0.0
        %3167 = vmatpush1.msra.mxu0 0.0
        %3168 = vmatprep.subr.mxu0 0.0
        %3169 = vmatpush1.msra.mxu0 0.0
        %3170 = vmatprep.subr.mxu0 0.0
        %3171 = vmatpush1.msra.mxu0 0.0
        %3172 = vmatprep.subr.mxu0 0.0
        %3173 = vmatpush1.msra.mxu0 0.0
        %3174 = vmatprep.subr.mxu0 0.0
        %3175 = vmatpush1.msra.mxu0 0.0
        %3176 = vmatprep.subr.mxu0 0.0
        %3177 = vmatpush1.msra.mxu0 0.0
        %3178 = vmatprep.subr.mxu0 0.0
        %3179 = vmatpush1.msra.mxu0 0.0
        %3180 = vmatprep.subr.mxu0 0.0
        %3181 = vmatpush1.msra.mxu0 0.0
        %3182 = vmatprep.subr.mxu0 0.0
        %3183 = vmatpush1.msra.mxu0 0.0
        %3184 = vmatprep.subr.mxu0 0.0
        %3185 = vmatpush1.msra.mxu0 0.0
        %3186 = vmatprep.subr.mxu0 0.0
        %3187 = vmatpush1.msra.mxu0 0.0
        %3188 = vmatprep.subr.mxu0 0.0
        %3189 = vmatpush1.msra.mxu0 0.0
        %3190 = vmatprep.subr.mxu0 0.0
        %3191 = vmatpush1.msra.mxu0 %v3069
        %3192 = vmatprep.subr.mxu0 0.0
        %3193 = vmatpush1.msra.mxu0 %v3068
        %3194 = vmatprep.subr.mxu0 0.0
        %3195 = vmatpush1.msra.mxu0 %v3067
        %3196 = vmatprep.subr.mxu0 0.0
        %3197 = vmatpush1.msra.mxu0 %v3066
        %3198 = vmatprep.subr.mxu0 0.0
        %3199 = vmatpush2.msra.mxu0 0.0
        %3200 = vmatprep.subr.mxu0 0.0
        %3201 = vmatpush2.msra.mxu0 0.0
        %3202 = vmatprep.subr.mxu0 0.0
        %3203 = vmatpush2.msra.mxu0 0.0
        %3204 = vmatprep.subr.mxu0 0.0
        %3205 = vmatpush2.msra.mxu0 0.0
        %3206 = vmatprep.subr.mxu0 0.0
        %3207 = vmatpush2.msra.mxu0 0.0
        %3208 = vmatprep.subr.mxu0 0.0
        %3209 = vmatpush2.msra.mxu0 0.0
        %3210 = vmatprep.subr.mxu0 0.0
        %3211 = vmatpush2.msra.mxu0 0.0
        %3212 = vmatprep.subr.mxu0 0.0
        %3213 = vmatpush2.msra.mxu0 0.0
        %3214 = vmatprep.subr.mxu0 0.0
        %3215 = vmatpush2.msra.mxu0 0.0
        %3216 = vmatprep.subr.mxu0 0.0
        %3217 = vmatpush2.msra.mxu0 0.0
        %3218 = vmatprep.subr.mxu0 0.0
        %3219 = vmatpush2.msra.mxu0 0.0
        %3220 = vmatprep.subr.mxu0 0.0
        %3221 = vmatpush2.msra.mxu0 0.0
        %3222 = vmatprep.subr.mxu0 0.0
        %3223 = vmatpush2.msra.mxu0 0.0
        %3224 = vmatprep.subr.mxu0 0.0
        %3225 = vmatpush2.msra.mxu0 0.0
        %3226 = vmatprep.subr.mxu0 0.0
        %3227 = vmatpush2.msra.mxu0 0.0
        %3228 = vmatprep.subr.mxu0 0.0
        %3229 = vmatpush2.msra.mxu0 0.0
        %3230 = vmatprep.mubr.f32.mxu0 0.0
        %3231 = vmatmul.mubr.f32.gmra.mxu0 %v3071
        %v3232 = vpop.f32.mrf.mxu0
        %v3233 = vadd.f32 0.0, %v3232
        %v3234 = vpop.f32.mrf.mxu0
        %3235 = vmatprep.mubr.f32.mxu0 0.0
        %3236 = vmatmul.mubr.f32.gmra.mxu0 %v3074
        %v3237 = vpop.f32.mrf.mxu0
        %v3238 = vadd.f32 0.0, %v3237
        %v3239 = vpop.f32.mrf.mxu0
        %3240 = vmatprep.mubr.f32.mxu0 0.0
        %3241 = vmatmul.mubr.f32.gmra.mxu0 %v3077
        %v3242 = vpop.f32.mrf.mxu0
        %v3243 = vadd.f32 0.0, %v3242
        %v3244 = vpop.f32.mrf.mxu0
        %3245 = vmatprep.mubr.f32.mxu0 0.0
        %3246 = vmatmul.mubr.f32.gmra.mxu0 %v3080
        %v3247 = vpop.f32.mrf.mxu0
        %v3248 = vadd.f32 0.0, %v3247
        %v3249 = vpop.f32.mrf.mxu0
        %3250 = vmatprep.mubr.f32.mxu0 0.0
        %3251 = vmatmul.mubr.f32.gmra.mxu0 %v3083
        %v3252 = vpop.f32.mrf.mxu0
        %v3253 = vadd.f32 0.0, %v3252
        %v3254 = vpop.f32.mrf.mxu0
        %3255 = vmatprep.mubr.f32.mxu0 0.0
        %3256 = vmatmul.mubr.f32.gmra.mxu0 %v3086
        %v3257 = vpop.f32.mrf.mxu0
        %v3258 = vadd.f32 0.0, %v3257
        %v3259 = vpop.f32.mrf.mxu0
        %3260 = vmatprep.mubr.f32.mxu0 0.0
        %3261 = vmatmul.mubr.f32.gmra.mxu0 %v3089
        %v3262 = vpop.f32.mrf.mxu0
        %v3263 = vadd.f32 0.0, %v3262
        %v3264 = vpop.f32.mrf.mxu0
        %3265 = vmatprep.mubr.f32.mxu0 0.0
        %3266 = vmatmul.mubr.f32.gmra.mxu0 %v3092
        %v3267 = vpop.f32.mrf.mxu0
        %v3268 = vadd.f32 0.0, %v3267
        %v3269 = vpop.f32.mrf.mxu0
        %3270 = vmatprep.mubr.f32.mxu0 0.0
        %3271 = vmatmul.mubr.f32.gmra.mxu0 %v3095
        %v3272 = vpop.f32.mrf.mxu0
        %v3273 = vadd.f32 0.0, %v3272
        %v3274 = vpop.f32.mrf.mxu0
        %3275 = vmatprep.mubr.f32.mxu0 0.0
        %3276 = vmatmul.mubr.f32.gmra.mxu0 %v3098
        %v3277 = vpop.f32.mrf.mxu0
        %v3278 = vadd.f32 0.0, %v3277
        %v3279 = vpop.f32.mrf.mxu0
        %3280 = vmatprep.mubr.f32.mxu0 0.0
        %3281 = vmatmul.mubr.f32.gmra.mxu0 %v3101
        %v3282 = vpop.f32.mrf.mxu0
        %v3283 = vadd.f32 0.0, %v3282
        %v3284 = vpop.f32.mrf.mxu0
        %3285 = vmatprep.mubr.f32.mxu0 0.0
        %3286 = vmatmul.mubr.f32.gmra.mxu0 %v3104
        %v3287 = vpop.f32.mrf.mxu0
        %v3288 = vadd.f32 0.0, %v3287
        %v3289 = vpop.f32.mrf.mxu0
        %3290 = vmatprep.mubr.f32.mxu0 0.0
        %3291 = vmatmul.mubr.f32.gmra.mxu0 %v3107
        %v3292 = vpop.f32.mrf.mxu0
        %v3293 = vadd.f32 0.0, %v3292
        %v3294 = vpop.f32.mrf.mxu0
        %3295 = vmatprep.mubr.f32.mxu0 0.0
        %3296 = vmatmul.mubr.f32.gmra.mxu0 %v3110
        %v3297 = vpop.f32.mrf.mxu0
        %v3298 = vadd.f32 0.0, %v3297
        %v3299 = vpop.f32.mrf.mxu0
        %3300 = vmatprep.mubr.f32.mxu0 0.0
        %3301 = vmatmul.mubr.f32.gmra.mxu0 %v3113
        %v3302 = vpop.f32.mrf.mxu0
        %v3303 = vadd.f32 0.0, %v3302
        %v3304 = vpop.f32.mrf.mxu0
        %3305 = vmatprep.mubr.f32.mxu0 0.0
        %3306 = vmatmul.mubr.f32.gmra.mxu0 %v3116
        %v3307 = vpop.f32.mrf.mxu0
        %v3308 = vadd.f32 0.0, %v3307
        %v3309 = vpop.f32.mrf.mxu0
        %3310 = vmatprep.mubr.f32.mxu0 0.0
        %3311 = vmatmul.mubr.f32.gmra.mxu0 %v3119
        %v3312 = vpop.f32.mrf.mxu0
        %v3313 = vadd.f32 0.0, %v3312
        %v3314 = vpop.f32.mrf.mxu0
        %3315 = vmatprep.mubr.f32.mxu0 0.0
        %3316 = vmatmul.mubr.f32.gmra.mxu0 %v3122
        %v3317 = vpop.f32.mrf.mxu0
        %v3318 = vadd.f32 0.0, %v3317
        %v3319 = vpop.f32.mrf.mxu0
        %3320 = vmatprep.mubr.f32.mxu0 0.0
        %3321 = vmatmul.mubr.f32.gmra.mxu0 %v3125
        %v3322 = vpop.f32.mrf.mxu0
        %v3323 = vadd.f32 0.0, %v3322
        %v3324 = vpop.f32.mrf.mxu0
        %3325 = vmatprep.mubr.f32.mxu0 0.0
        %3326 = vmatmul.mubr.f32.gmra.mxu0 %v3128
        %v3327 = vpop.f32.mrf.mxu0
        %v3328 = vadd.f32 0.0, %v3327
        %v3329 = vpop.f32.mrf.mxu0
        %3330 = vmatprep.mubr.f32.mxu0 0.0
        %3331 = vmatmul.mubr.f32.gmra.mxu0 %v3131
        %v3332 = vpop.f32.mrf.mxu0
        %v3333 = vadd.f32 0.0, %v3332
        %v3334 = vpop.f32.mrf.mxu0
        %3335 = vmatprep.mubr.f32.mxu0 0.0
        %3336 = vmatmul.mubr.f32.gmra.mxu0 %v3134
        %v3337 = vpop.f32.mrf.mxu0
        %v3338 = vadd.f32 0.0, %v3337
        %v3339 = vpop.f32.mrf.mxu0
        %3340 = vmatprep.mubr.f32.mxu0 0.0
        %3341 = vmatmul.mubr.f32.gmra.mxu0 %v3137
        %v3342 = vpop.f32.mrf.mxu0
        %v3343 = vadd.f32 0.0, %v3342
        %v3344 = vpop.f32.mrf.mxu0
        %3345 = vmatprep.mubr.f32.mxu0 0.0
        %3346 = vmatmul.mubr.f32.gmra.mxu0 %v3140
        %v3347 = vpop.f32.mrf.mxu0
        %v3348 = vadd.f32 0.0, %v3347
        %v3349 = vpop.f32.mrf.mxu0
        %3350 = vmatprep.mubr.f32.mxu0 0.0
        %3351 = vmatmul.mubr.f32.gmra.mxu0 %v3143
        %v3352 = vpop.f32.mrf.mxu0
        %v3353 = vadd.f32 0.0, %v3352
        %v3354 = vpop.f32.mrf.mxu0
        %3355 = vmatprep.mubr.f32.mxu0 0.0
        %3356 = vmatmul.mubr.f32.gmra.mxu0 %v3146
        %v3357 = vpop.f32.mrf.mxu0
        %v3358 = vadd.f32 0.0, %v3357
        %v3359 = vpop.f32.mrf.mxu0
        %3360 = vmatprep.mubr.f32.mxu0 0.0
        %3361 = vmatmul.mubr.f32.gmra.mxu0 %v3149
        %v3362 = vpop.f32.mrf.mxu0
        %v3363 = vadd.f32 0.0, %v3362
        %v3364 = vpop.f32.mrf.mxu0
        %3365 = vmatprep.mubr.f32.mxu0 0.0
        %3366 = vmatmul.mubr.f32.gmra.mxu0 %v3152
        %v3367 = vpop.f32.mrf.mxu0
        %v3368 = vadd.f32 0.0, %v3367
        %v3369 = vpop.f32.mrf.mxu0
        %3370 = vmatprep.mubr.f32.mxu0 0.0
        %3371 = vmatmul.mubr.f32.gmra.mxu0 %v3155
        %v3372 = vpop.f32.mrf.mxu0
        %v3373 = vadd.f32 0.0, %v3372
        %v3374 = vpop.f32.mrf.mxu0
        %3375 = vmatprep.mubr.f32.mxu0 0.0
        %3376 = vmatmul.mubr.f32.gmra.mxu0 %v3158
        %v3377 = vpop.f32.mrf.mxu0
        %v3378 = vadd.f32 0.0, %v3377
        %v3379 = vpop.f32.mrf.mxu0
        %3380 = vmatprep.mubr.f32.mxu0 0.0
        %3381 = vmatmul.mubr.f32.gmra.mxu0 %v3161
        %v3382 = vpop.f32.mrf.mxu0
        %v3383 = vadd.f32 0.0, %v3382
        %v3384 = vpop.f32.mrf.mxu0
        %3385 = vmatprep.mubr.f32.mxu0 0.0
        %3386 = vmatmul.mubr.f32.gmra.mxu0 %v3164
        %v3387 = vpop.f32.mrf.mxu0
        %v3388 = vadd.f32 0.0, %v3387
        %v3389 = vpop.f32.mrf.mxu0
        %3390 = vdwg.mxu0
        %v3391 = vadd.f32 %v3001, %v3233
        %v3392 = vadd.f32 %v3002, %v3238
        %v3393 = vadd.f32 %v3003, %v3243
        %v3394 = vadd.f32 %v3004, %v3248
        %v3395 = vadd.f32 %v3005, %v3253
        %v3396 = vadd.f32 %v3006, %v3258
        %v3397 = vadd.f32 %v3007, %v3263
        %v3398 = vadd.f32 %v3008, %v3268
        %v3399 = vadd.f32 %v3009, %v3273
        %v3400 = vadd.f32 %v3010, %v3278
        %v3401 = vadd.f32 %v3011, %v3283
        %v3402 = vadd.f32 %v3012, %v3288
        %v3403 = vadd.f32 %v3013, %v3293
        %v3404 = vadd.f32 %v3014, %v3298
        %v3405 = vadd.f32 %v3015, %v3303
        %v3406 = vadd.f32 %v3016, %v3308
        %v3407 = vadd.f32 %v3017, %v3313
        %v3408 = vadd.f32 %v3018, %v3318
        %v3409 = vadd.f32 %v3019, %v3323
        %v3410 = vadd.f32 %v3020, %v3328
        %v3411 = vadd.f32 %v3021, %v3333
        %v3412 = vadd.f32 %v3022, %v3338
        %v3413 = vadd.f32 %v3023, %v3343
        %v3414 = vadd.f32 %v3024, %v3348
        %v3415 = vadd.f32 %v3025, %v3353
        %v3416 = vadd.f32 %v3026, %v3358
        %v3417 = vadd.f32 %v3027, %v3363
        %v3418 = vadd.f32 %v3028, %v3368
        %v3419 = vadd.f32 %v3029, %v3373
        %v3420 = vadd.f32 %v3030, %v3378
        %v3421 = vadd.f32 %v3031, %v3383
        %v3422 = vadd.f32 %v3032, %v3388
        %v3423 = vld [vmem:[%s392 + $0x1] sm:$0xff]
        %v3424 = vld [vmem:[%s392 + $0x9] sm:$0xff]
        %v3425 = vld [vmem:[%s392 + $0x19] sm:$0xff]
        %v3426 = vld [vmem:[%s392 + $0x21] sm:$0xff]
        %v3427 = vld [vmem:[%s392 + $0x31] sm:$0xff]
        %v3428 = vld [vmem:[%s392 + $0x39] sm:$0xff]
        %v3429 = vld [vmem:[%s392 + $0x49] sm:$0xff]
        %v3430 = vld [vmem:[%s392 + $0x51] sm:$0xff]
        %v3431 = vld [vmem:[%s392 + $0x61] sm:$0xff]
        %v3432 = vld [vmem:[%s392 + $0x69] sm:$0xff]
        %v3433 = vld [vmem:[%s392 + $0x79] sm:$0xff]
        %v3434 = vld [vmem:[%s392 + $0x81] sm:$0xff]
        %v3435 = vld [vmem:[%s392 + $0x91] sm:$0xff]
        %v3436 = vld [vmem:[%s392 + $0x99] sm:$0xff]
        %v3437 = vld [vmem:[%s392 + $0xa9] sm:$0xff]
        %v3438 = vld [vmem:[%s392 + $0xb1] sm:$0xff]
        %v3439 = vld [vmem:[%s392 + $0xc1] sm:$0xff]
        %v3440 = vld [vmem:[%s392 + $0xc9] sm:$0xff]
        %v3441 = vld [vmem:[%s392 + $0xd9] sm:$0xff]
        %v3442 = vld [vmem:[%s392 + $0xe1] sm:$0xff]
        %v3443 = vld [vmem:[%s392 + $0xf1] sm:$0xff]
        %v3444 = vld [vmem:[%s392 + $0xf9] sm:$0xff]
        %v3445 = vld [vmem:[%s392 + $0x109] sm:$0xff]
        %v3446 = vld [vmem:[%s392 + $0x111] sm:$0xff]
        %v3447 = vld [vmem:[%s392 + $0x121] sm:$0xff]
        %v3448 = vld [vmem:[%s392 + $0x129] sm:$0xff]
        %v3449 = vld [vmem:[%s392 + $0x139] sm:$0xff]
        %v3450 = vld [vmem:[%s392 + $0x141] sm:$0xff]
        %v3451 = vld [vmem:[%s392 + $0x151] sm:$0xff]
        %v3452 = vld [vmem:[%s392 + $0x159] sm:$0xff]
        %v3453 = vld [vmem:[%s392 + $0x169] sm:$0xff]
        %v3454 = vld [vmem:[%s392 + $0x171] sm:$0xff]
        %s3455 = scalar_lea.vmem %s5, 128
        %v3456 = vld [vmem:[%s3455] sm:$0xff]
        %v3457 = vld [vmem:[%s3455 + $0x8] sm:$0xff]
        %v3458 = vld [vmem:[%s3455 + $0x10] sm:$0xff]
        %v3459 = vld [vmem:[%s3455 + $0x18] sm:$0xff]
        %v3461 = vsel %vm314, %v3423, 0
        %v3464 = vsel %vm314, %v3424, 0
        %v3467 = vsel %vm314, %v3425, 0
        %v3470 = vsel %vm314, %v3426, 0
        %v3473 = vsel %vm314, %v3427, 0
        %v3476 = vsel %vm314, %v3428, 0
        %v3479 = vsel %vm314, %v3429, 0
        %v3482 = vsel %vm314, %v3430, 0
        %v3485 = vsel %vm314, %v3431, 0
        %v3488 = vsel %vm314, %v3432, 0
        %v3491 = vsel %vm314, %v3433, 0
        %v3494 = vsel %vm314, %v3434, 0
        %v3497 = vsel %vm314, %v3435, 0
        %v3500 = vsel %vm314, %v3436, 0
        %v3503 = vsel %vm314, %v3437, 0
        %v3506 = vsel %vm314, %v3438, 0
        %v3509 = vsel %vm314, %v3439, 0
        %v3512 = vsel %vm314, %v3440, 0
        %v3515 = vsel %vm314, %v3441, 0
        %v3518 = vsel %vm314, %v3442, 0
        %v3521 = vsel %vm314, %v3443, 0
        %v3524 = vsel %vm314, %v3444, 0
        %v3527 = vsel %vm314, %v3445, 0
        %v3530 = vsel %vm314, %v3446, 0
        %v3533 = vsel %vm314, %v3447, 0
        %v3536 = vsel %vm314, %v3448, 0
        %v3539 = vsel %vm314, %v3449, 0
        %v3542 = vsel %vm314, %v3450, 0
        %v3545 = vsel %vm314, %v3451, 0
        %v3548 = vsel %vm314, %v3452, 0
        %v3551 = vsel %vm314, %v3453, 0
        %v3554 = vsel %vm314, %v3454, 0
        %3556 = vmatprep.subr.mxu0 0.0
        %3557 = vmatpush1.msra.mxu0 0.0
        %3558 = vmatprep.subr.mxu0 0.0
        %3559 = vmatpush1.msra.mxu0 0.0
        %3560 = vmatprep.subr.mxu0 0.0
        %3561 = vmatpush1.msra.mxu0 0.0
        %3562 = vmatprep.subr.mxu0 0.0
        %3563 = vmatpush1.msra.mxu0 0.0
        %3564 = vmatprep.subr.mxu0 0.0
        %3565 = vmatpush1.msra.mxu0 0.0
        %3566 = vmatprep.subr.mxu0 0.0
        %3567 = vmatpush1.msra.mxu0 0.0
        %3568 = vmatprep.subr.mxu0 0.0
        %3569 = vmatpush1.msra.mxu0 0.0
        %3570 = vmatprep.subr.mxu0 0.0
        %3571 = vmatpush1.msra.mxu0 0.0
        %3572 = vmatprep.subr.mxu0 0.0
        %3573 = vmatpush1.msra.mxu0 0.0
        %3574 = vmatprep.subr.mxu0 0.0
        %3575 = vmatpush1.msra.mxu0 0.0
        %3576 = vmatprep.subr.mxu0 0.0
        %3577 = vmatpush1.msra.mxu0 0.0
        %3578 = vmatprep.subr.mxu0 0.0
        %3579 = vmatpush1.msra.mxu0 0.0
        %3580 = vmatprep.subr.mxu0 0.0
        %3581 = vmatpush1.msra.mxu0 %v3459
        %3582 = vmatprep.subr.mxu0 0.0
        %3583 = vmatpush1.msra.mxu0 %v3458
        %3584 = vmatprep.subr.mxu0 0.0
        %3585 = vmatpush1.msra.mxu0 %v3457
        %3586 = vmatprep.subr.mxu0 0.0
        %3587 = vmatpush1.msra.mxu0 %v3456
        %3588 = vmatprep.subr.mxu0 0.0
        %3589 = vmatpush2.msra.mxu0 0.0
        %3590 = vmatprep.subr.mxu0 0.0
        %3591 = vmatpush2.msra.mxu0 0.0
        %3592 = vmatprep.subr.mxu0 0.0
        %3593 = vmatpush2.msra.mxu0 0.0
        %3594 = vmatprep.subr.mxu0 0.0
        %3595 = vmatpush2.msra.mxu0 0.0
        %3596 = vmatprep.subr.mxu0 0.0
        %3597 = vmatpush2.msra.mxu0 0.0
        %3598 = vmatprep.subr.mxu0 0.0
        %3599 = vmatpush2.msra.mxu0 0.0
        %3600 = vmatprep.subr.mxu0 0.0
        %3601 = vmatpush2.msra.mxu0 0.0
        %3602 = vmatprep.subr.mxu0 0.0
        %3603 = vmatpush2.msra.mxu0 0.0
        %3604 = vmatprep.subr.mxu0 0.0
        %3605 = vmatpush2.msra.mxu0 0.0
        %3606 = vmatprep.subr.mxu0 0.0
        %3607 = vmatpush2.msra.mxu0 0.0
        %3608 = vmatprep.subr.mxu0 0.0
        %3609 = vmatpush2.msra.mxu0 0.0
        %3610 = vmatprep.subr.mxu0 0.0
        %3611 = vmatpush2.msra.mxu0 0.0
        %3612 = vmatprep.subr.mxu0 0.0
        %3613 = vmatpush2.msra.mxu0 0.0
        %3614 = vmatprep.subr.mxu0 0.0
        %3615 = vmatpush2.msra.mxu0 0.0
        %3616 = vmatprep.subr.mxu0 0.0
        %3617 = vmatpush2.msra.mxu0 0.0
        %3618 = vmatprep.subr.mxu0 0.0
        %3619 = vmatpush2.msra.mxu0 0.0
        %3620 = vmatprep.mubr.f32.mxu0 0.0
        %3621 = vmatmul.mubr.f32.gmra.mxu0 %v3461
        %v3622 = vpop.f32.mrf.mxu0
        %v3623 = vadd.f32 0.0, %v3622
        %v3624 = vpop.f32.mrf.mxu0
        %3625 = vmatprep.mubr.f32.mxu0 0.0
        %3626 = vmatmul.mubr.f32.gmra.mxu0 %v3464
        %v3627 = vpop.f32.mrf.mxu0
        %v3628 = vadd.f32 0.0, %v3627
        %v3629 = vpop.f32.mrf.mxu0
        %3630 = vmatprep.mubr.f32.mxu0 0.0
        %3631 = vmatmul.mubr.f32.gmra.mxu0 %v3467
        %v3632 = vpop.f32.mrf.mxu0
        %v3633 = vadd.f32 0.0, %v3632
        %v3634 = vpop.f32.mrf.mxu0
        %3635 = vmatprep.mubr.f32.mxu0 0.0
        %3636 = vmatmul.mubr.f32.gmra.mxu0 %v3470
        %v3637 = vpop.f32.mrf.mxu0
        %v3638 = vadd.f32 0.0, %v3637
        %v3639 = vpop.f32.mrf.mxu0
        %3640 = vmatprep.mubr.f32.mxu0 0.0
        %3641 = vmatmul.mubr.f32.gmra.mxu0 %v3473
        %v3642 = vpop.f32.mrf.mxu0
        %v3643 = vadd.f32 0.0, %v3642
        %v3644 = vpop.f32.mrf.mxu0
        %3645 = vmatprep.mubr.f32.mxu0 0.0
        %3646 = vmatmul.mubr.f32.gmra.mxu0 %v3476
        %v3647 = vpop.f32.mrf.mxu0
        %v3648 = vadd.f32 0.0, %v3647
        %v3649 = vpop.f32.mrf.mxu0
        %3650 = vmatprep.mubr.f32.mxu0 0.0
        %3651 = vmatmul.mubr.f32.gmra.mxu0 %v3479
        %v3652 = vpop.f32.mrf.mxu0
        %v3653 = vadd.f32 0.0, %v3652
        %v3654 = vpop.f32.mrf.mxu0
        %3655 = vmatprep.mubr.f32.mxu0 0.0
        %3656 = vmatmul.mubr.f32.gmra.mxu0 %v3482
        %v3657 = vpop.f32.mrf.mxu0
        %v3658 = vadd.f32 0.0, %v3657
        %v3659 = vpop.f32.mrf.mxu0
        %3660 = vmatprep.mubr.f32.mxu0 0.0
        %3661 = vmatmul.mubr.f32.gmra.mxu0 %v3485
        %v3662 = vpop.f32.mrf.mxu0
        %v3663 = vadd.f32 0.0, %v3662
        %v3664 = vpop.f32.mrf.mxu0
        %3665 = vmatprep.mubr.f32.mxu0 0.0
        %3666 = vmatmul.mubr.f32.gmra.mxu0 %v3488
        %v3667 = vpop.f32.mrf.mxu0
        %v3668 = vadd.f32 0.0, %v3667
        %v3669 = vpop.f32.mrf.mxu0
        %3670 = vmatprep.mubr.f32.mxu0 0.0
        %3671 = vmatmul.mubr.f32.gmra.mxu0 %v3491
        %v3672 = vpop.f32.mrf.mxu0
        %v3673 = vadd.f32 0.0, %v3672
        %v3674 = vpop.f32.mrf.mxu0
        %3675 = vmatprep.mubr.f32.mxu0 0.0
        %3676 = vmatmul.mubr.f32.gmra.mxu0 %v3494
        %v3677 = vpop.f32.mrf.mxu0
        %v3678 = vadd.f32 0.0, %v3677
        %v3679 = vpop.f32.mrf.mxu0
        %3680 = vmatprep.mubr.f32.mxu0 0.0
        %3681 = vmatmul.mubr.f32.gmra.mxu0 %v3497
        %v3682 = vpop.f32.mrf.mxu0
        %v3683 = vadd.f32 0.0, %v3682
        %v3684 = vpop.f32.mrf.mxu0
        %3685 = vmatprep.mubr.f32.mxu0 0.0
        %3686 = vmatmul.mubr.f32.gmra.mxu0 %v3500
        %v3687 = vpop.f32.mrf.mxu0
        %v3688 = vadd.f32 0.0, %v3687
        %v3689 = vpop.f32.mrf.mxu0
        %3690 = vmatprep.mubr.f32.mxu0 0.0
        %3691 = vmatmul.mubr.f32.gmra.mxu0 %v3503
        %v3692 = vpop.f32.mrf.mxu0
        %v3693 = vadd.f32 0.0, %v3692
        %v3694 = vpop.f32.mrf.mxu0
        %3695 = vmatprep.mubr.f32.mxu0 0.0
        %3696 = vmatmul.mubr.f32.gmra.mxu0 %v3506
        %v3697 = vpop.f32.mrf.mxu0
        %v3698 = vadd.f32 0.0, %v3697
        %v3699 = vpop.f32.mrf.mxu0
        %3700 = vmatprep.mubr.f32.mxu0 0.0
        %3701 = vmatmul.mubr.f32.gmra.mxu0 %v3509
        %v3702 = vpop.f32.mrf.mxu0
        %v3703 = vadd.f32 0.0, %v3702
        %v3704 = vpop.f32.mrf.mxu0
        %3705 = vmatprep.mubr.f32.mxu0 0.0
        %3706 = vmatmul.mubr.f32.gmra.mxu0 %v3512
        %v3707 = vpop.f32.mrf.mxu0
        %v3708 = vadd.f32 0.0, %v3707
        %v3709 = vpop.f32.mrf.mxu0
        %3710 = vmatprep.mubr.f32.mxu0 0.0
        %3711 = vmatmul.mubr.f32.gmra.mxu0 %v3515
        %v3712 = vpop.f32.mrf.mxu0
        %v3713 = vadd.f32 0.0, %v3712
        %v3714 = vpop.f32.mrf.mxu0
        %3715 = vmatprep.mubr.f32.mxu0 0.0
        %3716 = vmatmul.mubr.f32.gmra.mxu0 %v3518
        %v3717 = vpop.f32.mrf.mxu0
        %v3718 = vadd.f32 0.0, %v3717
        %v3719 = vpop.f32.mrf.mxu0
        %3720 = vmatprep.mubr.f32.mxu0 0.0
        %3721 = vmatmul.mubr.f32.gmra.mxu0 %v3521
        %v3722 = vpop.f32.mrf.mxu0
        %v3723 = vadd.f32 0.0, %v3722
        %v3724 = vpop.f32.mrf.mxu0
        %3725 = vmatprep.mubr.f32.mxu0 0.0
        %3726 = vmatmul.mubr.f32.gmra.mxu0 %v3524
        %v3727 = vpop.f32.mrf.mxu0
        %v3728 = vadd.f32 0.0, %v3727
        %v3729 = vpop.f32.mrf.mxu0
        %3730 = vmatprep.mubr.f32.mxu0 0.0
        %3731 = vmatmul.mubr.f32.gmra.mxu0 %v3527
        %v3732 = vpop.f32.mrf.mxu0
        %v3733 = vadd.f32 0.0, %v3732
        %v3734 = vpop.f32.mrf.mxu0
        %3735 = vmatprep.mubr.f32.mxu0 0.0
        %3736 = vmatmul.mubr.f32.gmra.mxu0 %v3530
        %v3737 = vpop.f32.mrf.mxu0
        %v3738 = vadd.f32 0.0, %v3737
        %v3739 = vpop.f32.mrf.mxu0
        %3740 = vmatprep.mubr.f32.mxu0 0.0
        %3741 = vmatmul.mubr.f32.gmra.mxu0 %v3533
        %v3742 = vpop.f32.mrf.mxu0
        %v3743 = vadd.f32 0.0, %v3742
        %v3744 = vpop.f32.mrf.mxu0
        %3745 = vmatprep.mubr.f32.mxu0 0.0
        %3746 = vmatmul.mubr.f32.gmra.mxu0 %v3536
        %v3747 = vpop.f32.mrf.mxu0
        %v3748 = vadd.f32 0.0, %v3747
        %v3749 = vpop.f32.mrf.mxu0
        %3750 = vmatprep.mubr.f32.mxu0 0.0
        %3751 = vmatmul.mubr.f32.gmra.mxu0 %v3539
        %v3752 = vpop.f32.mrf.mxu0
        %v3753 = vadd.f32 0.0, %v3752
        %v3754 = vpop.f32.mrf.mxu0
        %3755 = vmatprep.mubr.f32.mxu0 0.0
        %3756 = vmatmul.mubr.f32.gmra.mxu0 %v3542
        %v3757 = vpop.f32.mrf.mxu0
        %v3758 = vadd.f32 0.0, %v3757
        %v3759 = vpop.f32.mrf.mxu0
        %3760 = vmatprep.mubr.f32.mxu0 0.0
        %3761 = vmatmul.mubr.f32.gmra.mxu0 %v3545
        %v3762 = vpop.f32.mrf.mxu0
        %v3763 = vadd.f32 0.0, %v3762
        %v3764 = vpop.f32.mrf.mxu0
        %3765 = vmatprep.mubr.f32.mxu0 0.0
        %3766 = vmatmul.mubr.f32.gmra.mxu0 %v3548
        %v3767 = vpop.f32.mrf.mxu0
        %v3768 = vadd.f32 0.0, %v3767
        %v3769 = vpop.f32.mrf.mxu0
        %3770 = vmatprep.mubr.f32.mxu0 0.0
        %3771 = vmatmul.mubr.f32.gmra.mxu0 %v3551
        %v3772 = vpop.f32.mrf.mxu0
        %v3773 = vadd.f32 0.0, %v3772
        %v3774 = vpop.f32.mrf.mxu0
        %3775 = vmatprep.mubr.f32.mxu0 0.0
        %3776 = vmatmul.mubr.f32.gmra.mxu0 %v3554
        %v3777 = vpop.f32.mrf.mxu0
        %v3778 = vadd.f32 0.0, %v3777
        %v3779 = vpop.f32.mrf.mxu0
        %3780 = vdwg.mxu0
        %v3781 = vadd.f32 %v3391, %v3623
        %v3782 = vadd.f32 %v3392, %v3628
        %v3783 = vadd.f32 %v3393, %v3633
        %v3784 = vadd.f32 %v3394, %v3638
        %v3785 = vadd.f32 %v3395, %v3643
        %v3786 = vadd.f32 %v3396, %v3648
        %v3787 = vadd.f32 %v3397, %v3653
        %v3788 = vadd.f32 %v3398, %v3658
        %v3789 = vadd.f32 %v3399, %v3663
        %v3790 = vadd.f32 %v3400, %v3668
        %v3791 = vadd.f32 %v3401, %v3673
        %v3792 = vadd.f32 %v3402, %v3678
        %v3793 = vadd.f32 %v3403, %v3683
        %v3794 = vadd.f32 %v3404, %v3688
        %v3795 = vadd.f32 %v3405, %v3693
        %v3796 = vadd.f32 %v3406, %v3698
        %v3797 = vadd.f32 %v3407, %v3703
        %v3798 = vadd.f32 %v3408, %v3708
        %v3799 = vadd.f32 %v3409, %v3713
        %v3800 = vadd.f32 %v3410, %v3718
        %v3801 = vadd.f32 %v3411, %v3723
        %v3802 = vadd.f32 %v3412, %v3728
        %v3803 = vadd.f32 %v3413, %v3733
        %v3804 = vadd.f32 %v3414, %v3738
        %v3805 = vadd.f32 %v3415, %v3743
        %v3806 = vadd.f32 %v3416, %v3748
        %v3807 = vadd.f32 %v3417, %v3753
        %v3808 = vadd.f32 %v3418, %v3758
        %v3809 = vadd.f32 %v3419, %v3763
        %v3810 = vadd.f32 %v3420, %v3768
        %v3811 = vadd.f32 %v3421, %v3773
        %v3812 = vadd.f32 %v3422, %v3778
        %v3813 = vld [vmem:[%s392 + $0x2] sm:$0xff]
        %v3814 = vld [vmem:[%s392 + $0xa] sm:$0xff]
        %v3815 = vld [vmem:[%s392 + $0x1a] sm:$0xff]
        %v3816 = vld [vmem:[%s392 + $0x22] sm:$0xff]
        %v3817 = vld [vmem:[%s392 + $0x32] sm:$0xff]
        %v3818 = vld [vmem:[%s392 + $0x3a] sm:$0xff]
        %v3819 = vld [vmem:[%s392 + $0x4a] sm:$0xff]
        %v3820 = vld [vmem:[%s392 + $0x52] sm:$0xff]
        %v3821 = vld [vmem:[%s392 + $0x62] sm:$0xff]
        %v3822 = vld [vmem:[%s392 + $0x6a] sm:$0xff]
        %v3823 = vld [vmem:[%s392 + $0x7a] sm:$0xff]
        %v3824 = vld [vmem:[%s392 + $0x82] sm:$0xff]
        %v3825 = vld [vmem:[%s392 + $0x92] sm:$0xff]
        %v3826 = vld [vmem:[%s392 + $0x9a] sm:$0xff]
        %v3827 = vld [vmem:[%s392 + $0xaa] sm:$0xff]
        %v3828 = vld [vmem:[%s392 + $0xb2] sm:$0xff]
        %v3829 = vld [vmem:[%s392 + $0xc2] sm:$0xff]
        %v3830 = vld [vmem:[%s392 + $0xca] sm:$0xff]
        %v3831 = vld [vmem:[%s392 + $0xda] sm:$0xff]
        %v3832 = vld [vmem:[%s392 + $0xe2] sm:$0xff]
        %v3833 = vld [vmem:[%s392 + $0xf2] sm:$0xff]
        %v3834 = vld [vmem:[%s392 + $0xfa] sm:$0xff]
        %v3835 = vld [vmem:[%s392 + $0x10a] sm:$0xff]
        %v3836 = vld [vmem:[%s392 + $0x112] sm:$0xff]
        %v3837 = vld [vmem:[%s392 + $0x122] sm:$0xff]
        %v3838 = vld [vmem:[%s392 + $0x12a] sm:$0xff]
        %v3839 = vld [vmem:[%s392 + $0x13a] sm:$0xff]
        %v3840 = vld [vmem:[%s392 + $0x142] sm:$0xff]
        %v3841 = vld [vmem:[%s392 + $0x152] sm:$0xff]
        %v3842 = vld [vmem:[%s392 + $0x15a] sm:$0xff]
        %v3843 = vld [vmem:[%s392 + $0x16a] sm:$0xff]
        %v3844 = vld [vmem:[%s392 + $0x172] sm:$0xff]
        %s3845 = scalar_lea.vmem %s5, 160
        %v3846 = vld [vmem:[%s3845] sm:$0xff]
        %v3847 = vld [vmem:[%s3845 + $0x8] sm:$0xff]
        %v3848 = vld [vmem:[%s3845 + $0x10] sm:$0xff]
        %v3849 = vld [vmem:[%s3845 + $0x18] sm:$0xff]
        %v3851 = vsel %vm314, %v3813, 0
        %v3854 = vsel %vm314, %v3814, 0
        %v3857 = vsel %vm314, %v3815, 0
        %v3860 = vsel %vm314, %v3816, 0
        %v3863 = vsel %vm314, %v3817, 0
        %v3866 = vsel %vm314, %v3818, 0
        %v3869 = vsel %vm314, %v3819, 0
        %v3872 = vsel %vm314, %v3820, 0
        %v3875 = vsel %vm314, %v3821, 0
        %v3878 = vsel %vm314, %v3822, 0
        %v3881 = vsel %vm314, %v3823, 0
        %v3884 = vsel %vm314, %v3824, 0
        %v3887 = vsel %vm314, %v3825, 0
        %v3890 = vsel %vm314, %v3826, 0
        %v3893 = vsel %vm314, %v3827, 0
        %v3896 = vsel %vm314, %v3828, 0
        %v3899 = vsel %vm314, %v3829, 0
        %v3902 = vsel %vm314, %v3830, 0
        %v3905 = vsel %vm314, %v3831, 0
        %v3908 = vsel %vm314, %v3832, 0
        %v3911 = vsel %vm314, %v3833, 0
        %v3914 = vsel %vm314, %v3834, 0
        %v3917 = vsel %vm314, %v3835, 0
        %v3920 = vsel %vm314, %v3836, 0
        %v3923 = vsel %vm314, %v3837, 0
        %v3926 = vsel %vm314, %v3838, 0
        %v3929 = vsel %vm314, %v3839, 0
        %v3932 = vsel %vm314, %v3840, 0
        %v3935 = vsel %vm314, %v3841, 0
        %v3938 = vsel %vm314, %v3842, 0
        %v3941 = vsel %vm314, %v3843, 0
        %v3944 = vsel %vm314, %v3844, 0
        %3946 = vmatprep.subr.mxu0 0.0
        %3947 = vmatpush1.msra.mxu0 0.0
        %3948 = vmatprep.subr.mxu0 0.0
        %3949 = vmatpush1.msra.mxu0 0.0
        %3950 = vmatprep.subr.mxu0 0.0
        %3951 = vmatpush1.msra.mxu0 0.0
        %3952 = vmatprep.subr.mxu0 0.0
        %3953 = vmatpush1.msra.mxu0 0.0
        %3954 = vmatprep.subr.mxu0 0.0
        %3955 = vmatpush1.msra.mxu0 0.0
        %3956 = vmatprep.subr.mxu0 0.0
        %3957 = vmatpush1.msra.mxu0 0.0
        %3958 = vmatprep.subr.mxu0 0.0
        %3959 = vmatpush1.msra.mxu0 0.0
        %3960 = vmatprep.subr.mxu0 0.0
        %3961 = vmatpush1.msra.mxu0 0.0
        %3962 = vmatprep.subr.mxu0 0.0
        %3963 = vmatpush1.msra.mxu0 0.0
        %3964 = vmatprep.subr.mxu0 0.0
        %3965 = vmatpush1.msra.mxu0 0.0
        %3966 = vmatprep.subr.mxu0 0.0
        %3967 = vmatpush1.msra.mxu0 0.0
        %3968 = vmatprep.subr.mxu0 0.0
        %3969 = vmatpush1.msra.mxu0 0.0
        %3970 = vmatprep.subr.mxu0 0.0
        %3971 = vmatpush1.msra.mxu0 %v3849
        %3972 = vmatprep.subr.mxu0 0.0
        %3973 = vmatpush1.msra.mxu0 %v3848
        %3974 = vmatprep.subr.mxu0 0.0
        %3975 = vmatpush1.msra.mxu0 %v3847
        %3976 = vmatprep.subr.mxu0 0.0
        %3977 = vmatpush1.msra.mxu0 %v3846
        %3978 = vmatprep.subr.mxu0 0.0
        %3979 = vmatpush2.msra.mxu0 0.0
        %3980 = vmatprep.subr.mxu0 0.0
        %3981 = vmatpush2.msra.mxu0 0.0
        %3982 = vmatprep.subr.mxu0 0.0
        %3983 = vmatpush2.msra.mxu0 0.0
        %3984 = vmatprep.subr.mxu0 0.0
        %3985 = vmatpush2.msra.mxu0 0.0
        %3986 = vmatprep.subr.mxu0 0.0
        %3987 = vmatpush2.msra.mxu0 0.0
        %3988 = vmatprep.subr.mxu0 0.0
        %3989 = vmatpush2.msra.mxu0 0.0
        %3990 = vmatprep.subr.mxu0 0.0
        %3991 = vmatpush2.msra.mxu0 0.0
        %3992 = vmatprep.subr.mxu0 0.0
        %3993 = vmatpush2.msra.mxu0 0.0
        %3994 = vmatprep.subr.mxu0 0.0
        %3995 = vmatpush2.msra.mxu0 0.0
        %3996 = vmatprep.subr.mxu0 0.0
        %3997 = vmatpush2.msra.mxu0 0.0
        %3998 = vmatprep.subr.mxu0 0.0
        %3999 = vmatpush2.msra.mxu0 0.0
        %4000 = vmatprep.subr.mxu0 0.0
        %4001 = vmatpush2.msra.mxu0 0.0
        %4002 = vmatprep.subr.mxu0 0.0
        %4003 = vmatpush2.msra.mxu0 0.0
        %4004 = vmatprep.subr.mxu0 0.0
        %4005 = vmatpush2.msra.mxu0 0.0
        %4006 = vmatprep.subr.mxu0 0.0
        %4007 = vmatpush2.msra.mxu0 0.0
        %4008 = vmatprep.subr.mxu0 0.0
        %4009 = vmatpush2.msra.mxu0 0.0
        %4010 = vmatprep.mubr.f32.mxu0 0.0
        %4011 = vmatmul.mubr.f32.gmra.mxu0 %v3851
        %v4012 = vpop.f32.mrf.mxu0
        %v4013 = vadd.f32 0.0, %v4012
        %v4014 = vpop.f32.mrf.mxu0
        %4015 = vmatprep.mubr.f32.mxu0 0.0
        %4016 = vmatmul.mubr.f32.gmra.mxu0 %v3854
        %v4017 = vpop.f32.mrf.mxu0
        %v4018 = vadd.f32 0.0, %v4017
        %v4019 = vpop.f32.mrf.mxu0
        %4020 = vmatprep.mubr.f32.mxu0 0.0
        %4021 = vmatmul.mubr.f32.gmra.mxu0 %v3857
        %v4022 = vpop.f32.mrf.mxu0
        %v4023 = vadd.f32 0.0, %v4022
        %v4024 = vpop.f32.mrf.mxu0
        %4025 = vmatprep.mubr.f32.mxu0 0.0
        %4026 = vmatmul.mubr.f32.gmra.mxu0 %v3860
        %v4027 = vpop.f32.mrf.mxu0
        %v4028 = vadd.f32 0.0, %v4027
        %v4029 = vpop.f32.mrf.mxu0
        %4030 = vmatprep.mubr.f32.mxu0 0.0
        %4031 = vmatmul.mubr.f32.gmra.mxu0 %v3863
        %v4032 = vpop.f32.mrf.mxu0
        %v4033 = vadd.f32 0.0, %v4032
        %v4034 = vpop.f32.mrf.mxu0
        %4035 = vmatprep.mubr.f32.mxu0 0.0
        %4036 = vmatmul.mubr.f32.gmra.mxu0 %v3866
        %v4037 = vpop.f32.mrf.mxu0
        %v4038 = vadd.f32 0.0, %v4037
        %v4039 = vpop.f32.mrf.mxu0
        %4040 = vmatprep.mubr.f32.mxu0 0.0
        %4041 = vmatmul.mubr.f32.gmra.mxu0 %v3869
        %v4042 = vpop.f32.mrf.mxu0
        %v4043 = vadd.f32 0.0, %v4042
        %v4044 = vpop.f32.mrf.mxu0
        %4045 = vmatprep.mubr.f32.mxu0 0.0
        %4046 = vmatmul.mubr.f32.gmra.mxu0 %v3872
        %v4047 = vpop.f32.mrf.mxu0
        %v4048 = vadd.f32 0.0, %v4047
        %v4049 = vpop.f32.mrf.mxu0
        %4050 = vmatprep.mubr.f32.mxu0 0.0
        %4051 = vmatmul.mubr.f32.gmra.mxu0 %v3875
        %v4052 = vpop.f32.mrf.mxu0
        %v4053 = vadd.f32 0.0, %v4052
        %v4054 = vpop.f32.mrf.mxu0
        %4055 = vmatprep.mubr.f32.mxu0 0.0
        %4056 = vmatmul.mubr.f32.gmra.mxu0 %v3878
        %v4057 = vpop.f32.mrf.mxu0
        %v4058 = vadd.f32 0.0, %v4057
        %v4059 = vpop.f32.mrf.mxu0
        %4060 = vmatprep.mubr.f32.mxu0 0.0
        %4061 = vmatmul.mubr.f32.gmra.mxu0 %v3881
        %v4062 = vpop.f32.mrf.mxu0
        %v4063 = vadd.f32 0.0, %v4062
        %v4064 = vpop.f32.mrf.mxu0
        %4065 = vmatprep.mubr.f32.mxu0 0.0
        %4066 = vmatmul.mubr.f32.gmra.mxu0 %v3884
        %v4067 = vpop.f32.mrf.mxu0
        %v4068 = vadd.f32 0.0, %v4067
        %v4069 = vpop.f32.mrf.mxu0
        %4070 = vmatprep.mubr.f32.mxu0 0.0
        %4071 = vmatmul.mubr.f32.gmra.mxu0 %v3887
        %v4072 = vpop.f32.mrf.mxu0
        %v4073 = vadd.f32 0.0, %v4072
        %v4074 = vpop.f32.mrf.mxu0
        %4075 = vmatprep.mubr.f32.mxu0 0.0
        %4076 = vmatmul.mubr.f32.gmra.mxu0 %v3890
        %v4077 = vpop.f32.mrf.mxu0
        %v4078 = vadd.f32 0.0, %v4077
        %v4079 = vpop.f32.mrf.mxu0
        %4080 = vmatprep.mubr.f32.mxu0 0.0
        %4081 = vmatmul.mubr.f32.gmra.mxu0 %v3893
        %v4082 = vpop.f32.mrf.mxu0
        %v4083 = vadd.f32 0.0, %v4082
        %v4084 = vpop.f32.mrf.mxu0
        %4085 = vmatprep.mubr.f32.mxu0 0.0
        %4086 = vmatmul.mubr.f32.gmra.mxu0 %v3896
        %v4087 = vpop.f32.mrf.mxu0
        %v4088 = vadd.f32 0.0, %v4087
        %v4089 = vpop.f32.mrf.mxu0
        %4090 = vmatprep.mubr.f32.mxu0 0.0
        %4091 = vmatmul.mubr.f32.gmra.mxu0 %v3899
        %v4092 = vpop.f32.mrf.mxu0
        %v4093 = vadd.f32 0.0, %v4092
        %v4094 = vpop.f32.mrf.mxu0
        %4095 = vmatprep.mubr.f32.mxu0 0.0
        %4096 = vmatmul.mubr.f32.gmra.mxu0 %v3902
        %v4097 = vpop.f32.mrf.mxu0
        %v4098 = vadd.f32 0.0, %v4097
        %v4099 = vpop.f32.mrf.mxu0
        %4100 = vmatprep.mubr.f32.mxu0 0.0
        %4101 = vmatmul.mubr.f32.gmra.mxu0 %v3905
        %v4102 = vpop.f32.mrf.mxu0
        %v4103 = vadd.f32 0.0, %v4102
        %v4104 = vpop.f32.mrf.mxu0
        %4105 = vmatprep.mubr.f32.mxu0 0.0
        %4106 = vmatmul.mubr.f32.gmra.mxu0 %v3908
        %v4107 = vpop.f32.mrf.mxu0
        %v4108 = vadd.f32 0.0, %v4107
        %v4109 = vpop.f32.mrf.mxu0
        %4110 = vmatprep.mubr.f32.mxu0 0.0
        %4111 = vmatmul.mubr.f32.gmra.mxu0 %v3911
        %v4112 = vpop.f32.mrf.mxu0
        %v4113 = vadd.f32 0.0, %v4112
        %v4114 = vpop.f32.mrf.mxu0
        %4115 = vmatprep.mubr.f32.mxu0 0.0
        %4116 = vmatmul.mubr.f32.gmra.mxu0 %v3914
        %v4117 = vpop.f32.mrf.mxu0
        %v4118 = vadd.f32 0.0, %v4117
        %v4119 = vpop.f32.mrf.mxu0
        %4120 = vmatprep.mubr.f32.mxu0 0.0
        %4121 = vmatmul.mubr.f32.gmra.mxu0 %v3917
        %v4122 = vpop.f32.mrf.mxu0
        %v4123 = vadd.f32 0.0, %v4122
        %v4124 = vpop.f32.mrf.mxu0
        %4125 = vmatprep.mubr.f32.mxu0 0.0
        %4126 = vmatmul.mubr.f32.gmra.mxu0 %v3920
        %v4127 = vpop.f32.mrf.mxu0
        %v4128 = vadd.f32 0.0, %v4127
        %v4129 = vpop.f32.mrf.mxu0
        %4130 = vmatprep.mubr.f32.mxu0 0.0
        %4131 = vmatmul.mubr.f32.gmra.mxu0 %v3923
        %v4132 = vpop.f32.mrf.mxu0
        %v4133 = vadd.f32 0.0, %v4132
        %v4134 = vpop.f32.mrf.mxu0
        %4135 = vmatprep.mubr.f32.mxu0 0.0
        %4136 = vmatmul.mubr.f32.gmra.mxu0 %v3926
        %v4137 = vpop.f32.mrf.mxu0
        %v4138 = vadd.f32 0.0, %v4137
        %v4139 = vpop.f32.mrf.mxu0
        %4140 = vmatprep.mubr.f32.mxu0 0.0
        %4141 = vmatmul.mubr.f32.gmra.mxu0 %v3929
        %v4142 = vpop.f32.mrf.mxu0
        %v4143 = vadd.f32 0.0, %v4142
        %v4144 = vpop.f32.mrf.mxu0
        %4145 = vmatprep.mubr.f32.mxu0 0.0
        %4146 = vmatmul.mubr.f32.gmra.mxu0 %v3932
        %v4147 = vpop.f32.mrf.mxu0
        %v4148 = vadd.f32 0.0, %v4147
        %v4149 = vpop.f32.mrf.mxu0
        %4150 = vmatprep.mubr.f32.mxu0 0.0
        %4151 = vmatmul.mubr.f32.gmra.mxu0 %v3935
        %v4152 = vpop.f32.mrf.mxu0
        %v4153 = vadd.f32 0.0, %v4152
        %v4154 = vpop.f32.mrf.mxu0
        %4155 = vmatprep.mubr.f32.mxu0 0.0
        %4156 = vmatmul.mubr.f32.gmra.mxu0 %v3938
        %v4157 = vpop.f32.mrf.mxu0
        %v4158 = vadd.f32 0.0, %v4157
        %v4159 = vpop.f32.mrf.mxu0
        %4160 = vmatprep.mubr.f32.mxu0 0.0
        %4161 = vmatmul.mubr.f32.gmra.mxu0 %v3941
        %v4162 = vpop.f32.mrf.mxu0
        %v4163 = vadd.f32 0.0, %v4162
        %v4164 = vpop.f32.mrf.mxu0
        %4165 = vmatprep.mubr.f32.mxu0 0.0
        %4166 = vmatmul.mubr.f32.gmra.mxu0 %v3944
        %v4167 = vpop.f32.mrf.mxu0
        %v4168 = vadd.f32 0.0, %v4167
        %v4169 = vpop.f32.mrf.mxu0
        %4170 = vdwg.mxu0
        %v4171 = vadd.f32 %v3781, %v4013
        %v4172 = vadd.f32 %v3782, %v4018
        %v4173 = vadd.f32 %v3783, %v4023
        %v4174 = vadd.f32 %v3784, %v4028
        %v4175 = vadd.f32 %v3785, %v4033
        %v4176 = vadd.f32 %v3786, %v4038
        %v4177 = vadd.f32 %v3787, %v4043
        %v4178 = vadd.f32 %v3788, %v4048
        %v4179 = vadd.f32 %v3789, %v4053
        %v4180 = vadd.f32 %v3790, %v4058
        %v4181 = vadd.f32 %v3791, %v4063
        %v4182 = vadd.f32 %v3792, %v4068
        %v4183 = vadd.f32 %v3793, %v4073
        %v4184 = vadd.f32 %v3794, %v4078
        %v4185 = vadd.f32 %v3795, %v4083
        %v4186 = vadd.f32 %v3796, %v4088
        %v4187 = vadd.f32 %v3797, %v4093
        %v4188 = vadd.f32 %v3798, %v4098
        %v4189 = vadd.f32 %v3799, %v4103
        %v4190 = vadd.f32 %v3800, %v4108
        %v4191 = vadd.f32 %v3801, %v4113
        %v4192 = vadd.f32 %v3802, %v4118
        %v4193 = vadd.f32 %v3803, %v4123
        %v4194 = vadd.f32 %v3804, %v4128
        %v4195 = vadd.f32 %v3805, %v4133
        %v4196 = vadd.f32 %v3806, %v4138
        %v4197 = vadd.f32 %v3807, %v4143
        %v4198 = vadd.f32 %v3808, %v4148
        %v4199 = vadd.f32 %v3809, %v4153
        %v4200 = vadd.f32 %v3810, %v4158
        %v4201 = vadd.f32 %v3811, %v4163
        %v4202 = vadd.f32 %v3812, %v4168
        %v4203 = vld [vmem:[%s999] sm:$0xff]
        %v4204 = vld [vmem:[%s999 + $0x8] sm:$0xff]
        %v4205 = vld [vmem:[%s999 + $0x18] sm:$0xff]
        %v4206 = vld [vmem:[%s999 + $0x20] sm:$0xff]
        %v4207 = vld [vmem:[%s999 + $0x30] sm:$0xff]
        %v4208 = vld [vmem:[%s999 + $0x38] sm:$0xff]
        %v4209 = vld [vmem:[%s999 + $0x48] sm:$0xff]
        %v4210 = vld [vmem:[%s999 + $0x50] sm:$0xff]
        %v4211 = vld [vmem:[%s999 + $0x60] sm:$0xff]
        %v4212 = vld [vmem:[%s999 + $0x68] sm:$0xff]
        %v4213 = vld [vmem:[%s999 + $0x78] sm:$0xff]
        %v4214 = vld [vmem:[%s999 + $0x80] sm:$0xff]
        %v4215 = vld [vmem:[%s999 + $0x90] sm:$0xff]
        %v4216 = vld [vmem:[%s999 + $0x98] sm:$0xff]
        %v4217 = vld [vmem:[%s999 + $0xa8] sm:$0xff]
        %v4218 = vld [vmem:[%s999 + $0xb0] sm:$0xff]
        %v4219 = vld [vmem:[%s999 + $0xc0] sm:$0xff]
        %v4220 = vld [vmem:[%s999 + $0xc8] sm:$0xff]
        %v4221 = vld [vmem:[%s999 + $0xd8] sm:$0xff]
        %v4222 = vld [vmem:[%s999 + $0xe0] sm:$0xff]
        %v4223 = vld [vmem:[%s999 + $0xf0] sm:$0xff]
        %v4224 = vld [vmem:[%s999 + $0xf8] sm:$0xff]
        %v4225 = vld [vmem:[%s999 + $0x108] sm:$0xff]
        %v4226 = vld [vmem:[%s999 + $0x110] sm:$0xff]
        %v4227 = vld [vmem:[%s999 + $0x120] sm:$0xff]
        %v4228 = vld [vmem:[%s999 + $0x128] sm:$0xff]
        %v4229 = vld [vmem:[%s999 + $0x138] sm:$0xff]
        %v4230 = vld [vmem:[%s999 + $0x140] sm:$0xff]
        %v4231 = vld [vmem:[%s999 + $0x150] sm:$0xff]
        %v4232 = vld [vmem:[%s999 + $0x158] sm:$0xff]
        %v4233 = vld [vmem:[%s999 + $0x168] sm:$0xff]
        %v4234 = vld [vmem:[%s999 + $0x170] sm:$0xff]
        %s4235 = scalar_lea.vmem %s5, 192
        %v4236 = vld [vmem:[%s4235] sm:$0xff]
        %v4237 = vld [vmem:[%s4235 + $0x8] sm:$0xff]
        %v4238 = vld [vmem:[%s4235 + $0x10] sm:$0xff]
        %v4239 = vld [vmem:[%s4235 + $0x18] sm:$0xff]
        %v4241 = vsel %vm314, %v4203, 0
        %v4244 = vsel %vm314, %v4204, 0
        %v4247 = vsel %vm314, %v4205, 0
        %v4250 = vsel %vm314, %v4206, 0
        %v4253 = vsel %vm314, %v4207, 0
        %v4256 = vsel %vm314, %v4208, 0
        %v4259 = vsel %vm314, %v4209, 0
        %v4262 = vsel %vm314, %v4210, 0
        %v4265 = vsel %vm314, %v4211, 0
        %v4268 = vsel %vm314, %v4212, 0
        %v4271 = vsel %vm314, %v4213, 0
        %v4274 = vsel %vm314, %v4214, 0
        %v4277 = vsel %vm314, %v4215, 0
        %v4280 = vsel %vm314, %v4216, 0
        %v4283 = vsel %vm314, %v4217, 0
        %v4286 = vsel %vm314, %v4218, 0
        %v4289 = vsel %vm314, %v4219, 0
        %v4292 = vsel %vm314, %v4220, 0
        %v4295 = vsel %vm314, %v4221, 0
        %v4298 = vsel %vm314, %v4222, 0
        %v4301 = vsel %vm314, %v4223, 0
        %v4304 = vsel %vm314, %v4224, 0
        %v4307 = vsel %vm314, %v4225, 0
        %v4310 = vsel %vm314, %v4226, 0
        %v4313 = vsel %vm314, %v4227, 0
        %v4316 = vsel %vm314, %v4228, 0
        %v4319 = vsel %vm314, %v4229, 0
        %v4322 = vsel %vm314, %v4230, 0
        %v4325 = vsel %vm314, %v4231, 0
        %v4328 = vsel %vm314, %v4232, 0
        %v4331 = vsel %vm314, %v4233, 0
        %v4334 = vsel %vm314, %v4234, 0
        %4336 = vmatprep.subr.mxu0 0.0
        %4337 = vmatpush1.msra.mxu0 0.0
        %4338 = vmatprep.subr.mxu0 0.0
        %4339 = vmatpush1.msra.mxu0 0.0
        %4340 = vmatprep.subr.mxu0 0.0
        %4341 = vmatpush1.msra.mxu0 0.0
        %4342 = vmatprep.subr.mxu0 0.0
        %4343 = vmatpush1.msra.mxu0 0.0
        %4344 = vmatprep.subr.mxu0 0.0
        %4345 = vmatpush1.msra.mxu0 0.0
        %4346 = vmatprep.subr.mxu0 0.0
        %4347 = vmatpush1.msra.mxu0 0.0
        %4348 = vmatprep.subr.mxu0 0.0
        %4349 = vmatpush1.msra.mxu0 0.0
        %4350 = vmatprep.subr.mxu0 0.0
        %4351 = vmatpush1.msra.mxu0 0.0
        %4352 = vmatprep.subr.mxu0 0.0
        %4353 = vmatpush1.msra.mxu0 0.0
        %4354 = vmatprep.subr.mxu0 0.0
        %4355 = vmatpush1.msra.mxu0 0.0
        %4356 = vmatprep.subr.mxu0 0.0
        %4357 = vmatpush1.msra.mxu0 0.0
        %4358 = vmatprep.subr.mxu0 0.0
        %4359 = vmatpush1.msra.mxu0 0.0
        %4360 = vmatprep.subr.mxu0 0.0
        %4361 = vmatpush1.msra.mxu0 %v4239
        %4362 = vmatprep.subr.mxu0 0.0
        %4363 = vmatpush1.msra.mxu0 %v4238
        %4364 = vmatprep.subr.mxu0 0.0
        %4365 = vmatpush1.msra.mxu0 %v4237
        %4366 = vmatprep.subr.mxu0 0.0
        %4367 = vmatpush1.msra.mxu0 %v4236
        %4368 = vmatprep.subr.mxu0 0.0
        %4369 = vmatpush2.msra.mxu0 0.0
        %4370 = vmatprep.subr.mxu0 0.0
        %4371 = vmatpush2.msra.mxu0 0.0
        %4372 = vmatprep.subr.mxu0 0.0
        %4373 = vmatpush2.msra.mxu0 0.0
        %4374 = vmatprep.subr.mxu0 0.0
        %4375 = vmatpush2.msra.mxu0 0.0
        %4376 = vmatprep.subr.mxu0 0.0
        %4377 = vmatpush2.msra.mxu0 0.0
        %4378 = vmatprep.subr.mxu0 0.0
        %4379 = vmatpush2.msra.mxu0 0.0
        %4380 = vmatprep.subr.mxu0 0.0
        %4381 = vmatpush2.msra.mxu0 0.0
        %4382 = vmatprep.subr.mxu0 0.0
        %4383 = vmatpush2.msra.mxu0 0.0
        %4384 = vmatprep.subr.mxu0 0.0
        %4385 = vmatpush2.msra.mxu0 0.0
        %4386 = vmatprep.subr.mxu0 0.0
        %4387 = vmatpush2.msra.mxu0 0.0
        %4388 = vmatprep.subr.mxu0 0.0
        %4389 = vmatpush2.msra.mxu0 0.0
        %4390 = vmatprep.subr.mxu0 0.0
        %4391 = vmatpush2.msra.mxu0 0.0
        %4392 = vmatprep.subr.mxu0 0.0
        %4393 = vmatpush2.msra.mxu0 0.0
        %4394 = vmatprep.subr.mxu0 0.0
        %4395 = vmatpush2.msra.mxu0 0.0
        %4396 = vmatprep.subr.mxu0 0.0
        %4397 = vmatpush2.msra.mxu0 0.0
        %4398 = vmatprep.subr.mxu0 0.0
        %4399 = vmatpush2.msra.mxu0 0.0
        %4400 = vmatprep.mubr.f32.mxu0 0.0
        %4401 = vmatmul.mubr.f32.gmra.mxu0 %v4241
        %v4402 = vpop.f32.mrf.mxu0
        %v4403 = vadd.f32 0.0, %v4402
        %v4404 = vpop.f32.mrf.mxu0
        %4405 = vmatprep.mubr.f32.mxu0 0.0
        %4406 = vmatmul.mubr.f32.gmra.mxu0 %v4244
        %v4407 = vpop.f32.mrf.mxu0
        %v4408 = vadd.f32 0.0, %v4407
        %v4409 = vpop.f32.mrf.mxu0
        %4410 = vmatprep.mubr.f32.mxu0 0.0
        %4411 = vmatmul.mubr.f32.gmra.mxu0 %v4247
        %v4412 = vpop.f32.mrf.mxu0
        %v4413 = vadd.f32 0.0, %v4412
        %v4414 = vpop.f32.mrf.mxu0
        %4415 = vmatprep.mubr.f32.mxu0 0.0
        %4416 = vmatmul.mubr.f32.gmra.mxu0 %v4250
        %v4417 = vpop.f32.mrf.mxu0
        %v4418 = vadd.f32 0.0, %v4417
        %v4419 = vpop.f32.mrf.mxu0
        %4420 = vmatprep.mubr.f32.mxu0 0.0
        %4421 = vmatmul.mubr.f32.gmra.mxu0 %v4253
        %v4422 = vpop.f32.mrf.mxu0
        %v4423 = vadd.f32 0.0, %v4422
        %v4424 = vpop.f32.mrf.mxu0
        %4425 = vmatprep.mubr.f32.mxu0 0.0
        %4426 = vmatmul.mubr.f32.gmra.mxu0 %v4256
        %v4427 = vpop.f32.mrf.mxu0
        %v4428 = vadd.f32 0.0, %v4427
        %v4429 = vpop.f32.mrf.mxu0
        %4430 = vmatprep.mubr.f32.mxu0 0.0
        %4431 = vmatmul.mubr.f32.gmra.mxu0 %v4259
        %v4432 = vpop.f32.mrf.mxu0
        %v4433 = vadd.f32 0.0, %v4432
        %v4434 = vpop.f32.mrf.mxu0
        %4435 = vmatprep.mubr.f32.mxu0 0.0
        %4436 = vmatmul.mubr.f32.gmra.mxu0 %v4262
        %v4437 = vpop.f32.mrf.mxu0
        %v4438 = vadd.f32 0.0, %v4437
        %v4439 = vpop.f32.mrf.mxu0
        %4440 = vmatprep.mubr.f32.mxu0 0.0
        %4441 = vmatmul.mubr.f32.gmra.mxu0 %v4265
        %v4442 = vpop.f32.mrf.mxu0
        %v4443 = vadd.f32 0.0, %v4442
        %v4444 = vpop.f32.mrf.mxu0
        %4445 = vmatprep.mubr.f32.mxu0 0.0
        %4446 = vmatmul.mubr.f32.gmra.mxu0 %v4268
        %v4447 = vpop.f32.mrf.mxu0
        %v4448 = vadd.f32 0.0, %v4447
        %v4449 = vpop.f32.mrf.mxu0
        %4450 = vmatprep.mubr.f32.mxu0 0.0
        %4451 = vmatmul.mubr.f32.gmra.mxu0 %v4271
        %v4452 = vpop.f32.mrf.mxu0
        %v4453 = vadd.f32 0.0, %v4452
        %v4454 = vpop.f32.mrf.mxu0
        %4455 = vmatprep.mubr.f32.mxu0 0.0
        %4456 = vmatmul.mubr.f32.gmra.mxu0 %v4274
        %v4457 = vpop.f32.mrf.mxu0
        %v4458 = vadd.f32 0.0, %v4457
        %v4459 = vpop.f32.mrf.mxu0
        %4460 = vmatprep.mubr.f32.mxu0 0.0
        %4461 = vmatmul.mubr.f32.gmra.mxu0 %v4277
        %v4462 = vpop.f32.mrf.mxu0
        %v4463 = vadd.f32 0.0, %v4462
        %v4464 = vpop.f32.mrf.mxu0
        %4465 = vmatprep.mubr.f32.mxu0 0.0
        %4466 = vmatmul.mubr.f32.gmra.mxu0 %v4280
        %v4467 = vpop.f32.mrf.mxu0
        %v4468 = vadd.f32 0.0, %v4467
        %v4469 = vpop.f32.mrf.mxu0
        %4470 = vmatprep.mubr.f32.mxu0 0.0
        %4471 = vmatmul.mubr.f32.gmra.mxu0 %v4283
        %v4472 = vpop.f32.mrf.mxu0
        %v4473 = vadd.f32 0.0, %v4472
        %v4474 = vpop.f32.mrf.mxu0
        %4475 = vmatprep.mubr.f32.mxu0 0.0
        %4476 = vmatmul.mubr.f32.gmra.mxu0 %v4286
        %v4477 = vpop.f32.mrf.mxu0
        %v4478 = vadd.f32 0.0, %v4477
        %v4479 = vpop.f32.mrf.mxu0
        %4480 = vmatprep.mubr.f32.mxu0 0.0
        %4481 = vmatmul.mubr.f32.gmra.mxu0 %v4289
        %v4482 = vpop.f32.mrf.mxu0
        %v4483 = vadd.f32 0.0, %v4482
        %v4484 = vpop.f32.mrf.mxu0
        %4485 = vmatprep.mubr.f32.mxu0 0.0
        %4486 = vmatmul.mubr.f32.gmra.mxu0 %v4292
        %v4487 = vpop.f32.mrf.mxu0
        %v4488 = vadd.f32 0.0, %v4487
        %v4489 = vpop.f32.mrf.mxu0
        %4490 = vmatprep.mubr.f32.mxu0 0.0
        %4491 = vmatmul.mubr.f32.gmra.mxu0 %v4295
        %v4492 = vpop.f32.mrf.mxu0
        %v4493 = vadd.f32 0.0, %v4492
        %v4494 = vpop.f32.mrf.mxu0
        %4495 = vmatprep.mubr.f32.mxu0 0.0
        %4496 = vmatmul.mubr.f32.gmra.mxu0 %v4298
        %v4497 = vpop.f32.mrf.mxu0
        %v4498 = vadd.f32 0.0, %v4497
        %v4499 = vpop.f32.mrf.mxu0
        %4500 = vmatprep.mubr.f32.mxu0 0.0
        %4501 = vmatmul.mubr.f32.gmra.mxu0 %v4301
        %v4502 = vpop.f32.mrf.mxu0
        %v4503 = vadd.f32 0.0, %v4502
        %v4504 = vpop.f32.mrf.mxu0
        %4505 = vmatprep.mubr.f32.mxu0 0.0
        %4506 = vmatmul.mubr.f32.gmra.mxu0 %v4304
        %v4507 = vpop.f32.mrf.mxu0
        %v4508 = vadd.f32 0.0, %v4507
        %v4509 = vpop.f32.mrf.mxu0
        %4510 = vmatprep.mubr.f32.mxu0 0.0
        %4511 = vmatmul.mubr.f32.gmra.mxu0 %v4307
        %v4512 = vpop.f32.mrf.mxu0
        %v4513 = vadd.f32 0.0, %v4512
        %v4514 = vpop.f32.mrf.mxu0
        %4515 = vmatprep.mubr.f32.mxu0 0.0
        %4516 = vmatmul.mubr.f32.gmra.mxu0 %v4310
        %v4517 = vpop.f32.mrf.mxu0
        %v4518 = vadd.f32 0.0, %v4517
        %v4519 = vpop.f32.mrf.mxu0
        %4520 = vmatprep.mubr.f32.mxu0 0.0
        %4521 = vmatmul.mubr.f32.gmra.mxu0 %v4313
        %v4522 = vpop.f32.mrf.mxu0
        %v4523 = vadd.f32 0.0, %v4522
        %v4524 = vpop.f32.mrf.mxu0
        %4525 = vmatprep.mubr.f32.mxu0 0.0
        %4526 = vmatmul.mubr.f32.gmra.mxu0 %v4316
        %v4527 = vpop.f32.mrf.mxu0
        %v4528 = vadd.f32 0.0, %v4527
        %v4529 = vpop.f32.mrf.mxu0
        %4530 = vmatprep.mubr.f32.mxu0 0.0
        %4531 = vmatmul.mubr.f32.gmra.mxu0 %v4319
        %v4532 = vpop.f32.mrf.mxu0
        %v4533 = vadd.f32 0.0, %v4532
        %v4534 = vpop.f32.mrf.mxu0
        %4535 = vmatprep.mubr.f32.mxu0 0.0
        %4536 = vmatmul.mubr.f32.gmra.mxu0 %v4322
        %v4537 = vpop.f32.mrf.mxu0
        %v4538 = vadd.f32 0.0, %v4537
        %v4539 = vpop.f32.mrf.mxu0
        %4540 = vmatprep.mubr.f32.mxu0 0.0
        %4541 = vmatmul.mubr.f32.gmra.mxu0 %v4325
        %v4542 = vpop.f32.mrf.mxu0
        %v4543 = vadd.f32 0.0, %v4542
        %v4544 = vpop.f32.mrf.mxu0
        %4545 = vmatprep.mubr.f32.mxu0 0.0
        %4546 = vmatmul.mubr.f32.gmra.mxu0 %v4328
        %v4547 = vpop.f32.mrf.mxu0
        %v4548 = vadd.f32 0.0, %v4547
        %v4549 = vpop.f32.mrf.mxu0
        %4550 = vmatprep.mubr.f32.mxu0 0.0
        %4551 = vmatmul.mubr.f32.gmra.mxu0 %v4331
        %v4552 = vpop.f32.mrf.mxu0
        %v4553 = vadd.f32 0.0, %v4552
        %v4554 = vpop.f32.mrf.mxu0
        %4555 = vmatprep.mubr.f32.mxu0 0.0
        %4556 = vmatmul.mubr.f32.gmra.mxu0 %v4334
        %v4557 = vpop.f32.mrf.mxu0
        %v4558 = vadd.f32 0.0, %v4557
        %v4559 = vpop.f32.mrf.mxu0
        %4560 = vdwg.mxu0
        %v4561 = vadd.f32 %v4171, %v4403
        %v4562 = vadd.f32 %v4172, %v4408
        %v4563 = vadd.f32 %v4173, %v4413
        %v4564 = vadd.f32 %v4174, %v4418
        %v4565 = vadd.f32 %v4175, %v4423
        %v4566 = vadd.f32 %v4176, %v4428
        %v4567 = vadd.f32 %v4177, %v4433
        %v4568 = vadd.f32 %v4178, %v4438
        %v4569 = vadd.f32 %v4179, %v4443
        %v4570 = vadd.f32 %v4180, %v4448
        %v4571 = vadd.f32 %v4181, %v4453
        %v4572 = vadd.f32 %v4182, %v4458
        %v4573 = vadd.f32 %v4183, %v4463
        %v4574 = vadd.f32 %v4184, %v4468
        %v4575 = vadd.f32 %v4185, %v4473
        %v4576 = vadd.f32 %v4186, %v4478
        %v4577 = vadd.f32 %v4187, %v4483
        %v4578 = vadd.f32 %v4188, %v4488
        %v4579 = vadd.f32 %v4189, %v4493
        %v4580 = vadd.f32 %v4190, %v4498
        %v4581 = vadd.f32 %v4191, %v4503
        %v4582 = vadd.f32 %v4192, %v4508
        %v4583 = vadd.f32 %v4193, %v4513
        %v4584 = vadd.f32 %v4194, %v4518
        %v4585 = vadd.f32 %v4195, %v4523
        %v4586 = vadd.f32 %v4196, %v4528
        %v4587 = vadd.f32 %v4197, %v4533
        %v4588 = vadd.f32 %v4198, %v4538
        %v4589 = vadd.f32 %v4199, %v4543
        %v4590 = vadd.f32 %v4200, %v4548
        %v4591 = vadd.f32 %v4201, %v4553
        %v4592 = vadd.f32 %v4202, %v4558
        %v4593 = vld [vmem:[%s999 + $0x1] sm:$0xff]
        %v4594 = vld [vmem:[%s999 + $0x9] sm:$0xff]
        %v4595 = vld [vmem:[%s999 + $0x19] sm:$0xff]
        %v4596 = vld [vmem:[%s999 + $0x21] sm:$0xff]
        %v4597 = vld [vmem:[%s999 + $0x31] sm:$0xff]
        %v4598 = vld [vmem:[%s999 + $0x39] sm:$0xff]
        %v4599 = vld [vmem:[%s999 + $0x49] sm:$0xff]
        %v4600 = vld [vmem:[%s999 + $0x51] sm:$0xff]
        %v4601 = vld [vmem:[%s999 + $0x61] sm:$0xff]
        %v4602 = vld [vmem:[%s999 + $0x69] sm:$0xff]
        %v4603 = vld [vmem:[%s999 + $0x79] sm:$0xff]
        %v4604 = vld [vmem:[%s999 + $0x81] sm:$0xff]
        %v4605 = vld [vmem:[%s999 + $0x91] sm:$0xff]
        %v4606 = vld [vmem:[%s999 + $0x99] sm:$0xff]
        %v4607 = vld [vmem:[%s999 + $0xa9] sm:$0xff]
        %v4608 = vld [vmem:[%s999 + $0xb1] sm:$0xff]
        %v4609 = vld [vmem:[%s999 + $0xc1] sm:$0xff]
        %v4610 = vld [vmem:[%s999 + $0xc9] sm:$0xff]
        %v4611 = vld [vmem:[%s999 + $0xd9] sm:$0xff]
        %v4612 = vld [vmem:[%s999 + $0xe1] sm:$0xff]
        %v4613 = vld [vmem:[%s999 + $0xf1] sm:$0xff]
        %v4614 = vld [vmem:[%s999 + $0xf9] sm:$0xff]
        %v4615 = vld [vmem:[%s999 + $0x109] sm:$0xff]
        %v4616 = vld [vmem:[%s999 + $0x111] sm:$0xff]
        %v4617 = vld [vmem:[%s999 + $0x121] sm:$0xff]
        %v4618 = vld [vmem:[%s999 + $0x129] sm:$0xff]
        %v4619 = vld [vmem:[%s999 + $0x139] sm:$0xff]
        %v4620 = vld [vmem:[%s999 + $0x141] sm:$0xff]
        %v4621 = vld [vmem:[%s999 + $0x151] sm:$0xff]
        %v4622 = vld [vmem:[%s999 + $0x159] sm:$0xff]
        %v4623 = vld [vmem:[%s999 + $0x169] sm:$0xff]
        %v4624 = vld [vmem:[%s999 + $0x171] sm:$0xff]
        %s4625 = scalar_lea.vmem %s5, 224
        %v4626 = vld [vmem:[%s4625] sm:$0xff]
        %v4627 = vld [vmem:[%s4625 + $0x8] sm:$0xff]
        %v4628 = vld [vmem:[%s4625 + $0x10] sm:$0xff]
        %v4629 = vld [vmem:[%s4625 + $0x18] sm:$0xff]
        %v4631 = vsel %vm314, %v4593, 0
        %v4634 = vsel %vm314, %v4594, 0
        %v4637 = vsel %vm314, %v4595, 0
        %v4640 = vsel %vm314, %v4596, 0
        %v4643 = vsel %vm314, %v4597, 0
        %v4646 = vsel %vm314, %v4598, 0
        %v4649 = vsel %vm314, %v4599, 0
        %v4652 = vsel %vm314, %v4600, 0
        %v4655 = vsel %vm314, %v4601, 0
        %v4658 = vsel %vm314, %v4602, 0
        %v4661 = vsel %vm314, %v4603, 0
        %v4664 = vsel %vm314, %v4604, 0
        %v4667 = vsel %vm314, %v4605, 0
        %v4670 = vsel %vm314, %v4606, 0
        %v4673 = vsel %vm314, %v4607, 0
        %v4676 = vsel %vm314, %v4608, 0
        %v4679 = vsel %vm314, %v4609, 0
        %v4682 = vsel %vm314, %v4610, 0
        %v4685 = vsel %vm314, %v4611, 0
        %v4688 = vsel %vm314, %v4612, 0
        %v4691 = vsel %vm314, %v4613, 0
        %v4694 = vsel %vm314, %v4614, 0
        %v4697 = vsel %vm314, %v4615, 0
        %v4700 = vsel %vm314, %v4616, 0
        %v4703 = vsel %vm314, %v4617, 0
        %v4706 = vsel %vm314, %v4618, 0
        %v4709 = vsel %vm314, %v4619, 0
        %v4712 = vsel %vm314, %v4620, 0
        %v4715 = vsel %vm314, %v4621, 0
        %v4718 = vsel %vm314, %v4622, 0
        %v4721 = vsel %vm314, %v4623, 0
        %v4724 = vsel %vm314, %v4624, 0
        %4726 = vmatprep.subr.mxu0 0.0
        %4727 = vmatpush1.msra.mxu0 0.0
        %4728 = vmatprep.subr.mxu0 0.0
        %4729 = vmatpush1.msra.mxu0 0.0
        %4730 = vmatprep.subr.mxu0 0.0
        %4731 = vmatpush1.msra.mxu0 0.0
        %4732 = vmatprep.subr.mxu0 0.0
        %4733 = vmatpush1.msra.mxu0 0.0
        %4734 = vmatprep.subr.mxu0 0.0
        %4735 = vmatpush1.msra.mxu0 0.0
        %4736 = vmatprep.subr.mxu0 0.0
        %4737 = vmatpush1.msra.mxu0 0.0
        %4738 = vmatprep.subr.mxu0 0.0
        %4739 = vmatpush1.msra.mxu0 0.0
        %4740 = vmatprep.subr.mxu0 0.0
        %4741 = vmatpush1.msra.mxu0 0.0
        %4742 = vmatprep.subr.mxu0 0.0
        %4743 = vmatpush1.msra.mxu0 0.0
        %4744 = vmatprep.subr.mxu0 0.0
        %4745 = vmatpush1.msra.mxu0 0.0
        %4746 = vmatprep.subr.mxu0 0.0
        %4747 = vmatpush1.msra.mxu0 0.0
        %4748 = vmatprep.subr.mxu0 0.0
        %4749 = vmatpush1.msra.mxu0 0.0
        %4750 = vmatprep.subr.mxu0 0.0
        %4751 = vmatpush1.msra.mxu0 %v4629
        %4752 = vmatprep.subr.mxu0 0.0
        %4753 = vmatpush1.msra.mxu0 %v4628
        %4754 = vmatprep.subr.mxu0 0.0
        %4755 = vmatpush1.msra.mxu0 %v4627
        %4756 = vmatprep.subr.mxu0 0.0
        %4757 = vmatpush1.msra.mxu0 %v4626
        %4758 = vmatprep.subr.mxu0 0.0
        %4759 = vmatpush2.msra.mxu0 0.0
        %4760 = vmatprep.subr.mxu0 0.0
        %4761 = vmatpush2.msra.mxu0 0.0
        %4762 = vmatprep.subr.mxu0 0.0
        %4763 = vmatpush2.msra.mxu0 0.0
        %4764 = vmatprep.subr.mxu0 0.0
        %4765 = vmatpush2.msra.mxu0 0.0
        %4766 = vmatprep.subr.mxu0 0.0
        %4767 = vmatpush2.msra.mxu0 0.0
        %4768 = vmatprep.subr.mxu0 0.0
        %4769 = vmatpush2.msra.mxu0 0.0
        %4770 = vmatprep.subr.mxu0 0.0
        %4771 = vmatpush2.msra.mxu0 0.0
        %4772 = vmatprep.subr.mxu0 0.0
        %4773 = vmatpush2.msra.mxu0 0.0
        %4774 = vmatprep.subr.mxu0 0.0
        %4775 = vmatpush2.msra.mxu0 0.0
        %4776 = vmatprep.subr.mxu0 0.0
        %4777 = vmatpush2.msra.mxu0 0.0
        %4778 = vmatprep.subr.mxu0 0.0
        %4779 = vmatpush2.msra.mxu0 0.0
        %4780 = vmatprep.subr.mxu0 0.0
        %4781 = vmatpush2.msra.mxu0 0.0
        %4782 = vmatprep.subr.mxu0 0.0
        %4783 = vmatpush2.msra.mxu0 0.0
        %4784 = vmatprep.subr.mxu0 0.0
        %4785 = vmatpush2.msra.mxu0 0.0
        %4786 = vmatprep.subr.mxu0 0.0
        %4787 = vmatpush2.msra.mxu0 0.0
        %4788 = vmatprep.subr.mxu0 0.0
        %4789 = vmatpush2.msra.mxu0 0.0
        %4790 = vmatprep.mubr.f32.mxu0 0.0
        %4791 = vmatmul.mubr.f32.gmra.mxu0 %v4631
        %v4792 = vpop.f32.mrf.mxu0
        %v4793 = vadd.f32 0.0, %v4792
        %v4794 = vpop.f32.mrf.mxu0
        %4795 = vmatprep.mubr.f32.mxu0 0.0
        %4796 = vmatmul.mubr.f32.gmra.mxu0 %v4634
        %v4797 = vpop.f32.mrf.mxu0
        %v4798 = vadd.f32 0.0, %v4797
        %v4799 = vpop.f32.mrf.mxu0
        %4800 = vmatprep.mubr.f32.mxu0 0.0
        %4801 = vmatmul.mubr.f32.gmra.mxu0 %v4637
        %v4802 = vpop.f32.mrf.mxu0
        %v4803 = vadd.f32 0.0, %v4802
        %v4804 = vpop.f32.mrf.mxu0
        %4805 = vmatprep.mubr.f32.mxu0 0.0
        %4806 = vmatmul.mubr.f32.gmra.mxu0 %v4640
        %v4807 = vpop.f32.mrf.mxu0
        %v4808 = vadd.f32 0.0, %v4807
        %v4809 = vpop.f32.mrf.mxu0
        %4810 = vmatprep.mubr.f32.mxu0 0.0
        %4811 = vmatmul.mubr.f32.gmra.mxu0 %v4643
        %v4812 = vpop.f32.mrf.mxu0
        %v4813 = vadd.f32 0.0, %v4812
        %v4814 = vpop.f32.mrf.mxu0
        %4815 = vmatprep.mubr.f32.mxu0 0.0
        %4816 = vmatmul.mubr.f32.gmra.mxu0 %v4646
        %v4817 = vpop.f32.mrf.mxu0
        %v4818 = vadd.f32 0.0, %v4817
        %v4819 = vpop.f32.mrf.mxu0
        %4820 = vmatprep.mubr.f32.mxu0 0.0
        %4821 = vmatmul.mubr.f32.gmra.mxu0 %v4649
        %v4822 = vpop.f32.mrf.mxu0
        %v4823 = vadd.f32 0.0, %v4822
        %v4824 = vpop.f32.mrf.mxu0
        %4825 = vmatprep.mubr.f32.mxu0 0.0
        %4826 = vmatmul.mubr.f32.gmra.mxu0 %v4652
        %v4827 = vpop.f32.mrf.mxu0
        %v4828 = vadd.f32 0.0, %v4827
        %v4829 = vpop.f32.mrf.mxu0
        %4830 = vmatprep.mubr.f32.mxu0 0.0
        %4831 = vmatmul.mubr.f32.gmra.mxu0 %v4655
        %v4832 = vpop.f32.mrf.mxu0
        %v4833 = vadd.f32 0.0, %v4832
        %v4834 = vpop.f32.mrf.mxu0
        %4835 = vmatprep.mubr.f32.mxu0 0.0
        %4836 = vmatmul.mubr.f32.gmra.mxu0 %v4658
        %v4837 = vpop.f32.mrf.mxu0
        %v4838 = vadd.f32 0.0, %v4837
        %v4839 = vpop.f32.mrf.mxu0
        %4840 = vmatprep.mubr.f32.mxu0 0.0
        %4841 = vmatmul.mubr.f32.gmra.mxu0 %v4661
        %v4842 = vpop.f32.mrf.mxu0
        %v4843 = vadd.f32 0.0, %v4842
        %v4844 = vpop.f32.mrf.mxu0
        %4845 = vmatprep.mubr.f32.mxu0 0.0
        %4846 = vmatmul.mubr.f32.gmra.mxu0 %v4664
        %v4847 = vpop.f32.mrf.mxu0
        %v4848 = vadd.f32 0.0, %v4847
        %v4849 = vpop.f32.mrf.mxu0
        %4850 = vmatprep.mubr.f32.mxu0 0.0
        %4851 = vmatmul.mubr.f32.gmra.mxu0 %v4667
        %v4852 = vpop.f32.mrf.mxu0
        %v4853 = vadd.f32 0.0, %v4852
        %v4854 = vpop.f32.mrf.mxu0
        %4855 = vmatprep.mubr.f32.mxu0 0.0
        %4856 = vmatmul.mubr.f32.gmra.mxu0 %v4670
        %v4857 = vpop.f32.mrf.mxu0
        %v4858 = vadd.f32 0.0, %v4857
        %v4859 = vpop.f32.mrf.mxu0
        %4860 = vmatprep.mubr.f32.mxu0 0.0
        %4861 = vmatmul.mubr.f32.gmra.mxu0 %v4673
        %v4862 = vpop.f32.mrf.mxu0
        %v4863 = vadd.f32 0.0, %v4862
        %v4864 = vpop.f32.mrf.mxu0
        %4865 = vmatprep.mubr.f32.mxu0 0.0
        %4866 = vmatmul.mubr.f32.gmra.mxu0 %v4676
        %v4867 = vpop.f32.mrf.mxu0
        %v4868 = vadd.f32 0.0, %v4867
        %v4869 = vpop.f32.mrf.mxu0
        %4870 = vmatprep.mubr.f32.mxu0 0.0
        %4871 = vmatmul.mubr.f32.gmra.mxu0 %v4679
        %v4872 = vpop.f32.mrf.mxu0
        %v4873 = vadd.f32 0.0, %v4872
        %v4874 = vpop.f32.mrf.mxu0
        %4875 = vmatprep.mubr.f32.mxu0 0.0
        %4876 = vmatmul.mubr.f32.gmra.mxu0 %v4682
        %v4877 = vpop.f32.mrf.mxu0
        %v4878 = vadd.f32 0.0, %v4877
        %v4879 = vpop.f32.mrf.mxu0
        %4880 = vmatprep.mubr.f32.mxu0 0.0
        %4881 = vmatmul.mubr.f32.gmra.mxu0 %v4685
        %v4882 = vpop.f32.mrf.mxu0
        %v4883 = vadd.f32 0.0, %v4882
        %v4884 = vpop.f32.mrf.mxu0
        %4885 = vmatprep.mubr.f32.mxu0 0.0
        %4886 = vmatmul.mubr.f32.gmra.mxu0 %v4688
        %v4887 = vpop.f32.mrf.mxu0
        %v4888 = vadd.f32 0.0, %v4887
        %v4889 = vpop.f32.mrf.mxu0
        %4890 = vmatprep.mubr.f32.mxu0 0.0
        %4891 = vmatmul.mubr.f32.gmra.mxu0 %v4691
        %v4892 = vpop.f32.mrf.mxu0
        %v4893 = vadd.f32 0.0, %v4892
        %v4894 = vpop.f32.mrf.mxu0
        %4895 = vmatprep.mubr.f32.mxu0 0.0
        %4896 = vmatmul.mubr.f32.gmra.mxu0 %v4694
        %v4897 = vpop.f32.mrf.mxu0
        %v4898 = vadd.f32 0.0, %v4897
        %v4899 = vpop.f32.mrf.mxu0
        %4900 = vmatprep.mubr.f32.mxu0 0.0
        %4901 = vmatmul.mubr.f32.gmra.mxu0 %v4697
        %v4902 = vpop.f32.mrf.mxu0
        %v4903 = vadd.f32 0.0, %v4902
        %v4904 = vpop.f32.mrf.mxu0
        %4905 = vmatprep.mubr.f32.mxu0 0.0
        %4906 = vmatmul.mubr.f32.gmra.mxu0 %v4700
        %v4907 = vpop.f32.mrf.mxu0
        %v4908 = vadd.f32 0.0, %v4907
        %v4909 = vpop.f32.mrf.mxu0
        %4910 = vmatprep.mubr.f32.mxu0 0.0
        %4911 = vmatmul.mubr.f32.gmra.mxu0 %v4703
        %v4912 = vpop.f32.mrf.mxu0
        %v4913 = vadd.f32 0.0, %v4912
        %v4914 = vpop.f32.mrf.mxu0
        %4915 = vmatprep.mubr.f32.mxu0 0.0
        %4916 = vmatmul.mubr.f32.gmra.mxu0 %v4706
        %v4917 = vpop.f32.mrf.mxu0
        %v4918 = vadd.f32 0.0, %v4917
        %v4919 = vpop.f32.mrf.mxu0
        %4920 = vmatprep.mubr.f32.mxu0 0.0
        %4921 = vmatmul.mubr.f32.gmra.mxu0 %v4709
        %v4922 = vpop.f32.mrf.mxu0
        %v4923 = vadd.f32 0.0, %v4922
        %v4924 = vpop.f32.mrf.mxu0
        %4925 = vmatprep.mubr.f32.mxu0 0.0
        %4926 = vmatmul.mubr.f32.gmra.mxu0 %v4712
        %v4927 = vpop.f32.mrf.mxu0
        %v4928 = vadd.f32 0.0, %v4927
        %v4929 = vpop.f32.mrf.mxu0
        %4930 = vmatprep.mubr.f32.mxu0 0.0
        %4931 = vmatmul.mubr.f32.gmra.mxu0 %v4715
        %v4932 = vpop.f32.mrf.mxu0
        %v4933 = vadd.f32 0.0, %v4932
        %v4934 = vpop.f32.mrf.mxu0
        %4935 = vmatprep.mubr.f32.mxu0 0.0
        %4936 = vmatmul.mubr.f32.gmra.mxu0 %v4718
        %v4937 = vpop.f32.mrf.mxu0
        %v4938 = vadd.f32 0.0, %v4937
        %v4939 = vpop.f32.mrf.mxu0
        %4940 = vmatprep.mubr.f32.mxu0 0.0
        %4941 = vmatmul.mubr.f32.gmra.mxu0 %v4721
        %v4942 = vpop.f32.mrf.mxu0
        %v4943 = vadd.f32 0.0, %v4942
        %v4944 = vpop.f32.mrf.mxu0
        %4945 = vmatprep.mubr.f32.mxu0 0.0
        %4946 = vmatmul.mubr.f32.gmra.mxu0 %v4724
        %v4947 = vpop.f32.mrf.mxu0
        %v4948 = vadd.f32 0.0, %v4947
        %v4949 = vpop.f32.mrf.mxu0
        %4950 = vdwg.mxu0
        %v4951 = vadd.f32 %v4561, %v4793
        %v4952 = vadd.f32 %v4562, %v4798
        %v4953 = vadd.f32 %v4563, %v4803
        %v4954 = vadd.f32 %v4564, %v4808
        %v4955 = vadd.f32 %v4565, %v4813
        %v4956 = vadd.f32 %v4566, %v4818
        %v4957 = vadd.f32 %v4567, %v4823
        %v4958 = vadd.f32 %v4568, %v4828
        %v4959 = vadd.f32 %v4569, %v4833
        %v4960 = vadd.f32 %v4570, %v4838
        %v4961 = vadd.f32 %v4571, %v4843
        %v4962 = vadd.f32 %v4572, %v4848
        %v4963 = vadd.f32 %v4573, %v4853
        %v4964 = vadd.f32 %v4574, %v4858
        %v4965 = vadd.f32 %v4575, %v4863
        %v4966 = vadd.f32 %v4576, %v4868
        %v4967 = vadd.f32 %v4577, %v4873
        %v4968 = vadd.f32 %v4578, %v4878
        %v4969 = vadd.f32 %v4579, %v4883
        %v4970 = vadd.f32 %v4580, %v4888
        %v4971 = vadd.f32 %v4581, %v4893
        %v4972 = vadd.f32 %v4582, %v4898
        %v4973 = vadd.f32 %v4583, %v4903
        %v4974 = vadd.f32 %v4584, %v4908
        %v4975 = vadd.f32 %v4585, %v4913
        %v4976 = vadd.f32 %v4586, %v4918
        %v4977 = vadd.f32 %v4587, %v4923
        %v4978 = vadd.f32 %v4588, %v4928
        %v4979 = vadd.f32 %v4589, %v4933
        %v4980 = vadd.f32 %v4590, %v4938
        %v4981 = vadd.f32 %v4591, %v4943
        %v4982 = vadd.f32 %v4592, %v4948
        %v4983 = vld [vmem:[%s999 + $0x2] sm:$0xff]
        %v4984 = vld [vmem:[%s999 + $0xa] sm:$0xff]
        %v4985 = vld [vmem:[%s999 + $0x1a] sm:$0xff]
        %v4986 = vld [vmem:[%s999 + $0x22] sm:$0xff]
        %v4987 = vld [vmem:[%s999 + $0x32] sm:$0xff]
        %v4988 = vld [vmem:[%s999 + $0x3a] sm:$0xff]
        %v4989 = vld [vmem:[%s999 + $0x4a] sm:$0xff]
        %v4990 = vld [vmem:[%s999 + $0x52] sm:$0xff]
        %v4991 = vld [vmem:[%s999 + $0x62] sm:$0xff]
        %v4992 = vld [vmem:[%s999 + $0x6a] sm:$0xff]
        %v4993 = vld [vmem:[%s999 + $0x7a] sm:$0xff]
        %v4994 = vld [vmem:[%s999 + $0x82] sm:$0xff]
        %v4995 = vld [vmem:[%s999 + $0x92] sm:$0xff]
        %v4996 = vld [vmem:[%s999 + $0x9a] sm:$0xff]
        %v4997 = vld [vmem:[%s999 + $0xaa] sm:$0xff]
        %v4998 = vld [vmem:[%s999 + $0xb2] sm:$0xff]
        %v4999 = vld [vmem:[%s999 + $0xc2] sm:$0xff]
        %v5000 = vld [vmem:[%s999 + $0xca] sm:$0xff]
        %v5001 = vld [vmem:[%s999 + $0xda] sm:$0xff]
        %v5002 = vld [vmem:[%s999 + $0xe2] sm:$0xff]
        %v5003 = vld [vmem:[%s999 + $0xf2] sm:$0xff]
        %v5004 = vld [vmem:[%s999 + $0xfa] sm:$0xff]
        %v5005 = vld [vmem:[%s999 + $0x10a] sm:$0xff]
        %v5006 = vld [vmem:[%s999 + $0x112] sm:$0xff]
        %v5007 = vld [vmem:[%s999 + $0x122] sm:$0xff]
        %v5008 = vld [vmem:[%s999 + $0x12a] sm:$0xff]
        %v5009 = vld [vmem:[%s999 + $0x13a] sm:$0xff]
        %v5010 = vld [vmem:[%s999 + $0x142] sm:$0xff]
        %v5011 = vld [vmem:[%s999 + $0x152] sm:$0xff]
        %v5012 = vld [vmem:[%s999 + $0x15a] sm:$0xff]
        %v5013 = vld [vmem:[%s999 + $0x16a] sm:$0xff]
        %v5014 = vld [vmem:[%s999 + $0x172] sm:$0xff]
        %s5015 = scalar_lea.vmem %s5, 256
        %v5016 = vld [vmem:[%s5015] sm:$0xff]
        %v5017 = vld [vmem:[%s5015 + $0x8] sm:$0xff]
        %v5018 = vld [vmem:[%s5015 + $0x10] sm:$0xff]
        %v5019 = vld [vmem:[%s5015 + $0x18] sm:$0xff]
        %v5021 = vsel %vm314, %v4983, 0
        %v5024 = vsel %vm314, %v4984, 0
        %v5027 = vsel %vm314, %v4985, 0
        %v5030 = vsel %vm314, %v4986, 0
        %v5033 = vsel %vm314, %v4987, 0
        %v5036 = vsel %vm314, %v4988, 0
        %v5039 = vsel %vm314, %v4989, 0
        %v5042 = vsel %vm314, %v4990, 0
        %v5045 = vsel %vm314, %v4991, 0
        %v5048 = vsel %vm314, %v4992, 0
        %v5051 = vsel %vm314, %v4993, 0
        %v5054 = vsel %vm314, %v4994, 0
        %v5057 = vsel %vm314, %v4995, 0
        %v5060 = vsel %vm314, %v4996, 0
        %v5063 = vsel %vm314, %v4997, 0
        %v5066 = vsel %vm314, %v4998, 0
        %v5069 = vsel %vm314, %v4999, 0
        %v5072 = vsel %vm314, %v5000, 0
        %v5075 = vsel %vm314, %v5001, 0
        %v5078 = vsel %vm314, %v5002, 0
        %v5081 = vsel %vm314, %v5003, 0
        %v5084 = vsel %vm314, %v5004, 0
        %v5087 = vsel %vm314, %v5005, 0
        %v5090 = vsel %vm314, %v5006, 0
        %v5093 = vsel %vm314, %v5007, 0
        %v5096 = vsel %vm314, %v5008, 0
        %v5099 = vsel %vm314, %v5009, 0
        %v5102 = vsel %vm314, %v5010, 0
        %v5105 = vsel %vm314, %v5011, 0
        %v5108 = vsel %vm314, %v5012, 0
        %v5111 = vsel %vm314, %v5013, 0
        %v5114 = vsel %vm314, %v5014, 0
        %5116 = vmatprep.subr.mxu0 0.0
        %5117 = vmatpush1.msra.mxu0 0.0
        %5118 = vmatprep.subr.mxu0 0.0
        %5119 = vmatpush1.msra.mxu0 0.0
        %5120 = vmatprep.subr.mxu0 0.0
        %5121 = vmatpush1.msra.mxu0 0.0
        %5122 = vmatprep.subr.mxu0 0.0
        %5123 = vmatpush1.msra.mxu0 0.0
        %5124 = vmatprep.subr.mxu0 0.0
        %5125 = vmatpush1.msra.mxu0 0.0
        %5126 = vmatprep.subr.mxu0 0.0
        %5127 = vmatpush1.msra.mxu0 0.0
        %5128 = vmatprep.subr.mxu0 0.0
        %5129 = vmatpush1.msra.mxu0 0.0
        %5130 = vmatprep.subr.mxu0 0.0
        %5131 = vmatpush1.msra.mxu0 0.0
        %5132 = vmatprep.subr.mxu0 0.0
        %5133 = vmatpush1.msra.mxu0 0.0
        %5134 = vmatprep.subr.mxu0 0.0
        %5135 = vmatpush1.msra.mxu0 0.0
        %5136 = vmatprep.subr.mxu0 0.0
        %5137 = vmatpush1.msra.mxu0 0.0
        %5138 = vmatprep.subr.mxu0 0.0
        %5139 = vmatpush1.msra.mxu0 0.0
        %5140 = vmatprep.subr.mxu0 0.0
        %5141 = vmatpush1.msra.mxu0 %v5019
        %5142 = vmatprep.subr.mxu0 0.0
        %5143 = vmatpush1.msra.mxu0 %v5018
        %5144 = vmatprep.subr.mxu0 0.0
        %5145 = vmatpush1.msra.mxu0 %v5017
        %5146 = vmatprep.subr.mxu0 0.0
        %5147 = vmatpush1.msra.mxu0 %v5016
        %5148 = vmatprep.subr.mxu0 0.0
        %5149 = vmatpush2.msra.mxu0 0.0
        %5150 = vmatprep.subr.mxu0 0.0
        %5151 = vmatpush2.msra.mxu0 0.0
        %5152 = vmatprep.subr.mxu0 0.0
        %5153 = vmatpush2.msra.mxu0 0.0
        %5154 = vmatprep.subr.mxu0 0.0
        %5155 = vmatpush2.msra.mxu0 0.0
        %5156 = vmatprep.subr.mxu0 0.0
        %5157 = vmatpush2.msra.mxu0 0.0
        %5158 = vmatprep.subr.mxu0 0.0
        %5159 = vmatpush2.msra.mxu0 0.0
        %5160 = vmatprep.subr.mxu0 0.0
        %5161 = vmatpush2.msra.mxu0 0.0
        %5162 = vmatprep.subr.mxu0 0.0
        %5163 = vmatpush2.msra.mxu0 0.0
        %5164 = vmatprep.subr.mxu0 0.0
        %5165 = vmatpush2.msra.mxu0 0.0
        %5166 = vmatprep.subr.mxu0 0.0
        %5167 = vmatpush2.msra.mxu0 0.0
        %5168 = vmatprep.subr.mxu0 0.0
        %5169 = vmatpush2.msra.mxu0 0.0
        %5170 = vmatprep.subr.mxu0 0.0
        %5171 = vmatpush2.msra.mxu0 0.0
        %5172 = vmatprep.subr.mxu0 0.0
        %5173 = vmatpush2.msra.mxu0 0.0
        %5174 = vmatprep.subr.mxu0 0.0
        %5175 = vmatpush2.msra.mxu0 0.0
        %5176 = vmatprep.subr.mxu0 0.0
        %5177 = vmatpush2.msra.mxu0 0.0
        %5178 = vmatprep.subr.mxu0 0.0
        %5179 = vmatpush2.msra.mxu0 0.0
        %5180 = vmatprep.mubr.f32.mxu0 0.0
        %5181 = vmatmul.mubr.f32.gmra.mxu0 %v5021
        %v5182 = vpop.f32.mrf.mxu0
        %v5183 = vadd.f32 0.0, %v5182
        %v5184 = vpop.f32.mrf.mxu0
        %5185 = vmatprep.mubr.f32.mxu0 0.0
        %5186 = vmatmul.mubr.f32.gmra.mxu0 %v5024
        %v5187 = vpop.f32.mrf.mxu0
        %v5188 = vadd.f32 0.0, %v5187
        %v5189 = vpop.f32.mrf.mxu0
        %5190 = vmatprep.mubr.f32.mxu0 0.0
        %5191 = vmatmul.mubr.f32.gmra.mxu0 %v5027
        %v5192 = vpop.f32.mrf.mxu0
        %v5193 = vadd.f32 0.0, %v5192
        %v5194 = vpop.f32.mrf.mxu0
        %5195 = vmatprep.mubr.f32.mxu0 0.0
        %5196 = vmatmul.mubr.f32.gmra.mxu0 %v5030
        %v5197 = vpop.f32.mrf.mxu0
        %v5198 = vadd.f32 0.0, %v5197
        %v5199 = vpop.f32.mrf.mxu0
        %5200 = vmatprep.mubr.f32.mxu0 0.0
        %5201 = vmatmul.mubr.f32.gmra.mxu0 %v5033
        %v5202 = vpop.f32.mrf.mxu0
        %v5203 = vadd.f32 0.0, %v5202
        %v5204 = vpop.f32.mrf.mxu0
        %5205 = vmatprep.mubr.f32.mxu0 0.0
        %5206 = vmatmul.mubr.f32.gmra.mxu0 %v5036
        %v5207 = vpop.f32.mrf.mxu0
        %v5208 = vadd.f32 0.0, %v5207
        %v5209 = vpop.f32.mrf.mxu0
        %5210 = vmatprep.mubr.f32.mxu0 0.0
        %5211 = vmatmul.mubr.f32.gmra.mxu0 %v5039
        %v5212 = vpop.f32.mrf.mxu0
        %v5213 = vadd.f32 0.0, %v5212
        %v5214 = vpop.f32.mrf.mxu0
        %5215 = vmatprep.mubr.f32.mxu0 0.0
        %5216 = vmatmul.mubr.f32.gmra.mxu0 %v5042
        %v5217 = vpop.f32.mrf.mxu0
        %v5218 = vadd.f32 0.0, %v5217
        %v5219 = vpop.f32.mrf.mxu0
        %5220 = vmatprep.mubr.f32.mxu0 0.0
        %5221 = vmatmul.mubr.f32.gmra.mxu0 %v5045
        %v5222 = vpop.f32.mrf.mxu0
        %v5223 = vadd.f32 0.0, %v5222
        %v5224 = vpop.f32.mrf.mxu0
        %5225 = vmatprep.mubr.f32.mxu0 0.0
        %5226 = vmatmul.mubr.f32.gmra.mxu0 %v5048
        %v5227 = vpop.f32.mrf.mxu0
        %v5228 = vadd.f32 0.0, %v5227
        %v5229 = vpop.f32.mrf.mxu0
        %5230 = vmatprep.mubr.f32.mxu0 0.0
        %5231 = vmatmul.mubr.f32.gmra.mxu0 %v5051
        %v5232 = vpop.f32.mrf.mxu0
        %v5233 = vadd.f32 0.0, %v5232
        %v5234 = vpop.f32.mrf.mxu0
        %5235 = vmatprep.mubr.f32.mxu0 0.0
        %5236 = vmatmul.mubr.f32.gmra.mxu0 %v5054
        %v5237 = vpop.f32.mrf.mxu0
        %v5238 = vadd.f32 0.0, %v5237
        %v5239 = vpop.f32.mrf.mxu0
        %5240 = vmatprep.mubr.f32.mxu0 0.0
        %5241 = vmatmul.mubr.f32.gmra.mxu0 %v5057
        %v5242 = vpop.f32.mrf.mxu0
        %v5243 = vadd.f32 0.0, %v5242
        %v5244 = vpop.f32.mrf.mxu0
        %5245 = vmatprep.mubr.f32.mxu0 0.0
        %5246 = vmatmul.mubr.f32.gmra.mxu0 %v5060
        %v5247 = vpop.f32.mrf.mxu0
        %v5248 = vadd.f32 0.0, %v5247
        %v5249 = vpop.f32.mrf.mxu0
        %5250 = vmatprep.mubr.f32.mxu0 0.0
        %5251 = vmatmul.mubr.f32.gmra.mxu0 %v5063
        %v5252 = vpop.f32.mrf.mxu0
        %v5253 = vadd.f32 0.0, %v5252
        %v5254 = vpop.f32.mrf.mxu0
        %5255 = vmatprep.mubr.f32.mxu0 0.0
        %5256 = vmatmul.mubr.f32.gmra.mxu0 %v5066
        %v5257 = vpop.f32.mrf.mxu0
        %v5258 = vadd.f32 0.0, %v5257
        %v5259 = vpop.f32.mrf.mxu0
        %5260 = vmatprep.mubr.f32.mxu0 0.0
        %5261 = vmatmul.mubr.f32.gmra.mxu0 %v5069
        %v5262 = vpop.f32.mrf.mxu0
        %v5263 = vadd.f32 0.0, %v5262
        %v5264 = vpop.f32.mrf.mxu0
        %5265 = vmatprep.mubr.f32.mxu0 0.0
        %5266 = vmatmul.mubr.f32.gmra.mxu0 %v5072
        %v5267 = vpop.f32.mrf.mxu0
        %v5268 = vadd.f32 0.0, %v5267
        %v5269 = vpop.f32.mrf.mxu0
        %5270 = vmatprep.mubr.f32.mxu0 0.0
        %5271 = vmatmul.mubr.f32.gmra.mxu0 %v5075
        %v5272 = vpop.f32.mrf.mxu0
        %v5273 = vadd.f32 0.0, %v5272
        %v5274 = vpop.f32.mrf.mxu0
        %5275 = vmatprep.mubr.f32.mxu0 0.0
        %5276 = vmatmul.mubr.f32.gmra.mxu0 %v5078
        %v5277 = vpop.f32.mrf.mxu0
        %v5278 = vadd.f32 0.0, %v5277
        %v5279 = vpop.f32.mrf.mxu0
        %5280 = vmatprep.mubr.f32.mxu0 0.0
        %5281 = vmatmul.mubr.f32.gmra.mxu0 %v5081
        %v5282 = vpop.f32.mrf.mxu0
        %v5283 = vadd.f32 0.0, %v5282
        %v5284 = vpop.f32.mrf.mxu0
        %5285 = vmatprep.mubr.f32.mxu0 0.0
        %5286 = vmatmul.mubr.f32.gmra.mxu0 %v5084
        %v5287 = vpop.f32.mrf.mxu0
        %v5288 = vadd.f32 0.0, %v5287
        %v5289 = vpop.f32.mrf.mxu0
        %5290 = vmatprep.mubr.f32.mxu0 0.0
        %5291 = vmatmul.mubr.f32.gmra.mxu0 %v5087
        %v5292 = vpop.f32.mrf.mxu0
        %v5293 = vadd.f32 0.0, %v5292
        %v5294 = vpop.f32.mrf.mxu0
        %5295 = vmatprep.mubr.f32.mxu0 0.0
        %5296 = vmatmul.mubr.f32.gmra.mxu0 %v5090
        %v5297 = vpop.f32.mrf.mxu0
        %v5298 = vadd.f32 0.0, %v5297
        %v5299 = vpop.f32.mrf.mxu0
        %5300 = vmatprep.mubr.f32.mxu0 0.0
        %5301 = vmatmul.mubr.f32.gmra.mxu0 %v5093
        %v5302 = vpop.f32.mrf.mxu0
        %v5303 = vadd.f32 0.0, %v5302
        %v5304 = vpop.f32.mrf.mxu0
        %5305 = vmatprep.mubr.f32.mxu0 0.0
        %5306 = vmatmul.mubr.f32.gmra.mxu0 %v5096
        %v5307 = vpop.f32.mrf.mxu0
        %v5308 = vadd.f32 0.0, %v5307
        %v5309 = vpop.f32.mrf.mxu0
        %5310 = vmatprep.mubr.f32.mxu0 0.0
        %5311 = vmatmul.mubr.f32.gmra.mxu0 %v5099
        %v5312 = vpop.f32.mrf.mxu0
        %v5313 = vadd.f32 0.0, %v5312
        %v5314 = vpop.f32.mrf.mxu0
        %5315 = vmatprep.mubr.f32.mxu0 0.0
        %5316 = vmatmul.mubr.f32.gmra.mxu0 %v5102
        %v5317 = vpop.f32.mrf.mxu0
        %v5318 = vadd.f32 0.0, %v5317
        %v5319 = vpop.f32.mrf.mxu0
        %5320 = vmatprep.mubr.f32.mxu0 0.0
        %5321 = vmatmul.mubr.f32.gmra.mxu0 %v5105
        %v5322 = vpop.f32.mrf.mxu0
        %v5323 = vadd.f32 0.0, %v5322
        %v5324 = vpop.f32.mrf.mxu0
        %5325 = vmatprep.mubr.f32.mxu0 0.0
        %5326 = vmatmul.mubr.f32.gmra.mxu0 %v5108
        %v5327 = vpop.f32.mrf.mxu0
        %v5328 = vadd.f32 0.0, %v5327
        %v5329 = vpop.f32.mrf.mxu0
        %5330 = vmatprep.mubr.f32.mxu0 0.0
        %5331 = vmatmul.mubr.f32.gmra.mxu0 %v5111
        %v5332 = vpop.f32.mrf.mxu0
        %v5333 = vadd.f32 0.0, %v5332
        %v5334 = vpop.f32.mrf.mxu0
        %5335 = vmatprep.mubr.f32.mxu0 0.0
        %5336 = vmatmul.mubr.f32.gmra.mxu0 %v5114
        %v5337 = vpop.f32.mrf.mxu0
        %v5338 = vadd.f32 0.0, %v5337
        %v5339 = vpop.f32.mrf.mxu0
        %5340 = vdwg.mxu0
        %v5341 = vadd.f32 %v4951, %v5183
        %v5342 = vadd.f32 %v4952, %v5188
        %v5343 = vadd.f32 %v4953, %v5193
        %v5344 = vadd.f32 %v4954, %v5198
        %v5345 = vadd.f32 %v4955, %v5203
        %v5346 = vadd.f32 %v4956, %v5208
        %v5347 = vadd.f32 %v4957, %v5213
        %v5348 = vadd.f32 %v4958, %v5218
        %v5349 = vadd.f32 %v4959, %v5223
        %v5350 = vadd.f32 %v4960, %v5228
        %v5351 = vadd.f32 %v4961, %v5233
        %v5352 = vadd.f32 %v4962, %v5238
        %v5353 = vadd.f32 %v4963, %v5243
        %v5354 = vadd.f32 %v4964, %v5248
        %v5355 = vadd.f32 %v4965, %v5253
        %v5356 = vadd.f32 %v4966, %v5258
        %v5357 = vadd.f32 %v4967, %v5263
        %v5358 = vadd.f32 %v4968, %v5268
        %v5359 = vadd.f32 %v4969, %v5273
        %v5360 = vadd.f32 %v4970, %v5278
        %v5361 = vadd.f32 %v4971, %v5283
        %v5362 = vadd.f32 %v4972, %v5288
        %v5363 = vadd.f32 %v4973, %v5293
        %v5364 = vadd.f32 %v4974, %v5298
        %v5365 = vadd.f32 %v4975, %v5303
        %v5366 = vadd.f32 %v4976, %v5308
        %v5367 = vadd.f32 %v4977, %v5313
        %v5368 = vadd.f32 %v4978, %v5318
        %v5369 = vadd.f32 %v4979, %v5323
        %v5370 = vadd.f32 %v4980, %v5328
        %v5371 = vadd.f32 %v4981, %v5333
        %v5372 = vadd.f32 %v4982, %v5338
        %v5373 = vld [vmem:[%s6] sm:$0x1]
        %v5375 = vlaneseq
        %v5376 = vshrl.u32 %v5375, 7
        %v5377 = vsub.s32 0, %v5376
        %v5378 = vrot.slane %v5373, %v5377
        %v5380 = vadd.f32 %v5341, %v5378
        %v5381 = vadd.f32 %v5342, %v5378
        %v5382 = vadd.f32 %v5343, %v5378
        %v5383 = vadd.f32 %v5344, %v5378
        %v5384 = vadd.f32 %v5345, %v5378
        %v5385 = vadd.f32 %v5346, %v5378
        %v5386 = vadd.f32 %v5347, %v5378
        %v5387 = vadd.f32 %v5348, %v5378
        %v5388 = vadd.f32 %v5349, %v5378
        %v5389 = vadd.f32 %v5350, %v5378
        %v5390 = vadd.f32 %v5351, %v5378
        %v5391 = vadd.f32 %v5352, %v5378
        %v5392 = vadd.f32 %v5353, %v5378
        %v5393 = vadd.f32 %v5354, %v5378
        %v5394 = vadd.f32 %v5355, %v5378
        %v5395 = vadd.f32 %v5356, %v5378
        %v5396 = vadd.f32 %v5357, %v5378
        %v5397 = vadd.f32 %v5358, %v5378
        %v5398 = vadd.f32 %v5359, %v5378
        %v5399 = vadd.f32 %v5360, %v5378
        %v5400 = vadd.f32 %v5361, %v5378
        %v5401 = vadd.f32 %v5362, %v5378
        %v5402 = vadd.f32 %v5363, %v5378
        %v5403 = vadd.f32 %v5364, %v5378
        %v5404 = vadd.f32 %v5365, %v5378
        %v5405 = vadd.f32 %v5366, %v5378
        %v5406 = vadd.f32 %v5367, %v5378
        %v5407 = vadd.f32 %v5368, %v5378
        %v5408 = vadd.f32 %v5369, %v5378
        %v5409 = vadd.f32 %v5370, %v5378
        %v5410 = vadd.f32 %v5371, %v5378
        %v5411 = vadd.f32 %v5372, %v5378
        %vm5412 = vcmp.gt.f32.partialorder %v5380, 0.0
        %vm5413 = vcmp.gt.f32.partialorder %v5381, 0.0
        %vm5414 = vcmp.gt.f32.partialorder %v5382, 0.0
        %vm5415 = vcmp.gt.f32.partialorder %v5383, 0.0
        %vm5416 = vcmp.gt.f32.partialorder %v5384, 0.0
        %vm5417 = vcmp.gt.f32.partialorder %v5385, 0.0
        %vm5418 = vcmp.gt.f32.partialorder %v5386, 0.0
        %vm5419 = vcmp.gt.f32.partialorder %v5387, 0.0
        %vm5420 = vcmp.gt.f32.partialorder %v5388, 0.0
        %vm5421 = vcmp.gt.f32.partialorder %v5389, 0.0
        %vm5422 = vcmp.gt.f32.partialorder %v5390, 0.0
        %vm5423 = vcmp.gt.f32.partialorder %v5391, 0.0
        %vm5424 = vcmp.gt.f32.partialorder %v5392, 0.0
        %vm5425 = vcmp.gt.f32.partialorder %v5393, 0.0
        %vm5426 = vcmp.gt.f32.partialorder %v5394, 0.0
        %vm5427 = vcmp.gt.f32.partialorder %v5395, 0.0
        %vm5428 = vcmp.gt.f32.partialorder %v5396, 0.0
        %vm5429 = vcmp.gt.f32.partialorder %v5397, 0.0
        %vm5430 = vcmp.gt.f32.partialorder %v5398, 0.0
        %vm5431 = vcmp.gt.f32.partialorder %v5399, 0.0
        %vm5432 = vcmp.gt.f32.partialorder %v5400, 0.0
        %vm5433 = vcmp.gt.f32.partialorder %v5401, 0.0
        %vm5434 = vcmp.gt.f32.partialorder %v5402, 0.0
        %vm5435 = vcmp.gt.f32.partialorder %v5403, 0.0
        %vm5436 = vcmp.gt.f32.partialorder %v5404, 0.0
        %vm5437 = vcmp.gt.f32.partialorder %v5405, 0.0
        %vm5438 = vcmp.gt.f32.partialorder %v5406, 0.0
        %vm5439 = vcmp.gt.f32.partialorder %v5407, 0.0
        %vm5440 = vcmp.gt.f32.partialorder %v5408, 0.0
        %vm5441 = vcmp.gt.f32.partialorder %v5409, 0.0
        %vm5442 = vcmp.gt.f32.partialorder %v5410, 0.0
        %vm5443 = vcmp.gt.f32.partialorder %v5411, 0.0
        %v5444 = vmul.f32 %v5380, 0.1
        %v5445 = vmul.f32 %v5381, 0.1
        %v5446 = vmul.f32 %v5382, 0.1
        %v5447 = vmul.f32 %v5383, 0.1
        %v5448 = vmul.f32 %v5384, 0.1
        %v5449 = vmul.f32 %v5385, 0.1
        %v5450 = vmul.f32 %v5386, 0.1
        %v5451 = vmul.f32 %v5387, 0.1
        %v5452 = vmul.f32 %v5388, 0.1
        %v5453 = vmul.f32 %v5389, 0.1
        %v5454 = vmul.f32 %v5390, 0.1
        %v5455 = vmul.f32 %v5391, 0.1
        %v5456 = vmul.f32 %v5392, 0.1
        %v5457 = vmul.f32 %v5393, 0.1
        %v5458 = vmul.f32 %v5394, 0.1
        %v5459 = vmul.f32 %v5395, 0.1
        %v5460 = vmul.f32 %v5396, 0.1
        %v5461 = vmul.f32 %v5397, 0.1
        %v5462 = vmul.f32 %v5398, 0.1
        %v5463 = vmul.f32 %v5399, 0.1
        %v5464 = vmul.f32 %v5400, 0.1
        %v5465 = vmul.f32 %v5401, 0.1
        %v5466 = vmul.f32 %v5402, 0.1
        %v5467 = vmul.f32 %v5403, 0.1
        %v5468 = vmul.f32 %v5404, 0.1
        %v5469 = vmul.f32 %v5405, 0.1
        %v5470 = vmul.f32 %v5406, 0.1
        %v5471 = vmul.f32 %v5407, 0.1
        %v5472 = vmul.f32 %v5408, 0.1
        %v5473 = vmul.f32 %v5409, 0.1
        %v5474 = vmul.f32 %v5410, 0.1
        %v5475 = vmul.f32 %v5411, 0.1
        %v5476 = vsel %vm5412, %v5380, %v5444
        %v5477 = vsel %vm5413, %v5381, %v5445
        %v5478 = vsel %vm5414, %v5382, %v5446
        %v5479 = vsel %vm5415, %v5383, %v5447
        %v5480 = vsel %vm5416, %v5384, %v5448
        %v5481 = vsel %vm5417, %v5385, %v5449
        %v5482 = vsel %vm5418, %v5386, %v5450
        %v5483 = vsel %vm5419, %v5387, %v5451
        %v5484 = vsel %vm5420, %v5388, %v5452
        %v5485 = vsel %vm5421, %v5389, %v5453
        %v5486 = vsel %vm5422, %v5390, %v5454
        %v5487 = vsel %vm5423, %v5391, %v5455
        %v5488 = vsel %vm5424, %v5392, %v5456
        %v5489 = vsel %vm5425, %v5393, %v5457
        %v5490 = vsel %vm5426, %v5394, %v5458
        %v5491 = vsel %vm5427, %v5395, %v5459
        %v5492 = vsel %vm5428, %v5396, %v5460
        %v5493 = vsel %vm5429, %v5397, %v5461
        %v5494 = vsel %vm5430, %v5398, %v5462
        %v5495 = vsel %vm5431, %v5399, %v5463
        %v5496 = vsel %vm5432, %v5400, %v5464
        %v5497 = vsel %vm5433, %v5401, %v5465
        %v5498 = vsel %vm5434, %v5402, %v5466
        %v5499 = vsel %vm5435, %v5403, %v5467
        %v5500 = vsel %vm5436, %v5404, %v5468
        %v5501 = vsel %vm5437, %v5405, %v5469
        %v5502 = vsel %vm5438, %v5406, %v5470
        %v5503 = vsel %vm5439, %v5407, %v5471
        %v5504 = vsel %vm5440, %v5408, %v5472
        %v5505 = vsel %vm5441, %v5409, %v5473
        %v5506 = vsel %vm5442, %v5410, %v5474
        %v5507 = vsel %vm5443, %v5411, %v5475
        %5508 = vst.msk [vmem:[%s392 + $0x1] sm:$0xff] %vm314, %v5476
        %5509 = vst.msk [vmem:[%s392 + $0x9] sm:$0xff] %vm314, %v5477
        %5510 = vst.msk [vmem:[%s392 + $0x19] sm:$0xff] %vm314, %v5478
        %5511 = vst.msk [vmem:[%s392 + $0x21] sm:$0xff] %vm314, %v5479
        %5512 = vst.msk [vmem:[%s392 + $0x31] sm:$0xff] %vm314, %v5480
        %5513 = vst.msk [vmem:[%s392 + $0x39] sm:$0xff] %vm314, %v5481
        %5514 = vst.msk [vmem:[%s392 + $0x49] sm:$0xff] %vm314, %v5482
        %5515 = vst.msk [vmem:[%s392 + $0x51] sm:$0xff] %vm314, %v5483
        %5516 = vst.msk [vmem:[%s392 + $0x61] sm:$0xff] %vm314, %v5484
        %5517 = vst.msk [vmem:[%s392 + $0x69] sm:$0xff] %vm314, %v5485
        %5518 = vst.msk [vmem:[%s392 + $0x79] sm:$0xff] %vm314, %v5486
        %5519 = vst.msk [vmem:[%s392 + $0x81] sm:$0xff] %vm314, %v5487
        %5520 = vst.msk [vmem:[%s392 + $0x91] sm:$0xff] %vm314, %v5488
        %5521 = vst.msk [vmem:[%s392 + $0x99] sm:$0xff] %vm314, %v5489
        %5522 = vst.msk [vmem:[%s392 + $0xa9] sm:$0xff] %vm314, %v5490
        %5523 = vst.msk [vmem:[%s392 + $0xb1] sm:$0xff] %vm314, %v5491
        %5524 = vst.msk [vmem:[%s392 + $0xc1] sm:$0xff] %vm314, %v5492
        %5525 = vst.msk [vmem:[%s392 + $0xc9] sm:$0xff] %vm314, %v5493
        %5526 = vst.msk [vmem:[%s392 + $0xd9] sm:$0xff] %vm314, %v5494
        %5527 = vst.msk [vmem:[%s392 + $0xe1] sm:$0xff] %vm314, %v5495
        %5528 = vst.msk [vmem:[%s392 + $0xf1] sm:$0xff] %vm314, %v5496
        %5529 = vst.msk [vmem:[%s392 + $0xf9] sm:$0xff] %vm314, %v5497
        %5530 = vst.msk [vmem:[%s392 + $0x109] sm:$0xff] %vm314, %v5498
        %5531 = vst.msk [vmem:[%s392 + $0x111] sm:$0xff] %vm314, %v5499
        %5532 = vst.msk [vmem:[%s392 + $0x121] sm:$0xff] %vm314, %v5500
        %5533 = vst.msk [vmem:[%s392 + $0x129] sm:$0xff] %vm314, %v5501
        %5534 = vst.msk [vmem:[%s392 + $0x139] sm:$0xff] %vm314, %v5502
        %5535 = vst.msk [vmem:[%s392 + $0x141] sm:$0xff] %vm314, %v5503
        %5536 = vst.msk [vmem:[%s392 + $0x151] sm:$0xff] %vm314, %v5504
        %5537 = vst.msk [vmem:[%s392 + $0x159] sm:$0xff] %vm314, %v5505
        %5538 = vst.msk [vmem:[%s392 + $0x169] sm:$0xff] %vm314, %v5506
        %5539 = vst.msk [vmem:[%s392 + $0x171] sm:$0xff] %vm314, %v5507
        %v5540 = vld [vmem:[#allocation2] sm:$0xff]
        %v5541 = vld [vmem:[#allocation2 + $0x8] sm:$0xff]
        %v5542 = vld [vmem:[#allocation2 + $0x18] sm:$0xff]
        %v5543 = vld [vmem:[#allocation2 + $0x20] sm:$0xff]
        %v5544 = vld [vmem:[#allocation2 + $0x30] sm:$0xff]
        %v5545 = vld [vmem:[#allocation2 + $0x38] sm:$0xff]
        %v5546 = vld [vmem:[#allocation2 + $0x48] sm:$0xff]
        %v5547 = vld [vmem:[#allocation2 + $0x50] sm:$0xff]
        %v5548 = vld [vmem:[#allocation2 + $0x60] sm:$0xff]
        %v5549 = vld [vmem:[#allocation2 + $0x68] sm:$0xff]
        %v5550 = vld [vmem:[#allocation2 + $0x78] sm:$0xff]
        %v5551 = vld [vmem:[#allocation2 + $0x80] sm:$0xff]
        %v5552 = vld [vmem:[#allocation2 + $0x90] sm:$0xff]
        %v5553 = vld [vmem:[#allocation2 + $0x98] sm:$0xff]
        %v5554 = vld [vmem:[#allocation2 + $0xa8] sm:$0xff]
        %v5555 = vld [vmem:[#allocation2 + $0xb0] sm:$0xff]
        %v5556 = vld [vmem:[#allocation2 + $0xc0] sm:$0xff]
        %v5557 = vld [vmem:[#allocation2 + $0xc8] sm:$0xff]
        %v5558 = vld [vmem:[#allocation2 + $0xd8] sm:$0xff]
        %v5559 = vld [vmem:[#allocation2 + $0xe0] sm:$0xff]
        %v5560 = vld [vmem:[#allocation2 + $0xf0] sm:$0xff]
        %v5561 = vld [vmem:[#allocation2 + $0xf8] sm:$0xff]
        %v5562 = vld [vmem:[#allocation2 + $0x108] sm:$0xff]
        %v5563 = vld [vmem:[#allocation2 + $0x110] sm:$0xff]
        %v5564 = vld [vmem:[#allocation2 + $0x120] sm:$0xff]
        %v5565 = vld [vmem:[#allocation2 + $0x128] sm:$0xff]
        %v5566 = vld [vmem:[#allocation2 + $0x138] sm:$0xff]
        %v5567 = vld [vmem:[#allocation2 + $0x140] sm:$0xff]
        %v5568 = vld [vmem:[#allocation2 + $0x150] sm:$0xff]
        %v5569 = vld [vmem:[#allocation2 + $0x158] sm:$0xff]
        %v5570 = vld [vmem:[#allocation2 + $0x168] sm:$0xff]
        %v5571 = vld [vmem:[#allocation2 + $0x170] sm:$0xff]
        %v5572 = vld [vmem:[%s309 + $0x9] sm:$0x1]
        %v5573 = vlaneseq
        %v5574 = vshrl.u32 %v5573, 7
        %v5575 = vsub.s32 0, %v5574
        %v5576 = vrot.slane %v5572, %v5575
        %v5577 = vmul.f32 %v5540, %v5576
        %v5578 = vmul.f32 %v5541, %v5576
        %v5579 = vmul.f32 %v5542, %v5576
        %v5580 = vmul.f32 %v5543, %v5576
        %v5581 = vmul.f32 %v5544, %v5576
        %v5582 = vmul.f32 %v5545, %v5576
        %v5583 = vmul.f32 %v5546, %v5576
        %v5584 = vmul.f32 %v5547, %v5576
        %v5585 = vmul.f32 %v5548, %v5576
        %v5586 = vmul.f32 %v5549, %v5576
        %v5587 = vmul.f32 %v5550, %v5576
        %v5588 = vmul.f32 %v5551, %v5576
        %v5589 = vmul.f32 %v5552, %v5576
        %v5590 = vmul.f32 %v5553, %v5576
        %v5591 = vmul.f32 %v5554, %v5576
        %v5592 = vmul.f32 %v5555, %v5576
        %v5593 = vmul.f32 %v5556, %v5576
        %v5594 = vmul.f32 %v5557, %v5576
        %v5595 = vmul.f32 %v5558, %v5576
        %v5596 = vmul.f32 %v5559, %v5576
        %v5597 = vmul.f32 %v5560, %v5576
        %v5598 = vmul.f32 %v5561, %v5576
        %v5599 = vmul.f32 %v5562, %v5576
        %v5600 = vmul.f32 %v5563, %v5576
        %v5601 = vmul.f32 %v5564, %v5576
        %v5602 = vmul.f32 %v5565, %v5576
        %v5603 = vmul.f32 %v5566, %v5576
        %v5604 = vmul.f32 %v5567, %v5576
        %v5605 = vmul.f32 %v5568, %v5576
        %v5606 = vmul.f32 %v5569, %v5576
        %v5607 = vmul.f32 %v5570, %v5576
        %v5608 = vmul.f32 %v5571, %v5576
        %v5609 = vld [vmem:[#allocation2 + $0x1] sm:$0xff]
        %v5610 = vld [vmem:[#allocation2 + $0x9] sm:$0xff]
        %v5611 = vld [vmem:[#allocation2 + $0x19] sm:$0xff]
        %v5612 = vld [vmem:[#allocation2 + $0x21] sm:$0xff]
        %v5613 = vld [vmem:[#allocation2 + $0x31] sm:$0xff]
        %v5614 = vld [vmem:[#allocation2 + $0x39] sm:$0xff]
        %v5615 = vld [vmem:[#allocation2 + $0x49] sm:$0xff]
        %v5616 = vld [vmem:[#allocation2 + $0x51] sm:$0xff]
        %v5617 = vld [vmem:[#allocation2 + $0x61] sm:$0xff]
        %v5618 = vld [vmem:[#allocation2 + $0x69] sm:$0xff]
        %v5619 = vld [vmem:[#allocation2 + $0x79] sm:$0xff]
        %v5620 = vld [vmem:[#allocation2 + $0x81] sm:$0xff]
        %v5621 = vld [vmem:[#allocation2 + $0x91] sm:$0xff]
        %v5622 = vld [vmem:[#allocation2 + $0x99] sm:$0xff]
        %v5623 = vld [vmem:[#allocation2 + $0xa9] sm:$0xff]
        %v5624 = vld [vmem:[#allocation2 + $0xb1] sm:$0xff]
        %v5625 = vld [vmem:[#allocation2 + $0xc1] sm:$0xff]
        %v5626 = vld [vmem:[#allocation2 + $0xc9] sm:$0xff]
        %v5627 = vld [vmem:[#allocation2 + $0xd9] sm:$0xff]
        %v5628 = vld [vmem:[#allocation2 + $0xe1] sm:$0xff]
        %v5629 = vld [vmem:[#allocation2 + $0xf1] sm:$0xff]
        %v5630 = vld [vmem:[#allocation2 + $0xf9] sm:$0xff]
        %v5631 = vld [vmem:[#allocation2 + $0x109] sm:$0xff]
        %v5632 = vld [vmem:[#allocation2 + $0x111] sm:$0xff]
        %v5633 = vld [vmem:[#allocation2 + $0x121] sm:$0xff]
        %v5634 = vld [vmem:[#allocation2 + $0x129] sm:$0xff]
        %v5635 = vld [vmem:[#allocation2 + $0x139] sm:$0xff]
        %v5636 = vld [vmem:[#allocation2 + $0x141] sm:$0xff]
        %v5637 = vld [vmem:[#allocation2 + $0x151] sm:$0xff]
        %v5638 = vld [vmem:[#allocation2 + $0x159] sm:$0xff]
        %v5639 = vld [vmem:[#allocation2 + $0x169] sm:$0xff]
        %v5640 = vld [vmem:[#allocation2 + $0x171] sm:$0xff]
        %v5641 = vld [vmem:[%s309 + $0xa] sm:$0x1]
        %v5642 = vlaneseq
        %v5643 = vshrl.u32 %v5642, 7
        %v5644 = vsub.s32 0, %v5643
        %v5645 = vrot.slane %v5641, %v5644
        %v5646 = vmul.f32 %v5609, %v5645
        %v5647 = vmul.f32 %v5610, %v5645
        %v5648 = vmul.f32 %v5611, %v5645
        %v5649 = vmul.f32 %v5612, %v5645
        %v5650 = vmul.f32 %v5613, %v5645
        %v5651 = vmul.f32 %v5614, %v5645
        %v5652 = vmul.f32 %v5615, %v5645
        %v5653 = vmul.f32 %v5616, %v5645
        %v5654 = vmul.f32 %v5617, %v5645
        %v5655 = vmul.f32 %v5618, %v5645
        %v5656 = vmul.f32 %v5619, %v5645
        %v5657 = vmul.f32 %v5620, %v5645
        %v5658 = vmul.f32 %v5621, %v5645
        %v5659 = vmul.f32 %v5622, %v5645
        %v5660 = vmul.f32 %v5623, %v5645
        %v5661 = vmul.f32 %v5624, %v5645
        %v5662 = vmul.f32 %v5625, %v5645
        %v5663 = vmul.f32 %v5626, %v5645
        %v5664 = vmul.f32 %v5627, %v5645
        %v5665 = vmul.f32 %v5628, %v5645
        %v5666 = vmul.f32 %v5629, %v5645
        %v5667 = vmul.f32 %v5630, %v5645
        %v5668 = vmul.f32 %v5631, %v5645
        %v5669 = vmul.f32 %v5632, %v5645
        %v5670 = vmul.f32 %v5633, %v5645
        %v5671 = vmul.f32 %v5634, %v5645
        %v5672 = vmul.f32 %v5635, %v5645
        %v5673 = vmul.f32 %v5636, %v5645
        %v5674 = vmul.f32 %v5637, %v5645
        %v5675 = vmul.f32 %v5638, %v5645
        %v5676 = vmul.f32 %v5639, %v5645
        %v5677 = vmul.f32 %v5640, %v5645
        %v5678 = vadd.f32 %v5577, %v5646
        %v5679 = vadd.f32 %v5578, %v5647
        %v5680 = vadd.f32 %v5579, %v5648
        %v5681 = vadd.f32 %v5580, %v5649
        %v5682 = vadd.f32 %v5581, %v5650
        %v5683 = vadd.f32 %v5582, %v5651
        %v5684 = vadd.f32 %v5583, %v5652
        %v5685 = vadd.f32 %v5584, %v5653
        %v5686 = vadd.f32 %v5585, %v5654
        %v5687 = vadd.f32 %v5586, %v5655
        %v5688 = vadd.f32 %v5587, %v5656
        %v5689 = vadd.f32 %v5588, %v5657
        %v5690 = vadd.f32 %v5589, %v5658
        %v5691 = vadd.f32 %v5590, %v5659
        %v5692 = vadd.f32 %v5591, %v5660
        %v5693 = vadd.f32 %v5592, %v5661
        %v5694 = vadd.f32 %v5593, %v5662
        %v5695 = vadd.f32 %v5594, %v5663
        %v5696 = vadd.f32 %v5595, %v5664
        %v5697 = vadd.f32 %v5596, %v5665
        %v5698 = vadd.f32 %v5597, %v5666
        %v5699 = vadd.f32 %v5598, %v5667
        %v5700 = vadd.f32 %v5599, %v5668
        %v5701 = vadd.f32 %v5600, %v5669
        %v5702 = vadd.f32 %v5601, %v5670
        %v5703 = vadd.f32 %v5602, %v5671
        %v5704 = vadd.f32 %v5603, %v5672
        %v5705 = vadd.f32 %v5604, %v5673
        %v5706 = vadd.f32 %v5605, %v5674
        %v5707 = vadd.f32 %v5606, %v5675
        %v5708 = vadd.f32 %v5607, %v5676
        %v5709 = vadd.f32 %v5608, %v5677
        %v5710 = vld [vmem:[#allocation2 + $0x2] sm:$0xff]
        %v5711 = vld [vmem:[#allocation2 + $0xa] sm:$0xff]
        %v5712 = vld [vmem:[#allocation2 + $0x1a] sm:$0xff]
        %v5713 = vld [vmem:[#allocation2 + $0x22] sm:$0xff]
        %v5714 = vld [vmem:[#allocation2 + $0x32] sm:$0xff]
        %v5715 = vld [vmem:[#allocation2 + $0x3a] sm:$0xff]
        %v5716 = vld [vmem:[#allocation2 + $0x4a] sm:$0xff]
        %v5717 = vld [vmem:[#allocation2 + $0x52] sm:$0xff]
        %v5718 = vld [vmem:[#allocation2 + $0x62] sm:$0xff]
        %v5719 = vld [vmem:[#allocation2 + $0x6a] sm:$0xff]
        %v5720 = vld [vmem:[#allocation2 + $0x7a] sm:$0xff]
        %v5721 = vld [vmem:[#allocation2 + $0x82] sm:$0xff]
        %v5722 = vld [vmem:[#allocation2 + $0x92] sm:$0xff]
        %v5723 = vld [vmem:[#allocation2 + $0x9a] sm:$0xff]
        %v5724 = vld [vmem:[#allocation2 + $0xaa] sm:$0xff]
        %v5725 = vld [vmem:[#allocation2 + $0xb2] sm:$0xff]
        %v5726 = vld [vmem:[#allocation2 + $0xc2] sm:$0xff]
        %v5727 = vld [vmem:[#allocation2 + $0xca] sm:$0xff]
        %v5728 = vld [vmem:[#allocation2 + $0xda] sm:$0xff]
        %v5729 = vld [vmem:[#allocation2 + $0xe2] sm:$0xff]
        %v5730 = vld [vmem:[#allocation2 + $0xf2] sm:$0xff]
        %v5731 = vld [vmem:[#allocation2 + $0xfa] sm:$0xff]
        %v5732 = vld [vmem:[#allocation2 + $0x10a] sm:$0xff]
        %v5733 = vld [vmem:[#allocation2 + $0x112] sm:$0xff]
        %v5734 = vld [vmem:[#allocation2 + $0x122] sm:$0xff]
        %v5735 = vld [vmem:[#allocation2 + $0x12a] sm:$0xff]
        %v5736 = vld [vmem:[#allocation2 + $0x13a] sm:$0xff]
        %v5737 = vld [vmem:[#allocation2 + $0x142] sm:$0xff]
        %v5738 = vld [vmem:[#allocation2 + $0x152] sm:$0xff]
        %v5739 = vld [vmem:[#allocation2 + $0x15a] sm:$0xff]
        %v5740 = vld [vmem:[#allocation2 + $0x16a] sm:$0xff]
        %v5741 = vld [vmem:[#allocation2 + $0x172] sm:$0xff]
        %v5742 = vld [vmem:[%s309 + $0xb] sm:$0x1]
        %v5743 = vlaneseq
        %v5744 = vshrl.u32 %v5743, 7
        %v5745 = vsub.s32 0, %v5744
        %v5746 = vrot.slane %v5742, %v5745
        %v5747 = vmul.f32 %v5710, %v5746
        %v5748 = vmul.f32 %v5711, %v5746
        %v5749 = vmul.f32 %v5712, %v5746
        %v5750 = vmul.f32 %v5713, %v5746
        %v5751 = vmul.f32 %v5714, %v5746
        %v5752 = vmul.f32 %v5715, %v5746
        %v5753 = vmul.f32 %v5716, %v5746
        %v5754 = vmul.f32 %v5717, %v5746
        %v5755 = vmul.f32 %v5718, %v5746
        %v5756 = vmul.f32 %v5719, %v5746
        %v5757 = vmul.f32 %v5720, %v5746
        %v5758 = vmul.f32 %v5721, %v5746
        %v5759 = vmul.f32 %v5722, %v5746
        %v5760 = vmul.f32 %v5723, %v5746
        %v5761 = vmul.f32 %v5724, %v5746
        %v5762 = vmul.f32 %v5725, %v5746
        %v5763 = vmul.f32 %v5726, %v5746
        %v5764 = vmul.f32 %v5727, %v5746
        %v5765 = vmul.f32 %v5728, %v5746
        %v5766 = vmul.f32 %v5729, %v5746
        %v5767 = vmul.f32 %v5730, %v5746
        %v5768 = vmul.f32 %v5731, %v5746
        %v5769 = vmul.f32 %v5732, %v5746
        %v5770 = vmul.f32 %v5733, %v5746
        %v5771 = vmul.f32 %v5734, %v5746
        %v5772 = vmul.f32 %v5735, %v5746
        %v5773 = vmul.f32 %v5736, %v5746
        %v5774 = vmul.f32 %v5737, %v5746
        %v5775 = vmul.f32 %v5738, %v5746
        %v5776 = vmul.f32 %v5739, %v5746
        %v5777 = vmul.f32 %v5740, %v5746
        %v5778 = vmul.f32 %v5741, %v5746
        %v5779 = vadd.f32 %v5678, %v5747
        %v5780 = vadd.f32 %v5679, %v5748
        %v5781 = vadd.f32 %v5680, %v5749
        %v5782 = vadd.f32 %v5681, %v5750
        %v5783 = vadd.f32 %v5682, %v5751
        %v5784 = vadd.f32 %v5683, %v5752
        %v5785 = vadd.f32 %v5684, %v5753
        %v5786 = vadd.f32 %v5685, %v5754
        %v5787 = vadd.f32 %v5686, %v5755
        %v5788 = vadd.f32 %v5687, %v5756
        %v5789 = vadd.f32 %v5688, %v5757
        %v5790 = vadd.f32 %v5689, %v5758
        %v5791 = vadd.f32 %v5690, %v5759
        %v5792 = vadd.f32 %v5691, %v5760
        %v5793 = vadd.f32 %v5692, %v5761
        %v5794 = vadd.f32 %v5693, %v5762
        %v5795 = vadd.f32 %v5694, %v5763
        %v5796 = vadd.f32 %v5695, %v5764
        %v5797 = vadd.f32 %v5696, %v5765
        %v5798 = vadd.f32 %v5697, %v5766
        %v5799 = vadd.f32 %v5698, %v5767
        %v5800 = vadd.f32 %v5699, %v5768
        %v5801 = vadd.f32 %v5700, %v5769
        %v5802 = vadd.f32 %v5701, %v5770
        %v5803 = vadd.f32 %v5702, %v5771
        %v5804 = vadd.f32 %v5703, %v5772
        %v5805 = vadd.f32 %v5704, %v5773
        %v5806 = vadd.f32 %v5705, %v5774
        %v5807 = vadd.f32 %v5706, %v5775
        %v5808 = vadd.f32 %v5707, %v5776
        %v5809 = vadd.f32 %v5708, %v5777
        %v5810 = vadd.f32 %v5709, %v5778
        %v5811 = vld [vmem:[%s392] sm:$0xff]
        %v5812 = vld [vmem:[%s392 + $0x8] sm:$0xff]
        %v5813 = vld [vmem:[%s392 + $0x18] sm:$0xff]
        %v5814 = vld [vmem:[%s392 + $0x20] sm:$0xff]
        %v5815 = vld [vmem:[%s392 + $0x30] sm:$0xff]
        %v5816 = vld [vmem:[%s392 + $0x38] sm:$0xff]
        %v5817 = vld [vmem:[%s392 + $0x48] sm:$0xff]
        %v5818 = vld [vmem:[%s392 + $0x50] sm:$0xff]
        %v5819 = vld [vmem:[%s392 + $0x60] sm:$0xff]
        %v5820 = vld [vmem:[%s392 + $0x68] sm:$0xff]
        %v5821 = vld [vmem:[%s392 + $0x78] sm:$0xff]
        %v5822 = vld [vmem:[%s392 + $0x80] sm:$0xff]
        %v5823 = vld [vmem:[%s392 + $0x90] sm:$0xff]
        %v5824 = vld [vmem:[%s392 + $0x98] sm:$0xff]
        %v5825 = vld [vmem:[%s392 + $0xa8] sm:$0xff]
        %v5826 = vld [vmem:[%s392 + $0xb0] sm:$0xff]
        %v5827 = vld [vmem:[%s392 + $0xc0] sm:$0xff]
        %v5828 = vld [vmem:[%s392 + $0xc8] sm:$0xff]
        %v5829 = vld [vmem:[%s392 + $0xd8] sm:$0xff]
        %v5830 = vld [vmem:[%s392 + $0xe0] sm:$0xff]
        %v5831 = vld [vmem:[%s392 + $0xf0] sm:$0xff]
        %v5832 = vld [vmem:[%s392 + $0xf8] sm:$0xff]
        %v5833 = vld [vmem:[%s392 + $0x108] sm:$0xff]
        %v5834 = vld [vmem:[%s392 + $0x110] sm:$0xff]
        %v5835 = vld [vmem:[%s392 + $0x120] sm:$0xff]
        %v5836 = vld [vmem:[%s392 + $0x128] sm:$0xff]
        %v5837 = vld [vmem:[%s392 + $0x138] sm:$0xff]
        %v5838 = vld [vmem:[%s392 + $0x140] sm:$0xff]
        %v5839 = vld [vmem:[%s392 + $0x150] sm:$0xff]
        %v5840 = vld [vmem:[%s392 + $0x158] sm:$0xff]
        %v5841 = vld [vmem:[%s392 + $0x168] sm:$0xff]
        %v5842 = vld [vmem:[%s392 + $0x170] sm:$0xff]
        %v5843 = vld [vmem:[%s309 + $0xc] sm:$0x1]
        %v5844 = vlaneseq
        %v5845 = vshrl.u32 %v5844, 7
        %v5846 = vsub.s32 0, %v5845
        %v5847 = vrot.slane %v5843, %v5846
        %v5848 = vmul.f32 %v5811, %v5847
        %v5849 = vmul.f32 %v5812, %v5847
        %v5850 = vmul.f32 %v5813, %v5847
        %v5851 = vmul.f32 %v5814, %v5847
        %v5852 = vmul.f32 %v5815, %v5847
        %v5853 = vmul.f32 %v5816, %v5847
        %v5854 = vmul.f32 %v5817, %v5847
        %v5855 = vmul.f32 %v5818, %v5847
        %v5856 = vmul.f32 %v5819, %v5847
        %v5857 = vmul.f32 %v5820, %v5847
        %v5858 = vmul.f32 %v5821, %v5847
        %v5859 = vmul.f32 %v5822, %v5847
        %v5860 = vmul.f32 %v5823, %v5847
        %v5861 = vmul.f32 %v5824, %v5847
        %v5862 = vmul.f32 %v5825, %v5847
        %v5863 = vmul.f32 %v5826, %v5847
        %v5864 = vmul.f32 %v5827, %v5847
        %v5865 = vmul.f32 %v5828, %v5847
        %v5866 = vmul.f32 %v5829, %v5847
        %v5867 = vmul.f32 %v5830, %v5847
        %v5868 = vmul.f32 %v5831, %v5847
        %v5869 = vmul.f32 %v5832, %v5847
        %v5870 = vmul.f32 %v5833, %v5847
        %v5871 = vmul.f32 %v5834, %v5847
        %v5872 = vmul.f32 %v5835, %v5847
        %v5873 = vmul.f32 %v5836, %v5847
        %v5874 = vmul.f32 %v5837, %v5847
        %v5875 = vmul.f32 %v5838, %v5847
        %v5876 = vmul.f32 %v5839, %v5847
        %v5877 = vmul.f32 %v5840, %v5847
        %v5878 = vmul.f32 %v5841, %v5847
        %v5879 = vmul.f32 %v5842, %v5847
        %v5880 = vadd.f32 %v5779, %v5848
        %v5881 = vadd.f32 %v5780, %v5849
        %v5882 = vadd.f32 %v5781, %v5850
        %v5883 = vadd.f32 %v5782, %v5851
        %v5884 = vadd.f32 %v5783, %v5852
        %v5885 = vadd.f32 %v5784, %v5853
        %v5886 = vadd.f32 %v5785, %v5854
        %v5887 = vadd.f32 %v5786, %v5855
        %v5888 = vadd.f32 %v5787, %v5856
        %v5889 = vadd.f32 %v5788, %v5857
        %v5890 = vadd.f32 %v5789, %v5858
        %v5891 = vadd.f32 %v5790, %v5859
        %v5892 = vadd.f32 %v5791, %v5860
        %v5893 = vadd.f32 %v5792, %v5861
        %v5894 = vadd.f32 %v5793, %v5862
        %v5895 = vadd.f32 %v5794, %v5863
        %v5896 = vadd.f32 %v5795, %v5864
        %v5897 = vadd.f32 %v5796, %v5865
        %v5898 = vadd.f32 %v5797, %v5866
        %v5899 = vadd.f32 %v5798, %v5867
        %v5900 = vadd.f32 %v5799, %v5868
        %v5901 = vadd.f32 %v5800, %v5869
        %v5902 = vadd.f32 %v5801, %v5870
        %v5903 = vadd.f32 %v5802, %v5871
        %v5904 = vadd.f32 %v5803, %v5872
        %v5905 = vadd.f32 %v5804, %v5873
        %v5906 = vadd.f32 %v5805, %v5874
        %v5907 = vadd.f32 %v5806, %v5875
        %v5908 = vadd.f32 %v5807, %v5876
        %v5909 = vadd.f32 %v5808, %v5877
        %v5910 = vadd.f32 %v5809, %v5878
        %v5911 = vadd.f32 %v5810, %v5879
        %v5912 = vld [vmem:[%s392 + $0x1] sm:$0xff]
        %v5913 = vld [vmem:[%s392 + $0x9] sm:$0xff]
        %v5914 = vld [vmem:[%s392 + $0x19] sm:$0xff]
        %v5915 = vld [vmem:[%s392 + $0x21] sm:$0xff]
        %v5916 = vld [vmem:[%s392 + $0x31] sm:$0xff]
        %v5917 = vld [vmem:[%s392 + $0x39] sm:$0xff]
        %v5918 = vld [vmem:[%s392 + $0x49] sm:$0xff]
        %v5919 = vld [vmem:[%s392 + $0x51] sm:$0xff]
        %v5920 = vld [vmem:[%s392 + $0x61] sm:$0xff]
        %v5921 = vld [vmem:[%s392 + $0x69] sm:$0xff]
        %v5922 = vld [vmem:[%s392 + $0x79] sm:$0xff]
        %v5923 = vld [vmem:[%s392 + $0x81] sm:$0xff]
        %v5924 = vld [vmem:[%s392 + $0x91] sm:$0xff]
        %v5925 = vld [vmem:[%s392 + $0x99] sm:$0xff]
        %v5926 = vld [vmem:[%s392 + $0xa9] sm:$0xff]
        %v5927 = vld [vmem:[%s392 + $0xb1] sm:$0xff]
        %v5928 = vld [vmem:[%s392 + $0xc1] sm:$0xff]
        %v5929 = vld [vmem:[%s392 + $0xc9] sm:$0xff]
        %v5930 = vld [vmem:[%s392 + $0xd9] sm:$0xff]
        %v5931 = vld [vmem:[%s392 + $0xe1] sm:$0xff]
        %v5932 = vld [vmem:[%s392 + $0xf1] sm:$0xff]
        %v5933 = vld [vmem:[%s392 + $0xf9] sm:$0xff]
        %v5934 = vld [vmem:[%s392 + $0x109] sm:$0xff]
        %v5935 = vld [vmem:[%s392 + $0x111] sm:$0xff]
        %v5936 = vld [vmem:[%s392 + $0x121] sm:$0xff]
        %v5937 = vld [vmem:[%s392 + $0x129] sm:$0xff]
        %v5938 = vld [vmem:[%s392 + $0x139] sm:$0xff]
        %v5939 = vld [vmem:[%s392 + $0x141] sm:$0xff]
        %v5940 = vld [vmem:[%s392 + $0x151] sm:$0xff]
        %v5941 = vld [vmem:[%s392 + $0x159] sm:$0xff]
        %v5942 = vld [vmem:[%s392 + $0x169] sm:$0xff]
        %v5943 = vld [vmem:[%s392 + $0x171] sm:$0xff]
        %v5944 = vld [vmem:[%s309 + $0xd] sm:$0x1]
        %v5945 = vlaneseq
        %v5946 = vshrl.u32 %v5945, 7
        %v5947 = vsub.s32 0, %v5946
        %v5948 = vrot.slane %v5944, %v5947
        %v5949 = vmul.f32 %v5912, %v5948
        %v5950 = vmul.f32 %v5913, %v5948
        %v5951 = vmul.f32 %v5914, %v5948
        %v5952 = vmul.f32 %v5915, %v5948
        %v5953 = vmul.f32 %v5916, %v5948
        %v5954 = vmul.f32 %v5917, %v5948
        %v5955 = vmul.f32 %v5918, %v5948
        %v5956 = vmul.f32 %v5919, %v5948
        %v5957 = vmul.f32 %v5920, %v5948
        %v5958 = vmul.f32 %v5921, %v5948
        %v5959 = vmul.f32 %v5922, %v5948
        %v5960 = vmul.f32 %v5923, %v5948
        %v5961 = vmul.f32 %v5924, %v5948
        %v5962 = vmul.f32 %v5925, %v5948
        %v5963 = vmul.f32 %v5926, %v5948
        %v5964 = vmul.f32 %v5927, %v5948
        %v5965 = vmul.f32 %v5928, %v5948
        %v5966 = vmul.f32 %v5929, %v5948
        %v5967 = vmul.f32 %v5930, %v5948
        %v5968 = vmul.f32 %v5931, %v5948
        %v5969 = vmul.f32 %v5932, %v5948
        %v5970 = vmul.f32 %v5933, %v5948
        %v5971 = vmul.f32 %v5934, %v5948
        %v5972 = vmul.f32 %v5935, %v5948
        %v5973 = vmul.f32 %v5936, %v5948
        %v5974 = vmul.f32 %v5937, %v5948
        %v5975 = vmul.f32 %v5938, %v5948
        %v5976 = vmul.f32 %v5939, %v5948
        %v5977 = vmul.f32 %v5940, %v5948
        %v5978 = vmul.f32 %v5941, %v5948
        %v5979 = vmul.f32 %v5942, %v5948
        %v5980 = vmul.f32 %v5943, %v5948
        %v5981 = vadd.f32 %v5880, %v5949
        %v5982 = vadd.f32 %v5881, %v5950
        %v5983 = vadd.f32 %v5882, %v5951
        %v5984 = vadd.f32 %v5883, %v5952
        %v5985 = vadd.f32 %v5884, %v5953
        %v5986 = vadd.f32 %v5885, %v5954
        %v5987 = vadd.f32 %v5886, %v5955
        %v5988 = vadd.f32 %v5887, %v5956
        %v5989 = vadd.f32 %v5888, %v5957
        %v5990 = vadd.f32 %v5889, %v5958
        %v5991 = vadd.f32 %v5890, %v5959
        %v5992 = vadd.f32 %v5891, %v5960
        %v5993 = vadd.f32 %v5892, %v5961
        %v5994 = vadd.f32 %v5893, %v5962
        %v5995 = vadd.f32 %v5894, %v5963
        %v5996 = vadd.f32 %v5895, %v5964
        %v5997 = vadd.f32 %v5896, %v5965
        %v5998 = vadd.f32 %v5897, %v5966
        %v5999 = vadd.f32 %v5898, %v5967
        %v6000 = vadd.f32 %v5899, %v5968
        %v6001 = vadd.f32 %v5900, %v5969
        %v6002 = vadd.f32 %v5901, %v5970
        %v6003 = vadd.f32 %v5902, %v5971
        %v6004 = vadd.f32 %v5903, %v5972
        %v6005 = vadd.f32 %v5904, %v5973
        %v6006 = vadd.f32 %v5905, %v5974
        %v6007 = vadd.f32 %v5906, %v5975
        %v6008 = vadd.f32 %v5907, %v5976
        %v6009 = vadd.f32 %v5908, %v5977
        %v6010 = vadd.f32 %v5909, %v5978
        %v6011 = vadd.f32 %v5910, %v5979
        %v6012 = vadd.f32 %v5911, %v5980
        %v6013 = vld [vmem:[%s392 + $0x2] sm:$0xff]
        %v6014 = vld [vmem:[%s392 + $0xa] sm:$0xff]
        %v6015 = vld [vmem:[%s392 + $0x1a] sm:$0xff]
        %v6016 = vld [vmem:[%s392 + $0x22] sm:$0xff]
        %v6017 = vld [vmem:[%s392 + $0x32] sm:$0xff]
        %v6018 = vld [vmem:[%s392 + $0x3a] sm:$0xff]
        %v6019 = vld [vmem:[%s392 + $0x4a] sm:$0xff]
        %v6020 = vld [vmem:[%s392 + $0x52] sm:$0xff]
        %v6021 = vld [vmem:[%s392 + $0x62] sm:$0xff]
        %v6022 = vld [vmem:[%s392 + $0x6a] sm:$0xff]
        %v6023 = vld [vmem:[%s392 + $0x7a] sm:$0xff]
        %v6024 = vld [vmem:[%s392 + $0x82] sm:$0xff]
        %v6025 = vld [vmem:[%s392 + $0x92] sm:$0xff]
        %v6026 = vld [vmem:[%s392 + $0x9a] sm:$0xff]
        %v6027 = vld [vmem:[%s392 + $0xaa] sm:$0xff]
        %v6028 = vld [vmem:[%s392 + $0xb2] sm:$0xff]
        %v6029 = vld [vmem:[%s392 + $0xc2] sm:$0xff]
        %v6030 = vld [vmem:[%s392 + $0xca] sm:$0xff]
        %v6031 = vld [vmem:[%s392 + $0xda] sm:$0xff]
        %v6032 = vld [vmem:[%s392 + $0xe2] sm:$0xff]
        %v6033 = vld [vmem:[%s392 + $0xf2] sm:$0xff]
        %v6034 = vld [vmem:[%s392 + $0xfa] sm:$0xff]
        %v6035 = vld [vmem:[%s392 + $0x10a] sm:$0xff]
        %v6036 = vld [vmem:[%s392 + $0x112] sm:$0xff]
        %v6037 = vld [vmem:[%s392 + $0x122] sm:$0xff]
        %v6038 = vld [vmem:[%s392 + $0x12a] sm:$0xff]
        %v6039 = vld [vmem:[%s392 + $0x13a] sm:$0xff]
        %v6040 = vld [vmem:[%s392 + $0x142] sm:$0xff]
        %v6041 = vld [vmem:[%s392 + $0x152] sm:$0xff]
        %v6042 = vld [vmem:[%s392 + $0x15a] sm:$0xff]
        %v6043 = vld [vmem:[%s392 + $0x16a] sm:$0xff]
        %v6044 = vld [vmem:[%s392 + $0x172] sm:$0xff]
        %v6045 = vld [vmem:[%s309 + $0xe] sm:$0x1]
        %v6046 = vlaneseq
        %v6047 = vshrl.u32 %v6046, 7
        %v6048 = vsub.s32 0, %v6047
        %v6049 = vrot.slane %v6045, %v6048
        %v6050 = vmul.f32 %v6013, %v6049
        %v6051 = vmul.f32 %v6014, %v6049
        %v6052 = vmul.f32 %v6015, %v6049
        %v6053 = vmul.f32 %v6016, %v6049
        %v6054 = vmul.f32 %v6017, %v6049
        %v6055 = vmul.f32 %v6018, %v6049
        %v6056 = vmul.f32 %v6019, %v6049
        %v6057 = vmul.f32 %v6020, %v6049
        %v6058 = vmul.f32 %v6021, %v6049
        %v6059 = vmul.f32 %v6022, %v6049
        %v6060 = vmul.f32 %v6023, %v6049
        %v6061 = vmul.f32 %v6024, %v6049
        %v6062 = vmul.f32 %v6025, %v6049
        %v6063 = vmul.f32 %v6026, %v6049
        %v6064 = vmul.f32 %v6027, %v6049
        %v6065 = vmul.f32 %v6028, %v6049
        %v6066 = vmul.f32 %v6029, %v6049
        %v6067 = vmul.f32 %v6030, %v6049
        %v6068 = vmul.f32 %v6031, %v6049
        %v6069 = vmul.f32 %v6032, %v6049
        %v6070 = vmul.f32 %v6033, %v6049
        %v6071 = vmul.f32 %v6034, %v6049
        %v6072 = vmul.f32 %v6035, %v6049
        %v6073 = vmul.f32 %v6036, %v6049
        %v6074 = vmul.f32 %v6037, %v6049
        %v6075 = vmul.f32 %v6038, %v6049
        %v6076 = vmul.f32 %v6039, %v6049
        %v6077 = vmul.f32 %v6040, %v6049
        %v6078 = vmul.f32 %v6041, %v6049
        %v6079 = vmul.f32 %v6042, %v6049
        %v6080 = vmul.f32 %v6043, %v6049
        %v6081 = vmul.f32 %v6044, %v6049
        %v6082 = vadd.f32 %v5981, %v6050
        %v6083 = vadd.f32 %v5982, %v6051
        %v6084 = vadd.f32 %v5983, %v6052
        %v6085 = vadd.f32 %v5984, %v6053
        %v6086 = vadd.f32 %v5985, %v6054
        %v6087 = vadd.f32 %v5986, %v6055
        %v6088 = vadd.f32 %v5987, %v6056
        %v6089 = vadd.f32 %v5988, %v6057
        %v6090 = vadd.f32 %v5989, %v6058
        %v6091 = vadd.f32 %v5990, %v6059
        %v6092 = vadd.f32 %v5991, %v6060
        %v6093 = vadd.f32 %v5992, %v6061
        %v6094 = vadd.f32 %v5993, %v6062
        %v6095 = vadd.f32 %v5994, %v6063
        %v6096 = vadd.f32 %v5995, %v6064
        %v6097 = vadd.f32 %v5996, %v6065
        %v6098 = vadd.f32 %v5997, %v6066
        %v6099 = vadd.f32 %v5998, %v6067
        %v6100 = vadd.f32 %v5999, %v6068
        %v6101 = vadd.f32 %v6000, %v6069
        %v6102 = vadd.f32 %v6001, %v6070
        %v6103 = vadd.f32 %v6002, %v6071
        %v6104 = vadd.f32 %v6003, %v6072
        %v6105 = vadd.f32 %v6004, %v6073
        %v6106 = vadd.f32 %v6005, %v6074
        %v6107 = vadd.f32 %v6006, %v6075
        %v6108 = vadd.f32 %v6007, %v6076
        %v6109 = vadd.f32 %v6008, %v6077
        %v6110 = vadd.f32 %v6009, %v6078
        %v6111 = vadd.f32 %v6010, %v6079
        %v6112 = vadd.f32 %v6011, %v6080
        %v6113 = vadd.f32 %v6012, %v6081
        %v6114 = vld [vmem:[%s999] sm:$0xff]
        %v6115 = vld [vmem:[%s999 + $0x8] sm:$0xff]
        %v6116 = vld [vmem:[%s999 + $0x18] sm:$0xff]
        %v6117 = vld [vmem:[%s999 + $0x20] sm:$0xff]
        %v6118 = vld [vmem:[%s999 + $0x30] sm:$0xff]
        %v6119 = vld [vmem:[%s999 + $0x38] sm:$0xff]
        %v6120 = vld [vmem:[%s999 + $0x48] sm:$0xff]
        %v6121 = vld [vmem:[%s999 + $0x50] sm:$0xff]
        %v6122 = vld [vmem:[%s999 + $0x60] sm:$0xff]
        %v6123 = vld [vmem:[%s999 + $0x68] sm:$0xff]
        %v6124 = vld [vmem:[%s999 + $0x78] sm:$0xff]
        %v6125 = vld [vmem:[%s999 + $0x80] sm:$0xff]
        %v6126 = vld [vmem:[%s999 + $0x90] sm:$0xff]
        %v6127 = vld [vmem:[%s999 + $0x98] sm:$0xff]
        %v6128 = vld [vmem:[%s999 + $0xa8] sm:$0xff]
        %v6129 = vld [vmem:[%s999 + $0xb0] sm:$0xff]
        %v6130 = vld [vmem:[%s999 + $0xc0] sm:$0xff]
        %v6131 = vld [vmem:[%s999 + $0xc8] sm:$0xff]
        %v6132 = vld [vmem:[%s999 + $0xd8] sm:$0xff]
        %v6133 = vld [vmem:[%s999 + $0xe0] sm:$0xff]
        %v6134 = vld [vmem:[%s999 + $0xf0] sm:$0xff]
        %v6135 = vld [vmem:[%s999 + $0xf8] sm:$0xff]
        %v6136 = vld [vmem:[%s999 + $0x108] sm:$0xff]
        %v6137 = vld [vmem:[%s999 + $0x110] sm:$0xff]
        %v6138 = vld [vmem:[%s999 + $0x120] sm:$0xff]
        %v6139 = vld [vmem:[%s999 + $0x128] sm:$0xff]
        %v6140 = vld [vmem:[%s999 + $0x138] sm:$0xff]
        %v6141 = vld [vmem:[%s999 + $0x140] sm:$0xff]
        %v6142 = vld [vmem:[%s999 + $0x150] sm:$0xff]
        %v6143 = vld [vmem:[%s999 + $0x158] sm:$0xff]
        %v6144 = vld [vmem:[%s999 + $0x168] sm:$0xff]
        %v6145 = vld [vmem:[%s999 + $0x170] sm:$0xff]
        %v6146 = vld [vmem:[%s309 + $0xf] sm:$0x1]
        %v6147 = vlaneseq
        %v6148 = vshrl.u32 %v6147, 7
        %v6149 = vsub.s32 0, %v6148
        %v6150 = vrot.slane %v6146, %v6149
        %v6151 = vmul.f32 %v6114, %v6150
        %v6152 = vmul.f32 %v6115, %v6150
        %v6153 = vmul.f32 %v6116, %v6150
        %v6154 = vmul.f32 %v6117, %v6150
        %v6155 = vmul.f32 %v6118, %v6150
        %v6156 = vmul.f32 %v6119, %v6150
        %v6157 = vmul.f32 %v6120, %v6150
        %v6158 = vmul.f32 %v6121, %v6150
        %v6159 = vmul.f32 %v6122, %v6150
        %v6160 = vmul.f32 %v6123, %v6150
        %v6161 = vmul.f32 %v6124, %v6150
        %v6162 = vmul.f32 %v6125, %v6150
        %v6163 = vmul.f32 %v6126, %v6150
        %v6164 = vmul.f32 %v6127, %v6150
        %v6165 = vmul.f32 %v6128, %v6150
        %v6166 = vmul.f32 %v6129, %v6150
        %v6167 = vmul.f32 %v6130, %v6150
        %v6168 = vmul.f32 %v6131, %v6150
        %v6169 = vmul.f32 %v6132, %v6150
        %v6170 = vmul.f32 %v6133, %v6150
        %v6171 = vmul.f32 %v6134, %v6150
        %v6172 = vmul.f32 %v6135, %v6150
        %v6173 = vmul.f32 %v6136, %v6150
        %v6174 = vmul.f32 %v6137, %v6150
        %v6175 = vmul.f32 %v6138, %v6150
        %v6176 = vmul.f32 %v6139, %v6150
        %v6177 = vmul.f32 %v6140, %v6150
        %v6178 = vmul.f32 %v6141, %v6150
        %v6179 = vmul.f32 %v6142, %v6150
        %v6180 = vmul.f32 %v6143, %v6150
        %v6181 = vmul.f32 %v6144, %v6150
        %v6182 = vmul.f32 %v6145, %v6150
        %v6183 = vadd.f32 %v6082, %v6151
        %v6184 = vadd.f32 %v6083, %v6152
        %v6185 = vadd.f32 %v6084, %v6153
        %v6186 = vadd.f32 %v6085, %v6154
        %v6187 = vadd.f32 %v6086, %v6155
        %v6188 = vadd.f32 %v6087, %v6156
        %v6189 = vadd.f32 %v6088, %v6157
        %v6190 = vadd.f32 %v6089, %v6158
        %v6191 = vadd.f32 %v6090, %v6159
        %v6192 = vadd.f32 %v6091, %v6160
        %v6193 = vadd.f32 %v6092, %v6161
        %v6194 = vadd.f32 %v6093, %v6162
        %v6195 = vadd.f32 %v6094, %v6163
        %v6196 = vadd.f32 %v6095, %v6164
        %v6197 = vadd.f32 %v6096, %v6165
        %v6198 = vadd.f32 %v6097, %v6166
        %v6199 = vadd.f32 %v6098, %v6167
        %v6200 = vadd.f32 %v6099, %v6168
        %v6201 = vadd.f32 %v6100, %v6169
        %v6202 = vadd.f32 %v6101, %v6170
        %v6203 = vadd.f32 %v6102, %v6171
        %v6204 = vadd.f32 %v6103, %v6172
        %v6205 = vadd.f32 %v6104, %v6173
        %v6206 = vadd.f32 %v6105, %v6174
        %v6207 = vadd.f32 %v6106, %v6175
        %v6208 = vadd.f32 %v6107, %v6176
        %v6209 = vadd.f32 %v6108, %v6177
        %v6210 = vadd.f32 %v6109, %v6178
        %v6211 = vadd.f32 %v6110, %v6179
        %v6212 = vadd.f32 %v6111, %v6180
        %v6213 = vadd.f32 %v6112, %v6181
        %v6214 = vadd.f32 %v6113, %v6182
        %v6215 = vld [vmem:[%s999 + $0x1] sm:$0xff]
        %v6216 = vld [vmem:[%s999 + $0x9] sm:$0xff]
        %v6217 = vld [vmem:[%s999 + $0x19] sm:$0xff]
        %v6218 = vld [vmem:[%s999 + $0x21] sm:$0xff]
        %v6219 = vld [vmem:[%s999 + $0x31] sm:$0xff]
        %v6220 = vld [vmem:[%s999 + $0x39] sm:$0xff]
        %v6221 = vld [vmem:[%s999 + $0x49] sm:$0xff]
        %v6222 = vld [vmem:[%s999 + $0x51] sm:$0xff]
        %v6223 = vld [vmem:[%s999 + $0x61] sm:$0xff]
        %v6224 = vld [vmem:[%s999 + $0x69] sm:$0xff]
        %v6225 = vld [vmem:[%s999 + $0x79] sm:$0xff]
        %v6226 = vld [vmem:[%s999 + $0x81] sm:$0xff]
        %v6227 = vld [vmem:[%s999 + $0x91] sm:$0xff]
        %v6228 = vld [vmem:[%s999 + $0x99] sm:$0xff]
        %v6229 = vld [vmem:[%s999 + $0xa9] sm:$0xff]
        %v6230 = vld [vmem:[%s999 + $0xb1] sm:$0xff]
        %v6231 = vld [vmem:[%s999 + $0xc1] sm:$0xff]
        %v6232 = vld [vmem:[%s999 + $0xc9] sm:$0xff]
        %v6233 = vld [vmem:[%s999 + $0xd9] sm:$0xff]
        %v6234 = vld [vmem:[%s999 + $0xe1] sm:$0xff]
        %v6235 = vld [vmem:[%s999 + $0xf1] sm:$0xff]
        %v6236 = vld [vmem:[%s999 + $0xf9] sm:$0xff]
        %v6237 = vld [vmem:[%s999 + $0x109] sm:$0xff]
        %v6238 = vld [vmem:[%s999 + $0x111] sm:$0xff]
        %v6239 = vld [vmem:[%s999 + $0x121] sm:$0xff]
        %v6240 = vld [vmem:[%s999 + $0x129] sm:$0xff]
        %v6241 = vld [vmem:[%s999 + $0x139] sm:$0xff]
        %v6242 = vld [vmem:[%s999 + $0x141] sm:$0xff]
        %v6243 = vld [vmem:[%s999 + $0x151] sm:$0xff]
        %v6244 = vld [vmem:[%s999 + $0x159] sm:$0xff]
        %v6245 = vld [vmem:[%s999 + $0x169] sm:$0xff]
        %v6246 = vld [vmem:[%s999 + $0x171] sm:$0xff]
        %v6247 = vld [vmem:[%s309 + $0x10] sm:$0x1]
        %v6248 = vlaneseq
        %v6249 = vshrl.u32 %v6248, 7
        %v6250 = vsub.s32 0, %v6249
        %v6251 = vrot.slane %v6247, %v6250
        %v6252 = vmul.f32 %v6215, %v6251
        %v6253 = vmul.f32 %v6216, %v6251
        %v6254 = vmul.f32 %v6217, %v6251
        %v6255 = vmul.f32 %v6218, %v6251
        %v6256 = vmul.f32 %v6219, %v6251
        %v6257 = vmul.f32 %v6220, %v6251
        %v6258 = vmul.f32 %v6221, %v6251
        %v6259 = vmul.f32 %v6222, %v6251
        %v6260 = vmul.f32 %v6223, %v6251
        %v6261 = vmul.f32 %v6224, %v6251
        %v6262 = vmul.f32 %v6225, %v6251
        %v6263 = vmul.f32 %v6226, %v6251
        %v6264 = vmul.f32 %v6227, %v6251
        %v6265 = vmul.f32 %v6228, %v6251
        %v6266 = vmul.f32 %v6229, %v6251
        %v6267 = vmul.f32 %v6230, %v6251
        %v6268 = vmul.f32 %v6231, %v6251
        %v6269 = vmul.f32 %v6232, %v6251
        %v6270 = vmul.f32 %v6233, %v6251
        %v6271 = vmul.f32 %v6234, %v6251
        %v6272 = vmul.f32 %v6235, %v6251
        %v6273 = vmul.f32 %v6236, %v6251
        %v6274 = vmul.f32 %v6237, %v6251
        %v6275 = vmul.f32 %v6238, %v6251
        %v6276 = vmul.f32 %v6239, %v6251
        %v6277 = vmul.f32 %v6240, %v6251
        %v6278 = vmul.f32 %v6241, %v6251
        %v6279 = vmul.f32 %v6242, %v6251
        %v6280 = vmul.f32 %v6243, %v6251
        %v6281 = vmul.f32 %v6244, %v6251
        %v6282 = vmul.f32 %v6245, %v6251
        %v6283 = vmul.f32 %v6246, %v6251
        %v6284 = vadd.f32 %v6183, %v6252
        %v6285 = vadd.f32 %v6184, %v6253
        %v6286 = vadd.f32 %v6185, %v6254
        %v6287 = vadd.f32 %v6186, %v6255
        %v6288 = vadd.f32 %v6187, %v6256
        %v6289 = vadd.f32 %v6188, %v6257
        %v6290 = vadd.f32 %v6189, %v6258
        %v6291 = vadd.f32 %v6190, %v6259
        %v6292 = vadd.f32 %v6191, %v6260
        %v6293 = vadd.f32 %v6192, %v6261
        %v6294 = vadd.f32 %v6193, %v6262
        %v6295 = vadd.f32 %v6194, %v6263
        %v6296 = vadd.f32 %v6195, %v6264
        %v6297 = vadd.f32 %v6196, %v6265
        %v6298 = vadd.f32 %v6197, %v6266
        %v6299 = vadd.f32 %v6198, %v6267
        %v6300 = vadd.f32 %v6199, %v6268
        %v6301 = vadd.f32 %v6200, %v6269
        %v6302 = vadd.f32 %v6201, %v6270
        %v6303 = vadd.f32 %v6202, %v6271
        %v6304 = vadd.f32 %v6203, %v6272
        %v6305 = vadd.f32 %v6204, %v6273
        %v6306 = vadd.f32 %v6205, %v6274
        %v6307 = vadd.f32 %v6206, %v6275
        %v6308 = vadd.f32 %v6207, %v6276
        %v6309 = vadd.f32 %v6208, %v6277
        %v6310 = vadd.f32 %v6209, %v6278
        %v6311 = vadd.f32 %v6210, %v6279
        %v6312 = vadd.f32 %v6211, %v6280
        %v6313 = vadd.f32 %v6212, %v6281
        %v6314 = vadd.f32 %v6213, %v6282
        %v6315 = vadd.f32 %v6214, %v6283
        %v6316 = vld [vmem:[%s999 + $0x2] sm:$0xff]
        %v6317 = vld [vmem:[%s999 + $0xa] sm:$0xff]
        %v6318 = vld [vmem:[%s999 + $0x1a] sm:$0xff]
        %v6319 = vld [vmem:[%s999 + $0x22] sm:$0xff]
        %v6320 = vld [vmem:[%s999 + $0x32] sm:$0xff]
        %v6321 = vld [vmem:[%s999 + $0x3a] sm:$0xff]
        %v6322 = vld [vmem:[%s999 + $0x4a] sm:$0xff]
        %v6323 = vld [vmem:[%s999 + $0x52] sm:$0xff]
        %v6324 = vld [vmem:[%s999 + $0x62] sm:$0xff]
        %v6325 = vld [vmem:[%s999 + $0x6a] sm:$0xff]
        %v6326 = vld [vmem:[%s999 + $0x7a] sm:$0xff]
        %v6327 = vld [vmem:[%s999 + $0x82] sm:$0xff]
        %v6328 = vld [vmem:[%s999 + $0x92] sm:$0xff]
        %v6329 = vld [vmem:[%s999 + $0x9a] sm:$0xff]
        %v6330 = vld [vmem:[%s999 + $0xaa] sm:$0xff]
        %v6331 = vld [vmem:[%s999 + $0xb2] sm:$0xff]
        %v6332 = vld [vmem:[%s999 + $0xc2] sm:$0xff]
        %v6333 = vld [vmem:[%s999 + $0xca] sm:$0xff]
        %v6334 = vld [vmem:[%s999 + $0xda] sm:$0xff]
        %v6335 = vld [vmem:[%s999 + $0xe2] sm:$0xff]
        %v6336 = vld [vmem:[%s999 + $0xf2] sm:$0xff]
        %v6337 = vld [vmem:[%s999 + $0xfa] sm:$0xff]
        %v6338 = vld [vmem:[%s999 + $0x10a] sm:$0xff]
        %v6339 = vld [vmem:[%s999 + $0x112] sm:$0xff]
        %v6340 = vld [vmem:[%s999 + $0x122] sm:$0xff]
        %v6341 = vld [vmem:[%s999 + $0x12a] sm:$0xff]
        %v6342 = vld [vmem:[%s999 + $0x13a] sm:$0xff]
        %v6343 = vld [vmem:[%s999 + $0x142] sm:$0xff]
        %v6344 = vld [vmem:[%s999 + $0x152] sm:$0xff]
        %v6345 = vld [vmem:[%s999 + $0x15a] sm:$0xff]
        %v6346 = vld [vmem:[%s999 + $0x16a] sm:$0xff]
        %v6347 = vld [vmem:[%s999 + $0x172] sm:$0xff]
        %v6348 = vld [vmem:[%s309 + $0x11] sm:$0x1]
        %v6349 = vlaneseq
        %v6350 = vshrl.u32 %v6349, 7
        %v6351 = vsub.s32 0, %v6350
        %v6352 = vrot.slane %v6348, %v6351
        %v6353 = vmul.f32 %v6316, %v6352
        %v6354 = vmul.f32 %v6317, %v6352
        %v6355 = vmul.f32 %v6318, %v6352
        %v6356 = vmul.f32 %v6319, %v6352
        %v6357 = vmul.f32 %v6320, %v6352
        %v6358 = vmul.f32 %v6321, %v6352
        %v6359 = vmul.f32 %v6322, %v6352
        %v6360 = vmul.f32 %v6323, %v6352
        %v6361 = vmul.f32 %v6324, %v6352
        %v6362 = vmul.f32 %v6325, %v6352
        %v6363 = vmul.f32 %v6326, %v6352
        %v6364 = vmul.f32 %v6327, %v6352
        %v6365 = vmul.f32 %v6328, %v6352
        %v6366 = vmul.f32 %v6329, %v6352
        %v6367 = vmul.f32 %v6330, %v6352
        %v6368 = vmul.f32 %v6331, %v6352
        %v6369 = vmul.f32 %v6332, %v6352
        %v6370 = vmul.f32 %v6333, %v6352
        %v6371 = vmul.f32 %v6334, %v6352
        %v6372 = vmul.f32 %v6335, %v6352
        %v6373 = vmul.f32 %v6336, %v6352
        %v6374 = vmul.f32 %v6337, %v6352
        %v6375 = vmul.f32 %v6338, %v6352
        %v6376 = vmul.f32 %v6339, %v6352
        %v6377 = vmul.f32 %v6340, %v6352
        %v6378 = vmul.f32 %v6341, %v6352
        %v6379 = vmul.f32 %v6342, %v6352
        %v6380 = vmul.f32 %v6343, %v6352
        %v6381 = vmul.f32 %v6344, %v6352
        %v6382 = vmul.f32 %v6345, %v6352
        %v6383 = vmul.f32 %v6346, %v6352
        %v6384 = vmul.f32 %v6347, %v6352
        %v6385 = vadd.f32 %v6284, %v6353
        %v6386 = vadd.f32 %v6285, %v6354
        %v6387 = vadd.f32 %v6286, %v6355
        %v6388 = vadd.f32 %v6287, %v6356
        %v6389 = vadd.f32 %v6288, %v6357
        %v6390 = vadd.f32 %v6289, %v6358
        %v6391 = vadd.f32 %v6290, %v6359
        %v6392 = vadd.f32 %v6291, %v6360
        %v6393 = vadd.f32 %v6292, %v6361
        %v6394 = vadd.f32 %v6293, %v6362
        %v6395 = vadd.f32 %v6294, %v6363
        %v6396 = vadd.f32 %v6295, %v6364
        %v6397 = vadd.f32 %v6296, %v6365
        %v6398 = vadd.f32 %v6297, %v6366
        %v6399 = vadd.f32 %v6298, %v6367
        %v6400 = vadd.f32 %v6299, %v6368
        %v6401 = vadd.f32 %v6300, %v6369
        %v6402 = vadd.f32 %v6301, %v6370
        %v6403 = vadd.f32 %v6302, %v6371
        %v6404 = vadd.f32 %v6303, %v6372
        %v6405 = vadd.f32 %v6304, %v6373
        %v6406 = vadd.f32 %v6305, %v6374
        %v6407 = vadd.f32 %v6306, %v6375
        %v6408 = vadd.f32 %v6307, %v6376
        %v6409 = vadd.f32 %v6308, %v6377
        %v6410 = vadd.f32 %v6309, %v6378
        %v6411 = vadd.f32 %v6310, %v6379
        %v6412 = vadd.f32 %v6311, %v6380
        %v6413 = vadd.f32 %v6312, %v6381
        %v6414 = vadd.f32 %v6313, %v6382
        %v6415 = vadd.f32 %v6314, %v6383
        %v6416 = vadd.f32 %v6315, %v6384
        %vm6417 = vcmp.gt.f32.partialorder %v6385, 0.0
        %vm6418 = vcmp.gt.f32.partialorder %v6386, 0.0
        %vm6419 = vcmp.gt.f32.partialorder %v6387, 0.0
        %vm6420 = vcmp.gt.f32.partialorder %v6388, 0.0
        %vm6421 = vcmp.gt.f32.partialorder %v6389, 0.0
        %vm6422 = vcmp.gt.f32.partialorder %v6390, 0.0
        %vm6423 = vcmp.gt.f32.partialorder %v6391, 0.0
        %vm6424 = vcmp.gt.f32.partialorder %v6392, 0.0
        %vm6425 = vcmp.gt.f32.partialorder %v6393, 0.0
        %vm6426 = vcmp.gt.f32.partialorder %v6394, 0.0
        %vm6427 = vcmp.gt.f32.partialorder %v6395, 0.0
        %vm6428 = vcmp.gt.f32.partialorder %v6396, 0.0
        %vm6429 = vcmp.gt.f32.partialorder %v6397, 0.0
        %vm6430 = vcmp.gt.f32.partialorder %v6398, 0.0
        %vm6431 = vcmp.gt.f32.partialorder %v6399, 0.0
        %vm6432 = vcmp.gt.f32.partialorder %v6400, 0.0
        %vm6433 = vcmp.gt.f32.partialorder %v6401, 0.0
        %vm6434 = vcmp.gt.f32.partialorder %v6402, 0.0
        %vm6435 = vcmp.gt.f32.partialorder %v6403, 0.0
        %vm6436 = vcmp.gt.f32.partialorder %v6404, 0.0
        %vm6437 = vcmp.gt.f32.partialorder %v6405, 0.0
        %vm6438 = vcmp.gt.f32.partialorder %v6406, 0.0
        %vm6439 = vcmp.gt.f32.partialorder %v6407, 0.0
        %vm6440 = vcmp.gt.f32.partialorder %v6408, 0.0
        %vm6441 = vcmp.gt.f32.partialorder %v6409, 0.0
        %vm6442 = vcmp.gt.f32.partialorder %v6410, 0.0
        %vm6443 = vcmp.gt.f32.partialorder %v6411, 0.0
        %vm6444 = vcmp.gt.f32.partialorder %v6412, 0.0
        %vm6445 = vcmp.gt.f32.partialorder %v6413, 0.0
        %vm6446 = vcmp.gt.f32.partialorder %v6414, 0.0
        %vm6447 = vcmp.gt.f32.partialorder %v6415, 0.0
        %vm6448 = vcmp.gt.f32.partialorder %v6416, 0.0
        %v6449 = vmul.f32 %v6385, 0.1
        %v6450 = vmul.f32 %v6386, 0.1
        %v6451 = vmul.f32 %v6387, 0.1
        %v6452 = vmul.f32 %v6388, 0.1
        %v6453 = vmul.f32 %v6389, 0.1
        %v6454 = vmul.f32 %v6390, 0.1
        %v6455 = vmul.f32 %v6391, 0.1
        %v6456 = vmul.f32 %v6392, 0.1
        %v6457 = vmul.f32 %v6393, 0.1
        %v6458 = vmul.f32 %v6394, 0.1
        %v6459 = vmul.f32 %v6395, 0.1
        %v6460 = vmul.f32 %v6396, 0.1
        %v6461 = vmul.f32 %v6397, 0.1
        %v6462 = vmul.f32 %v6398, 0.1
        %v6463 = vmul.f32 %v6399, 0.1
        %v6464 = vmul.f32 %v6400, 0.1
        %v6465 = vmul.f32 %v6401, 0.1
        %v6466 = vmul.f32 %v6402, 0.1
        %v6467 = vmul.f32 %v6403, 0.1
        %v6468 = vmul.f32 %v6404, 0.1
        %v6469 = vmul.f32 %v6405, 0.1
        %v6470 = vmul.f32 %v6406, 0.1
        %v6471 = vmul.f32 %v6407, 0.1
        %v6472 = vmul.f32 %v6408, 0.1
        %v6473 = vmul.f32 %v6409, 0.1
        %v6474 = vmul.f32 %v6410, 0.1
        %v6475 = vmul.f32 %v6411, 0.1
        %v6476 = vmul.f32 %v6412, 0.1
        %v6477 = vmul.f32 %v6413, 0.1
        %v6478 = vmul.f32 %v6414, 0.1
        %v6479 = vmul.f32 %v6415, 0.1
        %v6480 = vmul.f32 %v6416, 0.1
        %v6481 = vsel %vm6417, %v6385, %v6449
        %v6482 = vsel %vm6418, %v6386, %v6450
        %v6483 = vsel %vm6419, %v6387, %v6451
        %v6484 = vsel %vm6420, %v6388, %v6452
        %v6485 = vsel %vm6421, %v6389, %v6453
        %v6486 = vsel %vm6422, %v6390, %v6454
        %v6487 = vsel %vm6423, %v6391, %v6455
        %v6488 = vsel %vm6424, %v6392, %v6456
        %v6489 = vsel %vm6425, %v6393, %v6457
        %v6490 = vsel %vm6426, %v6394, %v6458
        %v6491 = vsel %vm6427, %v6395, %v6459
        %v6492 = vsel %vm6428, %v6396, %v6460
        %v6493 = vsel %vm6429, %v6397, %v6461
        %v6494 = vsel %vm6430, %v6398, %v6462
        %v6495 = vsel %vm6431, %v6399, %v6463
        %v6496 = vsel %vm6432, %v6400, %v6464
        %v6497 = vsel %vm6433, %v6401, %v6465
        %v6498 = vsel %vm6434, %v6402, %v6466
        %v6499 = vsel %vm6435, %v6403, %v6467
        %v6500 = vsel %vm6436, %v6404, %v6468
        %v6501 = vsel %vm6437, %v6405, %v6469
        %v6502 = vsel %vm6438, %v6406, %v6470
        %v6503 = vsel %vm6439, %v6407, %v6471
        %v6504 = vsel %vm6440, %v6408, %v6472
        %v6505 = vsel %vm6441, %v6409, %v6473
        %v6506 = vsel %vm6442, %v6410, %v6474
        %v6507 = vsel %vm6443, %v6411, %v6475
        %v6508 = vsel %vm6444, %v6412, %v6476
        %v6509 = vsel %vm6445, %v6413, %v6477
        %v6510 = vsel %vm6446, %v6414, %v6478
        %v6511 = vsel %vm6447, %v6415, %v6479
        %v6512 = vsel %vm6448, %v6416, %v6480
        %s6513 = scalar_lea.vmem %s3, 32
        %v6514 = vld [vmem:[%s6513] sm:$0xff]
        %v6515 = vld [vmem:[%s6513 + $0x8] sm:$0xff]
        %v6516 = vld [vmem:[%s6513 + $0x10] sm:$0xff]
        %v6517 = vld [vmem:[%s6513 + $0x18] sm:$0xff]
        %s6518 = scalar_lea.vmem %s4, 1
        %v6519 = vld [vmem:[%s6518] sm:$0x1]
        %v6521 = vlaneseq
        %v6522 = vshrl.u32 %v6521, 7
        %v6523 = vsub.s32 0, %v6522
        %v6524 = vrot.slane %v6519, %v6523
        %v6527 = vsel %vm314, %v6481, 0
        %v6530 = vsel %vm314, %v6482, 0
        %v6533 = vsel %vm314, %v6483, 0
        %v6536 = vsel %vm314, %v6484, 0
        %v6539 = vsel %vm314, %v6485, 0
        %v6542 = vsel %vm314, %v6486, 0
        %v6545 = vsel %vm314, %v6487, 0
        %v6548 = vsel %vm314, %v6488, 0
        %v6551 = vsel %vm314, %v6489, 0
        %v6554 = vsel %vm314, %v6490, 0
        %v6557 = vsel %vm314, %v6491, 0
        %v6560 = vsel %vm314, %v6492, 0
        %v6563 = vsel %vm314, %v6493, 0
        %v6566 = vsel %vm314, %v6494, 0
        %v6569 = vsel %vm314, %v6495, 0
        %v6572 = vsel %vm314, %v6496, 0
        %v6575 = vsel %vm314, %v6497, 0
        %v6578 = vsel %vm314, %v6498, 0
        %v6581 = vsel %vm314, %v6499, 0
        %v6584 = vsel %vm314, %v6500, 0
        %v6587 = vsel %vm314, %v6501, 0
        %v6590 = vsel %vm314, %v6502, 0
        %v6593 = vsel %vm314, %v6503, 0
        %v6596 = vsel %vm314, %v6504, 0
        %v6599 = vsel %vm314, %v6505, 0
        %v6602 = vsel %vm314, %v6506, 0
        %v6605 = vsel %vm314, %v6507, 0
        %v6608 = vsel %vm314, %v6508, 0
        %v6611 = vsel %vm314, %v6509, 0
        %v6614 = vsel %vm314, %v6510, 0
        %v6617 = vsel %vm314, %v6511, 0
        %v6620 = vsel %vm314, %v6512, 0
        %6622 = vmatprep.subr.mxu0 0.0
        %6623 = vmatpush1.msra.mxu0 0.0
        %6624 = vmatprep.subr.mxu0 0.0
        %6625 = vmatpush1.msra.mxu0 0.0
        %6626 = vmatprep.subr.mxu0 0.0
        %6627 = vmatpush1.msra.mxu0 0.0
        %6628 = vmatprep.subr.mxu0 0.0
        %6629 = vmatpush1.msra.mxu0 0.0
        %6630 = vmatprep.subr.mxu0 0.0
        %6631 = vmatpush1.msra.mxu0 0.0
        %6632 = vmatprep.subr.mxu0 0.0
        %6633 = vmatpush1.msra.mxu0 0.0
        %6634 = vmatprep.subr.mxu0 0.0
        %6635 = vmatpush1.msra.mxu0 0.0
        %6636 = vmatprep.subr.mxu0 0.0
        %6637 = vmatpush1.msra.mxu0 0.0
        %6638 = vmatprep.subr.mxu0 0.0
        %6639 = vmatpush1.msra.mxu0 0.0
        %6640 = vmatprep.subr.mxu0 0.0
        %6641 = vmatpush1.msra.mxu0 0.0
        %6642 = vmatprep.subr.mxu0 0.0
        %6643 = vmatpush1.msra.mxu0 0.0
        %6644 = vmatprep.subr.mxu0 0.0
        %6645 = vmatpush1.msra.mxu0 0.0
        %6646 = vmatprep.subr.mxu0 0.0
        %6647 = vmatpush1.msra.mxu0 %v6517
        %6648 = vmatprep.subr.mxu0 0.0
        %6649 = vmatpush1.msra.mxu0 %v6516
        %6650 = vmatprep.subr.mxu0 0.0
        %6651 = vmatpush1.msra.mxu0 %v6515
        %6652 = vmatprep.subr.mxu0 0.0
        %6653 = vmatpush1.msra.mxu0 %v6514
        %6654 = vmatprep.subr.mxu0 0.0
        %6655 = vmatpush2.msra.mxu0 0.0
        %6656 = vmatprep.subr.mxu0 0.0
        %6657 = vmatpush2.msra.mxu0 0.0
        %6658 = vmatprep.subr.mxu0 0.0
        %6659 = vmatpush2.msra.mxu0 0.0
        %6660 = vmatprep.subr.mxu0 0.0
        %6661 = vmatpush2.msra.mxu0 0.0
        %6662 = vmatprep.subr.mxu0 0.0
        %6663 = vmatpush2.msra.mxu0 0.0
        %6664 = vmatprep.subr.mxu0 0.0
        %6665 = vmatpush2.msra.mxu0 0.0
        %6666 = vmatprep.subr.mxu0 0.0
        %6667 = vmatpush2.msra.mxu0 0.0
        %6668 = vmatprep.subr.mxu0 0.0
        %6669 = vmatpush2.msra.mxu0 0.0
        %6670 = vmatprep.subr.mxu0 0.0
        %6671 = vmatpush2.msra.mxu0 0.0
        %6672 = vmatprep.subr.mxu0 0.0
        %6673 = vmatpush2.msra.mxu0 0.0
        %6674 = vmatprep.subr.mxu0 0.0
        %6675 = vmatpush2.msra.mxu0 0.0
        %6676 = vmatprep.subr.mxu0 0.0
        %6677 = vmatpush2.msra.mxu0 0.0
        %6678 = vmatprep.subr.mxu0 0.0
        %6679 = vmatpush2.msra.mxu0 0.0
        %6680 = vmatprep.subr.mxu0 0.0
        %6681 = vmatpush2.msra.mxu0 0.0
        %6682 = vmatprep.subr.mxu0 0.0
        %6683 = vmatpush2.msra.mxu0 0.0
        %6684 = vmatprep.subr.mxu0 0.0
        %6685 = vmatpush2.msra.mxu0 0.0
        %6686 = vmatprep.mubr.f32.mxu0 0.0
        %6687 = vmatmul.mubr.f32.gmra.mxu0 %v6527
        %v6688 = vpop.f32.mrf.mxu0
        %v6689 = vadd.f32 %v6524, %v6688
        %v6690 = vpop.f32.mrf.mxu0
        %6691 = vmatprep.mubr.f32.mxu0 0.0
        %6692 = vmatmul.mubr.f32.gmra.mxu0 %v6530
        %v6693 = vpop.f32.mrf.mxu0
        %v6694 = vadd.f32 %v6524, %v6693
        %v6695 = vpop.f32.mrf.mxu0
        %6696 = vmatprep.mubr.f32.mxu0 0.0
        %6697 = vmatmul.mubr.f32.gmra.mxu0 %v6533
        %v6698 = vpop.f32.mrf.mxu0
        %v6699 = vadd.f32 %v6524, %v6698
        %v6700 = vpop.f32.mrf.mxu0
        %6701 = vmatprep.mubr.f32.mxu0 0.0
        %6702 = vmatmul.mubr.f32.gmra.mxu0 %v6536
        %v6703 = vpop.f32.mrf.mxu0
        %v6704 = vadd.f32 %v6524, %v6703
        %v6705 = vpop.f32.mrf.mxu0
        %6706 = vmatprep.mubr.f32.mxu0 0.0
        %6707 = vmatmul.mubr.f32.gmra.mxu0 %v6539
        %v6708 = vpop.f32.mrf.mxu0
        %v6709 = vadd.f32 %v6524, %v6708
        %v6710 = vpop.f32.mrf.mxu0
        %6711 = vmatprep.mubr.f32.mxu0 0.0
        %6712 = vmatmul.mubr.f32.gmra.mxu0 %v6542
        %v6713 = vpop.f32.mrf.mxu0
        %v6714 = vadd.f32 %v6524, %v6713
        %v6715 = vpop.f32.mrf.mxu0
        %6716 = vmatprep.mubr.f32.mxu0 0.0
        %6717 = vmatmul.mubr.f32.gmra.mxu0 %v6545
        %v6718 = vpop.f32.mrf.mxu0
        %v6719 = vadd.f32 %v6524, %v6718
        %v6720 = vpop.f32.mrf.mxu0
        %6721 = vmatprep.mubr.f32.mxu0 0.0
        %6722 = vmatmul.mubr.f32.gmra.mxu0 %v6548
        %v6723 = vpop.f32.mrf.mxu0
        %v6724 = vadd.f32 %v6524, %v6723
        %v6725 = vpop.f32.mrf.mxu0
        %6726 = vmatprep.mubr.f32.mxu0 0.0
        %6727 = vmatmul.mubr.f32.gmra.mxu0 %v6551
        %v6728 = vpop.f32.mrf.mxu0
        %v6729 = vadd.f32 %v6524, %v6728
        %v6730 = vpop.f32.mrf.mxu0
        %6731 = vmatprep.mubr.f32.mxu0 0.0
        %6732 = vmatmul.mubr.f32.gmra.mxu0 %v6554
        %v6733 = vpop.f32.mrf.mxu0
        %v6734 = vadd.f32 %v6524, %v6733
        %v6735 = vpop.f32.mrf.mxu0
        %6736 = vmatprep.mubr.f32.mxu0 0.0
        %6737 = vmatmul.mubr.f32.gmra.mxu0 %v6557
        %v6738 = vpop.f32.mrf.mxu0
        %v6739 = vadd.f32 %v6524, %v6738
        %v6740 = vpop.f32.mrf.mxu0
        %6741 = vmatprep.mubr.f32.mxu0 0.0
        %6742 = vmatmul.mubr.f32.gmra.mxu0 %v6560
        %v6743 = vpop.f32.mrf.mxu0
        %v6744 = vadd.f32 %v6524, %v6743
        %v6745 = vpop.f32.mrf.mxu0
        %6746 = vmatprep.mubr.f32.mxu0 0.0
        %6747 = vmatmul.mubr.f32.gmra.mxu0 %v6563
        %v6748 = vpop.f32.mrf.mxu0
        %v6749 = vadd.f32 %v6524, %v6748
        %v6750 = vpop.f32.mrf.mxu0
        %6751 = vmatprep.mubr.f32.mxu0 0.0
        %6752 = vmatmul.mubr.f32.gmra.mxu0 %v6566
        %v6753 = vpop.f32.mrf.mxu0
        %v6754 = vadd.f32 %v6524, %v6753
        %v6755 = vpop.f32.mrf.mxu0
        %6756 = vmatprep.mubr.f32.mxu0 0.0
        %6757 = vmatmul.mubr.f32.gmra.mxu0 %v6569
        %v6758 = vpop.f32.mrf.mxu0
        %v6759 = vadd.f32 %v6524, %v6758
        %v6760 = vpop.f32.mrf.mxu0
        %6761 = vmatprep.mubr.f32.mxu0 0.0
        %6762 = vmatmul.mubr.f32.gmra.mxu0 %v6572
        %v6763 = vpop.f32.mrf.mxu0
        %v6764 = vadd.f32 %v6524, %v6763
        %v6765 = vpop.f32.mrf.mxu0
        %6766 = vmatprep.mubr.f32.mxu0 0.0
        %6767 = vmatmul.mubr.f32.gmra.mxu0 %v6575
        %v6768 = vpop.f32.mrf.mxu0
        %v6769 = vadd.f32 %v6524, %v6768
        %v6770 = vpop.f32.mrf.mxu0
        %6771 = vmatprep.mubr.f32.mxu0 0.0
        %6772 = vmatmul.mubr.f32.gmra.mxu0 %v6578
        %v6773 = vpop.f32.mrf.mxu0
        %v6774 = vadd.f32 %v6524, %v6773
        %v6775 = vpop.f32.mrf.mxu0
        %6776 = vmatprep.mubr.f32.mxu0 0.0
        %6777 = vmatmul.mubr.f32.gmra.mxu0 %v6581
        %v6778 = vpop.f32.mrf.mxu0
        %v6779 = vadd.f32 %v6524, %v6778
        %v6780 = vpop.f32.mrf.mxu0
        %6781 = vmatprep.mubr.f32.mxu0 0.0
        %6782 = vmatmul.mubr.f32.gmra.mxu0 %v6584
        %v6783 = vpop.f32.mrf.mxu0
        %v6784 = vadd.f32 %v6524, %v6783
        %v6785 = vpop.f32.mrf.mxu0
        %6786 = vmatprep.mubr.f32.mxu0 0.0
        %6787 = vmatmul.mubr.f32.gmra.mxu0 %v6587
        %v6788 = vpop.f32.mrf.mxu0
        %v6789 = vadd.f32 %v6524, %v6788
        %v6790 = vpop.f32.mrf.mxu0
        %6791 = vmatprep.mubr.f32.mxu0 0.0
        %6792 = vmatmul.mubr.f32.gmra.mxu0 %v6590
        %v6793 = vpop.f32.mrf.mxu0
        %v6794 = vadd.f32 %v6524, %v6793
        %v6795 = vpop.f32.mrf.mxu0
        %6796 = vmatprep.mubr.f32.mxu0 0.0
        %6797 = vmatmul.mubr.f32.gmra.mxu0 %v6593
        %v6798 = vpop.f32.mrf.mxu0
        %v6799 = vadd.f32 %v6524, %v6798
        %v6800 = vpop.f32.mrf.mxu0
        %6801 = vmatprep.mubr.f32.mxu0 0.0
        %6802 = vmatmul.mubr.f32.gmra.mxu0 %v6596
        %v6803 = vpop.f32.mrf.mxu0
        %v6804 = vadd.f32 %v6524, %v6803
        %v6805 = vpop.f32.mrf.mxu0
        %6806 = vmatprep.mubr.f32.mxu0 0.0
        %6807 = vmatmul.mubr.f32.gmra.mxu0 %v6599
        %v6808 = vpop.f32.mrf.mxu0
        %v6809 = vadd.f32 %v6524, %v6808
        %v6810 = vpop.f32.mrf.mxu0
        %6811 = vmatprep.mubr.f32.mxu0 0.0
        %6812 = vmatmul.mubr.f32.gmra.mxu0 %v6602
        %v6813 = vpop.f32.mrf.mxu0
        %v6814 = vadd.f32 %v6524, %v6813
        %v6815 = vpop.f32.mrf.mxu0
        %6816 = vmatprep.mubr.f32.mxu0 0.0
        %6817 = vmatmul.mubr.f32.gmra.mxu0 %v6605
        %v6818 = vpop.f32.mrf.mxu0
        %v6819 = vadd.f32 %v6524, %v6818
        %v6820 = vpop.f32.mrf.mxu0
        %6821 = vmatprep.mubr.f32.mxu0 0.0
        %6822 = vmatmul.mubr.f32.gmra.mxu0 %v6608
        %v6823 = vpop.f32.mrf.mxu0
        %v6824 = vadd.f32 %v6524, %v6823
        %v6825 = vpop.f32.mrf.mxu0
        %6826 = vmatprep.mubr.f32.mxu0 0.0
        %6827 = vmatmul.mubr.f32.gmra.mxu0 %v6611
        %v6828 = vpop.f32.mrf.mxu0
        %v6829 = vadd.f32 %v6524, %v6828
        %v6830 = vpop.f32.mrf.mxu0
        %6831 = vmatprep.mubr.f32.mxu0 0.0
        %6832 = vmatmul.mubr.f32.gmra.mxu0 %v6614
        %v6833 = vpop.f32.mrf.mxu0
        %v6834 = vadd.f32 %v6524, %v6833
        %v6835 = vpop.f32.mrf.mxu0
        %6836 = vmatprep.mubr.f32.mxu0 0.0
        %6837 = vmatmul.mubr.f32.gmra.mxu0 %v6617
        %v6838 = vpop.f32.mrf.mxu0
        %v6839 = vadd.f32 %v6524, %v6838
        %v6840 = vpop.f32.mrf.mxu0
        %6841 = vmatprep.mubr.f32.mxu0 0.0
        %6842 = vmatmul.mubr.f32.gmra.mxu0 %v6620
        %v6843 = vpop.f32.mrf.mxu0
        %v6844 = vadd.f32 %v6524, %v6843
        %v6845 = vpop.f32.mrf.mxu0
        %6846 = vdwg.mxu0
        %v6847 = vld [vmem:[%s313 + $0x1] sm:$0x1]
        %v6848 = vlaneseq
        %v6849 = vshrl.u32 %v6848, 7
        %v6850 = vsub.s32 0, %v6849
        %v6851 = vrot.slane %v6847, %v6850
        %v6852 = vmul.f32 %v5912, %v6851
        %v6853 = vmul.f32 %v5913, %v6851
        %v6854 = vmul.f32 %v5914, %v6851
        %v6855 = vmul.f32 %v5915, %v6851
        %v6856 = vmul.f32 %v5916, %v6851
        %v6857 = vmul.f32 %v5917, %v6851
        %v6858 = vmul.f32 %v5918, %v6851
        %v6859 = vmul.f32 %v5919, %v6851
        %v6860 = vmul.f32 %v5920, %v6851
        %v6861 = vmul.f32 %v5921, %v6851
        %v6862 = vmul.f32 %v5922, %v6851
        %v6863 = vmul.f32 %v5923, %v6851
        %v6864 = vmul.f32 %v5924, %v6851
        %v6865 = vmul.f32 %v5925, %v6851
        %v6866 = vmul.f32 %v5926, %v6851
        %v6867 = vmul.f32 %v5927, %v6851
        %v6868 = vmul.f32 %v5928, %v6851
        %v6869 = vmul.f32 %v5929, %v6851
        %v6870 = vmul.f32 %v5930, %v6851
        %v6871 = vmul.f32 %v5931, %v6851
        %v6872 = vmul.f32 %v5932, %v6851
        %v6873 = vmul.f32 %v5933, %v6851
        %v6874 = vmul.f32 %v5934, %v6851
        %v6875 = vmul.f32 %v5935, %v6851
        %v6876 = vmul.f32 %v5936, %v6851
        %v6877 = vmul.f32 %v5937, %v6851
        %v6878 = vmul.f32 %v5938, %v6851
        %v6879 = vmul.f32 %v5939, %v6851
        %v6880 = vmul.f32 %v5940, %v6851
        %v6881 = vmul.f32 %v5941, %v6851
        %v6882 = vmul.f32 %v5942, %v6851
        %v6883 = vmul.f32 %v5943, %v6851
        %v6884 = vadd.f32 %v6689, %v6852
        %v6885 = vadd.f32 %v6694, %v6853
        %v6886 = vadd.f32 %v6699, %v6854
        %v6887 = vadd.f32 %v6704, %v6855
        %v6888 = vadd.f32 %v6709, %v6856
        %v6889 = vadd.f32 %v6714, %v6857
        %v6890 = vadd.f32 %v6719, %v6858
        %v6891 = vadd.f32 %v6724, %v6859
        %v6892 = vadd.f32 %v6729, %v6860
        %v6893 = vadd.f32 %v6734, %v6861
        %v6894 = vadd.f32 %v6739, %v6862
        %v6895 = vadd.f32 %v6744, %v6863
        %v6896 = vadd.f32 %v6749, %v6864
        %v6897 = vadd.f32 %v6754, %v6865
        %v6898 = vadd.f32 %v6759, %v6866
        %v6899 = vadd.f32 %v6764, %v6867
        %v6900 = vadd.f32 %v6769, %v6868
        %v6901 = vadd.f32 %v6774, %v6869
        %v6902 = vadd.f32 %v6779, %v6870
        %v6903 = vadd.f32 %v6784, %v6871
        %v6904 = vadd.f32 %v6789, %v6872
        %v6905 = vadd.f32 %v6794, %v6873
        %v6906 = vadd.f32 %v6799, %v6874
        %v6907 = vadd.f32 %v6804, %v6875
        %v6908 = vadd.f32 %v6809, %v6876
        %v6909 = vadd.f32 %v6814, %v6877
        %v6910 = vadd.f32 %v6819, %v6878
        %v6911 = vadd.f32 %v6824, %v6879
        %v6912 = vadd.f32 %v6829, %v6880
        %v6913 = vadd.f32 %v6834, %v6881
        %v6914 = vadd.f32 %v6839, %v6882
        %v6915 = vadd.f32 %v6844, %v6883
        %vm6916 = vcmp.gt.f32.partialorder %v6884, 0.0
        %vm6917 = vcmp.gt.f32.partialorder %v6885, 0.0
        %vm6918 = vcmp.gt.f32.partialorder %v6886, 0.0
        %vm6919 = vcmp.gt.f32.partialorder %v6887, 0.0
        %vm6920 = vcmp.gt.f32.partialorder %v6888, 0.0
        %vm6921 = vcmp.gt.f32.partialorder %v6889, 0.0
        %vm6922 = vcmp.gt.f32.partialorder %v6890, 0.0
        %vm6923 = vcmp.gt.f32.partialorder %v6891, 0.0
        %vm6924 = vcmp.gt.f32.partialorder %v6892, 0.0
        %vm6925 = vcmp.gt.f32.partialorder %v6893, 0.0
        %vm6926 = vcmp.gt.f32.partialorder %v6894, 0.0
        %vm6927 = vcmp.gt.f32.partialorder %v6895, 0.0
        %vm6928 = vcmp.gt.f32.partialorder %v6896, 0.0
        %vm6929 = vcmp.gt.f32.partialorder %v6897, 0.0
        %vm6930 = vcmp.gt.f32.partialorder %v6898, 0.0
        %vm6931 = vcmp.gt.f32.partialorder %v6899, 0.0
        %vm6932 = vcmp.gt.f32.partialorder %v6900, 0.0
        %vm6933 = vcmp.gt.f32.partialorder %v6901, 0.0
        %vm6934 = vcmp.gt.f32.partialorder %v6902, 0.0
        %vm6935 = vcmp.gt.f32.partialorder %v6903, 0.0
        %vm6936 = vcmp.gt.f32.partialorder %v6904, 0.0
        %vm6937 = vcmp.gt.f32.partialorder %v6905, 0.0
        %vm6938 = vcmp.gt.f32.partialorder %v6906, 0.0
        %vm6939 = vcmp.gt.f32.partialorder %v6907, 0.0
        %vm6940 = vcmp.gt.f32.partialorder %v6908, 0.0
        %vm6941 = vcmp.gt.f32.partialorder %v6909, 0.0
        %vm6942 = vcmp.gt.f32.partialorder %v6910, 0.0
        %vm6943 = vcmp.gt.f32.partialorder %v6911, 0.0
        %vm6944 = vcmp.gt.f32.partialorder %v6912, 0.0
        %vm6945 = vcmp.gt.f32.partialorder %v6913, 0.0
        %vm6946 = vcmp.gt.f32.partialorder %v6914, 0.0
        %vm6947 = vcmp.gt.f32.partialorder %v6915, 0.0
        %v6948 = vmul.f32 %v6884, 0.1
        %v6949 = vmul.f32 %v6885, 0.1
        %v6950 = vmul.f32 %v6886, 0.1
        %v6951 = vmul.f32 %v6887, 0.1
        %v6952 = vmul.f32 %v6888, 0.1
        %v6953 = vmul.f32 %v6889, 0.1
        %v6954 = vmul.f32 %v6890, 0.1
        %v6955 = vmul.f32 %v6891, 0.1
        %v6956 = vmul.f32 %v6892, 0.1
        %v6957 = vmul.f32 %v6893, 0.1
        %v6958 = vmul.f32 %v6894, 0.1
        %v6959 = vmul.f32 %v6895, 0.1
        %v6960 = vmul.f32 %v6896, 0.1
        %v6961 = vmul.f32 %v6897, 0.1
        %v6962 = vmul.f32 %v6898, 0.1
        %v6963 = vmul.f32 %v6899, 0.1
        %v6964 = vmul.f32 %v6900, 0.1
        %v6965 = vmul.f32 %v6901, 0.1
        %v6966 = vmul.f32 %v6902, 0.1
        %v6967 = vmul.f32 %v6903, 0.1
        %v6968 = vmul.f32 %v6904, 0.1
        %v6969 = vmul.f32 %v6905, 0.1
        %v6970 = vmul.f32 %v6906, 0.1
        %v6971 = vmul.f32 %v6907, 0.1
        %v6972 = vmul.f32 %v6908, 0.1
        %v6973 = vmul.f32 %v6909, 0.1
        %v6974 = vmul.f32 %v6910, 0.1
        %v6975 = vmul.f32 %v6911, 0.1
        %v6976 = vmul.f32 %v6912, 0.1
        %v6977 = vmul.f32 %v6913, 0.1
        %v6978 = vmul.f32 %v6914, 0.1
        %v6979 = vmul.f32 %v6915, 0.1
        %v6980 = vsel %vm6916, %v6884, %v6948
        %v6981 = vsel %vm6917, %v6885, %v6949
        %v6982 = vsel %vm6918, %v6886, %v6950
        %v6983 = vsel %vm6919, %v6887, %v6951
        %v6984 = vsel %vm6920, %v6888, %v6952
        %v6985 = vsel %vm6921, %v6889, %v6953
        %v6986 = vsel %vm6922, %v6890, %v6954
        %v6987 = vsel %vm6923, %v6891, %v6955
        %v6988 = vsel %vm6924, %v6892, %v6956
        %v6989 = vsel %vm6925, %v6893, %v6957
        %v6990 = vsel %vm6926, %v6894, %v6958
        %v6991 = vsel %vm6927, %v6895, %v6959
        %v6992 = vsel %vm6928, %v6896, %v6960
        %v6993 = vsel %vm6929, %v6897, %v6961
        %v6994 = vsel %vm6930, %v6898, %v6962
        %v6995 = vsel %vm6931, %v6899, %v6963
        %v6996 = vsel %vm6932, %v6900, %v6964
        %v6997 = vsel %vm6933, %v6901, %v6965
        %v6998 = vsel %vm6934, %v6902, %v6966
        %v6999 = vsel %vm6935, %v6903, %v6967
        %v7000 = vsel %vm6936, %v6904, %v6968
        %v7001 = vsel %vm6937, %v6905, %v6969
        %v7002 = vsel %vm6938, %v6906, %v6970
        %v7003 = vsel %vm6939, %v6907, %v6971
        %v7004 = vsel %vm6940, %v6908, %v6972
        %v7005 = vsel %vm6941, %v6909, %v6973
        %v7006 = vsel %vm6942, %v6910, %v6974
        %v7007 = vsel %vm6943, %v6911, %v6975
        %v7008 = vsel %vm6944, %v6912, %v6976
        %v7009 = vsel %vm6945, %v6913, %v6977
        %v7010 = vsel %vm6946, %v6914, %v6978
        %v7011 = vsel %vm6947, %v6915, %v6979
        %7012 = vst.msk [vmem:[%s392 + $0x1] sm:$0xff] %vm314, %v6980
        %7013 = vst.msk [vmem:[%s392 + $0x9] sm:$0xff] %vm314, %v6981
        %7014 = vst.msk [vmem:[%s392 + $0x19] sm:$0xff] %vm314, %v6982
        %7015 = vst.msk [vmem:[%s392 + $0x21] sm:$0xff] %vm314, %v6983
        %7016 = vst.msk [vmem:[%s392 + $0x31] sm:$0xff] %vm314, %v6984
        %7017 = vst.msk [vmem:[%s392 + $0x39] sm:$0xff] %vm314, %v6985
        %7018 = vst.msk [vmem:[%s392 + $0x49] sm:$0xff] %vm314, %v6986
        %7019 = vst.msk [vmem:[%s392 + $0x51] sm:$0xff] %vm314, %v6987
        %7020 = vst.msk [vmem:[%s392 + $0x61] sm:$0xff] %vm314, %v6988
        %7021 = vst.msk [vmem:[%s392 + $0x69] sm:$0xff] %vm314, %v6989
        %7022 = vst.msk [vmem:[%s392 + $0x79] sm:$0xff] %vm314, %v6990
        %7023 = vst.msk [vmem:[%s392 + $0x81] sm:$0xff] %vm314, %v6991
        %7024 = vst.msk [vmem:[%s392 + $0x91] sm:$0xff] %vm314, %v6992
        %7025 = vst.msk [vmem:[%s392 + $0x99] sm:$0xff] %vm314, %v6993
        %7026 = vst.msk [vmem:[%s392 + $0xa9] sm:$0xff] %vm314, %v6994
        %7027 = vst.msk [vmem:[%s392 + $0xb1] sm:$0xff] %vm314, %v6995
        %7028 = vst.msk [vmem:[%s392 + $0xc1] sm:$0xff] %vm314, %v6996
        %7029 = vst.msk [vmem:[%s392 + $0xc9] sm:$0xff] %vm314, %v6997
        %7030 = vst.msk [vmem:[%s392 + $0xd9] sm:$0xff] %vm314, %v6998
        %7031 = vst.msk [vmem:[%s392 + $0xe1] sm:$0xff] %vm314, %v6999
        %7032 = vst.msk [vmem:[%s392 + $0xf1] sm:$0xff] %vm314, %v7000
        %7033 = vst.msk [vmem:[%s392 + $0xf9] sm:$0xff] %vm314, %v7001
        %7034 = vst.msk [vmem:[%s392 + $0x109] sm:$0xff] %vm314, %v7002
        %7035 = vst.msk [vmem:[%s392 + $0x111] sm:$0xff] %vm314, %v7003
        %7036 = vst.msk [vmem:[%s392 + $0x121] sm:$0xff] %vm314, %v7004
        %7037 = vst.msk [vmem:[%s392 + $0x129] sm:$0xff] %vm314, %v7005
        %7038 = vst.msk [vmem:[%s392 + $0x139] sm:$0xff] %vm314, %v7006
        %7039 = vst.msk [vmem:[%s392 + $0x141] sm:$0xff] %vm314, %v7007
        %7040 = vst.msk [vmem:[%s392 + $0x151] sm:$0xff] %vm314, %v7008
        %7041 = vst.msk [vmem:[%s392 + $0x159] sm:$0xff] %vm314, %v7009
        %7042 = vst.msk [vmem:[%s392 + $0x169] sm:$0xff] %vm314, %v7010
        %7043 = vst.msk [vmem:[%s392 + $0x171] sm:$0xff] %vm314, %v7011
        %v7044 = vld [vmem:[#allocation2] sm:$0xff]
        %v7045 = vld [vmem:[#allocation2 + $0x8] sm:$0xff]
        %v7046 = vld [vmem:[#allocation2 + $0x18] sm:$0xff]
        %v7047 = vld [vmem:[#allocation2 + $0x20] sm:$0xff]
        %v7048 = vld [vmem:[#allocation2 + $0x30] sm:$0xff]
        %v7049 = vld [vmem:[#allocation2 + $0x38] sm:$0xff]
        %v7050 = vld [vmem:[#allocation2 + $0x48] sm:$0xff]
        %v7051 = vld [vmem:[#allocation2 + $0x50] sm:$0xff]
        %v7052 = vld [vmem:[#allocation2 + $0x60] sm:$0xff]
        %v7053 = vld [vmem:[#allocation2 + $0x68] sm:$0xff]
        %v7054 = vld [vmem:[#allocation2 + $0x78] sm:$0xff]
        %v7055 = vld [vmem:[#allocation2 + $0x80] sm:$0xff]
        %v7056 = vld [vmem:[#allocation2 + $0x90] sm:$0xff]
        %v7057 = vld [vmem:[#allocation2 + $0x98] sm:$0xff]
        %v7058 = vld [vmem:[#allocation2 + $0xa8] sm:$0xff]
        %v7059 = vld [vmem:[#allocation2 + $0xb0] sm:$0xff]
        %v7060 = vld [vmem:[#allocation2 + $0xc0] sm:$0xff]
        %v7061 = vld [vmem:[#allocation2 + $0xc8] sm:$0xff]
        %v7062 = vld [vmem:[#allocation2 + $0xd8] sm:$0xff]
        %v7063 = vld [vmem:[#allocation2 + $0xe0] sm:$0xff]
        %v7064 = vld [vmem:[#allocation2 + $0xf0] sm:$0xff]
        %v7065 = vld [vmem:[#allocation2 + $0xf8] sm:$0xff]
        %v7066 = vld [vmem:[#allocation2 + $0x108] sm:$0xff]
        %v7067 = vld [vmem:[#allocation2 + $0x110] sm:$0xff]
        %v7068 = vld [vmem:[#allocation2 + $0x120] sm:$0xff]
        %v7069 = vld [vmem:[#allocation2 + $0x128] sm:$0xff]
        %v7070 = vld [vmem:[#allocation2 + $0x138] sm:$0xff]
        %v7071 = vld [vmem:[#allocation2 + $0x140] sm:$0xff]
        %v7072 = vld [vmem:[#allocation2 + $0x150] sm:$0xff]
        %v7073 = vld [vmem:[#allocation2 + $0x158] sm:$0xff]
        %v7074 = vld [vmem:[#allocation2 + $0x168] sm:$0xff]
        %v7075 = vld [vmem:[#allocation2 + $0x170] sm:$0xff]
        %s7076 = scalar_lea.vmem %s5, 288
        %v7077 = vld [vmem:[%s7076] sm:$0xff]
        %v7078 = vld [vmem:[%s7076 + $0x8] sm:$0xff]
        %v7079 = vld [vmem:[%s7076 + $0x10] sm:$0xff]
        %v7080 = vld [vmem:[%s7076 + $0x18] sm:$0xff]
        %v7081 = vld [vmem:[#allocation2 + $0x1] sm:$0xff]
        %v7082 = vld [vmem:[#allocation2 + $0x9] sm:$0xff]
        %v7083 = vld [vmem:[#allocation2 + $0x19] sm:$0xff]
        %v7084 = vld [vmem:[#allocation2 + $0x21] sm:$0xff]
        %v7085 = vld [vmem:[#allocation2 + $0x31] sm:$0xff]
        %v7086 = vld [vmem:[#allocation2 + $0x39] sm:$0xff]
        %v7087 = vld [vmem:[#allocation2 + $0x49] sm:$0xff]
        %v7088 = vld [vmem:[#allocation2 + $0x51] sm:$0xff]
        %v7089 = vld [vmem:[#allocation2 + $0x61] sm:$0xff]
        %v7090 = vld [vmem:[#allocation2 + $0x69] sm:$0xff]
        %v7091 = vld [vmem:[#allocation2 + $0x79] sm:$0xff]
        %v7092 = vld [vmem:[#allocation2 + $0x81] sm:$0xff]
        %v7093 = vld [vmem:[#allocation2 + $0x91] sm:$0xff]
        %v7094 = vld [vmem:[#allocation2 + $0x99] sm:$0xff]
        %v7095 = vld [vmem:[#allocation2 + $0xa9] sm:$0xff]
        %v7096 = vld [vmem:[#allocation2 + $0xb1] sm:$0xff]
        %v7097 = vld [vmem:[#allocation2 + $0xc1] sm:$0xff]
        %v7098 = vld [vmem:[#allocation2 + $0xc9] sm:$0xff]
        %v7099 = vld [vmem:[#allocation2 + $0xd9] sm:$0xff]
        %v7100 = vld [vmem:[#allocation2 + $0xe1] sm:$0xff]
        %v7101 = vld [vmem:[#allocation2 + $0xf1] sm:$0xff]
        %v7102 = vld [vmem:[#allocation2 + $0xf9] sm:$0xff]
        %v7103 = vld [vmem:[#allocation2 + $0x109] sm:$0xff]
        %v7104 = vld [vmem:[#allocation2 + $0x111] sm:$0xff]
        %v7105 = vld [vmem:[#allocation2 + $0x121] sm:$0xff]
        %v7106 = vld [vmem:[#allocation2 + $0x129] sm:$0xff]
        %v7107 = vld [vmem:[#allocation2 + $0x139] sm:$0xff]
        %v7108 = vld [vmem:[#allocation2 + $0x141] sm:$0xff]
        %v7109 = vld [vmem:[#allocation2 + $0x151] sm:$0xff]
        %v7110 = vld [vmem:[#allocation2 + $0x159] sm:$0xff]
        %v7111 = vld [vmem:[#allocation2 + $0x169] sm:$0xff]
        %v7112 = vld [vmem:[#allocation2 + $0x171] sm:$0xff]
        %s7113 = scalar_lea.vmem %s5, 320
        %v7114 = vld [vmem:[%s7113] sm:$0xff]
        %v7115 = vld [vmem:[%s7113 + $0x8] sm:$0xff]
        %v7116 = vld [vmem:[%s7113 + $0x10] sm:$0xff]
        %v7117 = vld [vmem:[%s7113 + $0x18] sm:$0xff]
        %v7119 = vsel %vm314, %v7081, 0
        %v7122 = vsel %vm314, %v7082, 0
        %v7125 = vsel %vm314, %v7083, 0
        %v7128 = vsel %vm314, %v7084, 0
        %v7131 = vsel %vm314, %v7085, 0
        %v7134 = vsel %vm314, %v7086, 0
        %v7137 = vsel %vm314, %v7087, 0
        %v7140 = vsel %vm314, %v7088, 0
        %v7143 = vsel %vm314, %v7089, 0
        %v7146 = vsel %vm314, %v7090, 0
        %v7149 = vsel %vm314, %v7091, 0
        %v7152 = vsel %vm314, %v7092, 0
        %v7155 = vsel %vm314, %v7093, 0
        %v7158 = vsel %vm314, %v7094, 0
        %v7161 = vsel %vm314, %v7095, 0
        %v7164 = vsel %vm314, %v7096, 0
        %v7167 = vsel %vm314, %v7097, 0
        %v7170 = vsel %vm314, %v7098, 0
        %v7173 = vsel %vm314, %v7099, 0
        %v7176 = vsel %vm314, %v7100, 0
        %v7179 = vsel %vm314, %v7101, 0
        %v7182 = vsel %vm314, %v7102, 0
        %v7185 = vsel %vm314, %v7103, 0
        %v7188 = vsel %vm314, %v7104, 0
        %v7191 = vsel %vm314, %v7105, 0
        %v7194 = vsel %vm314, %v7106, 0
        %v7197 = vsel %vm314, %v7107, 0
        %v7200 = vsel %vm314, %v7108, 0
        %v7203 = vsel %vm314, %v7109, 0
        %v7206 = vsel %vm314, %v7110, 0
        %v7209 = vsel %vm314, %v7111, 0
        %v7212 = vsel %vm314, %v7112, 0
        %7214 = vmatprep.subr.mxu0 0.0
        %7215 = vmatpush1.msra.mxu0 0.0
        %7216 = vmatprep.subr.mxu0 0.0
        %7217 = vmatpush1.msra.mxu0 0.0
        %7218 = vmatprep.subr.mxu0 0.0
        %7219 = vmatpush1.msra.mxu0 0.0
        %7220 = vmatprep.subr.mxu0 0.0
        %7221 = vmatpush1.msra.mxu0 0.0
        %7222 = vmatprep.subr.mxu0 0.0
        %7223 = vmatpush1.msra.mxu0 0.0
        %7224 = vmatprep.subr.mxu0 0.0
        %7225 = vmatpush1.msra.mxu0 0.0
        %7226 = vmatprep.subr.mxu0 0.0
        %7227 = vmatpush1.msra.mxu0 0.0
        %7228 = vmatprep.subr.mxu0 0.0
        %7229 = vmatpush1.msra.mxu0 0.0
        %7230 = vmatprep.subr.mxu0 0.0
        %7231 = vmatpush1.msra.mxu0 0.0
        %7232 = vmatprep.subr.mxu0 0.0
        %7233 = vmatpush1.msra.mxu0 0.0
        %7234 = vmatprep.subr.mxu0 0.0
        %7235 = vmatpush1.msra.mxu0 0.0
        %7236 = vmatprep.subr.mxu0 0.0
        %7237 = vmatpush1.msra.mxu0 0.0
        %7238 = vmatprep.subr.mxu0 0.0
        %7239 = vmatpush1.msra.mxu0 %v7117
        %7240 = vmatprep.subr.mxu0 0.0
        %7241 = vmatpush1.msra.mxu0 %v7116
        %7242 = vmatprep.subr.mxu0 0.0
        %7243 = vmatpush1.msra.mxu0 %v7115
        %7244 = vmatprep.subr.mxu0 0.0
        %7245 = vmatpush1.msra.mxu0 %v7114
        %7246 = vmatprep.subr.mxu0 0.0
        %7247 = vmatpush2.msra.mxu0 0.0
        %7248 = vmatprep.subr.mxu0 0.0
        %7249 = vmatpush2.msra.mxu0 0.0
        %7250 = vmatprep.subr.mxu0 0.0
        %7251 = vmatpush2.msra.mxu0 0.0
        %7252 = vmatprep.subr.mxu0 0.0
        %7253 = vmatpush2.msra.mxu0 0.0
        %7254 = vmatprep.subr.mxu0 0.0
        %7255 = vmatpush2.msra.mxu0 0.0
        %7256 = vmatprep.subr.mxu0 0.0
        %7257 = vmatpush2.msra.mxu0 0.0
        %7258 = vmatprep.subr.mxu0 0.0
        %7259 = vmatpush2.msra.mxu0 0.0
        %7260 = vmatprep.subr.mxu0 0.0
        %7261 = vmatpush2.msra.mxu0 0.0
        %7262 = vmatprep.subr.mxu0 0.0
        %7263 = vmatpush2.msra.mxu0 0.0
        %7264 = vmatprep.subr.mxu0 0.0
        %7265 = vmatpush2.msra.mxu0 0.0
        %7266 = vmatprep.subr.mxu0 0.0
        %7267 = vmatpush2.msra.mxu0 0.0
        %7268 = vmatprep.subr.mxu0 0.0
        %7269 = vmatpush2.msra.mxu0 0.0
        %7270 = vmatprep.subr.mxu0 0.0
        %7271 = vmatpush2.msra.mxu0 0.0
        %7272 = vmatprep.subr.mxu0 0.0
        %7273 = vmatpush2.msra.mxu0 0.0
        %7274 = vmatprep.subr.mxu0 0.0
        %7275 = vmatpush2.msra.mxu0 0.0
        %7276 = vmatprep.subr.mxu0 0.0
        %7277 = vmatpush2.msra.mxu0 0.0
        %7278 = vmatprep.mubr.f32.mxu0 0.0
        %7279 = vmatmul.mubr.f32.gmra.mxu0 %v7119
        %v7280 = vpop.f32.mrf.mxu0
        %v7281 = vadd.f32 0.0, %v7280
        %v7282 = vpop.f32.mrf.mxu0
        %7283 = vmatprep.mubr.f32.mxu0 0.0
        %7284 = vmatmul.mubr.f32.gmra.mxu0 %v7122
        %v7285 = vpop.f32.mrf.mxu0
        %v7286 = vadd.f32 0.0, %v7285
        %v7287 = vpop.f32.mrf.mxu0
        %7288 = vmatprep.mubr.f32.mxu0 0.0
        %7289 = vmatmul.mubr.f32.gmra.mxu0 %v7125
        %v7290 = vpop.f32.mrf.mxu0
        %v7291 = vadd.f32 0.0, %v7290
        %v7292 = vpop.f32.mrf.mxu0
        %7293 = vmatprep.mubr.f32.mxu0 0.0
        %7294 = vmatmul.mubr.f32.gmra.mxu0 %v7128
        %v7295 = vpop.f32.mrf.mxu0
        %v7296 = vadd.f32 0.0, %v7295
        %v7297 = vpop.f32.mrf.mxu0
        %7298 = vmatprep.mubr.f32.mxu0 0.0
        %7299 = vmatmul.mubr.f32.gmra.mxu0 %v7131
        %v7300 = vpop.f32.mrf.mxu0
        %v7301 = vadd.f32 0.0, %v7300
        %v7302 = vpop.f32.mrf.mxu0
        %7303 = vmatprep.mubr.f32.mxu0 0.0
        %7304 = vmatmul.mubr.f32.gmra.mxu0 %v7134
        %v7305 = vpop.f32.mrf.mxu0
        %v7306 = vadd.f32 0.0, %v7305
        %v7307 = vpop.f32.mrf.mxu0
        %7308 = vmatprep.mubr.f32.mxu0 0.0
        %7309 = vmatmul.mubr.f32.gmra.mxu0 %v7137
        %v7310 = vpop.f32.mrf.mxu0
        %v7311 = vadd.f32 0.0, %v7310
        %v7312 = vpop.f32.mrf.mxu0
        %7313 = vmatprep.mubr.f32.mxu0 0.0
        %7314 = vmatmul.mubr.f32.gmra.mxu0 %v7140
        %v7315 = vpop.f32.mrf.mxu0
        %v7316 = vadd.f32 0.0, %v7315
        %v7317 = vpop.f32.mrf.mxu0
        %7318 = vmatprep.mubr.f32.mxu0 0.0
        %7319 = vmatmul.mubr.f32.gmra.mxu0 %v7143
        %v7320 = vpop.f32.mrf.mxu0
        %v7321 = vadd.f32 0.0, %v7320
        %v7322 = vpop.f32.mrf.mxu0
        %7323 = vmatprep.mubr.f32.mxu0 0.0
        %7324 = vmatmul.mubr.f32.gmra.mxu0 %v7146
        %v7325 = vpop.f32.mrf.mxu0
        %v7326 = vadd.f32 0.0, %v7325
        %v7327 = vpop.f32.mrf.mxu0
        %7328 = vmatprep.mubr.f32.mxu0 0.0
        %7329 = vmatmul.mubr.f32.gmra.mxu0 %v7149
        %v7330 = vpop.f32.mrf.mxu0
        %v7331 = vadd.f32 0.0, %v7330
        %v7332 = vpop.f32.mrf.mxu0
        %7333 = vmatprep.mubr.f32.mxu0 0.0
        %7334 = vmatmul.mubr.f32.gmra.mxu0 %v7152
        %v7335 = vpop.f32.mrf.mxu0
        %v7336 = vadd.f32 0.0, %v7335
        %v7337 = vpop.f32.mrf.mxu0
        %7338 = vmatprep.mubr.f32.mxu0 0.0
        %7339 = vmatmul.mubr.f32.gmra.mxu0 %v7155
        %v7340 = vpop.f32.mrf.mxu0
        %v7341 = vadd.f32 0.0, %v7340
        %v7342 = vpop.f32.mrf.mxu0
        %7343 = vmatprep.mubr.f32.mxu0 0.0
        %7344 = vmatmul.mubr.f32.gmra.mxu0 %v7158
        %v7345 = vpop.f32.mrf.mxu0
        %v7346 = vadd.f32 0.0, %v7345
        %v7347 = vpop.f32.mrf.mxu0
        %7348 = vmatprep.mubr.f32.mxu0 0.0
        %7349 = vmatmul.mubr.f32.gmra.mxu0 %v7161
        %v7350 = vpop.f32.mrf.mxu0
        %v7351 = vadd.f32 0.0, %v7350
        %v7352 = vpop.f32.mrf.mxu0
        %7353 = vmatprep.mubr.f32.mxu0 0.0
        %7354 = vmatmul.mubr.f32.gmra.mxu0 %v7164
        %v7355 = vpop.f32.mrf.mxu0
        %v7356 = vadd.f32 0.0, %v7355
        %v7357 = vpop.f32.mrf.mxu0
        %7358 = vmatprep.mubr.f32.mxu0 0.0
        %7359 = vmatmul.mubr.f32.gmra.mxu0 %v7167
        %v7360 = vpop.f32.mrf.mxu0
        %v7361 = vadd.f32 0.0, %v7360
        %v7362 = vpop.f32.mrf.mxu0
        %7363 = vmatprep.mubr.f32.mxu0 0.0
        %7364 = vmatmul.mubr.f32.gmra.mxu0 %v7170
        %v7365 = vpop.f32.mrf.mxu0
        %v7366 = vadd.f32 0.0, %v7365
        %v7367 = vpop.f32.mrf.mxu0
        %7368 = vmatprep.mubr.f32.mxu0 0.0
        %7369 = vmatmul.mubr.f32.gmra.mxu0 %v7173
        %v7370 = vpop.f32.mrf.mxu0
        %v7371 = vadd.f32 0.0, %v7370
        %v7372 = vpop.f32.mrf.mxu0
        %7373 = vmatprep.mubr.f32.mxu0 0.0
        %7374 = vmatmul.mubr.f32.gmra.mxu0 %v7176
        %v7375 = vpop.f32.mrf.mxu0
        %v7376 = vadd.f32 0.0, %v7375
        %v7377 = vpop.f32.mrf.mxu0
        %7378 = vmatprep.mubr.f32.mxu0 0.0
        %7379 = vmatmul.mubr.f32.gmra.mxu0 %v7179
        %v7380 = vpop.f32.mrf.mxu0
        %v7381 = vadd.f32 0.0, %v7380
        %v7382 = vpop.f32.mrf.mxu0
        %7383 = vmatprep.mubr.f32.mxu0 0.0
        %7384 = vmatmul.mubr.f32.gmra.mxu0 %v7182
        %v7385 = vpop.f32.mrf.mxu0
        %v7386 = vadd.f32 0.0, %v7385
        %v7387 = vpop.f32.mrf.mxu0
        %7388 = vmatprep.mubr.f32.mxu0 0.0
        %7389 = vmatmul.mubr.f32.gmra.mxu0 %v7185
        %v7390 = vpop.f32.mrf.mxu0
        %v7391 = vadd.f32 0.0, %v7390
        %v7392 = vpop.f32.mrf.mxu0
        %7393 = vmatprep.mubr.f32.mxu0 0.0
        %7394 = vmatmul.mubr.f32.gmra.mxu0 %v7188
        %v7395 = vpop.f32.mrf.mxu0
        %v7396 = vadd.f32 0.0, %v7395
        %v7397 = vpop.f32.mrf.mxu0
        %7398 = vmatprep.mubr.f32.mxu0 0.0
        %7399 = vmatmul.mubr.f32.gmra.mxu0 %v7191
        %v7400 = vpop.f32.mrf.mxu0
        %v7401 = vadd.f32 0.0, %v7400
        %v7402 = vpop.f32.mrf.mxu0
        %7403 = vmatprep.mubr.f32.mxu0 0.0
        %7404 = vmatmul.mubr.f32.gmra.mxu0 %v7194
        %v7405 = vpop.f32.mrf.mxu0
        %v7406 = vadd.f32 0.0, %v7405
        %v7407 = vpop.f32.mrf.mxu0
        %7408 = vmatprep.mubr.f32.mxu0 0.0
        %7409 = vmatmul.mubr.f32.gmra.mxu0 %v7197
        %v7410 = vpop.f32.mrf.mxu0
        %v7411 = vadd.f32 0.0, %v7410
        %v7412 = vpop.f32.mrf.mxu0
        %7413 = vmatprep.mubr.f32.mxu0 0.0
        %7414 = vmatmul.mubr.f32.gmra.mxu0 %v7200
        %v7415 = vpop.f32.mrf.mxu0
        %v7416 = vadd.f32 0.0, %v7415
        %v7417 = vpop.f32.mrf.mxu0
        %7418 = vmatprep.mubr.f32.mxu0 0.0
        %7419 = vmatmul.mubr.f32.gmra.mxu0 %v7203
        %v7420 = vpop.f32.mrf.mxu0
        %v7421 = vadd.f32 0.0, %v7420
        %v7422 = vpop.f32.mrf.mxu0
        %7423 = vmatprep.mubr.f32.mxu0 0.0
        %7424 = vmatmul.mubr.f32.gmra.mxu0 %v7206
        %v7425 = vpop.f32.mrf.mxu0
        %v7426 = vadd.f32 0.0, %v7425
        %v7427 = vpop.f32.mrf.mxu0
        %7428 = vmatprep.mubr.f32.mxu0 0.0
        %7429 = vmatmul.mubr.f32.gmra.mxu0 %v7209
        %v7430 = vpop.f32.mrf.mxu0
        %v7431 = vadd.f32 0.0, %v7430
        %v7432 = vpop.f32.mrf.mxu0
        %7433 = vmatprep.mubr.f32.mxu0 0.0
        %7434 = vmatmul.mubr.f32.gmra.mxu0 %v7212
        %v7435 = vpop.f32.mrf.mxu0
        %v7436 = vadd.f32 0.0, %v7435
        %v7437 = vpop.f32.mrf.mxu0
        %7438 = vdwg.mxu0
        %v7440 = vsel %vm314, %v7044, 0
        %v7443 = vsel %vm314, %v7045, 0
        %v7446 = vsel %vm314, %v7046, 0
        %v7449 = vsel %vm314, %v7047, 0
        %v7452 = vsel %vm314, %v7048, 0
        %v7455 = vsel %vm314, %v7049, 0
        %v7458 = vsel %vm314, %v7050, 0
        %v7461 = vsel %vm314, %v7051, 0
        %v7464 = vsel %vm314, %v7052, 0
        %v7467 = vsel %vm314, %v7053, 0
        %v7470 = vsel %vm314, %v7054, 0
        %v7473 = vsel %vm314, %v7055, 0
        %v7476 = vsel %vm314, %v7056, 0
        %v7479 = vsel %vm314, %v7057, 0
        %v7482 = vsel %vm314, %v7058, 0
        %v7485 = vsel %vm314, %v7059, 0
        %v7488 = vsel %vm314, %v7060, 0
        %v7491 = vsel %vm314, %v7061, 0
        %v7494 = vsel %vm314, %v7062, 0
        %v7497 = vsel %vm314, %v7063, 0
        %v7500 = vsel %vm314, %v7064, 0
        %v7503 = vsel %vm314, %v7065, 0
        %v7506 = vsel %vm314, %v7066, 0
        %v7509 = vsel %vm314, %v7067, 0
        %v7512 = vsel %vm314, %v7068, 0
        %v7515 = vsel %vm314, %v7069, 0
        %v7518 = vsel %vm314, %v7070, 0
        %v7521 = vsel %vm314, %v7071, 0
        %v7524 = vsel %vm314, %v7072, 0
        %v7527 = vsel %vm314, %v7073, 0
        %v7530 = vsel %vm314, %v7074, 0
        %v7533 = vsel %vm314, %v7075, 0
        %7535 = vmatprep.subr.mxu0 0.0
        %7536 = vmatpush1.msra.mxu0 0.0
        %7537 = vmatprep.subr.mxu0 0.0
        %7538 = vmatpush1.msra.mxu0 0.0
        %7539 = vmatprep.subr.mxu0 0.0
        %7540 = vmatpush1.msra.mxu0 0.0
        %7541 = vmatprep.subr.mxu0 0.0
        %7542 = vmatpush1.msra.mxu0 0.0
        %7543 = vmatprep.subr.mxu0 0.0
        %7544 = vmatpush1.msra.mxu0 0.0
        %7545 = vmatprep.subr.mxu0 0.0
        %7546 = vmatpush1.msra.mxu0 0.0
        %7547 = vmatprep.subr.mxu0 0.0
        %7548 = vmatpush1.msra.mxu0 0.0
        %7549 = vmatprep.subr.mxu0 0.0
        %7550 = vmatpush1.msra.mxu0 0.0
        %7551 = vmatprep.subr.mxu0 0.0
        %7552 = vmatpush1.msra.mxu0 0.0
        %7553 = vmatprep.subr.mxu0 0.0
        %7554 = vmatpush1.msra.mxu0 0.0
        %7555 = vmatprep.subr.mxu0 0.0
        %7556 = vmatpush1.msra.mxu0 0.0
        %7557 = vmatprep.subr.mxu0 0.0
        %7558 = vmatpush1.msra.mxu0 0.0
        %7559 = vmatprep.subr.mxu0 0.0
        %7560 = vmatpush1.msra.mxu0 %v7080
        %7561 = vmatprep.subr.mxu0 0.0
        %7562 = vmatpush1.msra.mxu0 %v7079
        %7563 = vmatprep.subr.mxu0 0.0
        %7564 = vmatpush1.msra.mxu0 %v7078
        %7565 = vmatprep.subr.mxu0 0.0
        %7566 = vmatpush1.msra.mxu0 %v7077
        %7567 = vmatprep.subr.mxu0 0.0
        %7568 = vmatpush2.msra.mxu0 0.0
        %7569 = vmatprep.subr.mxu0 0.0
        %7570 = vmatpush2.msra.mxu0 0.0
        %7571 = vmatprep.subr.mxu0 0.0
        %7572 = vmatpush2.msra.mxu0 0.0
        %7573 = vmatprep.subr.mxu0 0.0
        %7574 = vmatpush2.msra.mxu0 0.0
        %7575 = vmatprep.subr.mxu0 0.0
        %7576 = vmatpush2.msra.mxu0 0.0
        %7577 = vmatprep.subr.mxu0 0.0
        %7578 = vmatpush2.msra.mxu0 0.0
        %7579 = vmatprep.subr.mxu0 0.0
        %7580 = vmatpush2.msra.mxu0 0.0
        %7581 = vmatprep.subr.mxu0 0.0
        %7582 = vmatpush2.msra.mxu0 0.0
        %7583 = vmatprep.subr.mxu0 0.0
        %7584 = vmatpush2.msra.mxu0 0.0
        %7585 = vmatprep.subr.mxu0 0.0
        %7586 = vmatpush2.msra.mxu0 0.0
        %7587 = vmatprep.subr.mxu0 0.0
        %7588 = vmatpush2.msra.mxu0 0.0
        %7589 = vmatprep.subr.mxu0 0.0
        %7590 = vmatpush2.msra.mxu0 0.0
        %7591 = vmatprep.subr.mxu0 0.0
        %7592 = vmatpush2.msra.mxu0 0.0
        %7593 = vmatprep.subr.mxu0 0.0
        %7594 = vmatpush2.msra.mxu0 0.0
        %7595 = vmatprep.subr.mxu0 0.0
        %7596 = vmatpush2.msra.mxu0 0.0
        %7597 = vmatprep.subr.mxu0 0.0
        %7598 = vmatpush2.msra.mxu0 0.0
        %7599 = vmatprep.mubr.f32.mxu0 0.0
        %7600 = vmatmul.mubr.f32.gmra.mxu0 %v7440
        %v7601 = vpop.f32.mrf.mxu0
        %v7602 = vadd.f32 %v7281, %v7601
        %v7603 = vpop.f32.mrf.mxu0
        %7604 = vmatprep.mubr.f32.mxu0 0.0
        %7605 = vmatmul.mubr.f32.gmra.mxu0 %v7443
        %v7606 = vpop.f32.mrf.mxu0
        %v7607 = vadd.f32 %v7286, %v7606
        %v7608 = vpop.f32.mrf.mxu0
        %7609 = vmatprep.mubr.f32.mxu0 0.0
        %7610 = vmatmul.mubr.f32.gmra.mxu0 %v7446
        %v7611 = vpop.f32.mrf.mxu0
        %v7612 = vadd.f32 %v7291, %v7611
        %v7613 = vpop.f32.mrf.mxu0
        %7614 = vmatprep.mubr.f32.mxu0 0.0
        %7615 = vmatmul.mubr.f32.gmra.mxu0 %v7449
        %v7616 = vpop.f32.mrf.mxu0
        %v7617 = vadd.f32 %v7296, %v7616
        %v7618 = vpop.f32.mrf.mxu0
        %7619 = vmatprep.mubr.f32.mxu0 0.0
        %7620 = vmatmul.mubr.f32.gmra.mxu0 %v7452
        %v7621 = vpop.f32.mrf.mxu0
        %v7622 = vadd.f32 %v7301, %v7621
        %v7623 = vpop.f32.mrf.mxu0
        %7624 = vmatprep.mubr.f32.mxu0 0.0
        %7625 = vmatmul.mubr.f32.gmra.mxu0 %v7455
        %v7626 = vpop.f32.mrf.mxu0
        %v7627 = vadd.f32 %v7306, %v7626
        %v7628 = vpop.f32.mrf.mxu0
        %7629 = vmatprep.mubr.f32.mxu0 0.0
        %7630 = vmatmul.mubr.f32.gmra.mxu0 %v7458
        %v7631 = vpop.f32.mrf.mxu0
        %v7632 = vadd.f32 %v7311, %v7631
        %v7633 = vpop.f32.mrf.mxu0
        %7634 = vmatprep.mubr.f32.mxu0 0.0
        %7635 = vmatmul.mubr.f32.gmra.mxu0 %v7461
        %v7636 = vpop.f32.mrf.mxu0
        %v7637 = vadd.f32 %v7316, %v7636
        %v7638 = vpop.f32.mrf.mxu0
        %7639 = vmatprep.mubr.f32.mxu0 0.0
        %7640 = vmatmul.mubr.f32.gmra.mxu0 %v7464
        %v7641 = vpop.f32.mrf.mxu0
        %v7642 = vadd.f32 %v7321, %v7641
        %v7643 = vpop.f32.mrf.mxu0
        %7644 = vmatprep.mubr.f32.mxu0 0.0
        %7645 = vmatmul.mubr.f32.gmra.mxu0 %v7467
        %v7646 = vpop.f32.mrf.mxu0
        %v7647 = vadd.f32 %v7326, %v7646
        %v7648 = vpop.f32.mrf.mxu0
        %7649 = vmatprep.mubr.f32.mxu0 0.0
        %7650 = vmatmul.mubr.f32.gmra.mxu0 %v7470
        %v7651 = vpop.f32.mrf.mxu0
        %v7652 = vadd.f32 %v7331, %v7651
        %v7653 = vpop.f32.mrf.mxu0
        %7654 = vmatprep.mubr.f32.mxu0 0.0
        %7655 = vmatmul.mubr.f32.gmra.mxu0 %v7473
        %v7656 = vpop.f32.mrf.mxu0
        %v7657 = vadd.f32 %v7336, %v7656
        %v7658 = vpop.f32.mrf.mxu0
        %7659 = vmatprep.mubr.f32.mxu0 0.0
        %7660 = vmatmul.mubr.f32.gmra.mxu0 %v7476
        %v7661 = vpop.f32.mrf.mxu0
        %v7662 = vadd.f32 %v7341, %v7661
        %v7663 = vpop.f32.mrf.mxu0
        %7664 = vmatprep.mubr.f32.mxu0 0.0
        %7665 = vmatmul.mubr.f32.gmra.mxu0 %v7479
        %v7666 = vpop.f32.mrf.mxu0
        %v7667 = vadd.f32 %v7346, %v7666
        %v7668 = vpop.f32.mrf.mxu0
        %7669 = vmatprep.mubr.f32.mxu0 0.0
        %7670 = vmatmul.mubr.f32.gmra.mxu0 %v7482
        %v7671 = vpop.f32.mrf.mxu0
        %v7672 = vadd.f32 %v7351, %v7671
        %v7673 = vpop.f32.mrf.mxu0
        %7674 = vmatprep.mubr.f32.mxu0 0.0
        %7675 = vmatmul.mubr.f32.gmra.mxu0 %v7485
        %v7676 = vpop.f32.mrf.mxu0
        %v7677 = vadd.f32 %v7356, %v7676
        %v7678 = vpop.f32.mrf.mxu0
        %7679 = vmatprep.mubr.f32.mxu0 0.0
        %7680 = vmatmul.mubr.f32.gmra.mxu0 %v7488
        %v7681 = vpop.f32.mrf.mxu0
        %v7682 = vadd.f32 %v7361, %v7681
        %v7683 = vpop.f32.mrf.mxu0
        %7684 = vmatprep.mubr.f32.mxu0 0.0
        %7685 = vmatmul.mubr.f32.gmra.mxu0 %v7491
        %v7686 = vpop.f32.mrf.mxu0
        %v7687 = vadd.f32 %v7366, %v7686
        %v7688 = vpop.f32.mrf.mxu0
        %7689 = vmatprep.mubr.f32.mxu0 0.0
        %7690 = vmatmul.mubr.f32.gmra.mxu0 %v7494
        %v7691 = vpop.f32.mrf.mxu0
        %v7692 = vadd.f32 %v7371, %v7691
        %v7693 = vpop.f32.mrf.mxu0
        %7694 = vmatprep.mubr.f32.mxu0 0.0
        %7695 = vmatmul.mubr.f32.gmra.mxu0 %v7497
        %v7696 = vpop.f32.mrf.mxu0
        %v7697 = vadd.f32 %v7376, %v7696
        %v7698 = vpop.f32.mrf.mxu0
        %7699 = vmatprep.mubr.f32.mxu0 0.0
        %7700 = vmatmul.mubr.f32.gmra.mxu0 %v7500
        %v7701 = vpop.f32.mrf.mxu0
        %v7702 = vadd.f32 %v7381, %v7701
        %v7703 = vpop.f32.mrf.mxu0
        %7704 = vmatprep.mubr.f32.mxu0 0.0
        %7705 = vmatmul.mubr.f32.gmra.mxu0 %v7503
        %v7706 = vpop.f32.mrf.mxu0
        %v7707 = vadd.f32 %v7386, %v7706
        %v7708 = vpop.f32.mrf.mxu0
        %7709 = vmatprep.mubr.f32.mxu0 0.0
        %7710 = vmatmul.mubr.f32.gmra.mxu0 %v7506
        %v7711 = vpop.f32.mrf.mxu0
        %v7712 = vadd.f32 %v7391, %v7711
        %v7713 = vpop.f32.mrf.mxu0
        %7714 = vmatprep.mubr.f32.mxu0 0.0
        %7715 = vmatmul.mubr.f32.gmra.mxu0 %v7509
        %v7716 = vpop.f32.mrf.mxu0
        %v7717 = vadd.f32 %v7396, %v7716
        %v7718 = vpop.f32.mrf.mxu0
        %7719 = vmatprep.mubr.f32.mxu0 0.0
        %7720 = vmatmul.mubr.f32.gmra.mxu0 %v7512
        %v7721 = vpop.f32.mrf.mxu0
        %v7722 = vadd.f32 %v7401, %v7721
        %v7723 = vpop.f32.mrf.mxu0
        %7724 = vmatprep.mubr.f32.mxu0 0.0
        %7725 = vmatmul.mubr.f32.gmra.mxu0 %v7515
        %v7726 = vpop.f32.mrf.mxu0
        %v7727 = vadd.f32 %v7406, %v7726
        %v7728 = vpop.f32.mrf.mxu0
        %7729 = vmatprep.mubr.f32.mxu0 0.0
        %7730 = vmatmul.mubr.f32.gmra.mxu0 %v7518
        %v7731 = vpop.f32.mrf.mxu0
        %v7732 = vadd.f32 %v7411, %v7731
        %v7733 = vpop.f32.mrf.mxu0
        %7734 = vmatprep.mubr.f32.mxu0 0.0
        %7735 = vmatmul.mubr.f32.gmra.mxu0 %v7521
        %v7736 = vpop.f32.mrf.mxu0
        %v7737 = vadd.f32 %v7416, %v7736
        %v7738 = vpop.f32.mrf.mxu0
        %7739 = vmatprep.mubr.f32.mxu0 0.0
        %7740 = vmatmul.mubr.f32.gmra.mxu0 %v7524
        %v7741 = vpop.f32.mrf.mxu0
        %v7742 = vadd.f32 %v7421, %v7741
        %v7743 = vpop.f32.mrf.mxu0
        %7744 = vmatprep.mubr.f32.mxu0 0.0
        %7745 = vmatmul.mubr.f32.gmra.mxu0 %v7527
        %v7746 = vpop.f32.mrf.mxu0
        %v7747 = vadd.f32 %v7426, %v7746
        %v7748 = vpop.f32.mrf.mxu0
        %7749 = vmatprep.mubr.f32.mxu0 0.0
        %7750 = vmatmul.mubr.f32.gmra.mxu0 %v7530
        %v7751 = vpop.f32.mrf.mxu0
        %v7752 = vadd.f32 %v7431, %v7751
        %v7753 = vpop.f32.mrf.mxu0
        %7754 = vmatprep.mubr.f32.mxu0 0.0
        %7755 = vmatmul.mubr.f32.gmra.mxu0 %v7533
        %v7756 = vpop.f32.mrf.mxu0
        %v7757 = vadd.f32 %v7436, %v7756
        %v7758 = vpop.f32.mrf.mxu0
        %7759 = vdwg.mxu0
        %v7760 = vld [vmem:[#allocation2 + $0x2] sm:$0xff]
        %v7761 = vld [vmem:[#allocation2 + $0xa] sm:$0xff]
        %v7762 = vld [vmem:[#allocation2 + $0x1a] sm:$0xff]
        %v7763 = vld [vmem:[#allocation2 + $0x22] sm:$0xff]
        %v7764 = vld [vmem:[#allocation2 + $0x32] sm:$0xff]
        %v7765 = vld [vmem:[#allocation2 + $0x3a] sm:$0xff]
        %v7766 = vld [vmem:[#allocation2 + $0x4a] sm:$0xff]
        %v7767 = vld [vmem:[#allocation2 + $0x52] sm:$0xff]
        %v7768 = vld [vmem:[#allocation2 + $0x62] sm:$0xff]
        %v7769 = vld [vmem:[#allocation2 + $0x6a] sm:$0xff]
        %v7770 = vld [vmem:[#allocation2 + $0x7a] sm:$0xff]
        %v7771 = vld [vmem:[#allocation2 + $0x82] sm:$0xff]
        %v7772 = vld [vmem:[#allocation2 + $0x92] sm:$0xff]
        %v7773 = vld [vmem:[#allocation2 + $0x9a] sm:$0xff]
        %v7774 = vld [vmem:[#allocation2 + $0xaa] sm:$0xff]
        %v7775 = vld [vmem:[#allocation2 + $0xb2] sm:$0xff]
        %v7776 = vld [vmem:[#allocation2 + $0xc2] sm:$0xff]
        %v7777 = vld [vmem:[#allocation2 + $0xca] sm:$0xff]
        %v7778 = vld [vmem:[#allocation2 + $0xda] sm:$0xff]
        %v7779 = vld [vmem:[#allocation2 + $0xe2] sm:$0xff]
        %v7780 = vld [vmem:[#allocation2 + $0xf2] sm:$0xff]
        %v7781 = vld [vmem:[#allocation2 + $0xfa] sm:$0xff]
        %v7782 = vld [vmem:[#allocation2 + $0x10a] sm:$0xff]
        %v7783 = vld [vmem:[#allocation2 + $0x112] sm:$0xff]
        %v7784 = vld [vmem:[#allocation2 + $0x122] sm:$0xff]
        %v7785 = vld [vmem:[#allocation2 + $0x12a] sm:$0xff]
        %v7786 = vld [vmem:[#allocation2 + $0x13a] sm:$0xff]
        %v7787 = vld [vmem:[#allocation2 + $0x142] sm:$0xff]
        %v7788 = vld [vmem:[#allocation2 + $0x152] sm:$0xff]
        %v7789 = vld [vmem:[#allocation2 + $0x15a] sm:$0xff]
        %v7790 = vld [vmem:[#allocation2 + $0x16a] sm:$0xff]
        %v7791 = vld [vmem:[#allocation2 + $0x172] sm:$0xff]
        %s7792 = scalar_lea.vmem %s5, 352
        %v7793 = vld [vmem:[%s7792] sm:$0xff]
        %v7794 = vld [vmem:[%s7792 + $0x8] sm:$0xff]
        %v7795 = vld [vmem:[%s7792 + $0x10] sm:$0xff]
        %v7796 = vld [vmem:[%s7792 + $0x18] sm:$0xff]
        %v7798 = vsel %vm314, %v7760, 0
        %v7801 = vsel %vm314, %v7761, 0
        %v7804 = vsel %vm314, %v7762, 0
        %v7807 = vsel %vm314, %v7763, 0
        %v7810 = vsel %vm314, %v7764, 0
        %v7813 = vsel %vm314, %v7765, 0
        %v7816 = vsel %vm314, %v7766, 0
        %v7819 = vsel %vm314, %v7767, 0
        %v7822 = vsel %vm314, %v7768, 0
        %v7825 = vsel %vm314, %v7769, 0
        %v7828 = vsel %vm314, %v7770, 0
        %v7831 = vsel %vm314, %v7771, 0
        %v7834 = vsel %vm314, %v7772, 0
        %v7837 = vsel %vm314, %v7773, 0
        %v7840 = vsel %vm314, %v7774, 0
        %v7843 = vsel %vm314, %v7775, 0
        %v7846 = vsel %vm314, %v7776, 0
        %v7849 = vsel %vm314, %v7777, 0
        %v7852 = vsel %vm314, %v7778, 0
        %v7855 = vsel %vm314, %v7779, 0
        %v7858 = vsel %vm314, %v7780, 0
        %v7861 = vsel %vm314, %v7781, 0
        %v7864 = vsel %vm314, %v7782, 0
        %v7867 = vsel %vm314, %v7783, 0
        %v7870 = vsel %vm314, %v7784, 0
        %v7873 = vsel %vm314, %v7785, 0
        %v7876 = vsel %vm314, %v7786, 0
        %v7879 = vsel %vm314, %v7787, 0
        %v7882 = vsel %vm314, %v7788, 0
        %v7885 = vsel %vm314, %v7789, 0
        %v7888 = vsel %vm314, %v7790, 0
        %v7891 = vsel %vm314, %v7791, 0
        %7893 = vmatprep.subr.mxu0 0.0
        %7894 = vmatpush1.msra.mxu0 0.0
        %7895 = vmatprep.subr.mxu0 0.0
        %7896 = vmatpush1.msra.mxu0 0.0
        %7897 = vmatprep.subr.mxu0 0.0
        %7898 = vmatpush1.msra.mxu0 0.0
        %7899 = vmatprep.subr.mxu0 0.0
        %7900 = vmatpush1.msra.mxu0 0.0
        %7901 = vmatprep.subr.mxu0 0.0
        %7902 = vmatpush1.msra.mxu0 0.0
        %7903 = vmatprep.subr.mxu0 0.0
        %7904 = vmatpush1.msra.mxu0 0.0
        %7905 = vmatprep.subr.mxu0 0.0
        %7906 = vmatpush1.msra.mxu0 0.0
        %7907 = vmatprep.subr.mxu0 0.0
        %7908 = vmatpush1.msra.mxu0 0.0
        %7909 = vmatprep.subr.mxu0 0.0
        %7910 = vmatpush1.msra.mxu0 0.0
        %7911 = vmatprep.subr.mxu0 0.0
        %7912 = vmatpush1.msra.mxu0 0.0
        %7913 = vmatprep.subr.mxu0 0.0
        %7914 = vmatpush1.msra.mxu0 0.0
        %7915 = vmatprep.subr.mxu0 0.0
        %7916 = vmatpush1.msra.mxu0 0.0
        %7917 = vmatprep.subr.mxu0 0.0
        %7918 = vmatpush1.msra.mxu0 %v7796
        %7919 = vmatprep.subr.mxu0 0.0
        %7920 = vmatpush1.msra.mxu0 %v7795
        %7921 = vmatprep.subr.mxu0 0.0
        %7922 = vmatpush1.msra.mxu0 %v7794
        %7923 = vmatprep.subr.mxu0 0.0
        %7924 = vmatpush1.msra.mxu0 %v7793
        %7925 = vmatprep.subr.mxu0 0.0
        %7926 = vmatpush2.msra.mxu0 0.0
        %7927 = vmatprep.subr.mxu0 0.0
        %7928 = vmatpush2.msra.mxu0 0.0
        %7929 = vmatprep.subr.mxu0 0.0
        %7930 = vmatpush2.msra.mxu0 0.0
        %7931 = vmatprep.subr.mxu0 0.0
        %7932 = vmatpush2.msra.mxu0 0.0
        %7933 = vmatprep.subr.mxu0 0.0
        %7934 = vmatpush2.msra.mxu0 0.0
        %7935 = vmatprep.subr.mxu0 0.0
        %7936 = vmatpush2.msra.mxu0 0.0
        %7937 = vmatprep.subr.mxu0 0.0
        %7938 = vmatpush2.msra.mxu0 0.0
        %7939 = vmatprep.subr.mxu0 0.0
        %7940 = vmatpush2.msra.mxu0 0.0
        %7941 = vmatprep.subr.mxu0 0.0
        %7942 = vmatpush2.msra.mxu0 0.0
        %7943 = vmatprep.subr.mxu0 0.0
        %7944 = vmatpush2.msra.mxu0 0.0
        %7945 = vmatprep.subr.mxu0 0.0
        %7946 = vmatpush2.msra.mxu0 0.0
        %7947 = vmatprep.subr.mxu0 0.0
        %7948 = vmatpush2.msra.mxu0 0.0
        %7949 = vmatprep.subr.mxu0 0.0
        %7950 = vmatpush2.msra.mxu0 0.0
        %7951 = vmatprep.subr.mxu0 0.0
        %7952 = vmatpush2.msra.mxu0 0.0
        %7953 = vmatprep.subr.mxu0 0.0
        %7954 = vmatpush2.msra.mxu0 0.0
        %7955 = vmatprep.subr.mxu0 0.0
        %7956 = vmatpush2.msra.mxu0 0.0
        %7957 = vmatprep.mubr.f32.mxu0 0.0
        %7958 = vmatmul.mubr.f32.gmra.mxu0 %v7798
        %v7959 = vpop.f32.mrf.mxu0
        %v7960 = vadd.f32 0.0, %v7959
        %v7961 = vpop.f32.mrf.mxu0
        %7962 = vmatprep.mubr.f32.mxu0 0.0
        %7963 = vmatmul.mubr.f32.gmra.mxu0 %v7801
        %v7964 = vpop.f32.mrf.mxu0
        %v7965 = vadd.f32 0.0, %v7964
        %v7966 = vpop.f32.mrf.mxu0
        %7967 = vmatprep.mubr.f32.mxu0 0.0
        %7968 = vmatmul.mubr.f32.gmra.mxu0 %v7804
        %v7969 = vpop.f32.mrf.mxu0
        %v7970 = vadd.f32 0.0, %v7969
        %v7971 = vpop.f32.mrf.mxu0
        %7972 = vmatprep.mubr.f32.mxu0 0.0
        %7973 = vmatmul.mubr.f32.gmra.mxu0 %v7807
        %v7974 = vpop.f32.mrf.mxu0
        %v7975 = vadd.f32 0.0, %v7974
        %v7976 = vpop.f32.mrf.mxu0
        %7977 = vmatprep.mubr.f32.mxu0 0.0
        %7978 = vmatmul.mubr.f32.gmra.mxu0 %v7810
        %v7979 = vpop.f32.mrf.mxu0
        %v7980 = vadd.f32 0.0, %v7979
        %v7981 = vpop.f32.mrf.mxu0
        %7982 = vmatprep.mubr.f32.mxu0 0.0
        %7983 = vmatmul.mubr.f32.gmra.mxu0 %v7813
        %v7984 = vpop.f32.mrf.mxu0
        %v7985 = vadd.f32 0.0, %v7984
        %v7986 = vpop.f32.mrf.mxu0
        %7987 = vmatprep.mubr.f32.mxu0 0.0
        %7988 = vmatmul.mubr.f32.gmra.mxu0 %v7816
        %v7989 = vpop.f32.mrf.mxu0
        %v7990 = vadd.f32 0.0, %v7989
        %v7991 = vpop.f32.mrf.mxu0
        %7992 = vmatprep.mubr.f32.mxu0 0.0
        %7993 = vmatmul.mubr.f32.gmra.mxu0 %v7819
        %v7994 = vpop.f32.mrf.mxu0
        %v7995 = vadd.f32 0.0, %v7994
        %v7996 = vpop.f32.mrf.mxu0
        %7997 = vmatprep.mubr.f32.mxu0 0.0
        %7998 = vmatmul.mubr.f32.gmra.mxu0 %v7822
        %v7999 = vpop.f32.mrf.mxu0
        %v8000 = vadd.f32 0.0, %v7999
        %v8001 = vpop.f32.mrf.mxu0
        %8002 = vmatprep.mubr.f32.mxu0 0.0
        %8003 = vmatmul.mubr.f32.gmra.mxu0 %v7825
        %v8004 = vpop.f32.mrf.mxu0
        %v8005 = vadd.f32 0.0, %v8004
        %v8006 = vpop.f32.mrf.mxu0
        %8007 = vmatprep.mubr.f32.mxu0 0.0
        %8008 = vmatmul.mubr.f32.gmra.mxu0 %v7828
        %v8009 = vpop.f32.mrf.mxu0
        %v8010 = vadd.f32 0.0, %v8009
        %v8011 = vpop.f32.mrf.mxu0
        %8012 = vmatprep.mubr.f32.mxu0 0.0
        %8013 = vmatmul.mubr.f32.gmra.mxu0 %v7831
        %v8014 = vpop.f32.mrf.mxu0
        %v8015 = vadd.f32 0.0, %v8014
        %v8016 = vpop.f32.mrf.mxu0
        %8017 = vmatprep.mubr.f32.mxu0 0.0
        %8018 = vmatmul.mubr.f32.gmra.mxu0 %v7834
        %v8019 = vpop.f32.mrf.mxu0
        %v8020 = vadd.f32 0.0, %v8019
        %v8021 = vpop.f32.mrf.mxu0
        %8022 = vmatprep.mubr.f32.mxu0 0.0
        %8023 = vmatmul.mubr.f32.gmra.mxu0 %v7837
        %v8024 = vpop.f32.mrf.mxu0
        %v8025 = vadd.f32 0.0, %v8024
        %v8026 = vpop.f32.mrf.mxu0
        %8027 = vmatprep.mubr.f32.mxu0 0.0
        %8028 = vmatmul.mubr.f32.gmra.mxu0 %v7840
        %v8029 = vpop.f32.mrf.mxu0
        %v8030 = vadd.f32 0.0, %v8029
        %v8031 = vpop.f32.mrf.mxu0
        %8032 = vmatprep.mubr.f32.mxu0 0.0
        %8033 = vmatmul.mubr.f32.gmra.mxu0 %v7843
        %v8034 = vpop.f32.mrf.mxu0
        %v8035 = vadd.f32 0.0, %v8034
        %v8036 = vpop.f32.mrf.mxu0
        %8037 = vmatprep.mubr.f32.mxu0 0.0
        %8038 = vmatmul.mubr.f32.gmra.mxu0 %v7846
        %v8039 = vpop.f32.mrf.mxu0
        %v8040 = vadd.f32 0.0, %v8039
        %v8041 = vpop.f32.mrf.mxu0
        %8042 = vmatprep.mubr.f32.mxu0 0.0
        %8043 = vmatmul.mubr.f32.gmra.mxu0 %v7849
        %v8044 = vpop.f32.mrf.mxu0
        %v8045 = vadd.f32 0.0, %v8044
        %v8046 = vpop.f32.mrf.mxu0
        %8047 = vmatprep.mubr.f32.mxu0 0.0
        %8048 = vmatmul.mubr.f32.gmra.mxu0 %v7852
        %v8049 = vpop.f32.mrf.mxu0
        %v8050 = vadd.f32 0.0, %v8049
        %v8051 = vpop.f32.mrf.mxu0
        %8052 = vmatprep.mubr.f32.mxu0 0.0
        %8053 = vmatmul.mubr.f32.gmra.mxu0 %v7855
        %v8054 = vpop.f32.mrf.mxu0
        %v8055 = vadd.f32 0.0, %v8054
        %v8056 = vpop.f32.mrf.mxu0
        %8057 = vmatprep.mubr.f32.mxu0 0.0
        %8058 = vmatmul.mubr.f32.gmra.mxu0 %v7858
        %v8059 = vpop.f32.mrf.mxu0
        %v8060 = vadd.f32 0.0, %v8059
        %v8061 = vpop.f32.mrf.mxu0
        %8062 = vmatprep.mubr.f32.mxu0 0.0
        %8063 = vmatmul.mubr.f32.gmra.mxu0 %v7861
        %v8064 = vpop.f32.mrf.mxu0
        %v8065 = vadd.f32 0.0, %v8064
        %v8066 = vpop.f32.mrf.mxu0
        %8067 = vmatprep.mubr.f32.mxu0 0.0
        %8068 = vmatmul.mubr.f32.gmra.mxu0 %v7864
        %v8069 = vpop.f32.mrf.mxu0
        %v8070 = vadd.f32 0.0, %v8069
        %v8071 = vpop.f32.mrf.mxu0
        %8072 = vmatprep.mubr.f32.mxu0 0.0
        %8073 = vmatmul.mubr.f32.gmra.mxu0 %v7867
        %v8074 = vpop.f32.mrf.mxu0
        %v8075 = vadd.f32 0.0, %v8074
        %v8076 = vpop.f32.mrf.mxu0
        %8077 = vmatprep.mubr.f32.mxu0 0.0
        %8078 = vmatmul.mubr.f32.gmra.mxu0 %v7870
        %v8079 = vpop.f32.mrf.mxu0
        %v8080 = vadd.f32 0.0, %v8079
        %v8081 = vpop.f32.mrf.mxu0
        %8082 = vmatprep.mubr.f32.mxu0 0.0
        %8083 = vmatmul.mubr.f32.gmra.mxu0 %v7873
        %v8084 = vpop.f32.mrf.mxu0
        %v8085 = vadd.f32 0.0, %v8084
        %v8086 = vpop.f32.mrf.mxu0
        %8087 = vmatprep.mubr.f32.mxu0 0.0
        %8088 = vmatmul.mubr.f32.gmra.mxu0 %v7876
        %v8089 = vpop.f32.mrf.mxu0
        %v8090 = vadd.f32 0.0, %v8089
        %v8091 = vpop.f32.mrf.mxu0
        %8092 = vmatprep.mubr.f32.mxu0 0.0
        %8093 = vmatmul.mubr.f32.gmra.mxu0 %v7879
        %v8094 = vpop.f32.mrf.mxu0
        %v8095 = vadd.f32 0.0, %v8094
        %v8096 = vpop.f32.mrf.mxu0
        %8097 = vmatprep.mubr.f32.mxu0 0.0
        %8098 = vmatmul.mubr.f32.gmra.mxu0 %v7882
        %v8099 = vpop.f32.mrf.mxu0
        %v8100 = vadd.f32 0.0, %v8099
        %v8101 = vpop.f32.mrf.mxu0
        %8102 = vmatprep.mubr.f32.mxu0 0.0
        %8103 = vmatmul.mubr.f32.gmra.mxu0 %v7885
        %v8104 = vpop.f32.mrf.mxu0
        %v8105 = vadd.f32 0.0, %v8104
        %v8106 = vpop.f32.mrf.mxu0
        %8107 = vmatprep.mubr.f32.mxu0 0.0
        %8108 = vmatmul.mubr.f32.gmra.mxu0 %v7888
        %v8109 = vpop.f32.mrf.mxu0
        %v8110 = vadd.f32 0.0, %v8109
        %v8111 = vpop.f32.mrf.mxu0
        %8112 = vmatprep.mubr.f32.mxu0 0.0
        %8113 = vmatmul.mubr.f32.gmra.mxu0 %v7891
        %v8114 = vpop.f32.mrf.mxu0
        %v8115 = vadd.f32 0.0, %v8114
        %v8116 = vpop.f32.mrf.mxu0
        %8117 = vdwg.mxu0
        %v8118 = vadd.f32 %v7602, %v7960
        %v8119 = vadd.f32 %v7607, %v7965
        %v8120 = vadd.f32 %v7612, %v7970
        %v8121 = vadd.f32 %v7617, %v7975
        %v8122 = vadd.f32 %v7622, %v7980
        %v8123 = vadd.f32 %v7627, %v7985
        %v8124 = vadd.f32 %v7632, %v7990
        %v8125 = vadd.f32 %v7637, %v7995
        %v8126 = vadd.f32 %v7642, %v8000
        %v8127 = vadd.f32 %v7647, %v8005
        %v8128 = vadd.f32 %v7652, %v8010
        %v8129 = vadd.f32 %v7657, %v8015
        %v8130 = vadd.f32 %v7662, %v8020
        %v8131 = vadd.f32 %v7667, %v8025
        %v8132 = vadd.f32 %v7672, %v8030
        %v8133 = vadd.f32 %v7677, %v8035
        %v8134 = vadd.f32 %v7682, %v8040
        %v8135 = vadd.f32 %v7687, %v8045
        %v8136 = vadd.f32 %v7692, %v8050
        %v8137 = vadd.f32 %v7697, %v8055
        %v8138 = vadd.f32 %v7702, %v8060
        %v8139 = vadd.f32 %v7707, %v8065
        %v8140 = vadd.f32 %v7712, %v8070
        %v8141 = vadd.f32 %v7717, %v8075
        %v8142 = vadd.f32 %v7722, %v8080
        %v8143 = vadd.f32 %v7727, %v8085
        %v8144 = vadd.f32 %v7732, %v8090
        %v8145 = vadd.f32 %v7737, %v8095
        %v8146 = vadd.f32 %v7742, %v8100
        %v8147 = vadd.f32 %v7747, %v8105
        %v8148 = vadd.f32 %v7752, %v8110
        %v8149 = vadd.f32 %v7757, %v8115
        %v8150 = vld [vmem:[%s392] sm:$0xff]
        %v8151 = vld [vmem:[%s392 + $0x8] sm:$0xff]
        %v8152 = vld [vmem:[%s392 + $0x18] sm:$0xff]
        %v8153 = vld [vmem:[%s392 + $0x20] sm:$0xff]
        %v8154 = vld [vmem:[%s392 + $0x30] sm:$0xff]
        %v8155 = vld [vmem:[%s392 + $0x38] sm:$0xff]
        %v8156 = vld [vmem:[%s392 + $0x48] sm:$0xff]
        %v8157 = vld [vmem:[%s392 + $0x50] sm:$0xff]
        %v8158 = vld [vmem:[%s392 + $0x60] sm:$0xff]
        %v8159 = vld [vmem:[%s392 + $0x68] sm:$0xff]
        %v8160 = vld [vmem:[%s392 + $0x78] sm:$0xff]
        %v8161 = vld [vmem:[%s392 + $0x80] sm:$0xff]
        %v8162 = vld [vmem:[%s392 + $0x90] sm:$0xff]
        %v8163 = vld [vmem:[%s392 + $0x98] sm:$0xff]
        %v8164 = vld [vmem:[%s392 + $0xa8] sm:$0xff]
        %v8165 = vld [vmem:[%s392 + $0xb0] sm:$0xff]
        %v8166 = vld [vmem:[%s392 + $0xc0] sm:$0xff]
        %v8167 = vld [vmem:[%s392 + $0xc8] sm:$0xff]
        %v8168 = vld [vmem:[%s392 + $0xd8] sm:$0xff]
        %v8169 = vld [vmem:[%s392 + $0xe0] sm:$0xff]
        %v8170 = vld [vmem:[%s392 + $0xf0] sm:$0xff]
        %v8171 = vld [vmem:[%s392 + $0xf8] sm:$0xff]
        %v8172 = vld [vmem:[%s392 + $0x108] sm:$0xff]
        %v8173 = vld [vmem:[%s392 + $0x110] sm:$0xff]
        %v8174 = vld [vmem:[%s392 + $0x120] sm:$0xff]
        %v8175 = vld [vmem:[%s392 + $0x128] sm:$0xff]
        %v8176 = vld [vmem:[%s392 + $0x138] sm:$0xff]
        %v8177 = vld [vmem:[%s392 + $0x140] sm:$0xff]
        %v8178 = vld [vmem:[%s392 + $0x150] sm:$0xff]
        %v8179 = vld [vmem:[%s392 + $0x158] sm:$0xff]
        %v8180 = vld [vmem:[%s392 + $0x168] sm:$0xff]
        %v8181 = vld [vmem:[%s392 + $0x170] sm:$0xff]
        %s8182 = scalar_lea.vmem %s5, 384
        %v8183 = vld [vmem:[%s8182] sm:$0xff]
        %v8184 = vld [vmem:[%s8182 + $0x8] sm:$0xff]
        %v8185 = vld [vmem:[%s8182 + $0x10] sm:$0xff]
        %v8186 = vld [vmem:[%s8182 + $0x18] sm:$0xff]
        %v8188 = vsel %vm314, %v8150, 0
        %v8191 = vsel %vm314, %v8151, 0
        %v8194 = vsel %vm314, %v8152, 0
        %v8197 = vsel %vm314, %v8153, 0
        %v8200 = vsel %vm314, %v8154, 0
        %v8203 = vsel %vm314, %v8155, 0
        %v8206 = vsel %vm314, %v8156, 0
        %v8209 = vsel %vm314, %v8157, 0
        %v8212 = vsel %vm314, %v8158, 0
        %v8215 = vsel %vm314, %v8159, 0
        %v8218 = vsel %vm314, %v8160, 0
        %v8221 = vsel %vm314, %v8161, 0
        %v8224 = vsel %vm314, %v8162, 0
        %v8227 = vsel %vm314, %v8163, 0
        %v8230 = vsel %vm314, %v8164, 0
        %v8233 = vsel %vm314, %v8165, 0
        %v8236 = vsel %vm314, %v8166, 0
        %v8239 = vsel %vm314, %v8167, 0
        %v8242 = vsel %vm314, %v8168, 0
        %v8245 = vsel %vm314, %v8169, 0
        %v8248 = vsel %vm314, %v8170, 0
        %v8251 = vsel %vm314, %v8171, 0
        %v8254 = vsel %vm314, %v8172, 0
        %v8257 = vsel %vm314, %v8173, 0
        %v8260 = vsel %vm314, %v8174, 0
        %v8263 = vsel %vm314, %v8175, 0
        %v8266 = vsel %vm314, %v8176, 0
        %v8269 = vsel %vm314, %v8177, 0
        %v8272 = vsel %vm314, %v8178, 0
        %v8275 = vsel %vm314, %v8179, 0
        %v8278 = vsel %vm314, %v8180, 0
        %v8281 = vsel %vm314, %v8181, 0
        %8283 = vmatprep.subr.mxu0 0.0
        %8284 = vmatpush1.msra.mxu0 0.0
        %8285 = vmatprep.subr.mxu0 0.0
        %8286 = vmatpush1.msra.mxu0 0.0
        %8287 = vmatprep.subr.mxu0 0.0
        %8288 = vmatpush1.msra.mxu0 0.0
        %8289 = vmatprep.subr.mxu0 0.0
        %8290 = vmatpush1.msra.mxu0 0.0
        %8291 = vmatprep.subr.mxu0 0.0
        %8292 = vmatpush1.msra.mxu0 0.0
        %8293 = vmatprep.subr.mxu0 0.0
        %8294 = vmatpush1.msra.mxu0 0.0
        %8295 = vmatprep.subr.mxu0 0.0
        %8296 = vmatpush1.msra.mxu0 0.0
        %8297 = vmatprep.subr.mxu0 0.0
        %8298 = vmatpush1.msra.mxu0 0.0
        %8299 = vmatprep.subr.mxu0 0.0
        %8300 = vmatpush1.msra.mxu0 0.0
        %8301 = vmatprep.subr.mxu0 0.0
        %8302 = vmatpush1.msra.mxu0 0.0
        %8303 = vmatprep.subr.mxu0 0.0
        %8304 = vmatpush1.msra.mxu0 0.0
        %8305 = vmatprep.subr.mxu0 0.0
        %8306 = vmatpush1.msra.mxu0 0.0
        %8307 = vmatprep.subr.mxu0 0.0
        %8308 = vmatpush1.msra.mxu0 %v8186
        %8309 = vmatprep.subr.mxu0 0.0
        %8310 = vmatpush1.msra.mxu0 %v8185
        %8311 = vmatprep.subr.mxu0 0.0
        %8312 = vmatpush1.msra.mxu0 %v8184
        %8313 = vmatprep.subr.mxu0 0.0
        %8314 = vmatpush1.msra.mxu0 %v8183
        %8315 = vmatprep.subr.mxu0 0.0
        %8316 = vmatpush2.msra.mxu0 0.0
        %8317 = vmatprep.subr.mxu0 0.0
        %8318 = vmatpush2.msra.mxu0 0.0
        %8319 = vmatprep.subr.mxu0 0.0
        %8320 = vmatpush2.msra.mxu0 0.0
        %8321 = vmatprep.subr.mxu0 0.0
        %8322 = vmatpush2.msra.mxu0 0.0
        %8323 = vmatprep.subr.mxu0 0.0
        %8324 = vmatpush2.msra.mxu0 0.0
        %8325 = vmatprep.subr.mxu0 0.0
        %8326 = vmatpush2.msra.mxu0 0.0
        %8327 = vmatprep.subr.mxu0 0.0
        %8328 = vmatpush2.msra.mxu0 0.0
        %8329 = vmatprep.subr.mxu0 0.0
        %8330 = vmatpush2.msra.mxu0 0.0
        %8331 = vmatprep.subr.mxu0 0.0
        %8332 = vmatpush2.msra.mxu0 0.0
        %8333 = vmatprep.subr.mxu0 0.0
        %8334 = vmatpush2.msra.mxu0 0.0
        %8335 = vmatprep.subr.mxu0 0.0
        %8336 = vmatpush2.msra.mxu0 0.0
        %8337 = vmatprep.subr.mxu0 0.0
        %8338 = vmatpush2.msra.mxu0 0.0
        %8339 = vmatprep.subr.mxu0 0.0
        %8340 = vmatpush2.msra.mxu0 0.0
        %8341 = vmatprep.subr.mxu0 0.0
        %8342 = vmatpush2.msra.mxu0 0.0
        %8343 = vmatprep.subr.mxu0 0.0
        %8344 = vmatpush2.msra.mxu0 0.0
        %8345 = vmatprep.subr.mxu0 0.0
        %8346 = vmatpush2.msra.mxu0 0.0
        %8347 = vmatprep.mubr.f32.mxu0 0.0
        %8348 = vmatmul.mubr.f32.gmra.mxu0 %v8188
        %v8349 = vpop.f32.mrf.mxu0
        %v8350 = vadd.f32 0.0, %v8349
        %v8351 = vpop.f32.mrf.mxu0
        %8352 = vmatprep.mubr.f32.mxu0 0.0
        %8353 = vmatmul.mubr.f32.gmra.mxu0 %v8191
        %v8354 = vpop.f32.mrf.mxu0
        %v8355 = vadd.f32 0.0, %v8354
        %v8356 = vpop.f32.mrf.mxu0
        %8357 = vmatprep.mubr.f32.mxu0 0.0
        %8358 = vmatmul.mubr.f32.gmra.mxu0 %v8194
        %v8359 = vpop.f32.mrf.mxu0
        %v8360 = vadd.f32 0.0, %v8359
        %v8361 = vpop.f32.mrf.mxu0
        %8362 = vmatprep.mubr.f32.mxu0 0.0
        %8363 = vmatmul.mubr.f32.gmra.mxu0 %v8197
        %v8364 = vpop.f32.mrf.mxu0
        %v8365 = vadd.f32 0.0, %v8364
        %v8366 = vpop.f32.mrf.mxu0
        %8367 = vmatprep.mubr.f32.mxu0 0.0
        %8368 = vmatmul.mubr.f32.gmra.mxu0 %v8200
        %v8369 = vpop.f32.mrf.mxu0
        %v8370 = vadd.f32 0.0, %v8369
        %v8371 = vpop.f32.mrf.mxu0
        %8372 = vmatprep.mubr.f32.mxu0 0.0
        %8373 = vmatmul.mubr.f32.gmra.mxu0 %v8203
        %v8374 = vpop.f32.mrf.mxu0
        %v8375 = vadd.f32 0.0, %v8374
        %v8376 = vpop.f32.mrf.mxu0
        %8377 = vmatprep.mubr.f32.mxu0 0.0
        %8378 = vmatmul.mubr.f32.gmra.mxu0 %v8206
        %v8379 = vpop.f32.mrf.mxu0
        %v8380 = vadd.f32 0.0, %v8379
        %v8381 = vpop.f32.mrf.mxu0
        %8382 = vmatprep.mubr.f32.mxu0 0.0
        %8383 = vmatmul.mubr.f32.gmra.mxu0 %v8209
        %v8384 = vpop.f32.mrf.mxu0
        %v8385 = vadd.f32 0.0, %v8384
        %v8386 = vpop.f32.mrf.mxu0
        %8387 = vmatprep.mubr.f32.mxu0 0.0
        %8388 = vmatmul.mubr.f32.gmra.mxu0 %v8212
        %v8389 = vpop.f32.mrf.mxu0
        %v8390 = vadd.f32 0.0, %v8389
        %v8391 = vpop.f32.mrf.mxu0
        %8392 = vmatprep.mubr.f32.mxu0 0.0
        %8393 = vmatmul.mubr.f32.gmra.mxu0 %v8215
        %v8394 = vpop.f32.mrf.mxu0
        %v8395 = vadd.f32 0.0, %v8394
        %v8396 = vpop.f32.mrf.mxu0
        %8397 = vmatprep.mubr.f32.mxu0 0.0
        %8398 = vmatmul.mubr.f32.gmra.mxu0 %v8218
        %v8399 = vpop.f32.mrf.mxu0
        %v8400 = vadd.f32 0.0, %v8399
        %v8401 = vpop.f32.mrf.mxu0
        %8402 = vmatprep.mubr.f32.mxu0 0.0
        %8403 = vmatmul.mubr.f32.gmra.mxu0 %v8221
        %v8404 = vpop.f32.mrf.mxu0
        %v8405 = vadd.f32 0.0, %v8404
        %v8406 = vpop.f32.mrf.mxu0
        %8407 = vmatprep.mubr.f32.mxu0 0.0
        %8408 = vmatmul.mubr.f32.gmra.mxu0 %v8224
        %v8409 = vpop.f32.mrf.mxu0
        %v8410 = vadd.f32 0.0, %v8409
        %v8411 = vpop.f32.mrf.mxu0
        %8412 = vmatprep.mubr.f32.mxu0 0.0
        %8413 = vmatmul.mubr.f32.gmra.mxu0 %v8227
        %v8414 = vpop.f32.mrf.mxu0
        %v8415 = vadd.f32 0.0, %v8414
        %v8416 = vpop.f32.mrf.mxu0
        %8417 = vmatprep.mubr.f32.mxu0 0.0
        %8418 = vmatmul.mubr.f32.gmra.mxu0 %v8230
        %v8419 = vpop.f32.mrf.mxu0
        %v8420 = vadd.f32 0.0, %v8419
        %v8421 = vpop.f32.mrf.mxu0
        %8422 = vmatprep.mubr.f32.mxu0 0.0
        %8423 = vmatmul.mubr.f32.gmra.mxu0 %v8233
        %v8424 = vpop.f32.mrf.mxu0
        %v8425 = vadd.f32 0.0, %v8424
        %v8426 = vpop.f32.mrf.mxu0
        %8427 = vmatprep.mubr.f32.mxu0 0.0
        %8428 = vmatmul.mubr.f32.gmra.mxu0 %v8236
        %v8429 = vpop.f32.mrf.mxu0
        %v8430 = vadd.f32 0.0, %v8429
        %v8431 = vpop.f32.mrf.mxu0
        %8432 = vmatprep.mubr.f32.mxu0 0.0
        %8433 = vmatmul.mubr.f32.gmra.mxu0 %v8239
        %v8434 = vpop.f32.mrf.mxu0
        %v8435 = vadd.f32 0.0, %v8434
        %v8436 = vpop.f32.mrf.mxu0
        %8437 = vmatprep.mubr.f32.mxu0 0.0
        %8438 = vmatmul.mubr.f32.gmra.mxu0 %v8242
        %v8439 = vpop.f32.mrf.mxu0
        %v8440 = vadd.f32 0.0, %v8439
        %v8441 = vpop.f32.mrf.mxu0
        %8442 = vmatprep.mubr.f32.mxu0 0.0
        %8443 = vmatmul.mubr.f32.gmra.mxu0 %v8245
        %v8444 = vpop.f32.mrf.mxu0
        %v8445 = vadd.f32 0.0, %v8444
        %v8446 = vpop.f32.mrf.mxu0
        %8447 = vmatprep.mubr.f32.mxu0 0.0
        %8448 = vmatmul.mubr.f32.gmra.mxu0 %v8248
        %v8449 = vpop.f32.mrf.mxu0
        %v8450 = vadd.f32 0.0, %v8449
        %v8451 = vpop.f32.mrf.mxu0
        %8452 = vmatprep.mubr.f32.mxu0 0.0
        %8453 = vmatmul.mubr.f32.gmra.mxu0 %v8251
        %v8454 = vpop.f32.mrf.mxu0
        %v8455 = vadd.f32 0.0, %v8454
        %v8456 = vpop.f32.mrf.mxu0
        %8457 = vmatprep.mubr.f32.mxu0 0.0
        %8458 = vmatmul.mubr.f32.gmra.mxu0 %v8254
        %v8459 = vpop.f32.mrf.mxu0
        %v8460 = vadd.f32 0.0, %v8459
        %v8461 = vpop.f32.mrf.mxu0
        %8462 = vmatprep.mubr.f32.mxu0 0.0
        %8463 = vmatmul.mubr.f32.gmra.mxu0 %v8257
        %v8464 = vpop.f32.mrf.mxu0
        %v8465 = vadd.f32 0.0, %v8464
        %v8466 = vpop.f32.mrf.mxu0
        %8467 = vmatprep.mubr.f32.mxu0 0.0
        %8468 = vmatmul.mubr.f32.gmra.mxu0 %v8260
        %v8469 = vpop.f32.mrf.mxu0
        %v8470 = vadd.f32 0.0, %v8469
        %v8471 = vpop.f32.mrf.mxu0
        %8472 = vmatprep.mubr.f32.mxu0 0.0
        %8473 = vmatmul.mubr.f32.gmra.mxu0 %v8263
        %v8474 = vpop.f32.mrf.mxu0
        %v8475 = vadd.f32 0.0, %v8474
        %v8476 = vpop.f32.mrf.mxu0
        %8477 = vmatprep.mubr.f32.mxu0 0.0
        %8478 = vmatmul.mubr.f32.gmra.mxu0 %v8266
        %v8479 = vpop.f32.mrf.mxu0
        %v8480 = vadd.f32 0.0, %v8479
        %v8481 = vpop.f32.mrf.mxu0
        %8482 = vmatprep.mubr.f32.mxu0 0.0
        %8483 = vmatmul.mubr.f32.gmra.mxu0 %v8269
        %v8484 = vpop.f32.mrf.mxu0
        %v8485 = vadd.f32 0.0, %v8484
        %v8486 = vpop.f32.mrf.mxu0
        %8487 = vmatprep.mubr.f32.mxu0 0.0
        %8488 = vmatmul.mubr.f32.gmra.mxu0 %v8272
        %v8489 = vpop.f32.mrf.mxu0
        %v8490 = vadd.f32 0.0, %v8489
        %v8491 = vpop.f32.mrf.mxu0
        %8492 = vmatprep.mubr.f32.mxu0 0.0
        %8493 = vmatmul.mubr.f32.gmra.mxu0 %v8275
        %v8494 = vpop.f32.mrf.mxu0
        %v8495 = vadd.f32 0.0, %v8494
        %v8496 = vpop.f32.mrf.mxu0
        %8497 = vmatprep.mubr.f32.mxu0 0.0
        %8498 = vmatmul.mubr.f32.gmra.mxu0 %v8278
        %v8499 = vpop.f32.mrf.mxu0
        %v8500 = vadd.f32 0.0, %v8499
        %v8501 = vpop.f32.mrf.mxu0
        %8502 = vmatprep.mubr.f32.mxu0 0.0
        %8503 = vmatmul.mubr.f32.gmra.mxu0 %v8281
        %v8504 = vpop.f32.mrf.mxu0
        %v8505 = vadd.f32 0.0, %v8504
        %v8506 = vpop.f32.mrf.mxu0
        %8507 = vdwg.mxu0
        %v8508 = vadd.f32 %v8118, %v8350
        %v8509 = vadd.f32 %v8119, %v8355
        %v8510 = vadd.f32 %v8120, %v8360
        %v8511 = vadd.f32 %v8121, %v8365
        %v8512 = vadd.f32 %v8122, %v8370
        %v8513 = vadd.f32 %v8123, %v8375
        %v8514 = vadd.f32 %v8124, %v8380
        %v8515 = vadd.f32 %v8125, %v8385
        %v8516 = vadd.f32 %v8126, %v8390
        %v8517 = vadd.f32 %v8127, %v8395
        %v8518 = vadd.f32 %v8128, %v8400
        %v8519 = vadd.f32 %v8129, %v8405
        %v8520 = vadd.f32 %v8130, %v8410
        %v8521 = vadd.f32 %v8131, %v8415
        %v8522 = vadd.f32 %v8132, %v8420
        %v8523 = vadd.f32 %v8133, %v8425
        %v8524 = vadd.f32 %v8134, %v8430
        %v8525 = vadd.f32 %v8135, %v8435
        %v8526 = vadd.f32 %v8136, %v8440
        %v8527 = vadd.f32 %v8137, %v8445
        %v8528 = vadd.f32 %v8138, %v8450
        %v8529 = vadd.f32 %v8139, %v8455
        %v8530 = vadd.f32 %v8140, %v8460
        %v8531 = vadd.f32 %v8141, %v8465
        %v8532 = vadd.f32 %v8142, %v8470
        %v8533 = vadd.f32 %v8143, %v8475
        %v8534 = vadd.f32 %v8144, %v8480
        %v8535 = vadd.f32 %v8145, %v8485
        %v8536 = vadd.f32 %v8146, %v8490
        %v8537 = vadd.f32 %v8147, %v8495
        %v8538 = vadd.f32 %v8148, %v8500
        %v8539 = vadd.f32 %v8149, %v8505
        %v8540 = vld [vmem:[%s392 + $0x1] sm:$0xff]
        %v8541 = vld [vmem:[%s392 + $0x9] sm:$0xff]
        %v8542 = vld [vmem:[%s392 + $0x19] sm:$0xff]
        %v8543 = vld [vmem:[%s392 + $0x21] sm:$0xff]
        %v8544 = vld [vmem:[%s392 + $0x31] sm:$0xff]
        %v8545 = vld [vmem:[%s392 + $0x39] sm:$0xff]
        %v8546 = vld [vmem:[%s392 + $0x49] sm:$0xff]
        %v8547 = vld [vmem:[%s392 + $0x51] sm:$0xff]
        %v8548 = vld [vmem:[%s392 + $0x61] sm:$0xff]
        %v8549 = vld [vmem:[%s392 + $0x69] sm:$0xff]
        %v8550 = vld [vmem:[%s392 + $0x79] sm:$0xff]
        %v8551 = vld [vmem:[%s392 + $0x81] sm:$0xff]
        %v8552 = vld [vmem:[%s392 + $0x91] sm:$0xff]
        %v8553 = vld [vmem:[%s392 + $0x99] sm:$0xff]
        %v8554 = vld [vmem:[%s392 + $0xa9] sm:$0xff]
        %v8555 = vld [vmem:[%s392 + $0xb1] sm:$0xff]
        %v8556 = vld [vmem:[%s392 + $0xc1] sm:$0xff]
        %v8557 = vld [vmem:[%s392 + $0xc9] sm:$0xff]
        %v8558 = vld [vmem:[%s392 + $0xd9] sm:$0xff]
        %v8559 = vld [vmem:[%s392 + $0xe1] sm:$0xff]
        %v8560 = vld [vmem:[%s392 + $0xf1] sm:$0xff]
        %v8561 = vld [vmem:[%s392 + $0xf9] sm:$0xff]
        %v8562 = vld [vmem:[%s392 + $0x109] sm:$0xff]
        %v8563 = vld [vmem:[%s392 + $0x111] sm:$0xff]
        %v8564 = vld [vmem:[%s392 + $0x121] sm:$0xff]
        %v8565 = vld [vmem:[%s392 + $0x129] sm:$0xff]
        %v8566 = vld [vmem:[%s392 + $0x139] sm:$0xff]
        %v8567 = vld [vmem:[%s392 + $0x141] sm:$0xff]
        %v8568 = vld [vmem:[%s392 + $0x151] sm:$0xff]
        %v8569 = vld [vmem:[%s392 + $0x159] sm:$0xff]
        %v8570 = vld [vmem:[%s392 + $0x169] sm:$0xff]
        %v8571 = vld [vmem:[%s392 + $0x171] sm:$0xff]
        %s8572 = scalar_lea.vmem %s5, 416
        %v8573 = vld [vmem:[%s8572] sm:$0xff]
        %v8574 = vld [vmem:[%s8572 + $0x8] sm:$0xff]
        %v8575 = vld [vmem:[%s8572 + $0x10] sm:$0xff]
        %v8576 = vld [vmem:[%s8572 + $0x18] sm:$0xff]
        %v8578 = vsel %vm314, %v8540, 0
        %v8581 = vsel %vm314, %v8541, 0
        %v8584 = vsel %vm314, %v8542, 0
        %v8587 = vsel %vm314, %v8543, 0
        %v8590 = vsel %vm314, %v8544, 0
        %v8593 = vsel %vm314, %v8545, 0
        %v8596 = vsel %vm314, %v8546, 0
        %v8599 = vsel %vm314, %v8547, 0
        %v8602 = vsel %vm314, %v8548, 0
        %v8605 = vsel %vm314, %v8549, 0
        %v8608 = vsel %vm314, %v8550, 0
        %v8611 = vsel %vm314, %v8551, 0
        %v8614 = vsel %vm314, %v8552, 0
        %v8617 = vsel %vm314, %v8553, 0
        %v8620 = vsel %vm314, %v8554, 0
        %v8623 = vsel %vm314, %v8555, 0
        %v8626 = vsel %vm314, %v8556, 0
        %v8629 = vsel %vm314, %v8557, 0
        %v8632 = vsel %vm314, %v8558, 0
        %v8635 = vsel %vm314, %v8559, 0
        %v8638 = vsel %vm314, %v8560, 0
        %v8641 = vsel %vm314, %v8561, 0
        %v8644 = vsel %vm314, %v8562, 0
        %v8647 = vsel %vm314, %v8563, 0
        %v8650 = vsel %vm314, %v8564, 0
        %v8653 = vsel %vm314, %v8565, 0
        %v8656 = vsel %vm314, %v8566, 0
        %v8659 = vsel %vm314, %v8567, 0
        %v8662 = vsel %vm314, %v8568, 0
        %v8665 = vsel %vm314, %v8569, 0
        %v8668 = vsel %vm314, %v8570, 0
        %v8671 = vsel %vm314, %v8571, 0
        %8673 = vmatprep.subr.mxu0 0.0
        %8674 = vmatpush1.msra.mxu0 0.0
        %8675 = vmatprep.subr.mxu0 0.0
        %8676 = vmatpush1.msra.mxu0 0.0
        %8677 = vmatprep.subr.mxu0 0.0
        %8678 = vmatpush1.msra.mxu0 0.0
        %8679 = vmatprep.subr.mxu0 0.0
        %8680 = vmatpush1.msra.mxu0 0.0
        %8681 = vmatprep.subr.mxu0 0.0
        %8682 = vmatpush1.msra.mxu0 0.0
        %8683 = vmatprep.subr.mxu0 0.0
        %8684 = vmatpush1.msra.mxu0 0.0
        %8685 = vmatprep.subr.mxu0 0.0
        %8686 = vmatpush1.msra.mxu0 0.0
        %8687 = vmatprep.subr.mxu0 0.0
        %8688 = vmatpush1.msra.mxu0 0.0
        %8689 = vmatprep.subr.mxu0 0.0
        %8690 = vmatpush1.msra.mxu0 0.0
        %8691 = vmatprep.subr.mxu0 0.0
        %8692 = vmatpush1.msra.mxu0 0.0
        %8693 = vmatprep.subr.mxu0 0.0
        %8694 = vmatpush1.msra.mxu0 0.0
        %8695 = vmatprep.subr.mxu0 0.0
        %8696 = vmatpush1.msra.mxu0 0.0
        %8697 = vmatprep.subr.mxu0 0.0
        %8698 = vmatpush1.msra.mxu0 %v8576
        %8699 = vmatprep.subr.mxu0 0.0
        %8700 = vmatpush1.msra.mxu0 %v8575
        %8701 = vmatprep.subr.mxu0 0.0
        %8702 = vmatpush1.msra.mxu0 %v8574
        %8703 = vmatprep.subr.mxu0 0.0
        %8704 = vmatpush1.msra.mxu0 %v8573
        %8705 = vmatprep.subr.mxu0 0.0
        %8706 = vmatpush2.msra.mxu0 0.0
        %8707 = vmatprep.subr.mxu0 0.0
        %8708 = vmatpush2.msra.mxu0 0.0
        %8709 = vmatprep.subr.mxu0 0.0
        %8710 = vmatpush2.msra.mxu0 0.0
        %8711 = vmatprep.subr.mxu0 0.0
        %8712 = vmatpush2.msra.mxu0 0.0
        %8713 = vmatprep.subr.mxu0 0.0
        %8714 = vmatpush2.msra.mxu0 0.0
        %8715 = vmatprep.subr.mxu0 0.0
        %8716 = vmatpush2.msra.mxu0 0.0
        %8717 = vmatprep.subr.mxu0 0.0
        %8718 = vmatpush2.msra.mxu0 0.0
        %8719 = vmatprep.subr.mxu0 0.0
        %8720 = vmatpush2.msra.mxu0 0.0
        %8721 = vmatprep.subr.mxu0 0.0
        %8722 = vmatpush2.msra.mxu0 0.0
        %8723 = vmatprep.subr.mxu0 0.0
        %8724 = vmatpush2.msra.mxu0 0.0
        %8725 = vmatprep.subr.mxu0 0.0
        %8726 = vmatpush2.msra.mxu0 0.0
        %8727 = vmatprep.subr.mxu0 0.0
        %8728 = vmatpush2.msra.mxu0 0.0
        %8729 = vmatprep.subr.mxu0 0.0
        %8730 = vmatpush2.msra.mxu0 0.0
        %8731 = vmatprep.subr.mxu0 0.0
        %8732 = vmatpush2.msra.mxu0 0.0
        %8733 = vmatprep.subr.mxu0 0.0
        %8734 = vmatpush2.msra.mxu0 0.0
        %8735 = vmatprep.subr.mxu0 0.0
        %8736 = vmatpush2.msra.mxu0 0.0
        %8737 = vmatprep.mubr.f32.mxu0 0.0
        %8738 = vmatmul.mubr.f32.gmra.mxu0 %v8578
        %v8739 = vpop.f32.mrf.mxu0
        %v8740 = vadd.f32 0.0, %v8739
        %v8741 = vpop.f32.mrf.mxu0
        %8742 = vmatprep.mubr.f32.mxu0 0.0
        %8743 = vmatmul.mubr.f32.gmra.mxu0 %v8581
        %v8744 = vpop.f32.mrf.mxu0
        %v8745 = vadd.f32 0.0, %v8744
        %v8746 = vpop.f32.mrf.mxu0
        %8747 = vmatprep.mubr.f32.mxu0 0.0
        %8748 = vmatmul.mubr.f32.gmra.mxu0 %v8584
        %v8749 = vpop.f32.mrf.mxu0
        %v8750 = vadd.f32 0.0, %v8749
        %v8751 = vpop.f32.mrf.mxu0
        %8752 = vmatprep.mubr.f32.mxu0 0.0
        %8753 = vmatmul.mubr.f32.gmra.mxu0 %v8587
        %v8754 = vpop.f32.mrf.mxu0
        %v8755 = vadd.f32 0.0, %v8754
        %v8756 = vpop.f32.mrf.mxu0
        %8757 = vmatprep.mubr.f32.mxu0 0.0
        %8758 = vmatmul.mubr.f32.gmra.mxu0 %v8590
        %v8759 = vpop.f32.mrf.mxu0
        %v8760 = vadd.f32 0.0, %v8759
        %v8761 = vpop.f32.mrf.mxu0
        %8762 = vmatprep.mubr.f32.mxu0 0.0
        %8763 = vmatmul.mubr.f32.gmra.mxu0 %v8593
        %v8764 = vpop.f32.mrf.mxu0
        %v8765 = vadd.f32 0.0, %v8764
        %v8766 = vpop.f32.mrf.mxu0
        %8767 = vmatprep.mubr.f32.mxu0 0.0
        %8768 = vmatmul.mubr.f32.gmra.mxu0 %v8596
        %v8769 = vpop.f32.mrf.mxu0
        %v8770 = vadd.f32 0.0, %v8769
        %v8771 = vpop.f32.mrf.mxu0
        %8772 = vmatprep.mubr.f32.mxu0 0.0
        %8773 = vmatmul.mubr.f32.gmra.mxu0 %v8599
        %v8774 = vpop.f32.mrf.mxu0
        %v8775 = vadd.f32 0.0, %v8774
        %v8776 = vpop.f32.mrf.mxu0
        %8777 = vmatprep.mubr.f32.mxu0 0.0
        %8778 = vmatmul.mubr.f32.gmra.mxu0 %v8602
        %v8779 = vpop.f32.mrf.mxu0
        %v8780 = vadd.f32 0.0, %v8779
        %v8781 = vpop.f32.mrf.mxu0
        %8782 = vmatprep.mubr.f32.mxu0 0.0
        %8783 = vmatmul.mubr.f32.gmra.mxu0 %v8605
        %v8784 = vpop.f32.mrf.mxu0
        %v8785 = vadd.f32 0.0, %v8784
        %v8786 = vpop.f32.mrf.mxu0
        %8787 = vmatprep.mubr.f32.mxu0 0.0
        %8788 = vmatmul.mubr.f32.gmra.mxu0 %v8608
        %v8789 = vpop.f32.mrf.mxu0
        %v8790 = vadd.f32 0.0, %v8789
        %v8791 = vpop.f32.mrf.mxu0
        %8792 = vmatprep.mubr.f32.mxu0 0.0
        %8793 = vmatmul.mubr.f32.gmra.mxu0 %v8611
        %v8794 = vpop.f32.mrf.mxu0
        %v8795 = vadd.f32 0.0, %v8794
        %v8796 = vpop.f32.mrf.mxu0
        %8797 = vmatprep.mubr.f32.mxu0 0.0
        %8798 = vmatmul.mubr.f32.gmra.mxu0 %v8614
        %v8799 = vpop.f32.mrf.mxu0
        %v8800 = vadd.f32 0.0, %v8799
        %v8801 = vpop.f32.mrf.mxu0
        %8802 = vmatprep.mubr.f32.mxu0 0.0
        %8803 = vmatmul.mubr.f32.gmra.mxu0 %v8617
        %v8804 = vpop.f32.mrf.mxu0
        %v8805 = vadd.f32 0.0, %v8804
        %v8806 = vpop.f32.mrf.mxu0
        %8807 = vmatprep.mubr.f32.mxu0 0.0
        %8808 = vmatmul.mubr.f32.gmra.mxu0 %v8620
        %v8809 = vpop.f32.mrf.mxu0
        %v8810 = vadd.f32 0.0, %v8809
        %v8811 = vpop.f32.mrf.mxu0
        %8812 = vmatprep.mubr.f32.mxu0 0.0
        %8813 = vmatmul.mubr.f32.gmra.mxu0 %v8623
        %v8814 = vpop.f32.mrf.mxu0
        %v8815 = vadd.f32 0.0, %v8814
        %v8816 = vpop.f32.mrf.mxu0
        %8817 = vmatprep.mubr.f32.mxu0 0.0
        %8818 = vmatmul.mubr.f32.gmra.mxu0 %v8626
        %v8819 = vpop.f32.mrf.mxu0
        %v8820 = vadd.f32 0.0, %v8819
        %v8821 = vpop.f32.mrf.mxu0
        %8822 = vmatprep.mubr.f32.mxu0 0.0
        %8823 = vmatmul.mubr.f32.gmra.mxu0 %v8629
        %v8824 = vpop.f32.mrf.mxu0
        %v8825 = vadd.f32 0.0, %v8824
        %v8826 = vpop.f32.mrf.mxu0
        %8827 = vmatprep.mubr.f32.mxu0 0.0
        %8828 = vmatmul.mubr.f32.gmra.mxu0 %v8632
        %v8829 = vpop.f32.mrf.mxu0
        %v8830 = vadd.f32 0.0, %v8829
        %v8831 = vpop.f32.mrf.mxu0
        %8832 = vmatprep.mubr.f32.mxu0 0.0
        %8833 = vmatmul.mubr.f32.gmra.mxu0 %v8635
        %v8834 = vpop.f32.mrf.mxu0
        %v8835 = vadd.f32 0.0, %v8834
        %v8836 = vpop.f32.mrf.mxu0
        %8837 = vmatprep.mubr.f32.mxu0 0.0
        %8838 = vmatmul.mubr.f32.gmra.mxu0 %v8638
        %v8839 = vpop.f32.mrf.mxu0
        %v8840 = vadd.f32 0.0, %v8839
        %v8841 = vpop.f32.mrf.mxu0
        %8842 = vmatprep.mubr.f32.mxu0 0.0
        %8843 = vmatmul.mubr.f32.gmra.mxu0 %v8641
        %v8844 = vpop.f32.mrf.mxu0
        %v8845 = vadd.f32 0.0, %v8844
        %v8846 = vpop.f32.mrf.mxu0
        %8847 = vmatprep.mubr.f32.mxu0 0.0
        %8848 = vmatmul.mubr.f32.gmra.mxu0 %v8644
        %v8849 = vpop.f32.mrf.mxu0
        %v8850 = vadd.f32 0.0, %v8849
        %v8851 = vpop.f32.mrf.mxu0
        %8852 = vmatprep.mubr.f32.mxu0 0.0
        %8853 = vmatmul.mubr.f32.gmra.mxu0 %v8647
        %v8854 = vpop.f32.mrf.mxu0
        %v8855 = vadd.f32 0.0, %v8854
        %v8856 = vpop.f32.mrf.mxu0
        %8857 = vmatprep.mubr.f32.mxu0 0.0
        %8858 = vmatmul.mubr.f32.gmra.mxu0 %v8650
        %v8859 = vpop.f32.mrf.mxu0
        %v8860 = vadd.f32 0.0, %v8859
        %v8861 = vpop.f32.mrf.mxu0
        %8862 = vmatprep.mubr.f32.mxu0 0.0
        %8863 = vmatmul.mubr.f32.gmra.mxu0 %v8653
        %v8864 = vpop.f32.mrf.mxu0
        %v8865 = vadd.f32 0.0, %v8864
        %v8866 = vpop.f32.mrf.mxu0
        %8867 = vmatprep.mubr.f32.mxu0 0.0
        %8868 = vmatmul.mubr.f32.gmra.mxu0 %v8656
        %v8869 = vpop.f32.mrf.mxu0
        %v8870 = vadd.f32 0.0, %v8869
        %v8871 = vpop.f32.mrf.mxu0
        %8872 = vmatprep.mubr.f32.mxu0 0.0
        %8873 = vmatmul.mubr.f32.gmra.mxu0 %v8659
        %v8874 = vpop.f32.mrf.mxu0
        %v8875 = vadd.f32 0.0, %v8874
        %v8876 = vpop.f32.mrf.mxu0
        %8877 = vmatprep.mubr.f32.mxu0 0.0
        %8878 = vmatmul.mubr.f32.gmra.mxu0 %v8662
        %v8879 = vpop.f32.mrf.mxu0
        %v8880 = vadd.f32 0.0, %v8879
        %v8881 = vpop.f32.mrf.mxu0
        %8882 = vmatprep.mubr.f32.mxu0 0.0
        %8883 = vmatmul.mubr.f32.gmra.mxu0 %v8665
        %v8884 = vpop.f32.mrf.mxu0
        %v8885 = vadd.f32 0.0, %v8884
        %v8886 = vpop.f32.mrf.mxu0
        %8887 = vmatprep.mubr.f32.mxu0 0.0
        %8888 = vmatmul.mubr.f32.gmra.mxu0 %v8668
        %v8889 = vpop.f32.mrf.mxu0
        %v8890 = vadd.f32 0.0, %v8889
        %v8891 = vpop.f32.mrf.mxu0
        %8892 = vmatprep.mubr.f32.mxu0 0.0
        %8893 = vmatmul.mubr.f32.gmra.mxu0 %v8671
        %v8894 = vpop.f32.mrf.mxu0
        %v8895 = vadd.f32 0.0, %v8894
        %v8896 = vpop.f32.mrf.mxu0
        %8897 = vdwg.mxu0
        %v8898 = vadd.f32 %v8508, %v8740
        %v8899 = vadd.f32 %v8509, %v8745
        %v8900 = vadd.f32 %v8510, %v8750
        %v8901 = vadd.f32 %v8511, %v8755
        %v8902 = vadd.f32 %v8512, %v8760
        %v8903 = vadd.f32 %v8513, %v8765
        %v8904 = vadd.f32 %v8514, %v8770
        %v8905 = vadd.f32 %v8515, %v8775
        %v8906 = vadd.f32 %v8516, %v8780
        %v8907 = vadd.f32 %v8517, %v8785
        %v8908 = vadd.f32 %v8518, %v8790
        %v8909 = vadd.f32 %v8519, %v8795
        %v8910 = vadd.f32 %v8520, %v8800
        %v8911 = vadd.f32 %v8521, %v8805
        %v8912 = vadd.f32 %v8522, %v8810
        %v8913 = vadd.f32 %v8523, %v8815
        %v8914 = vadd.f32 %v8524, %v8820
        %v8915 = vadd.f32 %v8525, %v8825
        %v8916 = vadd.f32 %v8526, %v8830
        %v8917 = vadd.f32 %v8527, %v8835
        %v8918 = vadd.f32 %v8528, %v8840
        %v8919 = vadd.f32 %v8529, %v8845
        %v8920 = vadd.f32 %v8530, %v8850
        %v8921 = vadd.f32 %v8531, %v8855
        %v8922 = vadd.f32 %v8532, %v8860
        %v8923 = vadd.f32 %v8533, %v8865
        %v8924 = vadd.f32 %v8534, %v8870
        %v8925 = vadd.f32 %v8535, %v8875
        %v8926 = vadd.f32 %v8536, %v8880
        %v8927 = vadd.f32 %v8537, %v8885
        %v8928 = vadd.f32 %v8538, %v8890
        %v8929 = vadd.f32 %v8539, %v8895
        %v8930 = vld [vmem:[%s392 + $0x2] sm:$0xff]
        %v8931 = vld [vmem:[%s392 + $0xa] sm:$0xff]
        %v8932 = vld [vmem:[%s392 + $0x1a] sm:$0xff]
        %v8933 = vld [vmem:[%s392 + $0x22] sm:$0xff]
        %v8934 = vld [vmem:[%s392 + $0x32] sm:$0xff]
        %v8935 = vld [vmem:[%s392 + $0x3a] sm:$0xff]
        %v8936 = vld [vmem:[%s392 + $0x4a] sm:$0xff]
        %v8937 = vld [vmem:[%s392 + $0x52] sm:$0xff]
        %v8938 = vld [vmem:[%s392 + $0x62] sm:$0xff]
        %v8939 = vld [vmem:[%s392 + $0x6a] sm:$0xff]
        %v8940 = vld [vmem:[%s392 + $0x7a] sm:$0xff]
        %v8941 = vld [vmem:[%s392 + $0x82] sm:$0xff]
        %v8942 = vld [vmem:[%s392 + $0x92] sm:$0xff]
        %v8943 = vld [vmem:[%s392 + $0x9a] sm:$0xff]
        %v8944 = vld [vmem:[%s392 + $0xaa] sm:$0xff]
        %v8945 = vld [vmem:[%s392 + $0xb2] sm:$0xff]
        %v8946 = vld [vmem:[%s392 + $0xc2] sm:$0xff]
        %v8947 = vld [vmem:[%s392 + $0xca] sm:$0xff]
        %v8948 = vld [vmem:[%s392 + $0xda] sm:$0xff]
        %v8949 = vld [vmem:[%s392 + $0xe2] sm:$0xff]
        %v8950 = vld [vmem:[%s392 + $0xf2] sm:$0xff]
        %v8951 = vld [vmem:[%s392 + $0xfa] sm:$0xff]
        %v8952 = vld [vmem:[%s392 + $0x10a] sm:$0xff]
        %v8953 = vld [vmem:[%s392 + $0x112] sm:$0xff]
        %v8954 = vld [vmem:[%s392 + $0x122] sm:$0xff]
        %v8955 = vld [vmem:[%s392 + $0x12a] sm:$0xff]
        %v8956 = vld [vmem:[%s392 + $0x13a] sm:$0xff]
        %v8957 = vld [vmem:[%s392 + $0x142] sm:$0xff]
        %v8958 = vld [vmem:[%s392 + $0x152] sm:$0xff]
        %v8959 = vld [vmem:[%s392 + $0x15a] sm:$0xff]
        %v8960 = vld [vmem:[%s392 + $0x16a] sm:$0xff]
        %v8961 = vld [vmem:[%s392 + $0x172] sm:$0xff]
        %s8962 = scalar_lea.vmem %s5, 448
        %v8963 = vld [vmem:[%s8962] sm:$0xff]
        %v8964 = vld [vmem:[%s8962 + $0x8] sm:$0xff]
        %v8965 = vld [vmem:[%s8962 + $0x10] sm:$0xff]
        %v8966 = vld [vmem:[%s8962 + $0x18] sm:$0xff]
        %v8968 = vsel %vm314, %v8930, 0
        %v8971 = vsel %vm314, %v8931, 0
        %v8974 = vsel %vm314, %v8932, 0
        %v8977 = vsel %vm314, %v8933, 0
        %v8980 = vsel %vm314, %v8934, 0
        %v8983 = vsel %vm314, %v8935, 0
        %v8986 = vsel %vm314, %v8936, 0
        %v8989 = vsel %vm314, %v8937, 0
        %v8992 = vsel %vm314, %v8938, 0
        %v8995 = vsel %vm314, %v8939, 0
        %v8998 = vsel %vm314, %v8940, 0
        %v9001 = vsel %vm314, %v8941, 0
        %v9004 = vsel %vm314, %v8942, 0
        %v9007 = vsel %vm314, %v8943, 0
        %v9010 = vsel %vm314, %v8944, 0
        %v9013 = vsel %vm314, %v8945, 0
        %v9016 = vsel %vm314, %v8946, 0
        %v9019 = vsel %vm314, %v8947, 0
        %v9022 = vsel %vm314, %v8948, 0
        %v9025 = vsel %vm314, %v8949, 0
        %v9028 = vsel %vm314, %v8950, 0
        %v9031 = vsel %vm314, %v8951, 0
        %v9034 = vsel %vm314, %v8952, 0
        %v9037 = vsel %vm314, %v8953, 0
        %v9040 = vsel %vm314, %v8954, 0
        %v9043 = vsel %vm314, %v8955, 0
        %v9046 = vsel %vm314, %v8956, 0
        %v9049 = vsel %vm314, %v8957, 0
        %v9052 = vsel %vm314, %v8958, 0
        %v9055 = vsel %vm314, %v8959, 0
        %v9058 = vsel %vm314, %v8960, 0
        %v9061 = vsel %vm314, %v8961, 0
        %9063 = vmatprep.subr.mxu0 0.0
        %9064 = vmatpush1.msra.mxu0 0.0
        %9065 = vmatprep.subr.mxu0 0.0
        %9066 = vmatpush1.msra.mxu0 0.0
        %9067 = vmatprep.subr.mxu0 0.0
        %9068 = vmatpush1.msra.mxu0 0.0
        %9069 = vmatprep.subr.mxu0 0.0
        %9070 = vmatpush1.msra.mxu0 0.0
        %9071 = vmatprep.subr.mxu0 0.0
        %9072 = vmatpush1.msra.mxu0 0.0
        %9073 = vmatprep.subr.mxu0 0.0
        %9074 = vmatpush1.msra.mxu0 0.0
        %9075 = vmatprep.subr.mxu0 0.0
        %9076 = vmatpush1.msra.mxu0 0.0
        %9077 = vmatprep.subr.mxu0 0.0
        %9078 = vmatpush1.msra.mxu0 0.0
        %9079 = vmatprep.subr.mxu0 0.0
        %9080 = vmatpush1.msra.mxu0 0.0
        %9081 = vmatprep.subr.mxu0 0.0
        %9082 = vmatpush1.msra.mxu0 0.0
        %9083 = vmatprep.subr.mxu0 0.0
        %9084 = vmatpush1.msra.mxu0 0.0
        %9085 = vmatprep.subr.mxu0 0.0
        %9086 = vmatpush1.msra.mxu0 0.0
        %9087 = vmatprep.subr.mxu0 0.0
        %9088 = vmatpush1.msra.mxu0 %v8966
        %9089 = vmatprep.subr.mxu0 0.0
        %9090 = vmatpush1.msra.mxu0 %v8965
        %9091 = vmatprep.subr.mxu0 0.0
        %9092 = vmatpush1.msra.mxu0 %v8964
        %9093 = vmatprep.subr.mxu0 0.0
        %9094 = vmatpush1.msra.mxu0 %v8963
        %9095 = vmatprep.subr.mxu0 0.0
        %9096 = vmatpush2.msra.mxu0 0.0
        %9097 = vmatprep.subr.mxu0 0.0
        %9098 = vmatpush2.msra.mxu0 0.0
        %9099 = vmatprep.subr.mxu0 0.0
        %9100 = vmatpush2.msra.mxu0 0.0
        %9101 = vmatprep.subr.mxu0 0.0
        %9102 = vmatpush2.msra.mxu0 0.0
        %9103 = vmatprep.subr.mxu0 0.0
        %9104 = vmatpush2.msra.mxu0 0.0
        %9105 = vmatprep.subr.mxu0 0.0
        %9106 = vmatpush2.msra.mxu0 0.0
        %9107 = vmatprep.subr.mxu0 0.0
        %9108 = vmatpush2.msra.mxu0 0.0
        %9109 = vmatprep.subr.mxu0 0.0
        %9110 = vmatpush2.msra.mxu0 0.0
        %9111 = vmatprep.subr.mxu0 0.0
        %9112 = vmatpush2.msra.mxu0 0.0
        %9113 = vmatprep.subr.mxu0 0.0
        %9114 = vmatpush2.msra.mxu0 0.0
        %9115 = vmatprep.subr.mxu0 0.0
        %9116 = vmatpush2.msra.mxu0 0.0
        %9117 = vmatprep.subr.mxu0 0.0
        %9118 = vmatpush2.msra.mxu0 0.0
        %9119 = vmatprep.subr.mxu0 0.0
        %9120 = vmatpush2.msra.mxu0 0.0
        %9121 = vmatprep.subr.mxu0 0.0
        %9122 = vmatpush2.msra.mxu0 0.0
        %9123 = vmatprep.subr.mxu0 0.0
        %9124 = vmatpush2.msra.mxu0 0.0
        %9125 = vmatprep.subr.mxu0 0.0
        %9126 = vmatpush2.msra.mxu0 0.0
        %9127 = vmatprep.mubr.f32.mxu0 0.0
        %9128 = vmatmul.mubr.f32.gmra.mxu0 %v8968
        %v9129 = vpop.f32.mrf.mxu0
        %v9130 = vadd.f32 0.0, %v9129
        %v9131 = vpop.f32.mrf.mxu0
        %9132 = vmatprep.mubr.f32.mxu0 0.0
        %9133 = vmatmul.mubr.f32.gmra.mxu0 %v8971
        %v9134 = vpop.f32.mrf.mxu0
        %v9135 = vadd.f32 0.0, %v9134
        %v9136 = vpop.f32.mrf.mxu0
        %9137 = vmatprep.mubr.f32.mxu0 0.0
        %9138 = vmatmul.mubr.f32.gmra.mxu0 %v8974
        %v9139 = vpop.f32.mrf.mxu0
        %v9140 = vadd.f32 0.0, %v9139
        %v9141 = vpop.f32.mrf.mxu0
        %9142 = vmatprep.mubr.f32.mxu0 0.0
        %9143 = vmatmul.mubr.f32.gmra.mxu0 %v8977
        %v9144 = vpop.f32.mrf.mxu0
        %v9145 = vadd.f32 0.0, %v9144
        %v9146 = vpop.f32.mrf.mxu0
        %9147 = vmatprep.mubr.f32.mxu0 0.0
        %9148 = vmatmul.mubr.f32.gmra.mxu0 %v8980
        %v9149 = vpop.f32.mrf.mxu0
        %v9150 = vadd.f32 0.0, %v9149
        %v9151 = vpop.f32.mrf.mxu0
        %9152 = vmatprep.mubr.f32.mxu0 0.0
        %9153 = vmatmul.mubr.f32.gmra.mxu0 %v8983
        %v9154 = vpop.f32.mrf.mxu0
        %v9155 = vadd.f32 0.0, %v9154
        %v9156 = vpop.f32.mrf.mxu0
        %9157 = vmatprep.mubr.f32.mxu0 0.0
        %9158 = vmatmul.mubr.f32.gmra.mxu0 %v8986
        %v9159 = vpop.f32.mrf.mxu0
        %v9160 = vadd.f32 0.0, %v9159
        %v9161 = vpop.f32.mrf.mxu0
        %9162 = vmatprep.mubr.f32.mxu0 0.0
        %9163 = vmatmul.mubr.f32.gmra.mxu0 %v8989
        %v9164 = vpop.f32.mrf.mxu0
        %v9165 = vadd.f32 0.0, %v9164
        %v9166 = vpop.f32.mrf.mxu0
        %9167 = vmatprep.mubr.f32.mxu0 0.0
        %9168 = vmatmul.mubr.f32.gmra.mxu0 %v8992
        %v9169 = vpop.f32.mrf.mxu0
        %v9170 = vadd.f32 0.0, %v9169
        %v9171 = vpop.f32.mrf.mxu0
        %9172 = vmatprep.mubr.f32.mxu0 0.0
        %9173 = vmatmul.mubr.f32.gmra.mxu0 %v8995
        %v9174 = vpop.f32.mrf.mxu0
        %v9175 = vadd.f32 0.0, %v9174
        %v9176 = vpop.f32.mrf.mxu0
        %9177 = vmatprep.mubr.f32.mxu0 0.0
        %9178 = vmatmul.mubr.f32.gmra.mxu0 %v8998
        %v9179 = vpop.f32.mrf.mxu0
        %v9180 = vadd.f32 0.0, %v9179
        %v9181 = vpop.f32.mrf.mxu0
        %9182 = vmatprep.mubr.f32.mxu0 0.0
        %9183 = vmatmul.mubr.f32.gmra.mxu0 %v9001
        %v9184 = vpop.f32.mrf.mxu0
        %v9185 = vadd.f32 0.0, %v9184
        %v9186 = vpop.f32.mrf.mxu0
        %9187 = vmatprep.mubr.f32.mxu0 0.0
        %9188 = vmatmul.mubr.f32.gmra.mxu0 %v9004
        %v9189 = vpop.f32.mrf.mxu0
        %v9190 = vadd.f32 0.0, %v9189
        %v9191 = vpop.f32.mrf.mxu0
        %9192 = vmatprep.mubr.f32.mxu0 0.0
        %9193 = vmatmul.mubr.f32.gmra.mxu0 %v9007
        %v9194 = vpop.f32.mrf.mxu0
        %v9195 = vadd.f32 0.0, %v9194
        %v9196 = vpop.f32.mrf.mxu0
        %9197 = vmatprep.mubr.f32.mxu0 0.0
        %9198 = vmatmul.mubr.f32.gmra.mxu0 %v9010
        %v9199 = vpop.f32.mrf.mxu0
        %v9200 = vadd.f32 0.0, %v9199
        %v9201 = vpop.f32.mrf.mxu0
        %9202 = vmatprep.mubr.f32.mxu0 0.0
        %9203 = vmatmul.mubr.f32.gmra.mxu0 %v9013
        %v9204 = vpop.f32.mrf.mxu0
        %v9205 = vadd.f32 0.0, %v9204
        %v9206 = vpop.f32.mrf.mxu0
        %9207 = vmatprep.mubr.f32.mxu0 0.0
        %9208 = vmatmul.mubr.f32.gmra.mxu0 %v9016
        %v9209 = vpop.f32.mrf.mxu0
        %v9210 = vadd.f32 0.0, %v9209
        %v9211 = vpop.f32.mrf.mxu0
        %9212 = vmatprep.mubr.f32.mxu0 0.0
        %9213 = vmatmul.mubr.f32.gmra.mxu0 %v9019
        %v9214 = vpop.f32.mrf.mxu0
        %v9215 = vadd.f32 0.0, %v9214
        %v9216 = vpop.f32.mrf.mxu0
        %9217 = vmatprep.mubr.f32.mxu0 0.0
        %9218 = vmatmul.mubr.f32.gmra.mxu0 %v9022
        %v9219 = vpop.f32.mrf.mxu0
        %v9220 = vadd.f32 0.0, %v9219
        %v9221 = vpop.f32.mrf.mxu0
        %9222 = vmatprep.mubr.f32.mxu0 0.0
        %9223 = vmatmul.mubr.f32.gmra.mxu0 %v9025
        %v9224 = vpop.f32.mrf.mxu0
        %v9225 = vadd.f32 0.0, %v9224
        %v9226 = vpop.f32.mrf.mxu0
        %9227 = vmatprep.mubr.f32.mxu0 0.0
        %9228 = vmatmul.mubr.f32.gmra.mxu0 %v9028
        %v9229 = vpop.f32.mrf.mxu0
        %v9230 = vadd.f32 0.0, %v9229
        %v9231 = vpop.f32.mrf.mxu0
        %9232 = vmatprep.mubr.f32.mxu0 0.0
        %9233 = vmatmul.mubr.f32.gmra.mxu0 %v9031
        %v9234 = vpop.f32.mrf.mxu0
        %v9235 = vadd.f32 0.0, %v9234
        %v9236 = vpop.f32.mrf.mxu0
        %9237 = vmatprep.mubr.f32.mxu0 0.0
        %9238 = vmatmul.mubr.f32.gmra.mxu0 %v9034
        %v9239 = vpop.f32.mrf.mxu0
        %v9240 = vadd.f32 0.0, %v9239
        %v9241 = vpop.f32.mrf.mxu0
        %9242 = vmatprep.mubr.f32.mxu0 0.0
        %9243 = vmatmul.mubr.f32.gmra.mxu0 %v9037
        %v9244 = vpop.f32.mrf.mxu0
        %v9245 = vadd.f32 0.0, %v9244
        %v9246 = vpop.f32.mrf.mxu0
        %9247 = vmatprep.mubr.f32.mxu0 0.0
        %9248 = vmatmul.mubr.f32.gmra.mxu0 %v9040
        %v9249 = vpop.f32.mrf.mxu0
        %v9250 = vadd.f32 0.0, %v9249
        %v9251 = vpop.f32.mrf.mxu0
        %9252 = vmatprep.mubr.f32.mxu0 0.0
        %9253 = vmatmul.mubr.f32.gmra.mxu0 %v9043
        %v9254 = vpop.f32.mrf.mxu0
        %v9255 = vadd.f32 0.0, %v9254
        %v9256 = vpop.f32.mrf.mxu0
        %9257 = vmatprep.mubr.f32.mxu0 0.0
        %9258 = vmatmul.mubr.f32.gmra.mxu0 %v9046
        %v9259 = vpop.f32.mrf.mxu0
        %v9260 = vadd.f32 0.0, %v9259
        %v9261 = vpop.f32.mrf.mxu0
        %9262 = vmatprep.mubr.f32.mxu0 0.0
        %9263 = vmatmul.mubr.f32.gmra.mxu0 %v9049
        %v9264 = vpop.f32.mrf.mxu0
        %v9265 = vadd.f32 0.0, %v9264
        %v9266 = vpop.f32.mrf.mxu0
        %9267 = vmatprep.mubr.f32.mxu0 0.0
        %9268 = vmatmul.mubr.f32.gmra.mxu0 %v9052
        %v9269 = vpop.f32.mrf.mxu0
        %v9270 = vadd.f32 0.0, %v9269
        %v9271 = vpop.f32.mrf.mxu0
        %9272 = vmatprep.mubr.f32.mxu0 0.0
        %9273 = vmatmul.mubr.f32.gmra.mxu0 %v9055
        %v9274 = vpop.f32.mrf.mxu0
        %v9275 = vadd.f32 0.0, %v9274
        %v9276 = vpop.f32.mrf.mxu0
        %9277 = vmatprep.mubr.f32.mxu0 0.0
        %9278 = vmatmul.mubr.f32.gmra.mxu0 %v9058
        %v9279 = vpop.f32.mrf.mxu0
        %v9280 = vadd.f32 0.0, %v9279
        %v9281 = vpop.f32.mrf.mxu0
        %9282 = vmatprep.mubr.f32.mxu0 0.0
        %9283 = vmatmul.mubr.f32.gmra.mxu0 %v9061
        %v9284 = vpop.f32.mrf.mxu0
        %v9285 = vadd.f32 0.0, %v9284
        %v9286 = vpop.f32.mrf.mxu0
        %9287 = vdwg.mxu0
        %v9288 = vadd.f32 %v8898, %v9130
        %v9289 = vadd.f32 %v8899, %v9135
        %v9290 = vadd.f32 %v8900, %v9140
        %v9291 = vadd.f32 %v8901, %v9145
        %v9292 = vadd.f32 %v8902, %v9150
        %v9293 = vadd.f32 %v8903, %v9155
        %v9294 = vadd.f32 %v8904, %v9160
        %v9295 = vadd.f32 %v8905, %v9165
        %v9296 = vadd.f32 %v8906, %v9170
        %v9297 = vadd.f32 %v8907, %v9175
        %v9298 = vadd.f32 %v8908, %v9180
        %v9299 = vadd.f32 %v8909, %v9185
        %v9300 = vadd.f32 %v8910, %v9190
        %v9301 = vadd.f32 %v8911, %v9195
        %v9302 = vadd.f32 %v8912, %v9200
        %v9303 = vadd.f32 %v8913, %v9205
        %v9304 = vadd.f32 %v8914, %v9210
        %v9305 = vadd.f32 %v8915, %v9215
        %v9306 = vadd.f32 %v8916, %v9220
        %v9307 = vadd.f32 %v8917, %v9225
        %v9308 = vadd.f32 %v8918, %v9230
        %v9309 = vadd.f32 %v8919, %v9235
        %v9310 = vadd.f32 %v8920, %v9240
        %v9311 = vadd.f32 %v8921, %v9245
        %v9312 = vadd.f32 %v8922, %v9250
        %v9313 = vadd.f32 %v8923, %v9255
        %v9314 = vadd.f32 %v8924, %v9260
        %v9315 = vadd.f32 %v8925, %v9265
        %v9316 = vadd.f32 %v8926, %v9270
        %v9317 = vadd.f32 %v8927, %v9275
        %v9318 = vadd.f32 %v8928, %v9280
        %v9319 = vadd.f32 %v8929, %v9285
        %v9320 = vld [vmem:[%s999] sm:$0xff]
        %v9321 = vld [vmem:[%s999 + $0x8] sm:$0xff]
        %v9322 = vld [vmem:[%s999 + $0x18] sm:$0xff]
        %v9323 = vld [vmem:[%s999 + $0x20] sm:$0xff]
        %v9324 = vld [vmem:[%s999 + $0x30] sm:$0xff]
        %v9325 = vld [vmem:[%s999 + $0x38] sm:$0xff]
        %v9326 = vld [vmem:[%s999 + $0x48] sm:$0xff]
        %v9327 = vld [vmem:[%s999 + $0x50] sm:$0xff]
        %v9328 = vld [vmem:[%s999 + $0x60] sm:$0xff]
        %v9329 = vld [vmem:[%s999 + $0x68] sm:$0xff]
        %v9330 = vld [vmem:[%s999 + $0x78] sm:$0xff]
        %v9331 = vld [vmem:[%s999 + $0x80] sm:$0xff]
        %v9332 = vld [vmem:[%s999 + $0x90] sm:$0xff]
        %v9333 = vld [vmem:[%s999 + $0x98] sm:$0xff]
        %v9334 = vld [vmem:[%s999 + $0xa8] sm:$0xff]
        %v9335 = vld [vmem:[%s999 + $0xb0] sm:$0xff]
        %v9336 = vld [vmem:[%s999 + $0xc0] sm:$0xff]
        %v9337 = vld [vmem:[%s999 + $0xc8] sm:$0xff]
        %v9338 = vld [vmem:[%s999 + $0xd8] sm:$0xff]
        %v9339 = vld [vmem:[%s999 + $0xe0] sm:$0xff]
        %v9340 = vld [vmem:[%s999 + $0xf0] sm:$0xff]
        %v9341 = vld [vmem:[%s999 + $0xf8] sm:$0xff]
        %v9342 = vld [vmem:[%s999 + $0x108] sm:$0xff]
        %v9343 = vld [vmem:[%s999 + $0x110] sm:$0xff]
        %v9344 = vld [vmem:[%s999 + $0x120] sm:$0xff]
        %v9345 = vld [vmem:[%s999 + $0x128] sm:$0xff]
        %v9346 = vld [vmem:[%s999 + $0x138] sm:$0xff]
        %v9347 = vld [vmem:[%s999 + $0x140] sm:$0xff]
        %v9348 = vld [vmem:[%s999 + $0x150] sm:$0xff]
        %v9349 = vld [vmem:[%s999 + $0x158] sm:$0xff]
        %v9350 = vld [vmem:[%s999 + $0x168] sm:$0xff]
        %v9351 = vld [vmem:[%s999 + $0x170] sm:$0xff]
        %s9352 = scalar_lea.vmem %s5, 480
        %v9353 = vld [vmem:[%s9352] sm:$0xff]
        %v9354 = vld [vmem:[%s9352 + $0x8] sm:$0xff]
        %v9355 = vld [vmem:[%s9352 + $0x10] sm:$0xff]
        %v9356 = vld [vmem:[%s9352 + $0x18] sm:$0xff]
        %v9358 = vsel %vm314, %v9320, 0
        %v9361 = vsel %vm314, %v9321, 0
        %v9364 = vsel %vm314, %v9322, 0
        %v9367 = vsel %vm314, %v9323, 0
        %v9370 = vsel %vm314, %v9324, 0
        %v9373 = vsel %vm314, %v9325, 0
        %v9376 = vsel %vm314, %v9326, 0
        %v9379 = vsel %vm314, %v9327, 0
        %v9382 = vsel %vm314, %v9328, 0
        %v9385 = vsel %vm314, %v9329, 0
        %v9388 = vsel %vm314, %v9330, 0
        %v9391 = vsel %vm314, %v9331, 0
        %v9394 = vsel %vm314, %v9332, 0
        %v9397 = vsel %vm314, %v9333, 0
        %v9400 = vsel %vm314, %v9334, 0
        %v9403 = vsel %vm314, %v9335, 0
        %v9406 = vsel %vm314, %v9336, 0
        %v9409 = vsel %vm314, %v9337, 0
        %v9412 = vsel %vm314, %v9338, 0
        %v9415 = vsel %vm314, %v9339, 0
        %v9418 = vsel %vm314, %v9340, 0
        %v9421 = vsel %vm314, %v9341, 0
        %v9424 = vsel %vm314, %v9342, 0
        %v9427 = vsel %vm314, %v9343, 0
        %v9430 = vsel %vm314, %v9344, 0
        %v9433 = vsel %vm314, %v9345, 0
        %v9436 = vsel %vm314, %v9346, 0
        %v9439 = vsel %vm314, %v9347, 0
        %v9442 = vsel %vm314, %v9348, 0
        %v9445 = vsel %vm314, %v9349, 0
        %v9448 = vsel %vm314, %v9350, 0
        %v9451 = vsel %vm314, %v9351, 0
        %9453 = vmatprep.subr.mxu0 0.0
        %9454 = vmatpush1.msra.mxu0 0.0
        %9455 = vmatprep.subr.mxu0 0.0
        %9456 = vmatpush1.msra.mxu0 0.0
        %9457 = vmatprep.subr.mxu0 0.0
        %9458 = vmatpush1.msra.mxu0 0.0
        %9459 = vmatprep.subr.mxu0 0.0
        %9460 = vmatpush1.msra.mxu0 0.0
        %9461 = vmatprep.subr.mxu0 0.0
        %9462 = vmatpush1.msra.mxu0 0.0
        %9463 = vmatprep.subr.mxu0 0.0
        %9464 = vmatpush1.msra.mxu0 0.0
        %9465 = vmatprep.subr.mxu0 0.0
        %9466 = vmatpush1.msra.mxu0 0.0
        %9467 = vmatprep.subr.mxu0 0.0
        %9468 = vmatpush1.msra.mxu0 0.0
        %9469 = vmatprep.subr.mxu0 0.0
        %9470 = vmatpush1.msra.mxu0 0.0
        %9471 = vmatprep.subr.mxu0 0.0
        %9472 = vmatpush1.msra.mxu0 0.0
        %9473 = vmatprep.subr.mxu0 0.0
        %9474 = vmatpush1.msra.mxu0 0.0
        %9475 = vmatprep.subr.mxu0 0.0
        %9476 = vmatpush1.msra.mxu0 0.0
        %9477 = vmatprep.subr.mxu0 0.0
        %9478 = vmatpush1.msra.mxu0 %v9356
        %9479 = vmatprep.subr.mxu0 0.0
        %9480 = vmatpush1.msra.mxu0 %v9355
        %9481 = vmatprep.subr.mxu0 0.0
        %9482 = vmatpush1.msra.mxu0 %v9354
        %9483 = vmatprep.subr.mxu0 0.0
        %9484 = vmatpush1.msra.mxu0 %v9353
        %9485 = vmatprep.subr.mxu0 0.0
        %9486 = vmatpush2.msra.mxu0 0.0
        %9487 = vmatprep.subr.mxu0 0.0
        %9488 = vmatpush2.msra.mxu0 0.0
        %9489 = vmatprep.subr.mxu0 0.0
        %9490 = vmatpush2.msra.mxu0 0.0
        %9491 = vmatprep.subr.mxu0 0.0
        %9492 = vmatpush2.msra.mxu0 0.0
        %9493 = vmatprep.subr.mxu0 0.0
        %9494 = vmatpush2.msra.mxu0 0.0
        %9495 = vmatprep.subr.mxu0 0.0
        %9496 = vmatpush2.msra.mxu0 0.0
        %9497 = vmatprep.subr.mxu0 0.0
        %9498 = vmatpush2.msra.mxu0 0.0
        %9499 = vmatprep.subr.mxu0 0.0
        %9500 = vmatpush2.msra.mxu0 0.0
        %9501 = vmatprep.subr.mxu0 0.0
        %9502 = vmatpush2.msra.mxu0 0.0
        %9503 = vmatprep.subr.mxu0 0.0
        %9504 = vmatpush2.msra.mxu0 0.0
        %9505 = vmatprep.subr.mxu0 0.0
        %9506 = vmatpush2.msra.mxu0 0.0
        %9507 = vmatprep.subr.mxu0 0.0
        %9508 = vmatpush2.msra.mxu0 0.0
        %9509 = vmatprep.subr.mxu0 0.0
        %9510 = vmatpush2.msra.mxu0 0.0
        %9511 = vmatprep.subr.mxu0 0.0
        %9512 = vmatpush2.msra.mxu0 0.0
        %9513 = vmatprep.subr.mxu0 0.0
        %9514 = vmatpush2.msra.mxu0 0.0
        %9515 = vmatprep.subr.mxu0 0.0
        %9516 = vmatpush2.msra.mxu0 0.0
        %9517 = vmatprep.mubr.f32.mxu0 0.0
        %9518 = vmatmul.mubr.f32.gmra.mxu0 %v9358
        %v9519 = vpop.f32.mrf.mxu0
        %v9520 = vadd.f32 0.0, %v9519
        %v9521 = vpop.f32.mrf.mxu0
        %9522 = vmatprep.mubr.f32.mxu0 0.0
        %9523 = vmatmul.mubr.f32.gmra.mxu0 %v9361
        %v9524 = vpop.f32.mrf.mxu0
        %v9525 = vadd.f32 0.0, %v9524
        %v9526 = vpop.f32.mrf.mxu0
        %9527 = vmatprep.mubr.f32.mxu0 0.0
        %9528 = vmatmul.mubr.f32.gmra.mxu0 %v9364
        %v9529 = vpop.f32.mrf.mxu0
        %v9530 = vadd.f32 0.0, %v9529
        %v9531 = vpop.f32.mrf.mxu0
        %9532 = vmatprep.mubr.f32.mxu0 0.0
        %9533 = vmatmul.mubr.f32.gmra.mxu0 %v9367
        %v9534 = vpop.f32.mrf.mxu0
        %v9535 = vadd.f32 0.0, %v9534
        %v9536 = vpop.f32.mrf.mxu0
        %9537 = vmatprep.mubr.f32.mxu0 0.0
        %9538 = vmatmul.mubr.f32.gmra.mxu0 %v9370
        %v9539 = vpop.f32.mrf.mxu0
        %v9540 = vadd.f32 0.0, %v9539
        %v9541 = vpop.f32.mrf.mxu0
        %9542 = vmatprep.mubr.f32.mxu0 0.0
        %9543 = vmatmul.mubr.f32.gmra.mxu0 %v9373
        %v9544 = vpop.f32.mrf.mxu0
        %v9545 = vadd.f32 0.0, %v9544
        %v9546 = vpop.f32.mrf.mxu0
        %9547 = vmatprep.mubr.f32.mxu0 0.0
        %9548 = vmatmul.mubr.f32.gmra.mxu0 %v9376
        %v9549 = vpop.f32.mrf.mxu0
        %v9550 = vadd.f32 0.0, %v9549
        %v9551 = vpop.f32.mrf.mxu0
        %9552 = vmatprep.mubr.f32.mxu0 0.0
        %9553 = vmatmul.mubr.f32.gmra.mxu0 %v9379
        %v9554 = vpop.f32.mrf.mxu0
        %v9555 = vadd.f32 0.0, %v9554
        %v9556 = vpop.f32.mrf.mxu0
        %9557 = vmatprep.mubr.f32.mxu0 0.0
        %9558 = vmatmul.mubr.f32.gmra.mxu0 %v9382
        %v9559 = vpop.f32.mrf.mxu0
        %v9560 = vadd.f32 0.0, %v9559
        %v9561 = vpop.f32.mrf.mxu0
        %9562 = vmatprep.mubr.f32.mxu0 0.0
        %9563 = vmatmul.mubr.f32.gmra.mxu0 %v9385
        %v9564 = vpop.f32.mrf.mxu0
        %v9565 = vadd.f32 0.0, %v9564
        %v9566 = vpop.f32.mrf.mxu0
        %9567 = vmatprep.mubr.f32.mxu0 0.0
        %9568 = vmatmul.mubr.f32.gmra.mxu0 %v9388
        %v9569 = vpop.f32.mrf.mxu0
        %v9570 = vadd.f32 0.0, %v9569
        %v9571 = vpop.f32.mrf.mxu0
        %9572 = vmatprep.mubr.f32.mxu0 0.0
        %9573 = vmatmul.mubr.f32.gmra.mxu0 %v9391
        %v9574 = vpop.f32.mrf.mxu0
        %v9575 = vadd.f32 0.0, %v9574
        %v9576 = vpop.f32.mrf.mxu0
        %9577 = vmatprep.mubr.f32.mxu0 0.0
        %9578 = vmatmul.mubr.f32.gmra.mxu0 %v9394
        %v9579 = vpop.f32.mrf.mxu0
        %v9580 = vadd.f32 0.0, %v9579
        %v9581 = vpop.f32.mrf.mxu0
        %9582 = vmatprep.mubr.f32.mxu0 0.0
        %9583 = vmatmul.mubr.f32.gmra.mxu0 %v9397
        %v9584 = vpop.f32.mrf.mxu0
        %v9585 = vadd.f32 0.0, %v9584
        %v9586 = vpop.f32.mrf.mxu0
        %9587 = vmatprep.mubr.f32.mxu0 0.0
        %9588 = vmatmul.mubr.f32.gmra.mxu0 %v9400
        %v9589 = vpop.f32.mrf.mxu0
        %v9590 = vadd.f32 0.0, %v9589
        %v9591 = vpop.f32.mrf.mxu0
        %9592 = vmatprep.mubr.f32.mxu0 0.0
        %9593 = vmatmul.mubr.f32.gmra.mxu0 %v9403
        %v9594 = vpop.f32.mrf.mxu0
        %v9595 = vadd.f32 0.0, %v9594
        %v9596 = vpop.f32.mrf.mxu0
        %9597 = vmatprep.mubr.f32.mxu0 0.0
        %9598 = vmatmul.mubr.f32.gmra.mxu0 %v9406
        %v9599 = vpop.f32.mrf.mxu0
        %v9600 = vadd.f32 0.0, %v9599
        %v9601 = vpop.f32.mrf.mxu0
        %9602 = vmatprep.mubr.f32.mxu0 0.0
        %9603 = vmatmul.mubr.f32.gmra.mxu0 %v9409
        %v9604 = vpop.f32.mrf.mxu0
        %v9605 = vadd.f32 0.0, %v9604
        %v9606 = vpop.f32.mrf.mxu0
        %9607 = vmatprep.mubr.f32.mxu0 0.0
        %9608 = vmatmul.mubr.f32.gmra.mxu0 %v9412
        %v9609 = vpop.f32.mrf.mxu0
        %v9610 = vadd.f32 0.0, %v9609
        %v9611 = vpop.f32.mrf.mxu0
        %9612 = vmatprep.mubr.f32.mxu0 0.0
        %9613 = vmatmul.mubr.f32.gmra.mxu0 %v9415
        %v9614 = vpop.f32.mrf.mxu0
        %v9615 = vadd.f32 0.0, %v9614
        %v9616 = vpop.f32.mrf.mxu0
        %9617 = vmatprep.mubr.f32.mxu0 0.0
        %9618 = vmatmul.mubr.f32.gmra.mxu0 %v9418
        %v9619 = vpop.f32.mrf.mxu0
        %v9620 = vadd.f32 0.0, %v9619
        %v9621 = vpop.f32.mrf.mxu0
        %9622 = vmatprep.mubr.f32.mxu0 0.0
        %9623 = vmatmul.mubr.f32.gmra.mxu0 %v9421
        %v9624 = vpop.f32.mrf.mxu0
        %v9625 = vadd.f32 0.0, %v9624
        %v9626 = vpop.f32.mrf.mxu0
        %9627 = vmatprep.mubr.f32.mxu0 0.0
        %9628 = vmatmul.mubr.f32.gmra.mxu0 %v9424
        %v9629 = vpop.f32.mrf.mxu0
        %v9630 = vadd.f32 0.0, %v9629
        %v9631 = vpop.f32.mrf.mxu0
        %9632 = vmatprep.mubr.f32.mxu0 0.0
        %9633 = vmatmul.mubr.f32.gmra.mxu0 %v9427
        %v9634 = vpop.f32.mrf.mxu0
        %v9635 = vadd.f32 0.0, %v9634
        %v9636 = vpop.f32.mrf.mxu0
        %9637 = vmatprep.mubr.f32.mxu0 0.0
        %9638 = vmatmul.mubr.f32.gmra.mxu0 %v9430
        %v9639 = vpop.f32.mrf.mxu0
        %v9640 = vadd.f32 0.0, %v9639
        %v9641 = vpop.f32.mrf.mxu0
        %9642 = vmatprep.mubr.f32.mxu0 0.0
        %9643 = vmatmul.mubr.f32.gmra.mxu0 %v9433
        %v9644 = vpop.f32.mrf.mxu0
        %v9645 = vadd.f32 0.0, %v9644
        %v9646 = vpop.f32.mrf.mxu0
        %9647 = vmatprep.mubr.f32.mxu0 0.0
        %9648 = vmatmul.mubr.f32.gmra.mxu0 %v9436
        %v9649 = vpop.f32.mrf.mxu0
        %v9650 = vadd.f32 0.0, %v9649
        %v9651 = vpop.f32.mrf.mxu0
        %9652 = vmatprep.mubr.f32.mxu0 0.0
        %9653 = vmatmul.mubr.f32.gmra.mxu0 %v9439
        %v9654 = vpop.f32.mrf.mxu0
        %v9655 = vadd.f32 0.0, %v9654
        %v9656 = vpop.f32.mrf.mxu0
        %9657 = vmatprep.mubr.f32.mxu0 0.0
        %9658 = vmatmul.mubr.f32.gmra.mxu0 %v9442
        %v9659 = vpop.f32.mrf.mxu0
        %v9660 = vadd.f32 0.0, %v9659
        %v9661 = vpop.f32.mrf.mxu0
        %9662 = vmatprep.mubr.f32.mxu0 0.0
        %9663 = vmatmul.mubr.f32.gmra.mxu0 %v9445
        %v9664 = vpop.f32.mrf.mxu0
        %v9665 = vadd.f32 0.0, %v9664
        %v9666 = vpop.f32.mrf.mxu0
        %9667 = vmatprep.mubr.f32.mxu0 0.0
        %9668 = vmatmul.mubr.f32.gmra.mxu0 %v9448
        %v9669 = vpop.f32.mrf.mxu0
        %v9670 = vadd.f32 0.0, %v9669
        %v9671 = vpop.f32.mrf.mxu0
        %9672 = vmatprep.mubr.f32.mxu0 0.0
        %9673 = vmatmul.mubr.f32.gmra.mxu0 %v9451
        %v9674 = vpop.f32.mrf.mxu0
        %v9675 = vadd.f32 0.0, %v9674
        %v9676 = vpop.f32.mrf.mxu0
        %9677 = vdwg.mxu0
        %v9678 = vadd.f32 %v9288, %v9520
        %v9679 = vadd.f32 %v9289, %v9525
        %v9680 = vadd.f32 %v9290, %v9530
        %v9681 = vadd.f32 %v9291, %v9535
        %v9682 = vadd.f32 %v9292, %v9540
        %v9683 = vadd.f32 %v9293, %v9545
        %v9684 = vadd.f32 %v9294, %v9550
        %v9685 = vadd.f32 %v9295, %v9555
        %v9686 = vadd.f32 %v9296, %v9560
        %v9687 = vadd.f32 %v9297, %v9565
        %v9688 = vadd.f32 %v9298, %v9570
        %v9689 = vadd.f32 %v9299, %v9575
        %v9690 = vadd.f32 %v9300, %v9580
        %v9691 = vadd.f32 %v9301, %v9585
        %v9692 = vadd.f32 %v9302, %v9590
        %v9693 = vadd.f32 %v9303, %v9595
        %v9694 = vadd.f32 %v9304, %v9600
        %v9695 = vadd.f32 %v9305, %v9605
        %v9696 = vadd.f32 %v9306, %v9610
        %v9697 = vadd.f32 %v9307, %v9615
        %v9698 = vadd.f32 %v9308, %v9620
        %v9699 = vadd.f32 %v9309, %v9625
        %v9700 = vadd.f32 %v9310, %v9630
        %v9701 = vadd.f32 %v9311, %v9635
        %v9702 = vadd.f32 %v9312, %v9640
        %v9703 = vadd.f32 %v9313, %v9645
        %v9704 = vadd.f32 %v9314, %v9650
        %v9705 = vadd.f32 %v9315, %v9655
        %v9706 = vadd.f32 %v9316, %v9660
        %v9707 = vadd.f32 %v9317, %v9665
        %v9708 = vadd.f32 %v9318, %v9670
        %v9709 = vadd.f32 %v9319, %v9675
        %v9710 = vld [vmem:[%s999 + $0x1] sm:$0xff]
        %v9711 = vld [vmem:[%s999 + $0x9] sm:$0xff]
        %v9712 = vld [vmem:[%s999 + $0x19] sm:$0xff]
        %v9713 = vld [vmem:[%s999 + $0x21] sm:$0xff]
        %v9714 = vld [vmem:[%s999 + $0x31] sm:$0xff]
        %v9715 = vld [vmem:[%s999 + $0x39] sm:$0xff]
        %v9716 = vld [vmem:[%s999 + $0x49] sm:$0xff]
        %v9717 = vld [vmem:[%s999 + $0x51] sm:$0xff]
        %v9718 = vld [vmem:[%s999 + $0x61] sm:$0xff]
        %v9719 = vld [vmem:[%s999 + $0x69] sm:$0xff]
        %v9720 = vld [vmem:[%s999 + $0x79] sm:$0xff]
        %v9721 = vld [vmem:[%s999 + $0x81] sm:$0xff]
        %v9722 = vld [vmem:[%s999 + $0x91] sm:$0xff]
        %v9723 = vld [vmem:[%s999 + $0x99] sm:$0xff]
        %v9724 = vld [vmem:[%s999 + $0xa9] sm:$0xff]
        %v9725 = vld [vmem:[%s999 + $0xb1] sm:$0xff]
        %v9726 = vld [vmem:[%s999 + $0xc1] sm:$0xff]
        %v9727 = vld [vmem:[%s999 + $0xc9] sm:$0xff]
        %v9728 = vld [vmem:[%s999 + $0xd9] sm:$0xff]
        %v9729 = vld [vmem:[%s999 + $0xe1] sm:$0xff]
        %v9730 = vld [vmem:[%s999 + $0xf1] sm:$0xff]
        %v9731 = vld [vmem:[%s999 + $0xf9] sm:$0xff]
        %v9732 = vld [vmem:[%s999 + $0x109] sm:$0xff]
        %v9733 = vld [vmem:[%s999 + $0x111] sm:$0xff]
        %v9734 = vld [vmem:[%s999 + $0x121] sm:$0xff]
        %v9735 = vld [vmem:[%s999 + $0x129] sm:$0xff]
        %v9736 = vld [vmem:[%s999 + $0x139] sm:$0xff]
        %v9737 = vld [vmem:[%s999 + $0x141] sm:$0xff]
        %v9738 = vld [vmem:[%s999 + $0x151] sm:$0xff]
        %v9739 = vld [vmem:[%s999 + $0x159] sm:$0xff]
        %v9740 = vld [vmem:[%s999 + $0x169] sm:$0xff]
        %v9741 = vld [vmem:[%s999 + $0x171] sm:$0xff]
        %s9742 = scalar_lea.vmem %s5, 512
        %v9743 = vld [vmem:[%s9742] sm:$0xff]
        %v9744 = vld [vmem:[%s9742 + $0x8] sm:$0xff]
        %v9745 = vld [vmem:[%s9742 + $0x10] sm:$0xff]
        %v9746 = vld [vmem:[%s9742 + $0x18] sm:$0xff]
        %v9748 = vsel %vm314, %v9710, 0
        %v9751 = vsel %vm314, %v9711, 0
        %v9754 = vsel %vm314, %v9712, 0
        %v9757 = vsel %vm314, %v9713, 0
        %v9760 = vsel %vm314, %v9714, 0
        %v9763 = vsel %vm314, %v9715, 0
        %v9766 = vsel %vm314, %v9716, 0
        %v9769 = vsel %vm314, %v9717, 0
        %v9772 = vsel %vm314, %v9718, 0
        %v9775 = vsel %vm314, %v9719, 0
        %v9778 = vsel %vm314, %v9720, 0
        %v9781 = vsel %vm314, %v9721, 0
        %v9784 = vsel %vm314, %v9722, 0
        %v9787 = vsel %vm314, %v9723, 0
        %v9790 = vsel %vm314, %v9724, 0
        %v9793 = vsel %vm314, %v9725, 0
        %v9796 = vsel %vm314, %v9726, 0
        %v9799 = vsel %vm314, %v9727, 0
        %v9802 = vsel %vm314, %v9728, 0
        %v9805 = vsel %vm314, %v9729, 0
        %v9808 = vsel %vm314, %v9730, 0
        %v9811 = vsel %vm314, %v9731, 0
        %v9814 = vsel %vm314, %v9732, 0
        %v9817 = vsel %vm314, %v9733, 0
        %v9820 = vsel %vm314, %v9734, 0
        %v9823 = vsel %vm314, %v9735, 0
        %v9826 = vsel %vm314, %v9736, 0
        %v9829 = vsel %vm314, %v9737, 0
        %v9832 = vsel %vm314, %v9738, 0
        %v9835 = vsel %vm314, %v9739, 0
        %v9838 = vsel %vm314, %v9740, 0
        %v9841 = vsel %vm314, %v9741, 0
        %9843 = vmatprep.subr.mxu0 0.0
        %9844 = vmatpush1.msra.mxu0 0.0
        %9845 = vmatprep.subr.mxu0 0.0
        %9846 = vmatpush1.msra.mxu0 0.0
        %9847 = vmatprep.subr.mxu0 0.0
        %9848 = vmatpush1.msra.mxu0 0.0
        %9849 = vmatprep.subr.mxu0 0.0
        %9850 = vmatpush1.msra.mxu0 0.0
        %9851 = vmatprep.subr.mxu0 0.0
        %9852 = vmatpush1.msra.mxu0 0.0
        %9853 = vmatprep.subr.mxu0 0.0
        %9854 = vmatpush1.msra.mxu0 0.0
        %9855 = vmatprep.subr.mxu0 0.0
        %9856 = vmatpush1.msra.mxu0 0.0
        %9857 = vmatprep.subr.mxu0 0.0
        %9858 = vmatpush1.msra.mxu0 0.0
        %9859 = vmatprep.subr.mxu0 0.0
        %9860 = vmatpush1.msra.mxu0 0.0
        %9861 = vmatprep.subr.mxu0 0.0
        %9862 = vmatpush1.msra.mxu0 0.0
        %9863 = vmatprep.subr.mxu0 0.0
        %9864 = vmatpush1.msra.mxu0 0.0
        %9865 = vmatprep.subr.mxu0 0.0
        %9866 = vmatpush1.msra.mxu0 0.0
        %9867 = vmatprep.subr.mxu0 0.0
        %9868 = vmatpush1.msra.mxu0 %v9746
        %9869 = vmatprep.subr.mxu0 0.0
        %9870 = vmatpush1.msra.mxu0 %v9745
        %9871 = vmatprep.subr.mxu0 0.0
        %9872 = vmatpush1.msra.mxu0 %v9744
        %9873 = vmatprep.subr.mxu0 0.0
        %9874 = vmatpush1.msra.mxu0 %v9743
        %9875 = vmatprep.subr.mxu0 0.0
        %9876 = vmatpush2.msra.mxu0 0.0
        %9877 = vmatprep.subr.mxu0 0.0
        %9878 = vmatpush2.msra.mxu0 0.0
        %9879 = vmatprep.subr.mxu0 0.0
        %9880 = vmatpush2.msra.mxu0 0.0
        %9881 = vmatprep.subr.mxu0 0.0
        %9882 = vmatpush2.msra.mxu0 0.0
        %9883 = vmatprep.subr.mxu0 0.0
        %9884 = vmatpush2.msra.mxu0 0.0
        %9885 = vmatprep.subr.mxu0 0.0
        %9886 = vmatpush2.msra.mxu0 0.0
        %9887 = vmatprep.subr.mxu0 0.0
        %9888 = vmatpush2.msra.mxu0 0.0
        %9889 = vmatprep.subr.mxu0 0.0
        %9890 = vmatpush2.msra.mxu0 0.0
        %9891 = vmatprep.subr.mxu0 0.0
        %9892 = vmatpush2.msra.mxu0 0.0
        %9893 = vmatprep.subr.mxu0 0.0
        %9894 = vmatpush2.msra.mxu0 0.0
        %9895 = vmatprep.subr.mxu0 0.0
        %9896 = vmatpush2.msra.mxu0 0.0
        %9897 = vmatprep.subr.mxu0 0.0
        %9898 = vmatpush2.msra.mxu0 0.0
        %9899 = vmatprep.subr.mxu0 0.0
        %9900 = vmatpush2.msra.mxu0 0.0
        %9901 = vmatprep.subr.mxu0 0.0
        %9902 = vmatpush2.msra.mxu0 0.0
        %9903 = vmatprep.subr.mxu0 0.0
        %9904 = vmatpush2.msra.mxu0 0.0
        %9905 = vmatprep.subr.mxu0 0.0
        %9906 = vmatpush2.msra.mxu0 0.0
        %9907 = vmatprep.mubr.f32.mxu0 0.0
        %9908 = vmatmul.mubr.f32.gmra.mxu0 %v9748
        %v9909 = vpop.f32.mrf.mxu0
        %v9910 = vadd.f32 0.0, %v9909
        %v9911 = vpop.f32.mrf.mxu0
        %9912 = vmatprep.mubr.f32.mxu0 0.0
        %9913 = vmatmul.mubr.f32.gmra.mxu0 %v9751
        %v9914 = vpop.f32.mrf.mxu0
        %v9915 = vadd.f32 0.0, %v9914
        %v9916 = vpop.f32.mrf.mxu0
        %9917 = vmatprep.mubr.f32.mxu0 0.0
        %9918 = vmatmul.mubr.f32.gmra.mxu0 %v9754
        %v9919 = vpop.f32.mrf.mxu0
        %v9920 = vadd.f32 0.0, %v9919
        %v9921 = vpop.f32.mrf.mxu0
        %9922 = vmatprep.mubr.f32.mxu0 0.0
        %9923 = vmatmul.mubr.f32.gmra.mxu0 %v9757
        %v9924 = vpop.f32.mrf.mxu0
        %v9925 = vadd.f32 0.0, %v9924
        %v9926 = vpop.f32.mrf.mxu0
        %9927 = vmatprep.mubr.f32.mxu0 0.0
        %9928 = vmatmul.mubr.f32.gmra.mxu0 %v9760
        %v9929 = vpop.f32.mrf.mxu0
        %v9930 = vadd.f32 0.0, %v9929
        %v9931 = vpop.f32.mrf.mxu0
        %9932 = vmatprep.mubr.f32.mxu0 0.0
        %9933 = vmatmul.mubr.f32.gmra.mxu0 %v9763
        %v9934 = vpop.f32.mrf.mxu0
        %v9935 = vadd.f32 0.0, %v9934
        %v9936 = vpop.f32.mrf.mxu0
        %9937 = vmatprep.mubr.f32.mxu0 0.0
        %9938 = vmatmul.mubr.f32.gmra.mxu0 %v9766
        %v9939 = vpop.f32.mrf.mxu0
        %v9940 = vadd.f32 0.0, %v9939
        %v9941 = vpop.f32.mrf.mxu0
        %9942 = vmatprep.mubr.f32.mxu0 0.0
        %9943 = vmatmul.mubr.f32.gmra.mxu0 %v9769
        %v9944 = vpop.f32.mrf.mxu0
        %v9945 = vadd.f32 0.0, %v9944
        %v9946 = vpop.f32.mrf.mxu0
        %9947 = vmatprep.mubr.f32.mxu0 0.0
        %9948 = vmatmul.mubr.f32.gmra.mxu0 %v9772
        %v9949 = vpop.f32.mrf.mxu0
        %v9950 = vadd.f32 0.0, %v9949
        %v9951 = vpop.f32.mrf.mxu0
        %9952 = vmatprep.mubr.f32.mxu0 0.0
        %9953 = vmatmul.mubr.f32.gmra.mxu0 %v9775
        %v9954 = vpop.f32.mrf.mxu0
        %v9955 = vadd.f32 0.0, %v9954
        %v9956 = vpop.f32.mrf.mxu0
        %9957 = vmatprep.mubr.f32.mxu0 0.0
        %9958 = vmatmul.mubr.f32.gmra.mxu0 %v9778
        %v9959 = vpop.f32.mrf.mxu0
        %v9960 = vadd.f32 0.0, %v9959
        %v9961 = vpop.f32.mrf.mxu0
        %9962 = vmatprep.mubr.f32.mxu0 0.0
        %9963 = vmatmul.mubr.f32.gmra.mxu0 %v9781
        %v9964 = vpop.f32.mrf.mxu0
        %v9965 = vadd.f32 0.0, %v9964
        %v9966 = vpop.f32.mrf.mxu0
        %9967 = vmatprep.mubr.f32.mxu0 0.0
        %9968 = vmatmul.mubr.f32.gmra.mxu0 %v9784
        %v9969 = vpop.f32.mrf.mxu0
        %v9970 = vadd.f32 0.0, %v9969
        %v9971 = vpop.f32.mrf.mxu0
        %9972 = vmatprep.mubr.f32.mxu0 0.0
        %9973 = vmatmul.mubr.f32.gmra.mxu0 %v9787
        %v9974 = vpop.f32.mrf.mxu0
        %v9975 = vadd.f32 0.0, %v9974
        %v9976 = vpop.f32.mrf.mxu0
        %9977 = vmatprep.mubr.f32.mxu0 0.0
        %9978 = vmatmul.mubr.f32.gmra.mxu0 %v9790
        %v9979 = vpop.f32.mrf.mxu0
        %v9980 = vadd.f32 0.0, %v9979
        %v9981 = vpop.f32.mrf.mxu0
        %9982 = vmatprep.mubr.f32.mxu0 0.0
        %9983 = vmatmul.mubr.f32.gmra.mxu0 %v9793
        %v9984 = vpop.f32.mrf.mxu0
        %v9985 = vadd.f32 0.0, %v9984
        %v9986 = vpop.f32.mrf.mxu0
        %9987 = vmatprep.mubr.f32.mxu0 0.0
        %9988 = vmatmul.mubr.f32.gmra.mxu0 %v9796
        %v9989 = vpop.f32.mrf.mxu0
        %v9990 = vadd.f32 0.0, %v9989
        %v9991 = vpop.f32.mrf.mxu0
        %9992 = vmatprep.mubr.f32.mxu0 0.0
        %9993 = vmatmul.mubr.f32.gmra.mxu0 %v9799
        %v9994 = vpop.f32.mrf.mxu0
        %v9995 = vadd.f32 0.0, %v9994
        %v9996 = vpop.f32.mrf.mxu0
        %9997 = vmatprep.mubr.f32.mxu0 0.0
        %9998 = vmatmul.mubr.f32.gmra.mxu0 %v9802
        %v9999 = vpop.f32.mrf.mxu0
        %v10000 = vadd.f32 0.0, %v9999
        %v10001 = vpop.f32.mrf.mxu0
        %10002 = vmatprep.mubr.f32.mxu0 0.0
        %10003 = vmatmul.mubr.f32.gmra.mxu0 %v9805
        %v10004 = vpop.f32.mrf.mxu0
        %v10005 = vadd.f32 0.0, %v10004
        %v10006 = vpop.f32.mrf.mxu0
        %10007 = vmatprep.mubr.f32.mxu0 0.0
        %10008 = vmatmul.mubr.f32.gmra.mxu0 %v9808
        %v10009 = vpop.f32.mrf.mxu0
        %v10010 = vadd.f32 0.0, %v10009
        %v10011 = vpop.f32.mrf.mxu0
        %10012 = vmatprep.mubr.f32.mxu0 0.0
        %10013 = vmatmul.mubr.f32.gmra.mxu0 %v9811
        %v10014 = vpop.f32.mrf.mxu0
        %v10015 = vadd.f32 0.0, %v10014
        %v10016 = vpop.f32.mrf.mxu0
        %10017 = vmatprep.mubr.f32.mxu0 0.0
        %10018 = vmatmul.mubr.f32.gmra.mxu0 %v9814
        %v10019 = vpop.f32.mrf.mxu0
        %v10020 = vadd.f32 0.0, %v10019
        %v10021 = vpop.f32.mrf.mxu0
        %10022 = vmatprep.mubr.f32.mxu0 0.0
        %10023 = vmatmul.mubr.f32.gmra.mxu0 %v9817
        %v10024 = vpop.f32.mrf.mxu0
        %v10025 = vadd.f32 0.0, %v10024
        %v10026 = vpop.f32.mrf.mxu0
        %10027 = vmatprep.mubr.f32.mxu0 0.0
        %10028 = vmatmul.mubr.f32.gmra.mxu0 %v9820
        %v10029 = vpop.f32.mrf.mxu0
        %v10030 = vadd.f32 0.0, %v10029
        %v10031 = vpop.f32.mrf.mxu0
        %10032 = vmatprep.mubr.f32.mxu0 0.0
        %10033 = vmatmul.mubr.f32.gmra.mxu0 %v9823
        %v10034 = vpop.f32.mrf.mxu0
        %v10035 = vadd.f32 0.0, %v10034
        %v10036 = vpop.f32.mrf.mxu0
        %10037 = vmatprep.mubr.f32.mxu0 0.0
        %10038 = vmatmul.mubr.f32.gmra.mxu0 %v9826
        %v10039 = vpop.f32.mrf.mxu0
        %v10040 = vadd.f32 0.0, %v10039
        %v10041 = vpop.f32.mrf.mxu0
        %10042 = vmatprep.mubr.f32.mxu0 0.0
        %10043 = vmatmul.mubr.f32.gmra.mxu0 %v9829
        %v10044 = vpop.f32.mrf.mxu0
        %v10045 = vadd.f32 0.0, %v10044
        %v10046 = vpop.f32.mrf.mxu0
        %10047 = vmatprep.mubr.f32.mxu0 0.0
        %10048 = vmatmul.mubr.f32.gmra.mxu0 %v9832
        %v10049 = vpop.f32.mrf.mxu0
        %v10050 = vadd.f32 0.0, %v10049
        %v10051 = vpop.f32.mrf.mxu0
        %10052 = vmatprep.mubr.f32.mxu0 0.0
        %10053 = vmatmul.mubr.f32.gmra.mxu0 %v9835
        %v10054 = vpop.f32.mrf.mxu0
        %v10055 = vadd.f32 0.0, %v10054
        %v10056 = vpop.f32.mrf.mxu0
        %10057 = vmatprep.mubr.f32.mxu0 0.0
        %10058 = vmatmul.mubr.f32.gmra.mxu0 %v9838
        %v10059 = vpop.f32.mrf.mxu0
        %v10060 = vadd.f32 0.0, %v10059
        %v10061 = vpop.f32.mrf.mxu0
        %10062 = vmatprep.mubr.f32.mxu0 0.0
        %10063 = vmatmul.mubr.f32.gmra.mxu0 %v9841
        %v10064 = vpop.f32.mrf.mxu0
        %v10065 = vadd.f32 0.0, %v10064
        %v10066 = vpop.f32.mrf.mxu0
        %10067 = vdwg.mxu0
        %v10068 = vadd.f32 %v9678, %v9910
        %v10069 = vadd.f32 %v9679, %v9915
        %v10070 = vadd.f32 %v9680, %v9920
        %v10071 = vadd.f32 %v9681, %v9925
        %v10072 = vadd.f32 %v9682, %v9930
        %v10073 = vadd.f32 %v9683, %v9935
        %v10074 = vadd.f32 %v9684, %v9940
        %v10075 = vadd.f32 %v9685, %v9945
        %v10076 = vadd.f32 %v9686, %v9950
        %v10077 = vadd.f32 %v9687, %v9955
        %v10078 = vadd.f32 %v9688, %v9960
        %v10079 = vadd.f32 %v9689, %v9965
        %v10080 = vadd.f32 %v9690, %v9970
        %v10081 = vadd.f32 %v9691, %v9975
        %v10082 = vadd.f32 %v9692, %v9980
        %v10083 = vadd.f32 %v9693, %v9985
        %v10084 = vadd.f32 %v9694, %v9990
        %v10085 = vadd.f32 %v9695, %v9995
        %v10086 = vadd.f32 %v9696, %v10000
        %v10087 = vadd.f32 %v9697, %v10005
        %v10088 = vadd.f32 %v9698, %v10010
        %v10089 = vadd.f32 %v9699, %v10015
        %v10090 = vadd.f32 %v9700, %v10020
        %v10091 = vadd.f32 %v9701, %v10025
        %v10092 = vadd.f32 %v9702, %v10030
        %v10093 = vadd.f32 %v9703, %v10035
        %v10094 = vadd.f32 %v9704, %v10040
        %v10095 = vadd.f32 %v9705, %v10045
        %v10096 = vadd.f32 %v9706, %v10050
        %v10097 = vadd.f32 %v9707, %v10055
        %v10098 = vadd.f32 %v9708, %v10060
        %v10099 = vadd.f32 %v9709, %v10065
        %v10100 = vld [vmem:[%s999 + $0x2] sm:$0xff]
        %v10101 = vld [vmem:[%s999 + $0xa] sm:$0xff]
        %v10102 = vld [vmem:[%s999 + $0x1a] sm:$0xff]
        %v10103 = vld [vmem:[%s999 + $0x22] sm:$0xff]
        %v10104 = vld [vmem:[%s999 + $0x32] sm:$0xff]
        %v10105 = vld [vmem:[%s999 + $0x3a] sm:$0xff]
        %v10106 = vld [vmem:[%s999 + $0x4a] sm:$0xff]
        %v10107 = vld [vmem:[%s999 + $0x52] sm:$0xff]
        %v10108 = vld [vmem:[%s999 + $0x62] sm:$0xff]
        %v10109 = vld [vmem:[%s999 + $0x6a] sm:$0xff]
        %v10110 = vld [vmem:[%s999 + $0x7a] sm:$0xff]
        %v10111 = vld [vmem:[%s999 + $0x82] sm:$0xff]
        %v10112 = vld [vmem:[%s999 + $0x92] sm:$0xff]
        %v10113 = vld [vmem:[%s999 + $0x9a] sm:$0xff]
        %v10114 = vld [vmem:[%s999 + $0xaa] sm:$0xff]
        %v10115 = vld [vmem:[%s999 + $0xb2] sm:$0xff]
        %v10116 = vld [vmem:[%s999 + $0xc2] sm:$0xff]
        %v10117 = vld [vmem:[%s999 + $0xca] sm:$0xff]
        %v10118 = vld [vmem:[%s999 + $0xda] sm:$0xff]
        %v10119 = vld [vmem:[%s999 + $0xe2] sm:$0xff]
        %v10120 = vld [vmem:[%s999 + $0xf2] sm:$0xff]
        %v10121 = vld [vmem:[%s999 + $0xfa] sm:$0xff]
        %v10122 = vld [vmem:[%s999 + $0x10a] sm:$0xff]
        %v10123 = vld [vmem:[%s999 + $0x112] sm:$0xff]
        %v10124 = vld [vmem:[%s999 + $0x122] sm:$0xff]
        %v10125 = vld [vmem:[%s999 + $0x12a] sm:$0xff]
        %v10126 = vld [vmem:[%s999 + $0x13a] sm:$0xff]
        %v10127 = vld [vmem:[%s999 + $0x142] sm:$0xff]
        %v10128 = vld [vmem:[%s999 + $0x152] sm:$0xff]
        %v10129 = vld [vmem:[%s999 + $0x15a] sm:$0xff]
        %v10130 = vld [vmem:[%s999 + $0x16a] sm:$0xff]
        %v10131 = vld [vmem:[%s999 + $0x172] sm:$0xff]
        %s10132 = scalar_lea.vmem %s5, 544
        %v10133 = vld [vmem:[%s10132] sm:$0xff]
        %v10134 = vld [vmem:[%s10132 + $0x8] sm:$0xff]
        %v10135 = vld [vmem:[%s10132 + $0x10] sm:$0xff]
        %v10136 = vld [vmem:[%s10132 + $0x18] sm:$0xff]
        %v10138 = vsel %vm314, %v10100, 0
        %v10141 = vsel %vm314, %v10101, 0
        %v10144 = vsel %vm314, %v10102, 0
        %v10147 = vsel %vm314, %v10103, 0
        %v10150 = vsel %vm314, %v10104, 0
        %v10153 = vsel %vm314, %v10105, 0
        %v10156 = vsel %vm314, %v10106, 0
        %v10159 = vsel %vm314, %v10107, 0
        %v10162 = vsel %vm314, %v10108, 0
        %v10165 = vsel %vm314, %v10109, 0
        %v10168 = vsel %vm314, %v10110, 0
        %v10171 = vsel %vm314, %v10111, 0
        %v10174 = vsel %vm314, %v10112, 0
        %v10177 = vsel %vm314, %v10113, 0
        %v10180 = vsel %vm314, %v10114, 0
        %v10183 = vsel %vm314, %v10115, 0
        %v10186 = vsel %vm314, %v10116, 0
        %v10189 = vsel %vm314, %v10117, 0
        %v10192 = vsel %vm314, %v10118, 0
        %v10195 = vsel %vm314, %v10119, 0
        %v10198 = vsel %vm314, %v10120, 0
        %v10201 = vsel %vm314, %v10121, 0
        %v10204 = vsel %vm314, %v10122, 0
        %v10207 = vsel %vm314, %v10123, 0
        %v10210 = vsel %vm314, %v10124, 0
        %v10213 = vsel %vm314, %v10125, 0
        %v10216 = vsel %vm314, %v10126, 0
        %v10219 = vsel %vm314, %v10127, 0
        %v10222 = vsel %vm314, %v10128, 0
        %v10225 = vsel %vm314, %v10129, 0
        %v10228 = vsel %vm314, %v10130, 0
        %v10231 = vsel %vm314, %v10131, 0
        %10233 = vmatprep.subr.mxu0 0.0
        %10234 = vmatpush1.msra.mxu0 0.0
        %10235 = vmatprep.subr.mxu0 0.0
        %10236 = vmatpush1.msra.mxu0 0.0
        %10237 = vmatprep.subr.mxu0 0.0
        %10238 = vmatpush1.msra.mxu0 0.0
        %10239 = vmatprep.subr.mxu0 0.0
        %10240 = vmatpush1.msra.mxu0 0.0
        %10241 = vmatprep.subr.mxu0 0.0
        %10242 = vmatpush1.msra.mxu0 0.0
        %10243 = vmatprep.subr.mxu0 0.0
        %10244 = vmatpush1.msra.mxu0 0.0
        %10245 = vmatprep.subr.mxu0 0.0
        %10246 = vmatpush1.msra.mxu0 0.0
        %10247 = vmatprep.subr.mxu0 0.0
        %10248 = vmatpush1.msra.mxu0 0.0
        %10249 = vmatprep.subr.mxu0 0.0
        %10250 = vmatpush1.msra.mxu0 0.0
        %10251 = vmatprep.subr.mxu0 0.0
        %10252 = vmatpush1.msra.mxu0 0.0
        %10253 = vmatprep.subr.mxu0 0.0
        %10254 = vmatpush1.msra.mxu0 0.0
        %10255 = vmatprep.subr.mxu0 0.0
        %10256 = vmatpush1.msra.mxu0 0.0
        %10257 = vmatprep.subr.mxu0 0.0
        %10258 = vmatpush1.msra.mxu0 %v10136
        %10259 = vmatprep.subr.mxu0 0.0
        %10260 = vmatpush1.msra.mxu0 %v10135
        %10261 = vmatprep.subr.mxu0 0.0
        %10262 = vmatpush1.msra.mxu0 %v10134
        %10263 = vmatprep.subr.mxu0 0.0
        %10264 = vmatpush1.msra.mxu0 %v10133
        %10265 = vmatprep.subr.mxu0 0.0
        %10266 = vmatpush2.msra.mxu0 0.0
        %10267 = vmatprep.subr.mxu0 0.0
        %10268 = vmatpush2.msra.mxu0 0.0
        %10269 = vmatprep.subr.mxu0 0.0
        %10270 = vmatpush2.msra.mxu0 0.0
        %10271 = vmatprep.subr.mxu0 0.0
        %10272 = vmatpush2.msra.mxu0 0.0
        %10273 = vmatprep.subr.mxu0 0.0
        %10274 = vmatpush2.msra.mxu0 0.0
        %10275 = vmatprep.subr.mxu0 0.0
        %10276 = vmatpush2.msra.mxu0 0.0
        %10277 = vmatprep.subr.mxu0 0.0
        %10278 = vmatpush2.msra.mxu0 0.0
        %10279 = vmatprep.subr.mxu0 0.0
        %10280 = vmatpush2.msra.mxu0 0.0
        %10281 = vmatprep.subr.mxu0 0.0
        %10282 = vmatpush2.msra.mxu0 0.0
        %10283 = vmatprep.subr.mxu0 0.0
        %10284 = vmatpush2.msra.mxu0 0.0
        %10285 = vmatprep.subr.mxu0 0.0
        %10286 = vmatpush2.msra.mxu0 0.0
        %10287 = vmatprep.subr.mxu0 0.0
        %10288 = vmatpush2.msra.mxu0 0.0
        %10289 = vmatprep.subr.mxu0 0.0
        %10290 = vmatpush2.msra.mxu0 0.0
        %10291 = vmatprep.subr.mxu0 0.0
        %10292 = vmatpush2.msra.mxu0 0.0
        %10293 = vmatprep.subr.mxu0 0.0
        %10294 = vmatpush2.msra.mxu0 0.0
        %10295 = vmatprep.subr.mxu0 0.0
        %10296 = vmatpush2.msra.mxu0 0.0
        %10297 = vmatprep.mubr.f32.mxu0 0.0
        %10298 = vmatmul.mubr.f32.gmra.mxu0 %v10138
        %v10299 = vpop.f32.mrf.mxu0
        %v10300 = vadd.f32 0.0, %v10299
        %v10301 = vpop.f32.mrf.mxu0
        %10302 = vmatprep.mubr.f32.mxu0 0.0
        %10303 = vmatmul.mubr.f32.gmra.mxu0 %v10141
        %v10304 = vpop.f32.mrf.mxu0
        %v10305 = vadd.f32 0.0, %v10304
        %v10306 = vpop.f32.mrf.mxu0
        %10307 = vmatprep.mubr.f32.mxu0 0.0
        %10308 = vmatmul.mubr.f32.gmra.mxu0 %v10144
        %v10309 = vpop.f32.mrf.mxu0
        %v10310 = vadd.f32 0.0, %v10309
        %v10311 = vpop.f32.mrf.mxu0
        %10312 = vmatprep.mubr.f32.mxu0 0.0
        %10313 = vmatmul.mubr.f32.gmra.mxu0 %v10147
        %v10314 = vpop.f32.mrf.mxu0
        %v10315 = vadd.f32 0.0, %v10314
        %v10316 = vpop.f32.mrf.mxu0
        %10317 = vmatprep.mubr.f32.mxu0 0.0
        %10318 = vmatmul.mubr.f32.gmra.mxu0 %v10150
        %v10319 = vpop.f32.mrf.mxu0
        %v10320 = vadd.f32 0.0, %v10319
        %v10321 = vpop.f32.mrf.mxu0
        %10322 = vmatprep.mubr.f32.mxu0 0.0
        %10323 = vmatmul.mubr.f32.gmra.mxu0 %v10153
        %v10324 = vpop.f32.mrf.mxu0
        %v10325 = vadd.f32 0.0, %v10324
        %v10326 = vpop.f32.mrf.mxu0
        %10327 = vmatprep.mubr.f32.mxu0 0.0
        %10328 = vmatmul.mubr.f32.gmra.mxu0 %v10156
        %v10329 = vpop.f32.mrf.mxu0
        %v10330 = vadd.f32 0.0, %v10329
        %v10331 = vpop.f32.mrf.mxu0
        %10332 = vmatprep.mubr.f32.mxu0 0.0
        %10333 = vmatmul.mubr.f32.gmra.mxu0 %v10159
        %v10334 = vpop.f32.mrf.mxu0
        %v10335 = vadd.f32 0.0, %v10334
        %v10336 = vpop.f32.mrf.mxu0
        %10337 = vmatprep.mubr.f32.mxu0 0.0
        %10338 = vmatmul.mubr.f32.gmra.mxu0 %v10162
        %v10339 = vpop.f32.mrf.mxu0
        %v10340 = vadd.f32 0.0, %v10339
        %v10341 = vpop.f32.mrf.mxu0
        %10342 = vmatprep.mubr.f32.mxu0 0.0
        %10343 = vmatmul.mubr.f32.gmra.mxu0 %v10165
        %v10344 = vpop.f32.mrf.mxu0
        %v10345 = vadd.f32 0.0, %v10344
        %v10346 = vpop.f32.mrf.mxu0
        %10347 = vmatprep.mubr.f32.mxu0 0.0
        %10348 = vmatmul.mubr.f32.gmra.mxu0 %v10168
        %v10349 = vpop.f32.mrf.mxu0
        %v10350 = vadd.f32 0.0, %v10349
        %v10351 = vpop.f32.mrf.mxu0
        %10352 = vmatprep.mubr.f32.mxu0 0.0
        %10353 = vmatmul.mubr.f32.gmra.mxu0 %v10171
        %v10354 = vpop.f32.mrf.mxu0
        %v10355 = vadd.f32 0.0, %v10354
        %v10356 = vpop.f32.mrf.mxu0
        %10357 = vmatprep.mubr.f32.mxu0 0.0
        %10358 = vmatmul.mubr.f32.gmra.mxu0 %v10174
        %v10359 = vpop.f32.mrf.mxu0
        %v10360 = vadd.f32 0.0, %v10359
        %v10361 = vpop.f32.mrf.mxu0
        %10362 = vmatprep.mubr.f32.mxu0 0.0
        %10363 = vmatmul.mubr.f32.gmra.mxu0 %v10177
        %v10364 = vpop.f32.mrf.mxu0
        %v10365 = vadd.f32 0.0, %v10364
        %v10366 = vpop.f32.mrf.mxu0
        %10367 = vmatprep.mubr.f32.mxu0 0.0
        %10368 = vmatmul.mubr.f32.gmra.mxu0 %v10180
        %v10369 = vpop.f32.mrf.mxu0
        %v10370 = vadd.f32 0.0, %v10369
        %v10371 = vpop.f32.mrf.mxu0
        %10372 = vmatprep.mubr.f32.mxu0 0.0
        %10373 = vmatmul.mubr.f32.gmra.mxu0 %v10183
        %v10374 = vpop.f32.mrf.mxu0
        %v10375 = vadd.f32 0.0, %v10374
        %v10376 = vpop.f32.mrf.mxu0
        %10377 = vmatprep.mubr.f32.mxu0 0.0
        %10378 = vmatmul.mubr.f32.gmra.mxu0 %v10186
        %v10379 = vpop.f32.mrf.mxu0
        %v10380 = vadd.f32 0.0, %v10379
        %v10381 = vpop.f32.mrf.mxu0
        %10382 = vmatprep.mubr.f32.mxu0 0.0
        %10383 = vmatmul.mubr.f32.gmra.mxu0 %v10189
        %v10384 = vpop.f32.mrf.mxu0
        %v10385 = vadd.f32 0.0, %v10384
        %v10386 = vpop.f32.mrf.mxu0
        %10387 = vmatprep.mubr.f32.mxu0 0.0
        %10388 = vmatmul.mubr.f32.gmra.mxu0 %v10192
        %v10389 = vpop.f32.mrf.mxu0
        %v10390 = vadd.f32 0.0, %v10389
        %v10391 = vpop.f32.mrf.mxu0
        %10392 = vmatprep.mubr.f32.mxu0 0.0
        %10393 = vmatmul.mubr.f32.gmra.mxu0 %v10195
        %v10394 = vpop.f32.mrf.mxu0
        %v10395 = vadd.f32 0.0, %v10394
        %v10396 = vpop.f32.mrf.mxu0
        %10397 = vmatprep.mubr.f32.mxu0 0.0
        %10398 = vmatmul.mubr.f32.gmra.mxu0 %v10198
        %v10399 = vpop.f32.mrf.mxu0
        %v10400 = vadd.f32 0.0, %v10399
        %v10401 = vpop.f32.mrf.mxu0
        %10402 = vmatprep.mubr.f32.mxu0 0.0
        %10403 = vmatmul.mubr.f32.gmra.mxu0 %v10201
        %v10404 = vpop.f32.mrf.mxu0
        %v10405 = vadd.f32 0.0, %v10404
        %v10406 = vpop.f32.mrf.mxu0
        %10407 = vmatprep.mubr.f32.mxu0 0.0
        %10408 = vmatmul.mubr.f32.gmra.mxu0 %v10204
        %v10409 = vpop.f32.mrf.mxu0
        %v10410 = vadd.f32 0.0, %v10409
        %v10411 = vpop.f32.mrf.mxu0
        %10412 = vmatprep.mubr.f32.mxu0 0.0
        %10413 = vmatmul.mubr.f32.gmra.mxu0 %v10207
        %v10414 = vpop.f32.mrf.mxu0
        %v10415 = vadd.f32 0.0, %v10414
        %v10416 = vpop.f32.mrf.mxu0
        %10417 = vmatprep.mubr.f32.mxu0 0.0
        %10418 = vmatmul.mubr.f32.gmra.mxu0 %v10210
        %v10419 = vpop.f32.mrf.mxu0
        %v10420 = vadd.f32 0.0, %v10419
        %v10421 = vpop.f32.mrf.mxu0
        %10422 = vmatprep.mubr.f32.mxu0 0.0
        %10423 = vmatmul.mubr.f32.gmra.mxu0 %v10213
        %v10424 = vpop.f32.mrf.mxu0
        %v10425 = vadd.f32 0.0, %v10424
        %v10426 = vpop.f32.mrf.mxu0
        %10427 = vmatprep.mubr.f32.mxu0 0.0
        %10428 = vmatmul.mubr.f32.gmra.mxu0 %v10216
        %v10429 = vpop.f32.mrf.mxu0
        %v10430 = vadd.f32 0.0, %v10429
        %v10431 = vpop.f32.mrf.mxu0
        %10432 = vmatprep.mubr.f32.mxu0 0.0
        %10433 = vmatmul.mubr.f32.gmra.mxu0 %v10219
        %v10434 = vpop.f32.mrf.mxu0
        %v10435 = vadd.f32 0.0, %v10434
        %v10436 = vpop.f32.mrf.mxu0
        %10437 = vmatprep.mubr.f32.mxu0 0.0
        %10438 = vmatmul.mubr.f32.gmra.mxu0 %v10222
        %v10439 = vpop.f32.mrf.mxu0
        %v10440 = vadd.f32 0.0, %v10439
        %v10441 = vpop.f32.mrf.mxu0
        %10442 = vmatprep.mubr.f32.mxu0 0.0
        %10443 = vmatmul.mubr.f32.gmra.mxu0 %v10225
        %v10444 = vpop.f32.mrf.mxu0
        %v10445 = vadd.f32 0.0, %v10444
        %v10446 = vpop.f32.mrf.mxu0
        %10447 = vmatprep.mubr.f32.mxu0 0.0
        %10448 = vmatmul.mubr.f32.gmra.mxu0 %v10228
        %v10449 = vpop.f32.mrf.mxu0
        %v10450 = vadd.f32 0.0, %v10449
        %v10451 = vpop.f32.mrf.mxu0
        %10452 = vmatprep.mubr.f32.mxu0 0.0
        %10453 = vmatmul.mubr.f32.gmra.mxu0 %v10231
        %v10454 = vpop.f32.mrf.mxu0
        %v10455 = vadd.f32 0.0, %v10454
        %v10456 = vpop.f32.mrf.mxu0
        %10457 = vdwg.mxu0
        %v10458 = vadd.f32 %v10068, %v10300
        %v10459 = vadd.f32 %v10069, %v10305
        %v10460 = vadd.f32 %v10070, %v10310
        %v10461 = vadd.f32 %v10071, %v10315
        %v10462 = vadd.f32 %v10072, %v10320
        %v10463 = vadd.f32 %v10073, %v10325
        %v10464 = vadd.f32 %v10074, %v10330
        %v10465 = vadd.f32 %v10075, %v10335
        %v10466 = vadd.f32 %v10076, %v10340
        %v10467 = vadd.f32 %v10077, %v10345
        %v10468 = vadd.f32 %v10078, %v10350
        %v10469 = vadd.f32 %v10079, %v10355
        %v10470 = vadd.f32 %v10080, %v10360
        %v10471 = vadd.f32 %v10081, %v10365
        %v10472 = vadd.f32 %v10082, %v10370
        %v10473 = vadd.f32 %v10083, %v10375
        %v10474 = vadd.f32 %v10084, %v10380
        %v10475 = vadd.f32 %v10085, %v10385
        %v10476 = vadd.f32 %v10086, %v10390
        %v10477 = vadd.f32 %v10087, %v10395
        %v10478 = vadd.f32 %v10088, %v10400
        %v10479 = vadd.f32 %v10089, %v10405
        %v10480 = vadd.f32 %v10090, %v10410
        %v10481 = vadd.f32 %v10091, %v10415
        %v10482 = vadd.f32 %v10092, %v10420
        %v10483 = vadd.f32 %v10093, %v10425
        %v10484 = vadd.f32 %v10094, %v10430
        %v10485 = vadd.f32 %v10095, %v10435
        %v10486 = vadd.f32 %v10096, %v10440
        %v10487 = vadd.f32 %v10097, %v10445
        %v10488 = vadd.f32 %v10098, %v10450
        %v10489 = vadd.f32 %v10099, %v10455
        %s10490 = scalar_lea.vmem %s6, 1
        %v10491 = vld [vmem:[%s10490] sm:$0x1]
        %v10493 = vlaneseq
        %v10494 = vshrl.u32 %v10493, 7
        %v10495 = vsub.s32 0, %v10494
        %v10496 = vrot.slane %v10491, %v10495
        %v10498 = vadd.f32 %v10458, %v10496
        %v10499 = vadd.f32 %v10459, %v10496
        %v10500 = vadd.f32 %v10460, %v10496
        %v10501 = vadd.f32 %v10461, %v10496
        %v10502 = vadd.f32 %v10462, %v10496
        %v10503 = vadd.f32 %v10463, %v10496
        %v10504 = vadd.f32 %v10464, %v10496
        %v10505 = vadd.f32 %v10465, %v10496
        %v10506 = vadd.f32 %v10466, %v10496
        %v10507 = vadd.f32 %v10467, %v10496
        %v10508 = vadd.f32 %v10468, %v10496
        %v10509 = vadd.f32 %v10469, %v10496
        %v10510 = vadd.f32 %v10470, %v10496
        %v10511 = vadd.f32 %v10471, %v10496
        %v10512 = vadd.f32 %v10472, %v10496
        %v10513 = vadd.f32 %v10473, %v10496
        %v10514 = vadd.f32 %v10474, %v10496
        %v10515 = vadd.f32 %v10475, %v10496
        %v10516 = vadd.f32 %v10476, %v10496
        %v10517 = vadd.f32 %v10477, %v10496
        %v10518 = vadd.f32 %v10478, %v10496
        %v10519 = vadd.f32 %v10479, %v10496
        %v10520 = vadd.f32 %v10480, %v10496
        %v10521 = vadd.f32 %v10481, %v10496
        %v10522 = vadd.f32 %v10482, %v10496
        %v10523 = vadd.f32 %v10483, %v10496
        %v10524 = vadd.f32 %v10484, %v10496
        %v10525 = vadd.f32 %v10485, %v10496
        %v10526 = vadd.f32 %v10486, %v10496
        %v10527 = vadd.f32 %v10487, %v10496
        %v10528 = vadd.f32 %v10488, %v10496
        %v10529 = vadd.f32 %v10489, %v10496
        %v10530 = vld [vmem:[%s304] sm:$0xff]
        %v10531 = vld [vmem:[%s304 + $0x8] sm:$0xff]
        %v10532 = vld [vmem:[%s304 + $0x10] sm:$0xff]
        %v10533 = vld [vmem:[%s304 + $0x18] sm:$0xff]
        %v10534 = vld [vmem:[%s304 + $0x20] sm:$0xff]
        %v10535 = vld [vmem:[%s304 + $0x28] sm:$0xff]
        %v10536 = vld [vmem:[%s304 + $0x30] sm:$0xff]
        %v10537 = vld [vmem:[%s304 + $0x38] sm:$0xff]
        %v10538 = vld [vmem:[%s304 + $0x40] sm:$0xff]
        %v10539 = vld [vmem:[%s304 + $0x48] sm:$0xff]
        %v10540 = vld [vmem:[%s304 + $0x50] sm:$0xff]
        %v10541 = vld [vmem:[%s304 + $0x58] sm:$0xff]
        %v10542 = vld [vmem:[%s304 + $0x60] sm:$0xff]
        %v10543 = vld [vmem:[%s304 + $0x68] sm:$0xff]
        %v10544 = vld [vmem:[%s304 + $0x70] sm:$0xff]
        %v10545 = vld [vmem:[%s304 + $0x78] sm:$0xff]
        %v10546 = vld [vmem:[%s304 + $0x80] sm:$0xff]
        %v10547 = vld [vmem:[%s304 + $0x88] sm:$0xff]
        %v10548 = vld [vmem:[%s304 + $0x90] sm:$0xff]
        %v10549 = vld [vmem:[%s304 + $0x98] sm:$0xff]
        %v10550 = vld [vmem:[%s304 + $0xa0] sm:$0xff]
        %v10551 = vld [vmem:[%s304 + $0xa8] sm:$0xff]
        %v10552 = vld [vmem:[%s304 + $0xb0] sm:$0xff]
        %v10553 = vld [vmem:[%s304 + $0xb8] sm:$0xff]
        %v10554 = vld [vmem:[%s304 + $0xc0] sm:$0xff]
        %v10555 = vld [vmem:[%s304 + $0xc8] sm:$0xff]
        %v10556 = vld [vmem:[%s304 + $0xd0] sm:$0xff]
        %v10557 = vld [vmem:[%s304 + $0xd8] sm:$0xff]
        %v10558 = vld [vmem:[%s304 + $0xe0] sm:$0xff]
        %v10559 = vld [vmem:[%s304 + $0xe8] sm:$0xff]
        %v10560 = vld [vmem:[%s304 + $0xf0] sm:$0xff]
        %v10561 = vld [vmem:[%s304 + $0xf8] sm:$0xff]
        %v10562 = vadd.f32 %v10498, %v10530
        %v10563 = vadd.f32 %v10499, %v10531
        %v10564 = vadd.f32 %v10500, %v10532
        %v10565 = vadd.f32 %v10501, %v10533
        %v10566 = vadd.f32 %v10502, %v10534
        %v10567 = vadd.f32 %v10503, %v10535
        %v10568 = vadd.f32 %v10504, %v10536
        %v10569 = vadd.f32 %v10505, %v10537
        %v10570 = vadd.f32 %v10506, %v10538
        %v10571 = vadd.f32 %v10507, %v10539
        %v10572 = vadd.f32 %v10508, %v10540
        %v10573 = vadd.f32 %v10509, %v10541
        %v10574 = vadd.f32 %v10510, %v10542
        %v10575 = vadd.f32 %v10511, %v10543
        %v10576 = vadd.f32 %v10512, %v10544
        %v10577 = vadd.f32 %v10513, %v10545
        %v10578 = vadd.f32 %v10514, %v10546
        %v10579 = vadd.f32 %v10515, %v10547
        %v10580 = vadd.f32 %v10516, %v10548
        %v10581 = vadd.f32 %v10517, %v10549
        %v10582 = vadd.f32 %v10518, %v10550
        %v10583 = vadd.f32 %v10519, %v10551
        %v10584 = vadd.f32 %v10520, %v10552
        %v10585 = vadd.f32 %v10521, %v10553
        %v10586 = vadd.f32 %v10522, %v10554
        %v10587 = vadd.f32 %v10523, %v10555
        %v10588 = vadd.f32 %v10524, %v10556
        %v10589 = vadd.f32 %v10525, %v10557
        %v10590 = vadd.f32 %v10526, %v10558
        %v10591 = vadd.f32 %v10527, %v10559
        %v10592 = vadd.f32 %v10528, %v10560
        %v10593 = vadd.f32 %v10529, %v10561
        %10594 = vst.msk [vmem:[%s299] sm:$0xff] %vm314, %v10562
        %10595 = vst.msk [vmem:[%s299 + $0x8] sm:$0xff] %vm314, %v10563
        %10596 = vst.msk [vmem:[%s299 + $0x10] sm:$0xff] %vm314, %v10564
        %10597 = vst.msk [vmem:[%s299 + $0x18] sm:$0xff] %vm314, %v10565
        %10598 = vst.msk [vmem:[%s299 + $0x20] sm:$0xff] %vm314, %v10566
        %10599 = vst.msk [vmem:[%s299 + $0x28] sm:$0xff] %vm314, %v10567
        %10600 = vst.msk [vmem:[%s299 + $0x30] sm:$0xff] %vm314, %v10568
        %10601 = vst.msk [vmem:[%s299 + $0x38] sm:$0xff] %vm314, %v10569
        %10602 = vst.msk [vmem:[%s299 + $0x40] sm:$0xff] %vm314, %v10570
        %10603 = vst.msk [vmem:[%s299 + $0x48] sm:$0xff] %vm314, %v10571
        %10604 = vst.msk [vmem:[%s299 + $0x50] sm:$0xff] %vm314, %v10572
        %10605 = vst.msk [vmem:[%s299 + $0x58] sm:$0xff] %vm314, %v10573
        %10606 = vst.msk [vmem:[%s299 + $0x60] sm:$0xff] %vm314, %v10574
        %10607 = vst.msk [vmem:[%s299 + $0x68] sm:$0xff] %vm314, %v10575
        %10608 = vst.msk [vmem:[%s299 + $0x70] sm:$0xff] %vm314, %v10576
        %10609 = vst.msk [vmem:[%s299 + $0x78] sm:$0xff] %vm314, %v10577
        %10610 = vst.msk [vmem:[%s299 + $0x80] sm:$0xff] %vm314, %v10578
        %10611 = vst.msk [vmem:[%s299 + $0x88] sm:$0xff] %vm314, %v10579
        %10612 = vst.msk [vmem:[%s299 + $0x90] sm:$0xff] %vm314, %v10580
        %10613 = vst.msk [vmem:[%s299 + $0x98] sm:$0xff] %vm314, %v10581
        %10614 = vst.msk [vmem:[%s299 + $0xa0] sm:$0xff] %vm314, %v10582
        %10615 = vst.msk [vmem:[%s299 + $0xa8] sm:$0xff] %vm314, %v10583
        %10616 = vst.msk [vmem:[%s299 + $0xb0] sm:$0xff] %vm314, %v10584
        %10617 = vst.msk [vmem:[%s299 + $0xb8] sm:$0xff] %vm314, %v10585
        %10618 = vst.msk [vmem:[%s299 + $0xc0] sm:$0xff] %vm314, %v10586
        %10619 = vst.msk [vmem:[%s299 + $0xc8] sm:$0xff] %vm314, %v10587
        %10620 = vst.msk [vmem:[%s299 + $0xd0] sm:$0xff] %vm314, %v10588
        %10621 = vst.msk [vmem:[%s299 + $0xd8] sm:$0xff] %vm314, %v10589
        %10622 = vst.msk [vmem:[%s299 + $0xe0] sm:$0xff] %vm314, %v10590
        %10623 = vst.msk [vmem:[%s299 + $0xe8] sm:$0xff] %vm314, %v10591
        %10624 = vst.msk [vmem:[%s299 + $0xf0] sm:$0xff] %vm314, %v10592
        %10625 = vst.msk [vmem:[%s299 + $0xf8] sm:$0xff] %vm314, %v10593
        %s10626 = sand.u32 %s191, 1
        %s10627 = scalar_lea.sflag [#allocation4], %s10626
        %s10628 = sand.u32 %s191, 1
        %s10629 = smul.addr %s10628, 256
        %s10630 = scalar_lea.vmem [#allocation3], %s10629
        // Predicated region
        $region49: #{dab_forward.1} parent=47 // pred_check
          %p10631 = pneg %p201
        $region50: #{dab_forward.1} parent=47 // pred_check_branch
          %10633 = sbr.rel (%p10631) target = $region52
        $region51: #{dab_forward.1} parent=47 // pred_region
          %s10635 = ssub.s32 4096, 4096
          %10636 = vsyncadd %s10627, %s10635
          %s10637 = smul.addr %s21, 32
          %s10638 = smul.addr %s10637, 128
          %s10639 = scalar_lea.hbm %s7, %s10638
          %s10640 = sshll.u32 %s10630, 4
          %s10641 = int_to_ptr.vmem [resolvable:$true] %s10640
          %10646 = dma.vmem_to_hbm [thread:$0]  %s10641, 4096, %s10639, %s10627, 128, 128, 8
        $region52: #{dab_forward.1} parent=47 // pred_fallthru
          _
      $region48: #{dab_forward.1} parent=5 // pred_fallthru
        _
      %p10647 = scmp.le.s32.totalorder 2, %s16
      // Predicated region
      $region53: #{dab_forward.1} parent=5 // pred_check
        %p10648 = pneg %p10647
      $region54: #{dab_forward.1} parent=5 // pred_check_branch
        %10650 = sbr.rel (%p10648) target = $region56
      $region55: #{dab_forward.1} parent=5 // pred_region
        %s10651 = ssub.s32 %s16, 2
        // Predicated region
        $region57: #{dab_forward.1} parent=55 // pred_check
          %p10652 = pneg %p207
        $region58: #{dab_forward.1} parent=55 // pred_check_branch
          %10654 = sbr.rel (%p10652) target = $region60
        $region59: #{dab_forward.1} parent=55 // pred_region
          %s10655 = sand.u32 %s192, 1
          %s10656 = scalar_lea.sflag [#allocation4], %s10655
          %s10657 = sand.u32 %s192, 1
          %s10658 = smul.addr %s10657, 256
          %s10659 = scalar_lea.vmem [#allocation3], %s10658
          %10660 = dma.done %s10656, 4096
        $region60: #{dab_forward.1} parent=55 // pred_fallthru
          _
      $region56: #{dab_forward.1} parent=5 // pred_fallthru
        _
    $region6: #{dab_forward.1} parent=1 // loop_footer
      %s20 = sadd.s32 1, %s16
    $region7: #{dab_forward.1} parent=1 // loop_footer_branch
      %15 = sbr.rel target = $region3
    $region8: #{dab_forward.1} parent=1 // loop_exit
      _
    %10661 = vsyncpa [#allocation4], 1
    %s10662 = scalar_lea.sflag [#allocation4], 1
    %10663 = vsyncpa %s10662, 1

</llo_original>
